<compile_context>
chip_gen: v7x
topology: tpu7x:2x2x1
jax: 0.10.0
libtpu: 0.0.40
codegen_flags: <defaults>
</compile_context>

<pallas_src>
import functools
import math

import jax
import jax.numpy as jnp
from jax.experimental import pallas as pl
from jax.experimental.pallas import tpu as pltpu


def _vmem_limit_bytes():
    """Per-generation scoped-VMEM budget (v7x: 64 MiB physical, v5e/v6e: 128 MiB)."""
    cap = 64 * 1024 * 1024
    try:
        info = pltpu.get_tpu_info()
        cap = int(getattr(info, "vmem_capacity_bytes", cap) or cap)
    except Exception:
        pass
    return min((cap * 3) // 5, 100 * 1024 * 1024)


_VMEM_LIMIT = _vmem_limit_bytes()


def _row_tile(dim, pref=512):
    """Largest multiple-of-128 tile <= pref that divides dim, else the full dim
    (a full-extent block is always a legal BlockSpec)."""
    t = min(pref, dim)
    t = (t // 128) * 128
    while t >= 128:
        if dim % t == 0:
            return t
        t -= 128
    return dim


# --------------------------------------------------------------------------
# Embedding LayerNorm (positional add fused in), tiled over (batch, seq)
# --------------------------------------------------------------------------

def _emb_ln_kernel(x_ref, p_ref, g_ref, b_ref, o_ref, *, eps):
    x = x_ref[0].astype(jnp.float32) + p_ref[...].astype(jnp.float32)   # [tl, E]
    mu = jnp.mean(x, axis=-1, keepdims=True)
    var = jnp.mean((x - mu) * (x - mu), axis=-1, keepdims=True)
    y = (x - mu) * jax.lax.rsqrt(var + eps)
    o_ref[0] = (y * g_ref[...].astype(jnp.float32)
                + b_ref[...].astype(jnp.float32)).astype(o_ref.dtype)


def embed_layernorm(x, pos, gamma, beta, eps=1e-12, out_dtype=jnp.bfloat16):
    """x: [B, L, E] bf16 gathered word embeddings, pos: [L, E] bf16."""
    B, L, E = x.shape
    tl = _row_tile(L, 512)
    return pl.pallas_call(
        functools.partial(_emb_ln_kernel, eps=eps),
        out_shape=jax.ShapeDtypeStruct((B, L, E), out_dtype),
        grid=(B, L // tl),
        in_specs=[
            pl.BlockSpec((1, tl, E), lambda b, l: (b, l, 0)),
            pl.BlockSpec((tl, E), lambda b, l: (l, 0)),
            pl.BlockSpec((1, E), lambda b, l: (0, 0)),
            pl.BlockSpec((1, E), lambda b, l: (0, 0)),
        ],
        out_specs=pl.BlockSpec((1, tl, E), lambda b, l: (b, l, 0)),
        compiler_params=pltpu.CompilerParams(
            dimension_semantics=("parallel", "parallel"),
            vmem_limit_bytes=_VMEM_LIMIT),
    )(x, pos, gamma, beta)


# --------------------------------------------------------------------------
# Fused attention sub-layer: QKV proj + softmax + context + output proj
# accumulated over heads + residual + LayerNorm, grid=(batch, head)
# --------------------------------------------------------------------------

def _attn_block_kernel(h_ref, wq_ref, wk_ref, wv_ref, bq_ref, bk_ref, bv_ref,
                       wo_ref, bo_ref, g_ref, b_ref, bias_ref,
                       o_ref, acc_ref, *, scale, eps):
    # TODO(synk): for L >~ 1k (especially v7x's 64 MiB VMEM) switch to a
    # kv-tiled flash-style online softmax so the [L, L] score block never
    # materializes.
    hi = pl.program_id(1)

    @pl.when(hi == 0)
    def _():
        acc_ref[...] = jnp.zeros_like(acc_ref)

    x = h_ref[0]                                                       # [L, E] bf16
    q = (jnp.dot(x, wq_ref[0], preferred_element_type=jnp.float32)
         + bq_ref[0].astype(jnp.float32)).astype(jnp.bfloat16)         # [L, Dh]
    k = (jnp.dot(x, wk_ref[0], preferred_element_type=jnp.float32)
         + bk_ref[0].astype(jnp.float32)).astype(jnp.bfloat16)
    v = (jnp.dot(x, wv_ref[0], preferred_element_type=jnp.float32)
         + bv_ref[0].astype(jnp.float32)).astype(jnp.bfloat16)

    s = jax.lax.dot_general(q, k, (((1,), (1,)), ((), ())),
                            preferred_element_type=jnp.float32) * scale
    s = s + bias_ref[0]                                                # mask padded keys
    m = jnp.max(s, axis=-1, keepdims=True)
    e = jnp.exp(s - m)
    p = e * pl.reciprocal(jnp.sum(e, axis=-1, keepdims=True), approx=True)
    ctx = jnp.dot(p.astype(jnp.bfloat16), v,
                  preferred_element_type=jnp.float32)                  # [L, Dh]
    # sum_h ctx_h @ Wo_h == concat_h(ctx_h) @ Wo  (no concatenate, no lane slicing)
    acc_ref[...] += jnp.dot(ctx.astype(jnp.bfloat16), wo_ref[0],
                            preferred_element_type=jnp.float32)        # [L, E]

    @pl.when(hi == pl.num_programs(1) - 1)
    def _():
        y = (acc_ref[...] + bo_ref[...].astype(jnp.float32)
             + x.astype(jnp.float32))                                  # residual
        mu = jnp.mean(y, axis=-1, keepdims=True)
        var = jnp.mean((y - mu) * (y - mu), axis=-1, keepdims=True)
        yn = (y - mu) * jax.lax.rsqrt(var + eps)
        o_ref[0] = (yn * g_ref[...].astype(jnp.float32)
                    + b_ref[...].astype(jnp.float32)).astype(o_ref.dtype)


def attention_block(h, lp, mask_bias, eps=1e-12):
    """h: [B, L, E] bf16 -> LayerNorm(h + MHA(h)): [B, L, E] bf16."""
    B, L, E = h.shape
    H, _, Dh = lp["wq"].shape
    return pl.pallas_call(
        functools.partial(_attn_block_kernel,
                          scale=1.0 / math.sqrt(Dh), eps=eps),
        out_shape=jax.ShapeDtypeStruct((B, L, E), jnp.bfloat16),
        grid=(B, H),
        in_specs=[
            pl.BlockSpec((1, L, E), lambda b, hh: (b, 0, 0)),   # resident across heads
            pl.BlockSpec((1, E, Dh), lambda b, hh: (hh, 0, 0)),
            pl.BlockSpec((1, E, Dh), lambda b, hh: (hh, 0, 0)),
            pl.BlockSpec((1, E, Dh), lambda b, hh: (hh, 0, 0)),
            pl.BlockSpec((1, 1, Dh), lambda b, hh: (hh, 0, 0)),
            pl.BlockSpec((1, 1, Dh), lambda b, hh: (hh, 0, 0)),
            pl.BlockSpec((1, 1, Dh), lambda b, hh: (hh, 0, 0)),
            pl.BlockSpec((1, Dh, E), lambda b, hh: (hh, 0, 0)),
            pl.BlockSpec((1, E), lambda b, hh: (0, 0)),
            pl.BlockSpec((1, E), lambda b, hh: (0, 0)),
            pl.BlockSpec((1, E), lambda b, hh: (0, 0)),
            pl.BlockSpec((1, 1, L), lambda b, hh: (b, 0, 0)),
        ],
        out_specs=pl.BlockSpec((1, L, E), lambda b, hh: (b, 0, 0)),
        scratch_shapes=[pltpu.VMEM((L, E), jnp.float32)],
        compiler_params=pltpu.CompilerParams(
            dimension_semantics=("parallel", "arbitrary"),
            vmem_limit_bytes=_VMEM_LIMIT),
    )(h, lp["wq"], lp["wk"], lp["wv"], lp["bq"], lp["bk"], lp["bv"],
      lp["wo"], lp["bo"], lp["ln1_g"], lp["ln1_b"], mask_bias)


# --------------------------------------------------------------------------
# Fused FFN sub-layer: x@W1 + GELU + @W2 + residual + LayerNorm (weights resident)
# --------------------------------------------------------------------------

def _ffn_block_kernel(x_ref, w1_ref, b1_ref, w2_ref, b2_ref, g_ref, b_ref,
                      o_ref, *, eps):
    x = x_ref[...]                                                     # [tm, E] bf16
    t = (jnp.dot(x, w1_ref[...], preferred_element_type=jnp.float32)
         + b1_ref[...].astype(jnp.float32))                            # [tm, F] f32
    # TODO(synk): HF BERT uses exact erf-GELU; tanh approximation kept here.
    t = jax.nn.gelu(t, approximate=True)
    y = (jnp.dot(t.astype(jnp.bfloat16), w2_ref[...],
                 preferred_element_type=jnp.float32)
         + b2_ref[...].astype(jnp.float32)
         + x.astype(jnp.float32))                                      # residual
    mu = jnp.mean(y, axis=-1, keepdims=True)
    var = jnp.mean((y - mu) * (y - mu), axis=-1, keepdims=True)
    yn = (y - mu) * jax.lax.rsqrt(var + eps)
    o_ref[...] = (yn * g_ref[...].astype(jnp.float32)
                  + b_ref[...].astype(jnp.float32)).astype(o_ref.dtype)


def ffn_block(x, lp, eps=1e-12, tm_pref=512):
    """x: [M, E] bf16 -> LayerNorm(x + GELU(x@W1+b1)@W2+b2): [M, E] bf16."""
    M, E = x.shape
    F = lp["w1"].shape[1]
    tm = _row_tile(M, tm_pref)
    return pl.pallas_call(
        functools.partial(_ffn_block_kernel, eps=eps),
        out_shape=jax.ShapeDtypeStruct((M, E), jnp.bfloat16),
        grid=(M // tm,),
        in_specs=[
            pl.BlockSpec((tm, E), lambda i: (i, 0)),
            pl.BlockSpec((E, F), lambda i: (0, 0)),    # constant index -> VMEM-resident
            pl.BlockSpec((1, F), lambda i: (0, 0)),
            pl.BlockSpec((F, E), lambda i: (0, 0)),    # constant index -> VMEM-resident
            pl.BlockSpec((1, E), lambda i: (0, 0)),
            pl.BlockSpec((1, E), lambda i: (0, 0)),
            pl.BlockSpec((1, E), lambda i: (0, 0)),
        ],
        out_specs=pl.BlockSpec((tm, E), lambda i: (i, 0)),
        compiler_params=pltpu.CompilerParams(
            dimension_semantics=("parallel",),
            vmem_limit_bytes=_VMEM_LIMIT),
    )(x, lp["w1"], lp["b1"], lp["w2"], lp["b2"], lp["ln2_g"], lp["ln2_b"])


# --------------------------------------------------------------------------
# Masked-mean pooling + L2 normalize, several batch rows per grid step
# --------------------------------------------------------------------------

def _pool_norm_kernel(x_ref, m_ref, o_ref):
    x = x_ref[...].astype(jnp.float32)                         # [TB, L, E]
    m = m_ref[...].astype(jnp.float32)                         # [TB, 1, L]
    summed = jnp.einsum("bql,ble->bqe", m, x,
                        preferred_element_type=jnp.float32)    # [TB, 1, E]
    count = jnp.maximum(jnp.sum(m, axis=2, keepdims=True), 1e-9)
    mean = (summed * pl.reciprocal(count, approx=True))[:, 0, :]   # [TB, E]
    # torch.nn.functional.normalize(p=2, dim=1, eps=1e-12)
    norm = jnp.sqrt(jnp.sum(mean * mean, axis=-1, keepdims=True))
    o_ref[...] = mean / jnp.maximum(norm, 1e-12)


def pool_and_normalize(hidden, mask3, tb_pref=8):
    """hidden: [B, L, E] bf16, mask3: [B, 1, L] f32 -> [B, E] f32 L2-normalized."""
    B, L, E = hidden.shape
    if B <= tb_pref:
        tb = B
    elif B % 8 == 0:
        tb = 8
    else:
        tb = B
    return pl.pallas_call(
        _pool_norm_kernel,
        out_shape=jax.ShapeDtypeStruct((B, E), jnp.float32),
        grid=(B // tb,),
        in_specs=[
            pl.BlockSpec((tb, L, E), lambda i: (i, 0, 0)),
            pl.BlockSpec((tb, 1, L), lambda i: (i, 0, 0)),
        ],
        out_specs=pl.BlockSpec((tb, E), lambda i: (i, 0)),
        compiler_params=pltpu.CompilerParams(
            dimension_semantics=("parallel",),
            vmem_limit_bytes=_VMEM_LIMIT),
    )(hidden, mask3)


# --------------------------------------------------------------------------
# Model glue (embedding gather, free reshapes) in plain JAX
# --------------------------------------------------------------------------

def language_encoder_forward(params, input_ids, attention_mask):
    """Synthetic SentenceTransformer forward: L2-normalized sentence embeddings
    [B, E] (output_value='sentence_embedding', normalize_embeddings=True,
    freeze=True eval path; TextMasking(mask_prob=0.0) is identity)."""
    B, L = input_ids.shape
    E = params["word_emb"].shape[1]
    # Token-id gather stays in plain JAX (data dependent); bf16 halves its bandwidth.
    gathered = params["word_emb"][input_ids]                          # [B, L, E] bf16
    h = embed_layernorm(gathered, params["pos_emb"][:L],
                        params["emb_ln_g"], params["emb_ln_b"])       # [B, L, E] bf16
    mask = attention_mask.astype(jnp.float32)
    mask_bias = ((1.0 - mask) * (-1e9)).reshape(B, 1, L)              # additive key mask
    for lp in params["layers"]:
        h = attention_block(h, lp, mask_bias)                         # fused qkv+attn+Wo+res+LN
        h = ffn_block(h.reshape(B * L, E), lp).reshape(B, L, E)       # fused ffn+res+LN
    return pool_and_normalize(h, mask.reshape(B, 1, L))


def init_params(key, vocab, max_len, E, F, n_layers, n_heads):
    Dh = E // n_heads
    scale = 0.02
    keys = jax.random.split(key, 2 + n_layers)
    params = {
        "word_emb": (jax.random.normal(keys[0], (vocab, E)) * scale).astype(jnp.bfloat16),
        "pos_emb": (jax.random.normal(keys[1], (max_len, E)) * scale).astype(jnp.bfloat16),
        "emb_ln_g": jnp.ones((1, E), jnp.float32),
        "emb_ln_b": jnp.zeros((1, E), jnp.float32),
        "layers": [],
    }
    for li in range(n_layers):
        lk = jax.random.split(keys[2 + li], 6)
        layer = {
            # Per-head projections [H, E, Dh]; output projection split per head [H, Dh, E].
            "wq": (jax.random.normal(lk[0], (n_heads, E, Dh)) * scale).astype(jnp.bfloat16),
            "wk": (jax.random.normal(lk[1], (n_heads, E, Dh)) * scale).astype(jnp.bfloat16),
            "wv": (jax.random.normal(lk[2], (n_heads, E, Dh)) * scale).astype(jnp.bfloat16),
            "bq": jnp.zeros((n_heads, 1, Dh), jnp.float32),
            "bk": jnp.zeros((n_heads, 1, Dh), jnp.float32),
            "bv": jnp.zeros((n_heads, 1, Dh), jnp.float32),
            "wo": (jax.random.normal(lk[3], (n_heads, Dh, E)) * scale).astype(jnp.bfloat16),
            "bo": jnp.zeros((1, E), jnp.float32),
            "ln1_g": jnp.ones((1, E), jnp.float32),
            "ln1_b": jnp.zeros((1, E), jnp.float32),
            "w1": (jax.random.normal(lk[4], (E, F)) * scale).astype(jnp.bfloat16),
            "b1": jnp.zeros((1, F), jnp.float32),
            "w2": (jax.random.normal(lk[5], (F, E)) * scale).astype(jnp.bfloat16),
            "b2": jnp.zeros((1, E), jnp.float32),
            "ln2_g": jnp.ones((1, E), jnp.float32),
            "ln2_b": jnp.zeros((1, E), jnp.float32),
        }
        params["layers"].append(layer)
    return params


# TODO(synk): string tokenization, disk pickle cache, pretrained checkpoint load
# and random TextMasking (mask_prob defaults to 0.0 == identity) have no Pallas
# equivalent and are omitted; inputs are synthetic token ids + attention mask.

if __name__ == "__main__":
    # Lane-aligned small config: B=2, L=128, E=128 (2 heads x 64), FFN=512, 2 layers.
    B, L, E, H, F, N_LAYERS, VOCAB = 2, 128, 128, 2, 512, 2, 256

    root = jax.random.PRNGKey(0)
    kp, kids = jax.random.split(root)
    params = init_params(kp, VOCAB, L, E, F, N_LAYERS, H)

    input_ids = jax.random.randint(kids, (B, L), 1, VOCAB, dtype=jnp.int32)
    # second sequence has 32 padding tokens (mask == 0, id == 0)
    lengths = jnp.array([L, L - 32], dtype=jnp.int32)
    attention_mask = (jnp.arange(L)[None, :] < lengths[:, None]).astype(jnp.float32)
    input_ids = jnp.where(attention_mask > 0, input_ids, 0).astype(jnp.int32)

    fwd = jax.jit(language_encoder_forward)
    emb = fwd(params, input_ids, attention_mask)
    emb = jax.block_until_ready(emb)

    assert emb.shape == (B, E), emb.shape
    assert bool(jnp.all(jnp.isfinite(emb)))
    norms = jnp.linalg.norm(emb, axis=1)
    assert bool(jnp.allclose(norms, 1.0, atol=1e-4)), norms

    print("KERNEL_OK")
</pallas_src>

<mosaic_0001>
module attributes {stable_mosaic.version = 11 : i64} {
  func.func @_emb_ln_kernel(%arg0: i32, %arg1: i32, %arg2: memref<1x128x128xbf16, #tpu.memory_space<vmem>>, %arg3: memref<128x128xbf16, #tpu.memory_space<vmem>>, %arg4: memref<1x128xf32, #tpu.memory_space<vmem>>, %arg5: memref<1x128xf32, #tpu.memory_space<vmem>>, %arg6: memref<1x128x128xbf16, #tpu.memory_space<vmem>>) attributes {dimension_semantics = [#tpu.dimension_semantics<parallel>, #tpu.dimension_semantics<parallel>], iteration_bounds = array<i64: 2, 1>, scalar_prefetch = 0 : i64, scratch_operands = 0 : i64, tpu.core_type = #tpu.core_type<tc>, window_params = [{transform_indices = @transform_0, window_bounds = array<i64: 1, 128, 128>}, {transform_indices = @transform_1, window_bounds = array<i64: 128, 128>}, {pipeline_mode = #tpu.pipeline_mode<synchronous>, transform_indices = @transform_2, window_bounds = array<i64: 1, 128>}, {pipeline_mode = #tpu.pipeline_mode<synchronous>, transform_indices = @transform_3, window_bounds = array<i64: 1, 128>}, {transform_indices = @transform_4, window_bounds = array<i64: 1, 128, 128>}]} {
    %c0 = arith.constant 0 : index
    %c0_0 = arith.constant 0 : index
    %c0_1 = arith.constant 0 : index
    %0 = vector.load %arg2[%c0, %c0_0, %c0_1] : memref<1x128x128xbf16, #tpu.memory_space<vmem>>, vector<1x128x128xbf16>
    %1 = vector.shape_cast %0 : vector<1x128x128xbf16> to vector<128x128xbf16>
    %2 = arith.extf %1 : vector<128x128xbf16> to vector<128x128xf32>
    %c0_2 = arith.constant 0 : index
    %c0_3 = arith.constant 0 : index
    %3 = vector.load %arg3[%c0_2, %c0_3] : memref<128x128xbf16, #tpu.memory_space<vmem>>, vector<128x128xbf16>
    %4 = arith.extf %3 : vector<128x128xbf16> to vector<128x128xf32>
    %5 = arith.addf %2, %4 : vector<128x128xf32>
    %cst = arith.constant dense<0.000000e+00> : vector<128xf32>
    %6 = vector.multi_reduction <add>, %5, %cst [1] : vector<128x128xf32> to vector<128xf32>
    %7 = vector.shape_cast %6 : vector<128xf32> to vector<128x1xf32>
    %cst_4 = arith.constant 1.280000e+02 : f32
    %8 = vector.broadcast %cst_4 : f32 to vector<128x1xf32>
    %9 = arith.divf %7, %8 : vector<128x1xf32>
    %10 = vector.broadcast %9 : vector<128x1xf32> to vector<128x128xf32>
    %11 = arith.subf %5, %10 : vector<128x128xf32>
    %12 = vector.broadcast %9 : vector<128x1xf32> to vector<128x128xf32>
    %13 = arith.subf %5, %12 : vector<128x128xf32>
    %14 = arith.mulf %11, %13 : vector<128x128xf32>
    %cst_5 = arith.constant dense<0.000000e+00> : vector<128xf32>
    %15 = vector.multi_reduction <add>, %14, %cst_5 [1] : vector<128x128xf32> to vector<128xf32>
    %16 = vector.shape_cast %15 : vector<128xf32> to vector<128x1xf32>
    %cst_6 = arith.constant 1.280000e+02 : f32
    %17 = vector.broadcast %cst_6 : f32 to vector<128x1xf32>
    %18 = arith.divf %16, %17 : vector<128x1xf32>
    %19 = vector.broadcast %9 : vector<128x1xf32> to vector<128x128xf32>
    %20 = arith.subf %5, %19 : vector<128x128xf32>
    %cst_7 = arith.constant 9.99999996E-13 : f32
    %21 = vector.broadcast %cst_7 : f32 to vector<128x1xf32>
    %22 = arith.addf %18, %21 : vector<128x1xf32>
    %23 = math.rsqrt %22 : vector<128x1xf32>
    %24 = vector.broadcast %23 : vector<128x1xf32> to vector<128x128xf32>
    %25 = arith.mulf %20, %24 : vector<128x128xf32>
    %c0_8 = arith.constant 0 : index
    %c0_9 = arith.constant 0 : index
    %26 = vector.load %arg4[%c0_8, %c0_9] : memref<1x128xf32, #tpu.memory_space<vmem>>, vector<1x128xf32>
    %27 = vector.broadcast %26 : vector<1x128xf32> to vector<128x128xf32>
    %28 = arith.mulf %25, %27 : vector<128x128xf32>
    %c0_10 = arith.constant 0 : index
    %c0_11 = arith.constant 0 : index
    %29 = vector.load %arg5[%c0_10, %c0_11] : memref<1x128xf32, #tpu.memory_space<vmem>>, vector<1x128xf32>
    %30 = vector.broadcast %29 : vector<1x128xf32> to vector<128x128xf32>
    %31 = arith.addf %28, %30 : vector<128x128xf32>
    %32 = arith.truncf %31 : vector<128x128xf32> to vector<128x128xbf16>
    %c0_12 = arith.constant 0 : index
    %c0_13 = arith.constant 0 : index
    %c0_14 = arith.constant 0 : index
    %33 = vector.load %arg6[%c0_12, %c0_13, %c0_14] : memref<1x128x128xbf16, #tpu.memory_space<vmem>>, vector<1x128x128xbf16>
    %34 = vector.shape_cast %33 : vector<1x128x128xbf16> to vector<128x128xbf16>
    %35 = vector.shape_cast %32 : vector<128x128xbf16> to vector<1x128x128xbf16>
    tpu.vector_store %arg6[%c0_12, %c0_13, %c0_14], %35 {strides = array<i32>} : memref<1x128x128xbf16, #tpu.memory_space<vmem>>, vector<1x128x128xbf16>,
    return
  }
  func.func @transform_0(%arg0: i32, %arg1: i32) -> (i32, i32, i32) {
    %c0_i32 = arith.constant 0 : i32
    %c0_i32_0 = arith.constant 0 : i32
    return %arg0, %arg1, %c0_i32 : i32, i32, i32
  }
  func.func @transform_1(%arg0: i32, %arg1: i32) -> (i32, i32) {
    %c0_i32 = arith.constant 0 : i32
    %c0_i32_0 = arith.constant 0 : i32
    return %arg1, %c0_i32 : i32, i32
  }
  func.func @transform_2(%arg0: i32, %arg1: i32) -> (i32, i32) {
    %c0_i32 = arith.constant 0 : i32
    %c0_i32_0 = arith.constant 0 : i32
    %c0_i32_1 = arith.constant 0 : i32
    return %c0_i32, %c0_i32_0 : i32, i32
  }
  func.func @transform_3(%arg0: i32, %arg1: i32) -> (i32, i32) {
    %c0_i32 = arith.constant 0 : i32
    %c0_i32_0 = arith.constant 0 : i32
    %c0_i32_1 = arith.constant 0 : i32
    return %c0_i32, %c0_i32_0 : i32, i32
  }
  func.func @transform_4(%arg0: i32, %arg1: i32) -> (i32, i32, i32) {
    %c0_i32 = arith.constant 0 : i32
    %c0_i32_0 = arith.constant 0 : i32
    return %arg0, %arg1, %c0_i32 : i32, i32, i32
  }
}

module attributes {stable_mosaic.version = 11 : i64} {
  func.func @_attn_block_kernel(%arg0: i32, %arg1: i32, %arg2: memref<1x128x128xbf16, #tpu.memory_space<vmem>>, %arg3: memref<1x128x64xbf16, #tpu.memory_space<vmem>>, %arg4: memref<1x128x64xbf16, #tpu.memory_space<vmem>>, %arg5: memref<1x128x64xbf16, #tpu.memory_space<vmem>>, %arg6: memref<1x1x64xf32, #tpu.memory_space<vmem>>, %arg7: memref<1x1x64xf32, #tpu.memory_space<vmem>>, %arg8: memref<1x1x64xf32, #tpu.memory_space<vmem>>, %arg9: memref<1x64x128xbf16, #tpu.memory_space<vmem>>, %arg10: memref<1x128xf32, #tpu.memory_space<vmem>>, %arg11: memref<1x128xf32, #tpu.memory_space<vmem>>, %arg12: memref<1x128xf32, #tpu.memory_space<vmem>>, %arg13: memref<1x1x128xf32, #tpu.memory_space<vmem>>, %arg14: memref<1x128x128xbf16, #tpu.memory_space<vmem>>, %arg15: memref<128x128xf32, #tpu.memory_space<vmem>>) attributes {dimension_semantics = [#tpu.dimension_semantics<parallel>, #tpu.dimension_semantics<arbitrary>], iteration_bounds = array<i64: 2, 2>, scalar_prefetch = 0 : i64, scratch_operands = 1 : i64, tpu.core_type = #tpu.core_type<tc>, window_params = [{transform_indices = @transform_0, window_bounds = array<i64: 1, 128, 128>}, {transform_indices = @transform_1, window_bounds = array<i64: 1, 128, 64>}, {transform_indices = @transform_2, window_bounds = array<i64: 1, 128, 64>}, {transform_indices = @transform_3, window_bounds = array<i64: 1, 128, 64>}, {transform_indices = @transform_4, window_bounds = array<i64: 1, 1, 64>}, {transform_indices = @transform_5, window_bounds = array<i64: 1, 1, 64>}, {transform_indices = @transform_6, window_bounds = array<i64: 1, 1, 64>}, {transform_indices = @transform_7, window_bounds = array<i64: 1, 64, 128>}, {pipeline_mode = #tpu.pipeline_mode<synchronous>, transform_indices = @transform_8, window_bounds = array<i64: 1, 128>}, {pipeline_mode = #tpu.pipeline_mode<synchronous>, transform_indices = @transform_9, window_bounds = array<i64: 1, 128>}, {pipeline_mode = #tpu.pipeline_mode<synchronous>, transform_indices = @transform_10, window_bounds = array<i64: 1, 128>}, {transform_indices = @transform_11, window_bounds = array<i64: 1, 1, 128>}, {transform_indices = @transform_12, window_bounds = array<i64: 1, 128, 128>}]} {
    %c0_i32 = arith.constant 0 : i32
    %0 = arith.cmpi eq, %arg1, %c0_i32 : i32
    %1 = arith.extui %0 : i1 to i32
    %c0_i32_0 = arith.constant 0 : i32
    %2 = arith.cmpi ne, %1, %c0_i32_0 : i32
    scf.if %2 {
      %cst_40 = arith.constant 0.000000e+00 : f32
      %58 = vector.broadcast %cst_40 : f32 to vector<128x128xf32>
      %c0_41 = arith.constant 0 : index
      %c0_42 = arith.constant 0 : index
      %59 = vector.load %arg15[%c0_41, %c0_42] : memref<128x128xf32, #tpu.memory_space<vmem>>, vector<128x128xf32>
      tpu.vector_store %arg15[%c0_41, %c0_42], %58 {strides = array<i32>} : memref<128x128xf32, #tpu.memory_space<vmem>>, vector<128x128xf32>,
    } else {
    }
    %c0 = arith.constant 0 : index
    %c0_1 = arith.constant 0 : index
    %c0_2 = arith.constant 0 : index
    %3 = vector.load %arg2[%c0, %c0_1, %c0_2] : memref<1x128x128xbf16, #tpu.memory_space<vmem>>, vector<1x128x128xbf16>
    %4 = vector.shape_cast %3 : vector<1x128x128xbf16> to vector<128x128xbf16>
    %c0_3 = arith.constant 0 : index
    %c0_4 = arith.constant 0 : index
    %c0_5 = arith.constant 0 : index
    %5 = vector.load %arg3[%c0_3, %c0_4, %c0_5] : memref<1x128x64xbf16, #tpu.memory_space<vmem>>, vector<1x128x64xbf16>
    %6 = vector.shape_cast %5 : vector<1x128x64xbf16> to vector<128x64xbf16>
    %cst = arith.constant dense<0.000000e+00> : vector<128x64xf32>
    %7 = tpu.matmul %4, %6, %cst {dimension_numbers = #tpu.dot_dimension_numbers<[1], [0], [0], [1], [0, 0, 1, 1], [], []>} : vector<128x128xbf16>, vector<128x64xbf16>, vector<128x64xf32> -> vector<128x64xf32>
    %c0_6 = arith.constant 0 : index
    %c0_7 = arith.constant 0 : index
    %c0_8 = arith.constant 0 : index
    %8 = vector.load %arg6[%c0_6, %c0_7, %c0_8] : memref<1x1x64xf32, #tpu.memory_space<vmem>>, vector<1x1x64xf32>
    %9 = vector.shape_cast %8 : vector<1x1x64xf32> to vector<1x64xf32>
    %10 = vector.broadcast %9 : vector<1x64xf32> to vector<128x64xf32>
    %11 = arith.addf %7, %10 : vector<128x64xf32>
    %12 = arith.truncf %11 : vector<128x64xf32> to vector<128x64xbf16>
    %c0_9 = arith.constant 0 : index
    %c0_10 = arith.constant 0 : index
    %c0_11 = arith.constant 0 : index
    %13 = vector.load %arg4[%c0_9, %c0_10, %c0_11] : memref<1x128x64xbf16, #tpu.memory_space<vmem>>, vector<1x128x64xbf16>
    %14 = vector.shape_cast %13 : vector<1x128x64xbf16> to vector<128x64xbf16>
    %cst_12 = arith.constant dense<0.000000e+00> : vector<128x64xf32>
    %15 = tpu.matmul %4, %14, %cst_12 {dimension_numbers = #tpu.dot_dimension_numbers<[1], [0], [0], [1], [0, 0, 1, 1], [], []>} : vector<128x128xbf16>, vector<128x64xbf16>, vector<128x64xf32> -> vector<128x64xf32>
    %c0_13 = arith.constant 0 : index
    %c0_14 = arith.constant 0 : index
    %c0_15 = arith.constant 0 : index
    %16 = vector.load %arg7[%c0_13, %c0_14, %c0_15] : memref<1x1x64xf32, #tpu.memory_space<vmem>>, vector<1x1x64xf32>
    %17 = vector.shape_cast %16 : vector<1x1x64xf32> to vector<1x64xf32>
    %18 = vector.broadcast %17 : vector<1x64xf32> to vector<128x64xf32>
    %19 = arith.addf %15, %18 : vector<128x64xf32>
    %20 = arith.truncf %19 : vector<128x64xf32> to vector<128x64xbf16>
    %c0_16 = arith.constant 0 : index
    %c0_17 = arith.constant 0 : index
    %c0_18 = arith.constant 0 : index
    %21 = vector.load %arg5[%c0_16, %c0_17, %c0_18] : memref<1x128x64xbf16, #tpu.memory_space<vmem>>, vector<1x128x64xbf16>
    %22 = vector.shape_cast %21 : vector<1x128x64xbf16> to vector<128x64xbf16>
    %cst_19 = arith.constant dense<0.000000e+00> : vector<128x64xf32>
    %23 = tpu.matmul %4, %22, %cst_19 {dimension_numbers = #tpu.dot_dimension_numbers<[1], [0], [0], [1], [0, 0, 1, 1], [], []>} : vector<128x128xbf16>, vector<128x64xbf16>, vector<128x64xf32> -> vector<128x64xf32>
    %c0_20 = arith.constant 0 : index
    %c0_21 = arith.constant 0 : index
    %c0_22 = arith.constant 0 : index
    %24 = vector.load %arg8[%c0_20, %c0_21, %c0_22] : memref<1x1x64xf32, #tpu.memory_space<vmem>>, vector<1x1x64xf32>
    %25 = vector.shape_cast %24 : vector<1x1x64xf32> to vector<1x64xf32>
    %26 = vector.broadcast %25 : vector<1x64xf32> to vector<128x64xf32>
    %27 = arith.addf %23, %26 : vector<128x64xf32>
    %28 = arith.truncf %27 : vector<128x64xf32> to vector<128x64xbf16>
    %cst_23 = arith.constant dense<0.000000e+00> : vector<128x128xf32>
    %29 = tpu.matmul %12, %20, %cst_23 {dimension_numbers = #tpu.dot_dimension_numbers<[1], [1], [0], [0], [0, 0, 1, 0], [], []>} : vector<128x64xbf16>, vector<128x64xbf16>, vector<128x128xf32> -> vector<128x128xf32>
    %cst_24 = arith.constant 1.250000e-01 : f32
    %30 = vector.broadcast %cst_24 : f32 to vector<128x128xf32>
    %31 = arith.mulf %29, %30 : vector<128x128xf32>
    %c0_25 = arith.constant 0 : index
    %c0_26 = arith.constant 0 : index
    %c0_27 = arith.constant 0 : index
    %32 = vector.load %arg13[%c0_25, %c0_26, %c0_27] : memref<1x1x128xf32, #tpu.memory_space<vmem>>, vector<1x1x128xf32>
    %33 = vector.shape_cast %32 : vector<1x1x128xf32> to vector<1x128xf32>
    %34 = vector.broadcast %33 : vector<1x128xf32> to vector<128x128xf32>
    %35 = arith.addf %31, %34 : vector<128x128xf32>
    %cst_28 = arith.constant dense<0xFF800000> : vector<128xf32>
    %36 = vector.multi_reduction <maximumf>, %35, %cst_28 [1] : vector<128x128xf32> to vector<128xf32>
    %37 = vector.shape_cast %36 : vector<128xf32> to vector<128x1xf32>
    %38 = vector.broadcast %37 : vector<128x1xf32> to vector<128x128xf32>
    %39 = arith.subf %35, %38 : vector<128x128xf32>
    %40 = math.exp %39 : vector<128x128xf32>
    %cst_29 = arith.constant dense<0.000000e+00> : vector<128xf32>
    %41 = vector.multi_reduction <add>, %40, %cst_29 [1] : vector<128x128xf32> to vector<128xf32>
    %42 = vector.shape_cast %41 : vector<128xf32> to vector<128x1xf32>
    %43 = tpu.reciprocal %42 {approx = true} : vector<128x1xf32> -> vector<128x1xf32>
    %44 = vector.broadcast %43 : vector<128x1xf32> to vector<128x128xf32>
    %45 = arith.mulf %40, %44 : vector<128x128xf32>
    %46 = arith.truncf %45 : vector<128x128xf32> to vector<128x128xbf16>
    %cst_30 = arith.constant dense<0.000000e+00> : vector<128x64xf32>
    %47 = tpu.matmul %46, %28, %cst_30 {dimension_numbers = #tpu.dot_dimension_numbers<[1], [0], [0], [1], [0, 0, 1, 1], [], []>} : vector<128x128xbf16>, vector<128x64xbf16>, vector<128x64xf32> -> vector<128x64xf32>
    %c0_31 = arith.constant 0 : index
    %c0_32 = arith.constant 0 : index
    %48 = vector.load %arg15[%c0_31, %c0_32] : memref<128x128xf32, #tpu.memory_space<vmem>>, vector<128x128xf32>
    %49 = arith.truncf %47 : vector<128x64xf32> to vector<128x64xbf16>
    %c0_33 = arith.constant 0 : index
    %c0_34 = arith.constant 0 : index
    %c0_35 = arith.constant 0 : index
    %50 = vector.load %arg9[%c0_33, %c0_34, %c0_35] : memref<1x64x128xbf16, #tpu.memory_space<vmem>>, vector<1x64x128xbf16>
    %51 = vector.shape_cast %50 : vector<1x64x128xbf16> to vector<64x128xbf16>
    %cst_36 = arith.constant dense<0.000000e+00> : vector<128x128xf32>
    %52 = tpu.matmul %49, %51, %cst_36 {dimension_numbers = #tpu.dot_dimension_numbers<[1], [0], [0], [1], [0, 0, 1, 1], [], []>} : vector<128x64xbf16>, vector<64x128xbf16>, vector<128x128xf32> -> vector<128x128xf32>
    %53 = arith.addf %48, %52 : vector<128x128xf32>
    %c0_37 = arith.constant 0 : index
    %c0_38 = arith.constant 0 : index
    %54 = vector.load %arg15[%c0_37, %c0_38] : memref<128x128xf32, #tpu.memory_space<vmem>>, vector<128x128xf32>
    tpu.vector_store %arg15[%c0_37, %c0_38], %53 {strides = array<i32>} : memref<128x128xf32, #tpu.memory_space<vmem>>, vector<128x128xf32>,
    %c1_i32 = arith.constant 1 : i32
    %55 = arith.cmpi eq, %arg1, %c1_i32 : i32
    %56 = arith.extui %55 : i1 to i32
    %c0_i32_39 = arith.constant 0 : i32
    %57 = arith.cmpi ne, %56, %c0_i32_39 : i32
    scf.if %57 {
      %c0_40 = arith.constant 0 : index
      %c0_41 = arith.constant 0 : index
      %58 = vector.load %arg15[%c0_40, %c0_41] : memref<128x128xf32, #tpu.memory_space<vmem>>, vector<128x128xf32>
      %c0_42 = arith.constant 0 : index
      %c0_43 = arith.constant 0 : index
      %59 = vector.load %arg10[%c0_42, %c0_43] : memref<1x128xf32, #tpu.memory_space<vmem>>, vector<1x128xf32>
      %60 = vector.broadcast %59 : vector<1x128xf32> to vector<128x128xf32>
      %61 = arith.addf %58, %60 : vector<128x128xf32>
      %62 = arith.extf %4 : vector<128x128xbf16> to vector<128x128xf32>
      %63 = arith.addf %61, %62 : vector<128x128xf32>
      %cst_44 = arith.constant dense<0.000000e+00> : vector<128xf32>
      %64 = vector.multi_reduction <add>, %63, %cst_44 [1] : vector<128x128xf32> to vector<128xf32>
      %65 = vector.shape_cast %64 : vector<128xf32> to vector<128x1xf32>
      %cst_45 = arith.constant 1.280000e+02 : f32
      %66 = vector.broadcast %cst_45 : f32 to vector<128x1xf32>
      %67 = arith.divf %65, %66 : vector<128x1xf32>
      %68 = vector.broadcast %67 : vector<128x1xf32> to vector<128x128xf32>
      %69 = arith.subf %63, %68 : vector<128x128xf32>
      %70 = vector.broadcast %67 : vector<128x1xf32> to vector<128x128xf32>
      %71 = arith.subf %63, %70 : vector<128x128xf32>
      %72 = arith.mulf %69, %71 : vector<128x128xf32>
      %cst_46 = arith.constant dense<0.000000e+00> : vector<128xf32>
      %73 = vector.multi_reduction <add>, %72, %cst_46 [1] : vector<128x128xf32> to vector<128xf32>
      %74 = vector.shape_cast %73 : vector<128xf32> to vector<128x1xf32>
      %cst_47 = arith.constant 1.280000e+02 : f32
      %75 = vector.broadcast %cst_47 : f32 to vector<128x1xf32>
      %76 = arith.divf %74, %75 : vector<128x1xf32>
      %77 = vector.broadcast %67 : vector<128x1xf32> to vector<128x128xf32>
      %78 = arith.subf %63, %77 : vector<128x128xf32>
      %cst_48 = arith.constant 9.99999996E-13 : f32
      %79 = vector.broadcast %cst_48 : f32 to vector<128x1xf32>
      %80 = arith.addf %76, %79 : vector<128x1xf32>
      %81 = math.rsqrt %80 : vector<128x1xf32>
      %82 = vector.broadcast %81 : vector<128x1xf32> to vector<128x128xf32>
      %83 = arith.mulf %78, %82 : vector<128x128xf32>
      %c0_49 = arith.constant 0 : index
      %c0_50 = arith.constant 0 : index
      %84 = vector.load %arg11[%c0_49, %c0_50] : memref<1x128xf32, #tpu.memory_space<vmem>>, vector<1x128xf32>
      %85 = vector.broadcast %84 : vector<1x128xf32> to vector<128x128xf32>
      %86 = arith.mulf %83, %85 : vector<128x128xf32>
      %c0_51 = arith.constant 0 : index
      %c0_52 = arith.constant 0 : index
      %87 = vector.load %arg12[%c0_51, %c0_52] : memref<1x128xf32, #tpu.memory_space<vmem>>, vector<1x128xf32>
      %88 = vector.broadcast %87 : vector<1x128xf32> to vector<128x128xf32>
      %89 = arith.addf %86, %88 : vector<128x128xf32>
      %90 = arith.truncf %89 : vector<128x128xf32> to vector<128x128xbf16>
      %c0_53 = arith.constant 0 : index
      %c0_54 = arith.constant 0 : index
      %c0_55 = arith.constant 0 : index
      %91 = vector.load %arg14[%c0_53, %c0_54, %c0_55] : memref<1x128x128xbf16, #tpu.memory_space<vmem>>, vector<1x128x128xbf16>
      %92 = vector.shape_cast %91 : vector<1x128x128xbf16> to vector<128x128xbf16>
      %93 = vector.shape_cast %90 : vector<128x128xbf16> to vector<1x128x128xbf16>
      tpu.vector_store %arg14[%c0_53, %c0_54, %c0_55], %93 {strides = array<i32>} : memref<1x128x128xbf16, #tpu.memory_space<vmem>>, vector<1x128x128xbf16>,
    } else {
    }
    return
  }
  func.func @transform_0(%arg0: i32, %arg1: i32) -> (i32, i32, i32) {
    %c0_i32 = arith.constant 0 : i32
    %c0_i32_0 = arith.constant 0 : i32
    %c0_i32_1 = arith.constant 0 : i32
    return %arg0, %c0_i32, %c0_i32_0 : i32, i32, i32
  }
  func.func @transform_1(%arg0: i32, %arg1: i32) -> (i32, i32, i32) {
    %c0_i32 = arith.constant 0 : i32
    %c0_i32_0 = arith.constant 0 : i32
    %c0_i32_1 = arith.constant 0 : i32
    return %arg1, %c0_i32, %c0_i32_0 : i32, i32, i32
  }
  func.func @transform_2(%arg0: i32, %arg1: i32) -> (i32, i32, i32) {
    %c0_i32 = arith.constant 0 : i32
    %c0_i32_0 = arith.constant 0 : i32
    %c0_i32_1 = arith.constant 0 : i32
    return %arg1, %c0_i32, %c0_i32_0 : i32, i32, i32
  }
  func.func @transform_3(%arg0: i32, %arg1: i32) -> (i32, i32, i32) {
    %c0_i32 = arith.constant 0 : i32
    %c0_i32_0 = arith.constant 0 : i32
    %c0_i32_1 = arith.constant 0 : i32
    return %arg1, %c0_i32, %c0_i32_0 : i32, i32, i32
  }
  func.func @transform_4(%arg0: i32, %arg1: i32) -> (i32, i32, i32) {
    %c0_i32 = arith.constant 0 : i32
    %c0_i32_0 = arith.constant 0 : i32
    %c0_i32_1 = arith.constant 0 : i32
    return %arg1, %c0_i32, %c0_i32_0 : i32, i32, i32
  }
  func.func @transform_5(%arg0: i32, %arg1: i32) -> (i32, i32, i32) {
    %c0_i32 = arith.constant 0 : i32
    %c0_i32_0 = arith.constant 0 : i32
    %c0_i32_1 = arith.constant 0 : i32
    return %arg1, %c0_i32, %c0_i32_0 : i32, i32, i32
  }
  func.func @transform_6(%arg0: i32, %arg1: i32) -> (i32, i32, i32) {
    %c0_i32 = arith.constant 0 : i32
    %c0_i32_0 = arith.constant 0 : i32
    %c0_i32_1 = arith.constant 0 : i32
    return %arg1, %c0_i32, %c0_i32_0 : i32, i32, i32
  }
  func.func @transform_7(%arg0: i32, %arg1: i32) -> (i32, i32, i32) {
    %c0_i32 = arith.constant 0 : i32
    %c0_i32_0 = arith.constant 0 : i32
    %c0_i32_1 = arith.constant 0 : i32
    return %arg1, %c0_i32, %c0_i32_0 : i32, i32, i32
  }
  func.func @transform_8(%arg0: i32, %arg1: i32) -> (i32, i32) {
    %c0_i32 = arith.constant 0 : i32
    %c0_i32_0 = arith.constant 0 : i32
    %c0_i32_1 = arith.constant 0 : i32
    return %c0_i32, %c0_i32_0 : i32, i32
  }
  func.func @transform_9(%arg0: i32, %arg1: i32) -> (i32, i32) {
    %c0_i32 = arith.constant 0 : i32
    %c0_i32_0 = arith.constant 0 : i32
    %c0_i32_1 = arith.constant 0 : i32
    return %c0_i32, %c0_i32_0 : i32, i32
  }
  func.func @transform_10(%arg0: i32, %arg1: i32) -> (i32, i32) {
    %c0_i32 = arith.constant 0 : i32
    %c0_i32_0 = arith.constant 0 : i32
    %c0_i32_1 = arith.constant 0 : i32
    return %c0_i32, %c0_i32_0 : i32, i32
  }
  func.func @transform_11(%arg0: i32, %arg1: i32) -> (i32, i32, i32) {
    %c0_i32 = arith.constant 0 : i32
    %c0_i32_0 = arith.constant 0 : i32
    %c0_i32_1 = arith.constant 0 : i32
    return %arg0, %c0_i32, %c0_i32_0 : i32, i32, i32
  }
  func.func @transform_12(%arg0: i32, %arg1: i32) -> (i32, i32, i32) {
    %c0_i32 = arith.constant 0 : i32
    %c0_i32_0 = arith.constant 0 : i32
    %c0_i32_1 = arith.constant 0 : i32
    return %arg0, %c0_i32, %c0_i32_0 : i32, i32, i32
  }
}

module attributes {stable_mosaic.version = 11 : i64} {
  func.func @_ffn_block_kernel(%arg0: i32, %arg1: memref<256x128xbf16, #tpu.memory_space<vmem>>, %arg2: memref<128x512xbf16, #tpu.memory_space<vmem>>, %arg3: memref<1x512xf32, #tpu.memory_space<vmem>>, %arg4: memref<512x128xbf16, #tpu.memory_space<vmem>>, %arg5: memref<1x128xf32, #tpu.memory_space<vmem>>, %arg6: memref<1x128xf32, #tpu.memory_space<vmem>>, %arg7: memref<1x128xf32, #tpu.memory_space<vmem>>, %arg8: memref<256x128xbf16, #tpu.memory_space<vmem>>) attributes {dimension_semantics = [#tpu.dimension_semantics<parallel>], iteration_bounds = array<i64: 1>, scalar_prefetch = 0 : i64, scratch_operands = 0 : i64, tpu.core_type = #tpu.core_type<tc>, window_params = [{transform_indices = @transform_0, window_bounds = array<i64: 256, 128>}, {pipeline_mode = #tpu.pipeline_mode<synchronous>, transform_indices = @transform_1, window_bounds = array<i64: 128, 512>}, {pipeline_mode = #tpu.pipeline_mode<synchronous>, transform_indices = @transform_2, window_bounds = array<i64: 1, 512>}, {pipeline_mode = #tpu.pipeline_mode<synchronous>, transform_indices = @transform_3, window_bounds = array<i64: 512, 128>}, {pipeline_mode = #tpu.pipeline_mode<synchronous>, transform_indices = @transform_4, window_bounds = array<i64: 1, 128>}, {pipeline_mode = #tpu.pipeline_mode<synchronous>, transform_indices = @transform_5, window_bounds = array<i64: 1, 128>}, {pipeline_mode = #tpu.pipeline_mode<synchronous>, transform_indices = @transform_6, window_bounds = array<i64: 1, 128>}, {transform_indices = @transform_7, window_bounds = array<i64: 256, 128>}]} {
    %c0 = arith.constant 0 : index
    %c0_0 = arith.constant 0 : index
    %0 = vector.load %arg1[%c0, %c0_0] : memref<256x128xbf16, #tpu.memory_space<vmem>>, vector<256x128xbf16>
    %c0_1 = arith.constant 0 : index
    %c0_2 = arith.constant 0 : index
    %1 = vector.load %arg2[%c0_1, %c0_2] : memref<128x512xbf16, #tpu.memory_space<vmem>>, vector<128x512xbf16>
    %cst = arith.constant dense<0.000000e+00> : vector<256x512xf32>
    %2 = tpu.matmul %0, %1, %cst {dimension_numbers = #tpu.dot_dimension_numbers<[1], [0], [0], [1], [0, 0, 1, 1], [], []>} : vector<256x128xbf16>, vector<128x512xbf16>, vector<256x512xf32> -> vector<256x512xf32>
    %c0_3 = arith.constant 0 : index
    %c0_4 = arith.constant 0 : index
    %3 = vector.load %arg3[%c0_3, %c0_4] : memref<1x512xf32, #tpu.memory_space<vmem>>, vector<1x512xf32>
    %4 = vector.broadcast %3 : vector<1x512xf32> to vector<256x512xf32>
    %5 = arith.addf %2, %4 : vector<256x512xf32>
    %6 = arith.mulf %5, %5 : vector<256x512xf32>
    %7 = arith.mulf %5, %6 : vector<256x512xf32>
    %cst_5 = arith.constant 4.471500e-02 : f32
    %8 = vector.broadcast %cst_5 : f32 to vector<256x512xf32>
    %9 = arith.mulf %8, %7 : vector<256x512xf32>
    %10 = arith.addf %5, %9 : vector<256x512xf32>
    %cst_6 = arith.constant 0.797884583 : f32
    %11 = vector.broadcast %cst_6 : f32 to vector<256x512xf32>
    %12 = arith.mulf %11, %10 : vector<256x512xf32>
    %13 = math.tanh %12 : vector<256x512xf32>
    %cst_7 = arith.constant 1.000000e+00 : f32
    %14 = vector.broadcast %cst_7 : f32 to vector<256x512xf32>
    %15 = arith.addf %14, %13 : vector<256x512xf32>
    %cst_8 = arith.constant 5.000000e-01 : f32
    %16 = vector.broadcast %cst_8 : f32 to vector<256x512xf32>
    %17 = arith.mulf %16, %15 : vector<256x512xf32>
    %18 = arith.mulf %5, %17 : vector<256x512xf32>
    %19 = arith.truncf %18 : vector<256x512xf32> to vector<256x512xbf16>
    %c0_9 = arith.constant 0 : index
    %c0_10 = arith.constant 0 : index
    %20 = vector.load %arg4[%c0_9, %c0_10] : memref<512x128xbf16, #tpu.memory_space<vmem>>, vector<512x128xbf16>
    %cst_11 = arith.constant dense<0.000000e+00> : vector<256x128xf32>
    %21 = tpu.matmul %19, %20, %cst_11 {dimension_numbers = #tpu.dot_dimension_numbers<[1], [0], [0], [1], [0, 0, 1, 1], [], []>} : vector<256x512xbf16>, vector<512x128xbf16>, vector<256x128xf32> -> vector<256x128xf32>
    %c0_12 = arith.constant 0 : index
    %c0_13 = arith.constant 0 : index
    %22 = vector.load %arg5[%c0_12, %c0_13] : memref<1x128xf32, #tpu.memory_space<vmem>>, vector<1x128xf32>
    %23 = vector.broadcast %22 : vector<1x128xf32> to vector<256x128xf32>
    %24 = arith.addf %21, %23 : vector<256x128xf32>
    %25 = arith.extf %0 : vector<256x128xbf16> to vector<256x128xf32>
    %26 = arith.addf %24, %25 : vector<256x128xf32>
    %cst_14 = arith.constant dense<0.000000e+00> : vector<256xf32>
    %27 = vector.multi_reduction <add>, %26, %cst_14 [1] : vector<256x128xf32> to vector<256xf32>
    %28 = vector.shape_cast %27 : vector<256xf32> to vector<256x1xf32>
    %cst_15 = arith.constant 1.280000e+02 : f32
    %29 = vector.broadcast %cst_15 : f32 to vector<256x1xf32>
    %30 = arith.divf %28, %29 : vector<256x1xf32>
    %31 = vector.broadcast %30 : vector<256x1xf32> to vector<256x128xf32>
    %32 = arith.subf %26, %31 : vector<256x128xf32>
    %33 = vector.broadcast %30 : vector<256x1xf32> to vector<256x128xf32>
    %34 = arith.subf %26, %33 : vector<256x128xf32>
    %35 = arith.mulf %32, %34 : vector<256x128xf32>
    %cst_16 = arith.constant dense<0.000000e+00> : vector<256xf32>
    %36 = vector.multi_reduction <add>, %35, %cst_16 [1] : vector<256x128xf32> to vector<256xf32>
    %37 = vector.shape_cast %36 : vector<256xf32> to vector<256x1xf32>
    %cst_17 = arith.constant 1.280000e+02 : f32
    %38 = vector.broadcast %cst_17 : f32 to vector<256x1xf32>
    %39 = arith.divf %37, %38 : vector<256x1xf32>
    %40 = vector.broadcast %30 : vector<256x1xf32> to vector<256x128xf32>
    %41 = arith.subf %26, %40 : vector<256x128xf32>
    %cst_18 = arith.constant 9.99999996E-13 : f32
    %42 = vector.broadcast %cst_18 : f32 to vector<256x1xf32>
    %43 = arith.addf %39, %42 : vector<256x1xf32>
    %44 = math.rsqrt %43 : vector<256x1xf32>
    %45 = vector.broadcast %44 : vector<256x1xf32> to vector<256x128xf32>
    %46 = arith.mulf %41, %45 : vector<256x128xf32>
    %c0_19 = arith.constant 0 : index
    %c0_20 = arith.constant 0 : index
    %47 = vector.load %arg6[%c0_19, %c0_20] : memref<1x128xf32, #tpu.memory_space<vmem>>, vector<1x128xf32>
    %48 = vector.broadcast %47 : vector<1x128xf32> to vector<256x128xf32>
    %49 = arith.mulf %46, %48 : vector<256x128xf32>
    %c0_21 = arith.constant 0 : index
    %c0_22 = arith.constant 0 : index
    %50 = vector.load %arg7[%c0_21, %c0_22] : memref<1x128xf32, #tpu.memory_space<vmem>>, vector<1x128xf32>
    %51 = vector.broadcast %50 : vector<1x128xf32> to vector<256x128xf32>
    %52 = arith.addf %49, %51 : vector<256x128xf32>
    %53 = arith.truncf %52 : vector<256x128xf32> to vector<256x128xbf16>
    %c0_23 = arith.constant 0 : index
    %c0_24 = arith.constant 0 : index
    %54 = vector.load %arg8[%c0_23, %c0_24] : memref<256x128xbf16, #tpu.memory_space<vmem>>, vector<256x128xbf16>
    tpu.vector_store %arg8[%c0_23, %c0_24], %53 {strides = array<i32>} : memref<256x128xbf16, #tpu.memory_space<vmem>>, vector<256x128xbf16>,
    return
  }
  func.func @transform_0(%arg0: i32) -> (i32, i32) {
    %c0_i32 = arith.constant 0 : i32
    %c0_i32_0 = arith.constant 0 : i32
    return %arg0, %c0_i32 : i32, i32
  }
  func.func @transform_1(%arg0: i32) -> (i32, i32) {
    %c0_i32 = arith.constant 0 : i32
    %c0_i32_0 = arith.constant 0 : i32
    %c0_i32_1 = arith.constant 0 : i32
    return %c0_i32, %c0_i32_0 : i32, i32
  }
  func.func @transform_2(%arg0: i32) -> (i32, i32) {
    %c0_i32 = arith.constant 0 : i32
    %c0_i32_0 = arith.constant 0 : i32
    %c0_i32_1 = arith.constant 0 : i32
    return %c0_i32, %c0_i32_0 : i32, i32
  }
  func.func @transform_3(%arg0: i32) -> (i32, i32) {
    %c0_i32 = arith.constant 0 : i32
    %c0_i32_0 = arith.constant 0 : i32
    %c0_i32_1 = arith.constant 0 : i32
    return %c0_i32, %c0_i32_0 : i32, i32
  }
  func.func @transform_4(%arg0: i32) -> (i32, i32) {
    %c0_i32 = arith.constant 0 : i32
    %c0_i32_0 = arith.constant 0 : i32
    %c0_i32_1 = arith.constant 0 : i32
    return %c0_i32, %c0_i32_0 : i32, i32
  }
  func.func @transform_5(%arg0: i32) -> (i32, i32) {
    %c0_i32 = arith.constant 0 : i32
    %c0_i32_0 = arith.constant 0 : i32
    %c0_i32_1 = arith.constant 0 : i32
    return %c0_i32, %c0_i32_0 : i32, i32
  }
  func.func @transform_6(%arg0: i32) -> (i32, i32) {
    %c0_i32 = arith.constant 0 : i32
    %c0_i32_0 = arith.constant 0 : i32
    %c0_i32_1 = arith.constant 0 : i32
    return %c0_i32, %c0_i32_0 : i32, i32
  }
  func.func @transform_7(%arg0: i32) -> (i32, i32) {
    %c0_i32 = arith.constant 0 : i32
    %c0_i32_0 = arith.constant 0 : i32
    return %arg0, %c0_i32 : i32, i32
  }
}

module attributes {stable_mosaic.version = 11 : i64} {
  func.func @_pool_norm_kernel(%arg0: i32, %arg1: memref<2x128x128xbf16, #tpu.memory_space<vmem>>, %arg2: memref<2x1x128xf32, #tpu.memory_space<vmem>>, %arg3: memref<2x128xf32, #tpu.memory_space<vmem>>) attributes {dimension_semantics = [#tpu.dimension_semantics<parallel>], iteration_bounds = array<i64: 1>, scalar_prefetch = 0 : i64, scratch_operands = 0 : i64, tpu.core_type = #tpu.core_type<tc>, window_params = [{transform_indices = @transform_0, window_bounds = array<i64: 2, 128, 128>}, {transform_indices = @transform_1, window_bounds = array<i64: 2, 1, 128>}, {transform_indices = @transform_2, window_bounds = array<i64: 2, 128>}]} {
    %c0 = arith.constant 0 : index
    %c0_0 = arith.constant 0 : index
    %c0_1 = arith.constant 0 : index
    %0 = vector.load %arg1[%c0, %c0_0, %c0_1] : memref<2x128x128xbf16, #tpu.memory_space<vmem>>, vector<2x128x128xbf16>
    %1 = arith.extf %0 : vector<2x128x128xbf16> to vector<2x128x128xf32>
    %c0_2 = arith.constant 0 : index
    %c0_3 = arith.constant 0 : index
    %c0_4 = arith.constant 0 : index
    %2 = vector.load %arg2[%c0_2, %c0_3, %c0_4] : memref<2x1x128xf32, #tpu.memory_space<vmem>>, vector<2x1x128xf32>
    "tpu.trace_start"() <{level = 10 : i32, message = "bql,ble->bqe"}> : () -> ()
    %cst = arith.constant dense<0.000000e+00> : vector<2x1x128xf32>
    %3 = tpu.matmul %2, %1, %cst {dimension_numbers = #tpu.dot_dimension_numbers<[2], [1], [1], [2], [0, 0, 0, 1, 1, 2], [0], [0]>} : vector<2x1x128xf32>, vector<2x128x128xf32>, vector<2x1x128xf32> -> vector<2x1x128xf32>
    "tpu.trace_stop"() : () -> ()
    %cst_5 = arith.constant dense<0.000000e+00> : vector<2x1xf32>
    %4 = vector.multi_reduction <add>, %2, %cst_5 [2] : vector<2x1x128xf32> to vector<2x1xf32>
    %5 = vector.shape_cast %4 : vector<2x1xf32> to vector<2x1x1xf32>
    %cst_6 = arith.constant 9.99999971E-10 : f32
    %6 = vector.broadcast %cst_6 : f32 to vector<2x1x1xf32>
    %7 = arith.maximumf %5, %6 : vector<2x1x1xf32>
    %8 = tpu.reciprocal %7 {approx = true} : vector<2x1x1xf32> -> vector<2x1x1xf32>
    %9 = vector.broadcast %8 : vector<2x1x1xf32> to vector<2x1x128xf32>
    %10 = arith.mulf %3, %9 : vector<2x1x128xf32>
    %11 = vector.shape_cast %10 : vector<2x1x128xf32> to vector<2x128xf32>
    %12 = arith.mulf %11, %11 : vector<2x128xf32>
    %cst_7 = arith.constant dense<0.000000e+00> : vector<2xf32>
    %13 = vector.multi_reduction <add>, %12, %cst_7 [1] : vector<2x128xf32> to vector<2xf32>
    %14 = vector.shape_cast %13 : vector<2xf32> to vector<2x1xf32>
    %15 = math.sqrt %14 : vector<2x1xf32>
    %cst_8 = arith.constant 9.99999996E-13 : f32
    %16 = vector.broadcast %cst_8 : f32 to vector<2x1xf32>
    %17 = arith.maximumf %15, %16 : vector<2x1xf32>
    %18 = vector.broadcast %17 : vector<2x1xf32> to vector<2x128xf32>
    %19 = arith.divf %11, %18 : vector<2x128xf32>
    %c0_9 = arith.constant 0 : index
    %c0_10 = arith.constant 0 : index
    %20 = vector.load %arg3[%c0_9, %c0_10] : memref<2x128xf32, #tpu.memory_space<vmem>>, vector<2x128xf32>
    tpu.vector_store %arg3[%c0_9, %c0_10], %19 {strides = array<i32>} : memref<2x128xf32, #tpu.memory_space<vmem>>, vector<2x128xf32>,
    return
  }
  func.func @transform_0(%arg0: i32) -> (i32, i32, i32) {
    %c0_i32 = arith.constant 0 : i32
    %c0_i32_0 = arith.constant 0 : i32
    %c0_i32_1 = arith.constant 0 : i32
    return %arg0, %c0_i32, %c0_i32_0 : i32, i32, i32
  }
  func.func @transform_1(%arg0: i32) -> (i32, i32, i32) {
    %c0_i32 = arith.constant 0 : i32
    %c0_i32_0 = arith.constant 0 : i32
    %c0_i32_1 = arith.constant 0 : i32
    return %arg0, %c0_i32, %c0_i32_0 : i32, i32, i32
  }
  func.func @transform_2(%arg0: i32) -> (i32, i32) {
    %c0_i32 = arith.constant 0 : i32
    %c0_i32_0 = arith.constant 0 : i32
    return %arg0, %c0_i32 : i32, i32
  }
}

</mosaic_0001>

<llo_original>
// kernel: language_encoder_forward.6
$region0: #{language_encoder_forward.6}
  #allocation0 [shape = 'u32[]', space=smem, size = 0x4, offset = 0x4, fixed_abs, tag = 'smem constant byte address 0x4 - core index']
  #allocation1 [shape = 'u32[144,128]{1,0:T(1,128)}', space=vmem, size = 0x12000, scoped, tag = 'internal scratch']
  %s0 = inlined_call_operand.vmem [shape: bf16[2,128,128], index: 0, kind: input, shape index: {}]
  %s1 = inlined_call_operand.vmem [shape: bf16[128,128], index: 1, kind: input, shape index: {}]
  %s2 = inlined_call_operand.vmem [shape: f32[1,128], index: 2, kind: input, shape index: {}]
  %s3 = inlined_call_operand.vmem [shape: f32[1,128], index: 3, kind: input, shape index: {}]
  %s4 = inlined_call_operand.vmem [shape: bf16[2,128,128], index: 4, kind: output, shape index: {}]
  %s5 = sld [smem:[#allocation0]]
  $region49: #{language_encoder_forward.6} parent=0
    _
  %s7 = ssub.s32 1, %s5
  %s8 = scalar_select 0, %s7, %s5
  loop: start=0, step=1, limit=4
  $region2: #{language_encoder_forward.6} parent=0 // loop_pre_header
    _
  $region3: #{language_encoder_forward.6} parent=0 // loop_header
    %s10 = sphi 0, %s14
    %p11 = scmp.ge.s32.totalorder %s10, 4
    %s17 = sphi 0, %s29
    %s18 = sphi 0, %s25
    %s19 = sphi 0, %s17
    %s20 = sphi 0, %s18
    %s21 = sphi 0, %s19
    %s22 = sphi 0, %s20
    %s34 = sphi 0, %s36
    %s37 = sphi 0, %s34
    %s38 = sphi 0, %s37
    %s54 = sphi 0, %s38
    %s60 = sphi 0, %s62
    %s63 = sphi 0, %s60
    %s64 = sphi 0, %s63
    %s80 = sphi 0, %s64
    %s84 = sphi 0, %s84
    %s86 = sphi 0, %s84
    %s87 = sphi 0, %s86
    %s101 = sphi 0, %s87
    %s105 = sphi 0, %s105
    %s107 = sphi 0, %s105
    %s108 = sphi 0, %s107
    %s122 = sphi 0, %s108
    %s130 = sphi 0, %s132
    %s133 = sphi 0, %s130
    %s134 = sphi 0, %s133
    %s150 = sphi 0, %s134
  $region4: #{language_encoder_forward.6} parent=0 // loop_header_branch
    %13 = sbr.rel (%p11) target = $region8
  $region5: #{language_encoder_forward.6} parent=0 // loop_body
    %s15 = ssub.s32 %s10, 1
    %s16 = ssub.s32 %s10, 2
    %s23 = sadd.s32 1, %s18
    %p24 = scmp.ge.s32.totalorder %s23, 1
    %s25 = scalar_select %p24, 0, %s23
    %s26 = sadd.s32 1, %s17
    %s27 = scalar_select %p24, %s26, %s17
    %p28 = scmp.ge.s32.totalorder %s27, 2
    %s29 = scalar_select %p28, 0, %s27
    %s30 = ssub.s32 %s17, %s29
    %s31 = ssub.s32 %s18, %s25
    %s32 = sor.u32 %s30, %s31
    %p33 = scmp.eq.s32.totalorder %s32, 0
    %s35 = sadd.s32 %s34, 1
    %s36 = scalar_select %p33, %s34, %s35
    %p39 = pneg %p33
    %p40 = scmp.eq.s32.totalorder %s10, 1
    %p41 = por %p39, %p40
    %p42 = scmp.ne.s32.totalorder %s34, %s37
    %p43 = scmp.eq.s32.totalorder %s10, 0
    %p44 = por %p42, %p43
    %p45 = scmp.ne.s32.totalorder %s34, %s37
    %p46 = scmp.eq.s32.totalorder %s15, 1
    %p47 = por %p45, %p46
    %p48 = scmp.ne.s32.totalorder %s37, %s38
    %p49 = scmp.eq.s32.totalorder %s15, 0
    %p50 = por %p48, %p49
    %p51 = scmp.ne.s32.totalorder %s37, %s38
    %p52 = scmp.eq.s32.totalorder %s16, 1
    %p53 = por %p51, %p52
    %p55 = scmp.ne.s32.totalorder %s38, %s54
    %p56 = scmp.eq.s32.totalorder %s16, 0
    %p57 = por %p55, %p56
    %s58 = ssub.s32 %s18, %s25
    %p59 = scmp.eq.s32.totalorder %s58, 0
    %s61 = sadd.s32 %s60, 1
    %s62 = scalar_select %p59, %s60, %s61
    %p65 = pneg %p59
    %p66 = scmp.eq.s32.totalorder %s10, 1
    %p67 = por %p65, %p66
    %p68 = scmp.ne.s32.totalorder %s60, %s63
    %p69 = scmp.eq.s32.totalorder %s10, 0
    %p70 = por %p68, %p69
    %p71 = scmp.ne.s32.totalorder %s60, %s63
    %p72 = scmp.eq.s32.totalorder %s15, 1
    %p73 = por %p71, %p72
    %p74 = scmp.ne.s32.totalorder %s63, %s64
    %p75 = scmp.eq.s32.totalorder %s15, 0
    %p76 = por %p74, %p75
    %p77 = scmp.ne.s32.totalorder %s63, %s64
    %p78 = scmp.eq.s32.totalorder %s16, 1
    %p79 = por %p77, %p78
    %p81 = scmp.ne.s32.totalorder %s64, %s80
    %p82 = scmp.eq.s32.totalorder %s16, 0
    %p83 = por %p81, %p82
    %s85 = sadd.s32 %s84, 1
    %p88 = scmp.eq.s32.totalorder %s10, 1
    %p89 = scmp.ne.s32.totalorder %s84, %s86
    %p90 = scmp.eq.s32.totalorder %s10, 0
    %p91 = por %p89, %p90
    %p92 = scmp.ne.s32.totalorder %s84, %s86
    %p93 = scmp.eq.s32.totalorder %s15, 1
    %p94 = por %p92, %p93
    %p95 = scmp.ne.s32.totalorder %s86, %s87
    %p96 = scmp.eq.s32.totalorder %s15, 0
    %p97 = por %p95, %p96
    %p98 = scmp.ne.s32.totalorder %s86, %s87
    %p99 = scmp.eq.s32.totalorder %s16, 1
    %p100 = por %p98, %p99
    %p102 = scmp.ne.s32.totalorder %s87, %s101
    %p103 = scmp.eq.s32.totalorder %s16, 0
    %p104 = por %p102, %p103
    %s106 = sadd.s32 %s105, 1
    %p109 = scmp.eq.s32.totalorder %s10, 1
    %p110 = scmp.ne.s32.totalorder %s105, %s107
    %p111 = scmp.eq.s32.totalorder %s10, 0
    %p112 = por %p110, %p111
    %p113 = scmp.ne.s32.totalorder %s105, %s107
    %p114 = scmp.eq.s32.totalorder %s15, 1
    %p115 = por %p113, %p114
    %p116 = scmp.ne.s32.totalorder %s107, %s108
    %p117 = scmp.eq.s32.totalorder %s15, 0
    %p118 = por %p116, %p117
    %p119 = scmp.ne.s32.totalorder %s107, %s108
    %p120 = scmp.eq.s32.totalorder %s16, 1
    %p121 = por %p119, %p120
    %p123 = scmp.ne.s32.totalorder %s108, %s122
    %p124 = scmp.eq.s32.totalorder %s16, 0
    %p125 = por %p123, %p124
    %s126 = ssub.s32 %s17, %s29
    %s127 = ssub.s32 %s18, %s25
    %s128 = sor.u32 %s126, %s127
    %p129 = scmp.eq.s32.totalorder %s128, 0
    %s131 = sadd.s32 %s130, 1
    %s132 = scalar_select %p129, %s130, %s131
    %p135 = pneg %p129
    %p136 = scmp.eq.s32.totalorder %s10, 1
    %p137 = por %p135, %p136
    %p138 = scmp.ne.s32.totalorder %s130, %s133
    %p139 = scmp.eq.s32.totalorder %s10, 0
    %p140 = por %p138, %p139
    %p141 = scmp.ne.s32.totalorder %s130, %s133
    %p142 = scmp.eq.s32.totalorder %s15, 1
    %p143 = por %p141, %p142
    %p144 = scmp.ne.s32.totalorder %s133, %s134
    %p145 = scmp.eq.s32.totalorder %s15, 0
    %p146 = por %p144, %p145
    %p147 = scmp.ne.s32.totalorder %s133, %s134
    %p148 = scmp.eq.s32.totalorder %s16, 1
    %p149 = por %p147, %p148
    %p151 = scmp.ne.s32.totalorder %s134, %s150
    %p152 = scmp.eq.s32.totalorder %s16, 0
    %p153 = por %p151, %p152
    %p154 = scmp.le.s32.totalorder 1, %s10
    %p155 = scmp.lt.s32.totalorder %s10, 3
    %p156 = pnand %p154, %p155
    %p157 = pneg %p156
    // Predicated region
    $region9: #{language_encoder_forward.6} parent=5 // pred_check
      _
    $region10: #{language_encoder_forward.6} parent=5 // pred_check_branch
      %159 = sbr.rel (%p156) target = $region12
    $region11: #{language_encoder_forward.6} parent=5 // pred_region
      %s160 = ssub.s32 %s10, 1
      // Predicated region
      $region13: #{language_encoder_forward.6} parent=11 // pred_check
        %p161 = pneg %p76
      $region14: #{language_encoder_forward.6} parent=11 // pred_check_branch
        %163 = sbr.rel (%p161) target = $region16
      $region15: #{language_encoder_forward.6} parent=11 // pred_region
        %s164 = smul.u32 16, %s20
        %p165 = scmp.lt.s32.totalorder %s164, 15
        %s166 = scalar_select %p165, %s164, 15
        %s167 = smul.addr %s166, 4
        %s168 = scalar_lea.vmem %s1, %s167
        %s169 = smul.u32 16, %s20
      $region16: #{language_encoder_forward.6} parent=11 // pred_fallthru
        _
      // Predicated region
      $region17: #{language_encoder_forward.6} parent=11 // pred_check
        %p170 = pneg %p97
      $region18: #{language_encoder_forward.6} parent=11 // pred_check_branch
        %172 = sbr.rel (%p170) target = $region20
      $region19: #{language_encoder_forward.6} parent=11 // pred_region
        _
      $region20: #{language_encoder_forward.6} parent=11 // pred_fallthru
        _
      // Predicated region
      $region21: #{language_encoder_forward.6} parent=11 // pred_check
        %p173 = pneg %p118
      $region22: #{language_encoder_forward.6} parent=11 // pred_check_branch
        %175 = sbr.rel (%p173) target = $region24
      $region23: #{language_encoder_forward.6} parent=11 // pred_region
        _
      $region24: #{language_encoder_forward.6} parent=11 // pred_fallthru
        _
    $region12: #{language_encoder_forward.6} parent=5 // pred_fallthru
      _
    %p176 = scmp.lt.s32.totalorder %s10, 2
    // Predicated region
    $region25: #{language_encoder_forward.6} parent=5 // pred_check
      %p177 = pneg %p176
    $region26: #{language_encoder_forward.6} parent=5 // pred_check_branch
      %179 = sbr.rel (%p177) target = $region28
    $region27: #{language_encoder_forward.6} parent=5 // pred_region
      // Predicated region
      $region29: #{language_encoder_forward.6} parent=27 // pred_check
        %p180 = pneg %p44
      $region30: #{language_encoder_forward.6} parent=27 // pred_check_branch
        %182 = sbr.rel (%p180) target = $region32
      $region31: #{language_encoder_forward.6} parent=27 // pred_region
        %s183 = smul.u32 16, %s18
        %p184 = scmp.lt.s32.totalorder %s17, 1
        %s185 = scalar_select %p184, %s17, 1
        %p186 = scmp.lt.s32.totalorder %s183, 15
        %s187 = scalar_select %p186, %s183, 15
        %s188 = smul.addr %s185, 16
        %s189 = sadd.s32 %s187, %s188
        %s190 = smul.addr %s189, 4
        %s191 = scalar_lea.vmem %s0, %s190
        %s192 = smul.u32 16, %s18
      $region32: #{language_encoder_forward.6} parent=27 // pred_fallthru
        _
    $region28: #{language_encoder_forward.6} parent=5 // pred_fallthru
      _
    %p193 = scmp.le.s32.totalorder 1, %s10
    %p194 = scmp.lt.s32.totalorder %s10, 3
    %p195 = pnand %p193, %p194
    %p196 = pneg %p195
    // Predicated region
    $region33: #{language_encoder_forward.6} parent=5 // pred_check
      _
    $region34: #{language_encoder_forward.6} parent=5 // pred_check_branch
      %198 = sbr.rel (%p195) target = $region36
    $region35: #{language_encoder_forward.6} parent=5 // pred_region
      %s199 = ssub.s32 %s10, 1
      %s200 = smul.u32 16, %s20
      %p201 = scmp.lt.s32.totalorder %s19, 1
      %s202 = scalar_select %p201, %s19, 1
      %p203 = scmp.lt.s32.totalorder %s200, 15
      %s204 = scalar_select %p203, %s200, 15
      %s205 = smul.addr %s202, 16
      %s206 = sadd.s32 %s204, %s205
      %s207 = smul.addr %s206, 4
      %s208 = scalar_lea.vmem %s0, %s207
      %p209 = pneg %p50
      %p210 = pneg %p47
      %s211 = smul.u32 16, %s20
      %p212 = scmp.lt.s32.totalorder %s211, 15
      %s213 = scalar_select %p212, %s211, 15
      %s214 = smul.addr %s213, 4
      %s215 = scalar_lea.vmem %s1, %s214
      %p216 = pneg %p76
      %p217 = pneg %p73
      %p218 = pneg %p97
      %p219 = pneg %p94
      %p220 = pneg %p118
      %p221 = pneg %p115
      %p222 = pneg %p146
      %p223 = pneg %p143
      %s224 = smul.u32 16, %s20
      %p225 = scmp.lt.s32.totalorder %s19, 1
      %s226 = scalar_select %p225, %s19, 1
      %p227 = scmp.lt.s32.totalorder %s224, 15
      %s228 = scalar_select %p227, %s224, 15
      %s229 = smul.addr %s226, 16
      %s230 = sadd.s32 %s228, %s229
      %s231 = smul.addr %s230, 4
      %s232 = scalar_lea.vmem %s4, %s231
      %s233 = smul.u32 16, %s20
      %p234 = scmp.lt.s32.totalorder %s19, 1
      %s235 = scalar_select %p234, %s19, 1
      %p236 = scmp.lt.s32.totalorder %s233, 15
      %s237 = scalar_select %p236, %s233, 15
      %s238 = smul.addr %s235, 16
      %s239 = sadd.s32 %s237, %s238
      %s240 = smul.addr %s239, 4
      %s241 = scalar_lea.vmem %s0, %s240
      %s242 = smul.u32 16, %s20
      %s243 = smul.u32 16, %s20
      %p244 = scmp.lt.s32.totalorder %s243, 15
      %s245 = scalar_select %p244, %s243, 15
      %s246 = smul.addr %s245, 4
      %s247 = scalar_lea.vmem %s1, %s246
      %s248 = smul.u32 16, %s20
      %s249 = smul.u32 16, %s20
      %p250 = scmp.lt.s32.totalorder %s19, 1
      %s251 = scalar_select %p250, %s19, 1
      %p252 = scmp.lt.s32.totalorder %s249, 15
      %s253 = scalar_select %p252, %s249, 15
      %s254 = smul.addr %s251, 16
      %s255 = sadd.s32 %s253, %s254
      %s256 = smul.addr %s255, 4
      %s257 = scalar_lea.vmem %s4, %s256
      %s258 = smul.u32 16, %s20
      %v259 = vld [vmem:[%s241] sm:$0xf]
      %v260 = vld [vmem:[%s241 + $0x4] sm:$0xf]
      %v261 = vld [vmem:[%s241 + $0x8] sm:$0xf]
      %v262 = vld [vmem:[%s241 + $0xc] sm:$0xf]
      %v263 = vld [vmem:[%s241 + $0x10] sm:$0xf]
      %v264 = vld [vmem:[%s241 + $0x14] sm:$0xf]
      %v265 = vld [vmem:[%s241 + $0x18] sm:$0xf]
      %v266 = vld [vmem:[%s241 + $0x1c] sm:$0xf]
      %v267 = vld [vmem:[%s241 + $0x20] sm:$0xf]
      %v268 = vld [vmem:[%s241 + $0x24] sm:$0xf]
      %v269 = vld [vmem:[%s241 + $0x28] sm:$0xf]
      %v270 = vld [vmem:[%s241 + $0x2c] sm:$0xf]
      %v271 = vld [vmem:[%s241 + $0x30] sm:$0xf]
      %v272 = vld [vmem:[%s241 + $0x34] sm:$0xf]
      %v273 = vld [vmem:[%s241 + $0x38] sm:$0xf]
      %v274 = vld [vmem:[%s241 + $0x3c] sm:$0xf]
      %v275 = vunpack.c.l.bf16 %v259
      %v276 = vunpack.c.l.bf16 %v260
      %v277 = vunpack.c.l.bf16 %v261
      %v278 = vunpack.c.l.bf16 %v262
      %v279 = vunpack.c.l.bf16 %v263
      %v280 = vunpack.c.l.bf16 %v264
      %v281 = vunpack.c.l.bf16 %v265
      %v282 = vunpack.c.l.bf16 %v266
      %v283 = vunpack.c.l.bf16 %v267
      %v284 = vunpack.c.l.bf16 %v268
      %v285 = vunpack.c.l.bf16 %v269
      %v286 = vunpack.c.l.bf16 %v270
      %v287 = vunpack.c.l.bf16 %v271
      %v288 = vunpack.c.l.bf16 %v272
      %v289 = vunpack.c.l.bf16 %v273
      %v290 = vunpack.c.l.bf16 %v274
      %v291 = vld [vmem:[%s247] sm:$0xf]
      %v292 = vld [vmem:[%s247 + $0x4] sm:$0xf]
      %v293 = vld [vmem:[%s247 + $0x8] sm:$0xf]
      %v294 = vld [vmem:[%s247 + $0xc] sm:$0xf]
      %v295 = vld [vmem:[%s247 + $0x10] sm:$0xf]
      %v296 = vld [vmem:[%s247 + $0x14] sm:$0xf]
      %v297 = vld [vmem:[%s247 + $0x18] sm:$0xf]
      %v298 = vld [vmem:[%s247 + $0x1c] sm:$0xf]
      %v299 = vld [vmem:[%s247 + $0x20] sm:$0xf]
      %v300 = vld [vmem:[%s247 + $0x24] sm:$0xf]
      %v301 = vld [vmem:[%s247 + $0x28] sm:$0xf]
      %v302 = vld [vmem:[%s247 + $0x2c] sm:$0xf]
      %v303 = vld [vmem:[%s247 + $0x30] sm:$0xf]
      %v304 = vld [vmem:[%s247 + $0x34] sm:$0xf]
      %v305 = vld [vmem:[%s247 + $0x38] sm:$0xf]
      %v306 = vld [vmem:[%s247 + $0x3c] sm:$0xf]
      %v307 = vunpack.c.l.bf16 %v291
      %v308 = vunpack.c.l.bf16 %v292
      %v309 = vunpack.c.l.bf16 %v293
      %v310 = vunpack.c.l.bf16 %v294
      %v311 = vunpack.c.l.bf16 %v295
      %v312 = vunpack.c.l.bf16 %v296
      %v313 = vunpack.c.l.bf16 %v297
      %v314 = vunpack.c.l.bf16 %v298
      %v315 = vunpack.c.l.bf16 %v299
      %v316 = vunpack.c.l.bf16 %v300
      %v317 = vunpack.c.l.bf16 %v301
      %v318 = vunpack.c.l.bf16 %v302
      %v319 = vunpack.c.l.bf16 %v303
      %v320 = vunpack.c.l.bf16 %v304
      %v321 = vunpack.c.l.bf16 %v305
      %v322 = vunpack.c.l.bf16 %v306
      %v323 = vadd.f32 %v275, %v307
      %v324 = vadd.f32 %v276, %v308
      %v325 = vadd.f32 %v277, %v309
      %v326 = vadd.f32 %v278, %v310
      %v327 = vadd.f32 %v279, %v311
      %v328 = vadd.f32 %v280, %v312
      %v329 = vadd.f32 %v281, %v313
      %v330 = vadd.f32 %v282, %v314
      %v331 = vadd.f32 %v283, %v315
      %v332 = vadd.f32 %v284, %v316
      %v333 = vadd.f32 %v285, %v317
      %v334 = vadd.f32 %v286, %v318
      %v335 = vadd.f32 %v287, %v319
      %v336 = vadd.f32 %v288, %v320
      %v337 = vadd.f32 %v289, %v321
      %v338 = vadd.f32 %v290, %v322
      %339 = vadd.xlane.f32.xlu0 %v323
      %v340 = vpop.xlane.xlu0 %339
      %341 = vadd.xlane.f32.xlu0 %v324
      %v342 = vpop.xlane.xlu0 %341
      %343 = vadd.xlane.f32.xlu0 %v325
      %v344 = vpop.xlane.xlu0 %343
      %345 = vadd.xlane.f32.xlu0 %v326
      %v346 = vpop.xlane.xlu0 %345
      %347 = vadd.xlane.f32.xlu0 %v327
      %v348 = vpop.xlane.xlu0 %347
      %349 = vadd.xlane.f32.xlu0 %v328
      %v350 = vpop.xlane.xlu0 %349
      %351 = vadd.xlane.f32.xlu0 %v329
      %v352 = vpop.xlane.xlu0 %351
      %353 = vadd.xlane.f32.xlu0 %v330
      %v354 = vpop.xlane.xlu0 %353
      %355 = vadd.xlane.f32.xlu0 %v331
      %v356 = vpop.xlane.xlu0 %355
      %357 = vadd.xlane.f32.xlu0 %v332
      %v358 = vpop.xlane.xlu0 %357
      %359 = vadd.xlane.f32.xlu0 %v333
      %v360 = vpop.xlane.xlu0 %359
      %361 = vadd.xlane.f32.xlu0 %v334
      %v362 = vpop.xlane.xlu0 %361
      %363 = vadd.xlane.f32.xlu0 %v335
      %v364 = vpop.xlane.xlu0 %363
      %365 = vadd.xlane.f32.xlu0 %v336
      %v366 = vpop.xlane.xlu0 %365
      %367 = vadd.xlane.f32.xlu0 %v337
      %v368 = vpop.xlane.xlu0 %367
      %369 = vadd.xlane.f32.xlu0 %v338
      %v370 = vpop.xlane.xlu0 %369
      %v371 = vrcp.pop 128.0
      %v372 = vmul.f32 %v340, %v371
      %v373 = vmul.f32 %v342, %v371
      %v374 = vmul.f32 %v344, %v371
      %v375 = vmul.f32 %v346, %v371
      %v376 = vmul.f32 %v348, %v371
      %v377 = vmul.f32 %v350, %v371
      %v378 = vmul.f32 %v352, %v371
      %v379 = vmul.f32 %v354, %v371
      %v380 = vmul.f32 %v356, %v371
      %v381 = vmul.f32 %v358, %v371
      %v382 = vmul.f32 %v360, %v371
      %v383 = vmul.f32 %v362, %v371
      %v384 = vmul.f32 %v364, %v371
      %v385 = vmul.f32 %v366, %v371
      %v386 = vmul.f32 %v368, %v371
      %v387 = vmul.f32 %v370, %v371
      %v388 = vsub.f32 %v323, %v372
      %v389 = vsub.f32 %v324, %v373
      %v390 = vsub.f32 %v325, %v374
      %v391 = vsub.f32 %v326, %v375
      %v392 = vsub.f32 %v327, %v376
      %v393 = vsub.f32 %v328, %v377
      %v394 = vsub.f32 %v329, %v378
      %v395 = vsub.f32 %v330, %v379
      %v396 = vsub.f32 %v331, %v380
      %v397 = vsub.f32 %v332, %v381
      %v398 = vsub.f32 %v333, %v382
      %v399 = vsub.f32 %v334, %v383
      %v400 = vsub.f32 %v335, %v384
      %v401 = vsub.f32 %v336, %v385
      %v402 = vsub.f32 %v337, %v386
      %v403 = vsub.f32 %v338, %v387
      %v404 = vmul.f32 %v388, %v388
      %v405 = vmul.f32 %v389, %v389
      %v406 = vmul.f32 %v390, %v390
      %v407 = vmul.f32 %v391, %v391
      %v408 = vmul.f32 %v392, %v392
      %v409 = vmul.f32 %v393, %v393
      %v410 = vmul.f32 %v394, %v394
      %v411 = vmul.f32 %v395, %v395
      %v412 = vmul.f32 %v396, %v396
      %v413 = vmul.f32 %v397, %v397
      %v414 = vmul.f32 %v398, %v398
      %v415 = vmul.f32 %v399, %v399
      %v416 = vmul.f32 %v400, %v400
      %v417 = vmul.f32 %v401, %v401
      %v418 = vmul.f32 %v402, %v402
      %v419 = vmul.f32 %v403, %v403
      %420 = vadd.xlane.f32.xlu0 %v404
      %v421 = vpop.xlane.xlu0 %420
      %422 = vadd.xlane.f32.xlu0 %v405
      %v423 = vpop.xlane.xlu0 %422
      %424 = vadd.xlane.f32.xlu0 %v406
      %v425 = vpop.xlane.xlu0 %424
      %426 = vadd.xlane.f32.xlu0 %v407
      %v427 = vpop.xlane.xlu0 %426
      %428 = vadd.xlane.f32.xlu0 %v408
      %v429 = vpop.xlane.xlu0 %428
      %430 = vadd.xlane.f32.xlu0 %v409
      %v431 = vpop.xlane.xlu0 %430
      %432 = vadd.xlane.f32.xlu0 %v410
      %v433 = vpop.xlane.xlu0 %432
      %434 = vadd.xlane.f32.xlu0 %v411
      %v435 = vpop.xlane.xlu0 %434
      %436 = vadd.xlane.f32.xlu0 %v412
      %v437 = vpop.xlane.xlu0 %436
      %438 = vadd.xlane.f32.xlu0 %v413
      %v439 = vpop.xlane.xlu0 %438
      %440 = vadd.xlane.f32.xlu0 %v414
      %v441 = vpop.xlane.xlu0 %440
      %442 = vadd.xlane.f32.xlu0 %v415
      %v443 = vpop.xlane.xlu0 %442
      %444 = vadd.xlane.f32.xlu0 %v416
      %v445 = vpop.xlane.xlu0 %444
      %446 = vadd.xlane.f32.xlu0 %v417
      %v447 = vpop.xlane.xlu0 %446
      %448 = vadd.xlane.f32.xlu0 %v418
      %v449 = vpop.xlane.xlu0 %448
      %450 = vadd.xlane.f32.xlu0 %v419
      %v451 = vpop.xlane.xlu0 %450
      %v452 = vmul.f32 %v421, %v371
      %v453 = vmul.f32 %v423, %v371
      %v454 = vmul.f32 %v425, %v371
      %v455 = vmul.f32 %v427, %v371
      %v456 = vmul.f32 %v429, %v371
      %v457 = vmul.f32 %v431, %v371
      %v458 = vmul.f32 %v433, %v371
      %v459 = vmul.f32 %v435, %v371
      %v460 = vmul.f32 %v437, %v371
      %v461 = vmul.f32 %v439, %v371
      %v462 = vmul.f32 %v441, %v371
      %v463 = vmul.f32 %v443, %v371
      %v464 = vmul.f32 %v445, %v371
      %v465 = vmul.f32 %v447, %v371
      %v466 = vmul.f32 %v449, %v371
      %v467 = vmul.f32 %v451, %v371
      %v468 = vadd.f32 %v452, 1e-12
      %v469 = vadd.f32 %v453, 1e-12
      %v470 = vadd.f32 %v454, 1e-12
      %v471 = vadd.f32 %v455, 1e-12
      %v472 = vadd.f32 %v456, 1e-12
      %v473 = vadd.f32 %v457, 1e-12
      %v474 = vadd.f32 %v458, 1e-12
      %v475 = vadd.f32 %v459, 1e-12
      %v476 = vadd.f32 %v460, 1e-12
      %v477 = vadd.f32 %v461, 1e-12
      %v478 = vadd.f32 %v462, 1e-12
      %v479 = vadd.f32 %v463, 1e-12
      %v480 = vadd.f32 %v464, 1e-12
      %v481 = vadd.f32 %v465, 1e-12
      %v482 = vadd.f32 %v466, 1e-12
      %v483 = vadd.f32 %v467, 1e-12
      %v484 = vrsqrt.pop %v468
      %v485 = vrsqrt.pop %v469
      %v486 = vrsqrt.pop %v470
      %v487 = vrsqrt.pop %v471
      %v488 = vrsqrt.pop %v472
      %v489 = vrsqrt.pop %v473
      %v490 = vrsqrt.pop %v474
      %v491 = vrsqrt.pop %v475
      %v492 = vrsqrt.pop %v476
      %v493 = vrsqrt.pop %v477
      %v494 = vrsqrt.pop %v478
      %v495 = vrsqrt.pop %v479
      %v496 = vrsqrt.pop %v480
      %v497 = vrsqrt.pop %v481
      %v498 = vrsqrt.pop %v482
      %v499 = vrsqrt.pop %v483
      %v500 = vmul.f32 %v388, %v484
      %v501 = vmul.f32 %v389, %v485
      %v502 = vmul.f32 %v390, %v486
      %v503 = vmul.f32 %v391, %v487
      %v504 = vmul.f32 %v392, %v488
      %v505 = vmul.f32 %v393, %v489
      %v506 = vmul.f32 %v394, %v490
      %v507 = vmul.f32 %v395, %v491
      %v508 = vmul.f32 %v396, %v492
      %v509 = vmul.f32 %v397, %v493
      %v510 = vmul.f32 %v398, %v494
      %v511 = vmul.f32 %v399, %v495
      %v512 = vmul.f32 %v400, %v496
      %v513 = vmul.f32 %v401, %v497
      %v514 = vmul.f32 %v402, %v498
      %v515 = vmul.f32 %v403, %v499
      %v516 = vld [vmem:[%s2] sm:$0x1]
      %v518 = vlaneseq
      %v519 = vshrl.u32 %v518, 7
      %v520 = vsub.s32 0, %v519
      %v521 = vrot.slane %v516, %v520
      %v523 = vmul.f32 %v500, %v521
      %v524 = vmul.f32 %v501, %v521
      %v525 = vmul.f32 %v502, %v521
      %v526 = vmul.f32 %v503, %v521
      %v527 = vmul.f32 %v504, %v521
      %v528 = vmul.f32 %v505, %v521
      %v529 = vmul.f32 %v506, %v521
      %v530 = vmul.f32 %v507, %v521
      %v531 = vmul.f32 %v508, %v521
      %v532 = vmul.f32 %v509, %v521
      %v533 = vmul.f32 %v510, %v521
      %v534 = vmul.f32 %v511, %v521
      %v535 = vmul.f32 %v512, %v521
      %v536 = vmul.f32 %v513, %v521
      %v537 = vmul.f32 %v514, %v521
      %v538 = vmul.f32 %v515, %v521
      %v539 = vld [vmem:[%s3] sm:$0x1]
      %v541 = vlaneseq
      %v542 = vshrl.u32 %v541, 7
      %v543 = vsub.s32 0, %v542
      %v544 = vrot.slane %v539, %v543
      %v546 = vadd.f32 %v523, %v544
      %v547 = vadd.f32 %v524, %v544
      %v548 = vadd.f32 %v525, %v544
      %v549 = vadd.f32 %v526, %v544
      %v550 = vadd.f32 %v527, %v544
      %v551 = vadd.f32 %v528, %v544
      %v552 = vadd.f32 %v529, %v544
      %v553 = vadd.f32 %v530, %v544
      %v554 = vadd.f32 %v531, %v544
      %v555 = vadd.f32 %v532, %v544
      %v556 = vadd.f32 %v533, %v544
      %v557 = vadd.f32 %v534, %v544
      %v558 = vadd.f32 %v535, %v544
      %v559 = vadd.f32 %v536, %v544
      %v560 = vadd.f32 %v537, %v544
      %v561 = vadd.f32 %v538, %v544
      %v562 = vpack.c.bf16 %v547, %v546
      %v563 = vpack.c.bf16 %v549, %v548
      %v564 = vpack.c.bf16 %v551, %v550
      %v565 = vpack.c.bf16 %v553, %v552
      %v566 = vpack.c.bf16 %v555, %v554
      %v567 = vpack.c.bf16 %v557, %v556
      %v568 = vpack.c.bf16 %v559, %v558
      %v569 = vpack.c.bf16 %v561, %v560
      %v578 = vunpack.c.l.b16 %v562
      %v579 = vunpack.c.h.b16 %v562
      %v580 = vunpack.c.l.b16 %v563
      %v581 = vunpack.c.h.b16 %v563
      %v582 = vunpack.c.l.b16 %v564
      %v583 = vunpack.c.h.b16 %v564
      %v584 = vunpack.c.l.b16 %v565
      %v585 = vunpack.c.h.b16 %v565
      %v586 = vunpack.c.l.b16 %v566
      %v587 = vunpack.c.h.b16 %v566
      %v588 = vunpack.c.l.b16 %v567
      %v589 = vunpack.c.h.b16 %v567
      %v590 = vunpack.c.l.b16 %v568
      %v591 = vunpack.c.h.b16 %v568
      %v592 = vunpack.c.l.b16 %v569
      %v593 = vunpack.c.h.b16 %v569
      %v594 = vpack.c.b16 %v578, %v578
      %v595 = vpack.c.b16 %v579, %v579
      %v596 = vpack.c.b16 %v580, %v580
      %v597 = vpack.c.b16 %v581, %v581
      %v598 = vpack.c.b16 %v582, %v582
      %v599 = vpack.c.b16 %v583, %v583
      %v600 = vpack.c.b16 %v584, %v584
      %v601 = vpack.c.b16 %v585, %v585
      %v602 = vpack.c.b16 %v586, %v586
      %v603 = vpack.c.b16 %v587, %v587
      %v604 = vpack.c.b16 %v588, %v588
      %v605 = vpack.c.b16 %v589, %v589
      %v606 = vpack.c.b16 %v590, %v590
      %v607 = vpack.c.b16 %v591, %v591
      %v608 = vpack.c.b16 %v592, %v592
      %v609 = vpack.c.b16 %v593, %v593
      %626 = vst [vmem:[%s257] sm:$0xf] %v594
      %627 = vst [vmem:[%s257 + $0x4] sm:$0xf] %v595
      %628 = vst [vmem:[%s257 + $0x8] sm:$0xf] %v596
      %629 = vst [vmem:[%s257 + $0xc] sm:$0xf] %v597
      %630 = vst [vmem:[%s257 + $0x10] sm:$0xf] %v598
      %631 = vst [vmem:[%s257 + $0x14] sm:$0xf] %v599
      %632 = vst [vmem:[%s257 + $0x18] sm:$0xf] %v600
      %633 = vst [vmem:[%s257 + $0x1c] sm:$0xf] %v601
      %634 = vst [vmem:[%s257 + $0x20] sm:$0xf] %v602
      %635 = vst [vmem:[%s257 + $0x24] sm:$0xf] %v603
      %636 = vst [vmem:[%s257 + $0x28] sm:$0xf] %v604
      %637 = vst [vmem:[%s257 + $0x2c] sm:$0xf] %v605
      %638 = vst [vmem:[%s257 + $0x30] sm:$0xf] %v606
      %639 = vst [vmem:[%s257 + $0x34] sm:$0xf] %v607
      %640 = vst [vmem:[%s257 + $0x38] sm:$0xf] %v608
      %641 = vst [vmem:[%s257 + $0x3c] sm:$0xf] %v609
      %s642 = smul.u32 16, %s20
      %p643 = scmp.lt.s32.totalorder %s19, 1
      %s644 = scalar_select %p643, %s19, 1
      %p645 = scmp.lt.s32.totalorder %s642, 15
      %s646 = scalar_select %p645, %s642, 15
      %s647 = smul.addr %s644, 16
      %s648 = sadd.s32 %s646, %s647
      %s649 = smul.addr %s648, 4
      %s650 = scalar_lea.vmem %s4, %s649
      // Predicated region
      $region37: #{language_encoder_forward.6} parent=35 // pred_check
        %p651 = pneg %p143
      $region38: #{language_encoder_forward.6} parent=35 // pred_check_branch
        %653 = sbr.rel (%p651) target = $region40
      $region39: #{language_encoder_forward.6} parent=35 // pred_region
        %s654 = smul.u32 16, %s20
      $region40: #{language_encoder_forward.6} parent=35 // pred_fallthru
        _
    $region36: #{language_encoder_forward.6} parent=5 // pred_fallthru
      _
    %p655 = scmp.le.s32.totalorder 2, %s10
    // Predicated region
    $region41: #{language_encoder_forward.6} parent=5 // pred_check
      %p656 = pneg %p655
    $region42: #{language_encoder_forward.6} parent=5 // pred_check_branch
      %658 = sbr.rel (%p656) target = $region44
    $region43: #{language_encoder_forward.6} parent=5 // pred_region
      %s659 = ssub.s32 %s10, 2
      // Predicated region
      $region45: #{language_encoder_forward.6} parent=43 // pred_check
        %p660 = pneg %p149
      $region46: #{language_encoder_forward.6} parent=43 // pred_check_branch
        %662 = sbr.rel (%p660) target = $region48
      $region47: #{language_encoder_forward.6} parent=43 // pred_region
        %s663 = smul.u32 16, %s22
        %p664 = scmp.lt.s32.totalorder %s21, 1
        %s665 = scalar_select %p664, %s21, 1
        %p666 = scmp.lt.s32.totalorder %s663, 15
        %s667 = scalar_select %p666, %s663, 15
        %s668 = smul.addr %s665, 16
        %s669 = sadd.s32 %s667, %s668
        %s670 = smul.addr %s669, 4
        %s671 = scalar_lea.vmem %s4, %s670
      $region48: #{language_encoder_forward.6} parent=43 // pred_fallthru
        _
    $region44: #{language_encoder_forward.6} parent=5 // pred_fallthru
      _
  $region6: #{language_encoder_forward.6} parent=0 // loop_footer
    %s14 = sadd.s32 1, %s10
  $region7: #{language_encoder_forward.6} parent=0 // loop_footer_branch
    %9 = sbr.rel target = $region3
  $region8: #{language_encoder_forward.6} parent=0 // loop_exit
    _

// kernel: language_encoder_forward.11
$region0: #{language_encoder_forward.11}
  #allocation0 [shape = 'u32[]', space=smem, size = 0x4, offset = 0x4, fixed_abs, tag = 'smem constant byte address 0x4 - core index']
  #allocation1 [shape = 'u32[144,128]{1,0:T(1,128)}', space=vmem, size = 0x12000, scoped, tag = 'internal scratch']
  %s0 = inlined_call_operand.vmem [shape: bf16[2,128,128], index: 0, kind: input, shape index: {}]
  %s1 = inlined_call_operand.vmem [shape: f32[2,1,128], index: 1, kind: input, shape index: {}]
  %s2 = inlined_call_operand.hbm [shape: f32[2,128], index: 2, kind: output, shape index: {}]
  %s3 = sld [smem:[#allocation0]]
  $region18: #{language_encoder_forward.11} parent=0
    _
  %s5 = ssub.s32 1, %s3
  %s6 = scalar_select 0, %s5, %s3
  $region1: #{language_encoder_forward.11} parent=0
    #allocation2 [shape = 'u8[1024]{0}', space=vmem, size = 0x400, scoped, tag = 'output window, operand 0, single buffered']
    #allocation3 [shape = 's32[1]{0}', space=sflag, size = 0x4, scoped, tag = 'scoped memory for language_encoder_forward.11']
    %7 = vsyncpa [#allocation3], 0
    // Predicated region
    $region2: #{language_encoder_forward.11} parent=1 // pred_check
      _
    $region3: #{language_encoder_forward.11} parent=1 // pred_check_branch
      %9 = sbr.rel (0) target = $region5
    $region4: #{language_encoder_forward.11} parent=1 // pred_region
      _
    $region5: #{language_encoder_forward.11} parent=1 // pred_fallthru
      _
    // Predicated region
    $region6: #{language_encoder_forward.11} parent=1 // pred_check
      _
    $region7: #{language_encoder_forward.11} parent=1 // pred_check_branch
      %11 = sbr.rel (0) target = $region9
    $region8: #{language_encoder_forward.11} parent=1 // pred_region
      _
    $region9: #{language_encoder_forward.11} parent=1 // pred_fallthru
      _
    %v12 = vld [vmem:[%s0] sm:$0xf]
    %v13 = vld [vmem:[%s0 + $0x4] sm:$0xf]
    %v14 = vld [vmem:[%s0 + $0x8] sm:$0xf]
    %v15 = vld [vmem:[%s0 + $0xc] sm:$0xf]
    %v16 = vld [vmem:[%s0 + $0x10] sm:$0xf]
    %v17 = vld [vmem:[%s0 + $0x14] sm:$0xf]
    %v18 = vld [vmem:[%s0 + $0x18] sm:$0xf]
    %v19 = vld [vmem:[%s0 + $0x1c] sm:$0xf]
    %v20 = vld [vmem:[%s0 + $0x20] sm:$0xf]
    %v21 = vld [vmem:[%s0 + $0x24] sm:$0xf]
    %v22 = vld [vmem:[%s0 + $0x28] sm:$0xf]
    %v23 = vld [vmem:[%s0 + $0x2c] sm:$0xf]
    %v24 = vld [vmem:[%s0 + $0x30] sm:$0xf]
    %v25 = vld [vmem:[%s0 + $0x34] sm:$0xf]
    %v26 = vld [vmem:[%s0 + $0x38] sm:$0xf]
    %v27 = vld [vmem:[%s0 + $0x3c] sm:$0xf]
    %v28 = vld [vmem:[%s0 + $0x40] sm:$0xf]
    %v29 = vld [vmem:[%s0 + $0x44] sm:$0xf]
    %v30 = vld [vmem:[%s0 + $0x48] sm:$0xf]
    %v31 = vld [vmem:[%s0 + $0x4c] sm:$0xf]
    %v32 = vld [vmem:[%s0 + $0x50] sm:$0xf]
    %v33 = vld [vmem:[%s0 + $0x54] sm:$0xf]
    %v34 = vld [vmem:[%s0 + $0x58] sm:$0xf]
    %v35 = vld [vmem:[%s0 + $0x5c] sm:$0xf]
    %v36 = vld [vmem:[%s0 + $0x60] sm:$0xf]
    %v37 = vld [vmem:[%s0 + $0x64] sm:$0xf]
    %v38 = vld [vmem:[%s0 + $0x68] sm:$0xf]
    %v39 = vld [vmem:[%s0 + $0x6c] sm:$0xf]
    %v40 = vld [vmem:[%s0 + $0x70] sm:$0xf]
    %v41 = vld [vmem:[%s0 + $0x74] sm:$0xf]
    %v42 = vld [vmem:[%s0 + $0x78] sm:$0xf]
    %v43 = vld [vmem:[%s0 + $0x7c] sm:$0xf]
    %v44 = vunpack.c.l.bf16 %v12
    %v45 = vunpack.c.l.bf16 %v13
    %v46 = vunpack.c.l.bf16 %v14
    %v47 = vunpack.c.l.bf16 %v15
    %v48 = vunpack.c.l.bf16 %v16
    %v49 = vunpack.c.l.bf16 %v17
    %v50 = vunpack.c.l.bf16 %v18
    %v51 = vunpack.c.l.bf16 %v19
    %v52 = vunpack.c.l.bf16 %v20
    %v53 = vunpack.c.l.bf16 %v21
    %v54 = vunpack.c.l.bf16 %v22
    %v55 = vunpack.c.l.bf16 %v23
    %v56 = vunpack.c.l.bf16 %v24
    %v57 = vunpack.c.l.bf16 %v25
    %v58 = vunpack.c.l.bf16 %v26
    %v59 = vunpack.c.l.bf16 %v27
    %v60 = vunpack.c.l.bf16 %v28
    %v61 = vunpack.c.l.bf16 %v29
    %v62 = vunpack.c.l.bf16 %v30
    %v63 = vunpack.c.l.bf16 %v31
    %v64 = vunpack.c.l.bf16 %v32
    %v65 = vunpack.c.l.bf16 %v33
    %v66 = vunpack.c.l.bf16 %v34
    %v67 = vunpack.c.l.bf16 %v35
    %v68 = vunpack.c.l.bf16 %v36
    %v69 = vunpack.c.l.bf16 %v37
    %v70 = vunpack.c.l.bf16 %v38
    %v71 = vunpack.c.l.bf16 %v39
    %v72 = vunpack.c.l.bf16 %v40
    %v73 = vunpack.c.l.bf16 %v41
    %v74 = vunpack.c.l.bf16 %v42
    %v75 = vunpack.c.l.bf16 %v43
    %v76 = vld [vmem:[%s1] sm:$0x1]
    %v77 = vld [vmem:[%s1 + $0x1] sm:$0x1]
    %78 = vmatprep.subr.mxu0 0.0
    %79 = vmatpush1.msra.mxu0 %v44
    %80 = vmatprep.subr.mxu0 0.0
    %81 = vmatpush1.msra.mxu0 %v45
    %82 = vmatprep.subr.mxu0 0.0
    %83 = vmatpush1.msra.mxu0 %v46
    %84 = vmatprep.subr.mxu0 0.0
    %85 = vmatpush1.msra.mxu0 %v47
    %86 = vmatprep.subr.mxu0 0.0
    %87 = vmatpush1.msra.mxu0 %v48
    %88 = vmatprep.subr.mxu0 0.0
    %89 = vmatpush1.msra.mxu0 %v49
    %90 = vmatprep.subr.mxu0 0.0
    %91 = vmatpush1.msra.mxu0 %v50
    %92 = vmatprep.subr.mxu0 0.0
    %93 = vmatpush1.msra.mxu0 %v51
    %94 = vmatprep.subr.mxu0 0.0
    %95 = vmatpush1.msra.mxu0 %v52
    %96 = vmatprep.subr.mxu0 0.0
    %97 = vmatpush1.msra.mxu0 %v53
    %98 = vmatprep.subr.mxu0 0.0
    %99 = vmatpush1.msra.mxu0 %v54
    %100 = vmatprep.subr.mxu0 0.0
    %101 = vmatpush1.msra.mxu0 %v55
    %102 = vmatprep.subr.mxu0 0.0
    %103 = vmatpush1.msra.mxu0 %v56
    %104 = vmatprep.subr.mxu0 0.0
    %105 = vmatpush1.msra.mxu0 %v57
    %106 = vmatprep.subr.mxu0 0.0
    %107 = vmatpush1.msra.mxu0 %v58
    %108 = vmatprep.subr.mxu0 0.0
    %109 = vmatpush1.msra.mxu0 %v59
    %110 = vmatprep.subr.mxu0 0.0
    %111 = vmatpush1.msra.mxu0 0.0
    %112 = vmatprep.subr.mxu0 0.0
    %113 = vmatpush1.msra.mxu0 0.0
    %114 = vmatprep.subr.mxu0 0.0
    %115 = vmatpush1.msra.mxu0 0.0
    %116 = vmatprep.subr.mxu0 0.0
    %117 = vmatpush1.msra.mxu0 0.0
    %118 = vmatprep.subr.mxu0 0.0
    %119 = vmatpush1.msra.mxu0 0.0
    %120 = vmatprep.subr.mxu0 0.0
    %121 = vmatpush1.msra.mxu0 0.0
    %122 = vmatprep.subr.mxu0 0.0
    %123 = vmatpush1.msra.mxu0 0.0
    %124 = vmatprep.subr.mxu0 0.0
    %125 = vmatpush1.msra.mxu0 0.0
    %126 = vmatprep.subr.mxu0 0.0
    %127 = vmatpush1.msra.mxu0 0.0
    %128 = vmatprep.subr.mxu0 0.0
    %129 = vmatpush1.msra.mxu0 0.0
    %130 = vmatprep.subr.mxu0 0.0
    %131 = vmatpush1.msra.mxu0 0.0
    %132 = vmatprep.subr.mxu0 0.0
    %133 = vmatpush1.msra.mxu0 0.0
    %134 = vmatprep.subr.mxu0 0.0
    %135 = vmatpush1.msra.mxu0 0.0
    %136 = vmatprep.subr.mxu0 0.0
    %137 = vmatpush1.msra.mxu0 0.0
    %138 = vmatprep.subr.mxu0 0.0
    %139 = vmatpush1.msra.mxu0 0.0
    %140 = vmatprep.subr.mxu0 0.0
    %141 = vmatpush1.msra.mxu0 0.0
    %142 = vmatprep.mubr.f32.mxu0 0.0
    %143 = vmatmul.mubr.f32.gmra.mrb[0].mxu0 %v76
    %v144 = vpop.f32.mrb[0].mxu0
    %v145 = vadd.f32 0.0, %v144
    %v146 = vpop.f32.mrb[0].mxu0
    %147 = vdwg.mxu0
    %148 = vmatprep.subr.mxu0 0.0
    %149 = vmatpush1.msra.mxu0 %v60
    %150 = vmatprep.subr.mxu0 0.0
    %151 = vmatpush1.msra.mxu0 %v61
    %152 = vmatprep.subr.mxu0 0.0
    %153 = vmatpush1.msra.mxu0 %v62
    %154 = vmatprep.subr.mxu0 0.0
    %155 = vmatpush1.msra.mxu0 %v63
    %156 = vmatprep.subr.mxu0 0.0
    %157 = vmatpush1.msra.mxu0 %v64
    %158 = vmatprep.subr.mxu0 0.0
    %159 = vmatpush1.msra.mxu0 %v65
    %160 = vmatprep.subr.mxu0 0.0
    %161 = vmatpush1.msra.mxu0 %v66
    %162 = vmatprep.subr.mxu0 0.0
    %163 = vmatpush1.msra.mxu0 %v67
    %164 = vmatprep.subr.mxu0 0.0
    %165 = vmatpush1.msra.mxu0 %v68
    %166 = vmatprep.subr.mxu0 0.0
    %167 = vmatpush1.msra.mxu0 %v69
    %168 = vmatprep.subr.mxu0 0.0
    %169 = vmatpush1.msra.mxu0 %v70
    %170 = vmatprep.subr.mxu0 0.0
    %171 = vmatpush1.msra.mxu0 %v71
    %172 = vmatprep.subr.mxu0 0.0
    %173 = vmatpush1.msra.mxu0 %v72
    %174 = vmatprep.subr.mxu0 0.0
    %175 = vmatpush1.msra.mxu0 %v73
    %176 = vmatprep.subr.mxu0 0.0
    %177 = vmatpush1.msra.mxu0 %v74
    %178 = vmatprep.subr.mxu0 0.0
    %179 = vmatpush1.msra.mxu0 %v75
    %180 = vmatprep.subr.mxu0 0.0
    %181 = vmatpush1.msra.mxu0 0.0
    %182 = vmatprep.subr.mxu0 0.0
    %183 = vmatpush1.msra.mxu0 0.0
    %184 = vmatprep.subr.mxu0 0.0
    %185 = vmatpush1.msra.mxu0 0.0
    %186 = vmatprep.subr.mxu0 0.0
    %187 = vmatpush1.msra.mxu0 0.0
    %188 = vmatprep.subr.mxu0 0.0
    %189 = vmatpush1.msra.mxu0 0.0
    %190 = vmatprep.subr.mxu0 0.0
    %191 = vmatpush1.msra.mxu0 0.0
    %192 = vmatprep.subr.mxu0 0.0
    %193 = vmatpush1.msra.mxu0 0.0
    %194 = vmatprep.subr.mxu0 0.0
    %195 = vmatpush1.msra.mxu0 0.0
    %196 = vmatprep.subr.mxu0 0.0
    %197 = vmatpush1.msra.mxu0 0.0
    %198 = vmatprep.subr.mxu0 0.0
    %199 = vmatpush1.msra.mxu0 0.0
    %200 = vmatprep.subr.mxu0 0.0
    %201 = vmatpush1.msra.mxu0 0.0
    %202 = vmatprep.subr.mxu0 0.0
    %203 = vmatpush1.msra.mxu0 0.0
    %204 = vmatprep.subr.mxu0 0.0
    %205 = vmatpush1.msra.mxu0 0.0
    %206 = vmatprep.subr.mxu0 0.0
    %207 = vmatpush1.msra.mxu0 0.0
    %208 = vmatprep.subr.mxu0 0.0
    %209 = vmatpush1.msra.mxu0 0.0
    %210 = vmatprep.subr.mxu0 0.0
    %211 = vmatpush1.msra.mxu0 0.0
    %212 = vmatprep.mubr.f32.mxu0 0.0
    %213 = vmatmul.mubr.f32.gmra.mrb[0].mxu0 %v77
    %v214 = vpop.f32.mrb[0].mxu0
    %v215 = vadd.f32 0.0, %v214
    %v216 = vpop.f32.mrb[0].mxu0
    %217 = vdwg.mxu0
    %vm218 = vcmask 1040384
    %v219 = vsel %vm218, %v76, 0.0
    %220 = vadd.xlane.f32.xlu0 %v219
    %v221 = vpop.xlane.xlu0 %220
    %v222 = vsel %vm218, %v77, 0.0
    %223 = vadd.xlane.f32.xlu0 %v222
    %v224 = vpop.xlane.xlu0 %223
    %v225 = vmax.f32 %v221, 1e-09
    %v226 = vmax.f32 %v224, 1e-09
    %v227 = vrcp.pop %v225
    %v228 = vrcp.pop %v226
    %v229 = vmul.f32 %v145, %v227
    %v230 = vmul.f32 %v215, %v228
    %v231 = vmul.f32 %v229, %v229
    %v232 = vmul.f32 %v230, %v230
    %v235 = vrot.slane %v232, 7
    %vm236 = vcmask 1041409
    %v237 = vsel %vm236, %v235, %v231
    %vm239 = vcmask 1041408
    %v240 = vsel %vm239, %v237, 0.0
    %241 = vadd.xlane.f32.xlu0 %v240
    %v242 = vpop.xlane.xlu0 %241
    %v243 = vrsqrt.pop %v242
    %v244 = vmul.f32 %v242, %v243
    %vm245 = vcmp.eq.f32.partialorder %v242, inf
    %v246 = vsel %vm245, %v242, %v244
    %vm247 = vcmp.eq.f32.partialorder %v242, 0.0
    %v248 = vand.u32 %v242, 2147483648
    %v249 = vsel %vm247, %v248, %v246
    %v250 = vmax.f32 %v249, 1e-12
    %v252 = vrot.slane %v250, 1
    %v255 = vrcp.pop %v250
    %v256 = vmul.f32 %v229, %v255
    %v257 = vrcp.pop %v252
    %v258 = vmul.f32 %v230, %v257
    %v261 = vrot.slane %v258, 7
    %v262 = vsel %vm236, %v261, %v256
    %264 = vst [vmem:[#allocation2] sm:$0x3] %v262
    // Predicated region
    $region10: #{language_encoder_forward.11} parent=1 // pred_check
      _
    $region11: #{language_encoder_forward.11} parent=1 // pred_check_branch
      %266 = sbr.rel (0) target = $region13
    $region12: #{language_encoder_forward.11} parent=1 // pred_region
      %s268 = ssub.s32 32, 32
      %269 = vsyncadd [#allocation3], %s268
      %s271 = sshll.u32 [#allocation2], 4
      %s272 = int_to_ptr.vmem [resolvable:$true] %s271
      %274 = dma.vmem_to_hbm [thread:$0]  %s272, 32, %s2, [#allocation3]
    $region13: #{language_encoder_forward.11} parent=1 // pred_fallthru
      _
    // Predicated region
    $region14: #{language_encoder_forward.11} parent=1 // pred_check
      _
    $region15: #{language_encoder_forward.11} parent=1 // pred_check_branch
      %276 = sbr.rel (0) target = $region17
    $region16: #{language_encoder_forward.11} parent=1 // pred_region
      %277 = dma.done [#allocation3], 32
    $region17: #{language_encoder_forward.11} parent=1 // pred_fallthru
      _
    %278 = vsyncpa [#allocation3], 1

// kernel: language_encoder_forward.7
$region0: #{language_encoder_forward.7}
  #allocation0 [shape = 'u32[]', space=smem, size = 0x4, offset = 0x4, fixed_abs, tag = 'smem constant byte address 0x4 - core index']
  #allocation1 [shape = 'u32[144,128]{1,0:T(1,128)}', space=vmem, size = 0x12000, scoped, tag = 'internal scratch']
  #allocation2 [shape = 'f32[128,128]{1,0:T(8,128)}', space=vmem, size = 0x10000, scoped, tag = 'scratch operand']
  %s0 = inlined_call_operand.vmem [shape: bf16[2,128,128], index: 0, kind: input, shape index: {}]
  %s1 = inlined_call_operand.vmem [shape: bf16[2,128,64], index: 1, kind: input, shape index: {}]
  %s2 = inlined_call_operand.vmem [shape: bf16[2,128,64], index: 2, kind: input, shape index: {}]
  %s3 = inlined_call_operand.vmem [shape: bf16[2,128,64], index: 3, kind: input, shape index: {}]
  %s4 = inlined_call_operand.vmem [shape: f32[2,1,64], index: 4, kind: input, shape index: {}]
  %s5 = inlined_call_operand.vmem [shape: f32[2,1,64], index: 5, kind: input, shape index: {}]
  %s6 = inlined_call_operand.vmem [shape: f32[2,1,64], index: 6, kind: input, shape index: {}]
  %s7 = inlined_call_operand.vmem [shape: bf16[2,64,128], index: 7, kind: input, shape index: {}]
  %s8 = inlined_call_operand.vmem [shape: f32[1,128], index: 8, kind: input, shape index: {}]
  %s9 = inlined_call_operand.vmem [shape: f32[1,128], index: 9, kind: input, shape index: {}]
  %s10 = inlined_call_operand.vmem [shape: f32[1,128], index: 10, kind: input, shape index: {}]
  %s11 = inlined_call_operand.vmem [shape: f32[2,1,128], index: 11, kind: input, shape index: {}]
  %s12 = inlined_call_operand.vmem [shape: bf16[2,128,128], index: 12, kind: output, shape index: {}]
  %s13 = sld [smem:[#allocation0]]
  $region89: #{language_encoder_forward.7} parent=0
    _
  %s15 = ssub.s32 1, %s13
  %s16 = scalar_select 0, %s15, %s13
  loop: start=0, step=1, limit=6
  $region2: #{language_encoder_forward.7} parent=0 // loop_pre_header
    _
  $region3: #{language_encoder_forward.7} parent=0 // loop_header
    %s18 = sphi 0, %s22
    %p19 = scmp.ge.s32.totalorder %s18, 6
    %s25 = sphi 0, %s37
    %s26 = sphi 0, %s33
    %s27 = sphi 0, %s25
    %s28 = sphi 0, %s26
    %s29 = sphi 0, %s27
    %s30 = sphi 0, %s28
    %s40 = sphi 0, %s42
    %s43 = sphi 0, %s40
    %s44 = sphi 0, %s43
    %s60 = sphi 0, %s44
    %s66 = sphi 0, %s68
    %s69 = sphi 0, %s66
    %s70 = sphi 0, %s69
    %s86 = sphi 0, %s70
    %s92 = sphi 0, %s94
    %s95 = sphi 0, %s92
    %s96 = sphi 0, %s95
    %s112 = sphi 0, %s96
    %s118 = sphi 0, %s120
    %s121 = sphi 0, %s118
    %s122 = sphi 0, %s121
    %s138 = sphi 0, %s122
    %s144 = sphi 0, %s146
    %s147 = sphi 0, %s144
    %s148 = sphi 0, %s147
    %s164 = sphi 0, %s148
    %s170 = sphi 0, %s172
    %s173 = sphi 0, %s170
    %s174 = sphi 0, %s173
    %s190 = sphi 0, %s174
    %s196 = sphi 0, %s198
    %s199 = sphi 0, %s196
    %s200 = sphi 0, %s199
    %s216 = sphi 0, %s200
    %s222 = sphi 0, %s224
    %s225 = sphi 0, %s222
    %s226 = sphi 0, %s225
    %s242 = sphi 0, %s226
    %s246 = sphi 0, %s246
    %s248 = sphi 0, %s246
    %s249 = sphi 0, %s248
    %s263 = sphi 0, %s249
    %s267 = sphi 0, %s267
    %s269 = sphi 0, %s267
    %s270 = sphi 0, %s269
    %s284 = sphi 0, %s270
    %s288 = sphi 0, %s288
    %s290 = sphi 0, %s288
    %s291 = sphi 0, %s290
    %s305 = sphi 0, %s291
    %s311 = sphi 0, %s313
    %s314 = sphi 0, %s311
    %s315 = sphi 0, %s314
    %s331 = sphi 0, %s315
    %s337 = sphi 0, %s339
    %s340 = sphi 0, %s337
    %s341 = sphi 0, %s340
    %s357 = sphi 0, %s341
  $region4: #{language_encoder_forward.7} parent=0 // loop_header_branch
    %21 = sbr.rel (%p19) target = $region8
  $region5: #{language_encoder_forward.7} parent=0 // loop_body
    %s23 = ssub.s32 %s18, 1
    %s24 = ssub.s32 %s18, 2
    %s31 = sadd.s32 1, %s26
    %p32 = scmp.ge.s32.totalorder %s31, 2
    %s33 = scalar_select %p32, 0, %s31
    %s34 = sadd.s32 1, %s25
    %s35 = scalar_select %p32, %s34, %s25
    %p36 = scmp.ge.s32.totalorder %s35, 2
    %s37 = scalar_select %p36, 0, %s35
    %s38 = ssub.s32 %s25, %s37
    %p39 = scmp.eq.s32.totalorder %s38, 0
    %s41 = sadd.s32 %s40, 1
    %s42 = scalar_select %p39, %s40, %s41
    %p45 = pneg %p39
    %p46 = scmp.eq.s32.totalorder %s18, 3
    %p47 = por %p45, %p46
    %p48 = scmp.ne.s32.totalorder %s40, %s43
    %p49 = scmp.eq.s32.totalorder %s18, 0
    %p50 = por %p48, %p49
    %p51 = scmp.ne.s32.totalorder %s40, %s43
    %p52 = scmp.eq.s32.totalorder %s23, 3
    %p53 = por %p51, %p52
    %p54 = scmp.ne.s32.totalorder %s43, %s44
    %p55 = scmp.eq.s32.totalorder %s23, 0
    %p56 = por %p54, %p55
    %p57 = scmp.ne.s32.totalorder %s43, %s44
    %p58 = scmp.eq.s32.totalorder %s24, 3
    %p59 = por %p57, %p58
    %p61 = scmp.ne.s32.totalorder %s44, %s60
    %p62 = scmp.eq.s32.totalorder %s24, 0
    %p63 = por %p61, %p62
    %s64 = ssub.s32 %s26, %s33
    %p65 = scmp.eq.s32.totalorder %s64, 0
    %s67 = sadd.s32 %s66, 1
    %s68 = scalar_select %p65, %s66, %s67
    %p71 = pneg %p65
    %p72 = scmp.eq.s32.totalorder %s18, 3
    %p73 = por %p71, %p72
    %p74 = scmp.ne.s32.totalorder %s66, %s69
    %p75 = scmp.eq.s32.totalorder %s18, 0
    %p76 = por %p74, %p75
    %p77 = scmp.ne.s32.totalorder %s66, %s69
    %p78 = scmp.eq.s32.totalorder %s23, 3
    %p79 = por %p77, %p78
    %p80 = scmp.ne.s32.totalorder %s69, %s70
    %p81 = scmp.eq.s32.totalorder %s23, 0
    %p82 = por %p80, %p81
    %p83 = scmp.ne.s32.totalorder %s69, %s70
    %p84 = scmp.eq.s32.totalorder %s24, 3
    %p85 = por %p83, %p84
    %p87 = scmp.ne.s32.totalorder %s70, %s86
    %p88 = scmp.eq.s32.totalorder %s24, 0
    %p89 = por %p87, %p88
    %s90 = ssub.s32 %s26, %s33
    %p91 = scmp.eq.s32.totalorder %s90, 0
    %s93 = sadd.s32 %s92, 1
    %s94 = scalar_select %p91, %s92, %s93
    %p97 = pneg %p91
    %p98 = scmp.eq.s32.totalorder %s18, 3
    %p99 = por %p97, %p98
    %p100 = scmp.ne.s32.totalorder %s92, %s95
    %p101 = scmp.eq.s32.totalorder %s18, 0
    %p102 = por %p100, %p101
    %p103 = scmp.ne.s32.totalorder %s92, %s95
    %p104 = scmp.eq.s32.totalorder %s23, 3
    %p105 = por %p103, %p104
    %p106 = scmp.ne.s32.totalorder %s95, %s96
    %p107 = scmp.eq.s32.totalorder %s23, 0
    %p108 = por %p106, %p107
    %p109 = scmp.ne.s32.totalorder %s95, %s96
    %p110 = scmp.eq.s32.totalorder %s24, 3
    %p111 = por %p109, %p110
    %p113 = scmp.ne.s32.totalorder %s96, %s112
    %p114 = scmp.eq.s32.totalorder %s24, 0
    %p115 = por %p113, %p114
    %s116 = ssub.s32 %s26, %s33
    %p117 = scmp.eq.s32.totalorder %s116, 0
    %s119 = sadd.s32 %s118, 1
    %s120 = scalar_select %p117, %s118, %s119
    %p123 = pneg %p117
    %p124 = scmp.eq.s32.totalorder %s18, 3
    %p125 = por %p123, %p124
    %p126 = scmp.ne.s32.totalorder %s118, %s121
    %p127 = scmp.eq.s32.totalorder %s18, 0
    %p128 = por %p126, %p127
    %p129 = scmp.ne.s32.totalorder %s118, %s121
    %p130 = scmp.eq.s32.totalorder %s23, 3
    %p131 = por %p129, %p130
    %p132 = scmp.ne.s32.totalorder %s121, %s122
    %p133 = scmp.eq.s32.totalorder %s23, 0
    %p134 = por %p132, %p133
    %p135 = scmp.ne.s32.totalorder %s121, %s122
    %p136 = scmp.eq.s32.totalorder %s24, 3
    %p137 = por %p135, %p136
    %p139 = scmp.ne.s32.totalorder %s122, %s138
    %p140 = scmp.eq.s32.totalorder %s24, 0
    %p141 = por %p139, %p140
    %s142 = ssub.s32 %s26, %s33
    %p143 = scmp.eq.s32.totalorder %s142, 0
    %s145 = sadd.s32 %s144, 1
    %s146 = scalar_select %p143, %s144, %s145
    %p149 = pneg %p143
    %p150 = scmp.eq.s32.totalorder %s18, 3
    %p151 = por %p149, %p150
    %p152 = scmp.ne.s32.totalorder %s144, %s147
    %p153 = scmp.eq.s32.totalorder %s18, 0
    %p154 = por %p152, %p153
    %p155 = scmp.ne.s32.totalorder %s144, %s147
    %p156 = scmp.eq.s32.totalorder %s23, 3
    %p157 = por %p155, %p156
    %p158 = scmp.ne.s32.totalorder %s147, %s148
    %p159 = scmp.eq.s32.totalorder %s23, 0
    %p160 = por %p158, %p159
    %p161 = scmp.ne.s32.totalorder %s147, %s148
    %p162 = scmp.eq.s32.totalorder %s24, 3
    %p163 = por %p161, %p162
    %p165 = scmp.ne.s32.totalorder %s148, %s164
    %p166 = scmp.eq.s32.totalorder %s24, 0
    %p167 = por %p165, %p166
    %s168 = ssub.s32 %s26, %s33
    %p169 = scmp.eq.s32.totalorder %s168, 0
    %s171 = sadd.s32 %s170, 1
    %s172 = scalar_select %p169, %s170, %s171
    %p175 = pneg %p169
    %p176 = scmp.eq.s32.totalorder %s18, 3
    %p177 = por %p175, %p176
    %p178 = scmp.ne.s32.totalorder %s170, %s173
    %p179 = scmp.eq.s32.totalorder %s18, 0
    %p180 = por %p178, %p179
    %p181 = scmp.ne.s32.totalorder %s170, %s173
    %p182 = scmp.eq.s32.totalorder %s23, 3
    %p183 = por %p181, %p182
    %p184 = scmp.ne.s32.totalorder %s173, %s174
    %p185 = scmp.eq.s32.totalorder %s23, 0
    %p186 = por %p184, %p185
    %p187 = scmp.ne.s32.totalorder %s173, %s174
    %p188 = scmp.eq.s32.totalorder %s24, 3
    %p189 = por %p187, %p188
    %p191 = scmp.ne.s32.totalorder %s174, %s190
    %p192 = scmp.eq.s32.totalorder %s24, 0
    %p193 = por %p191, %p192
    %s194 = ssub.s32 %s26, %s33
    %p195 = scmp.eq.s32.totalorder %s194, 0
    %s197 = sadd.s32 %s196, 1
    %s198 = scalar_select %p195, %s196, %s197
    %p201 = pneg %p195
    %p202 = scmp.eq.s32.totalorder %s18, 3
    %p203 = por %p201, %p202
    %p204 = scmp.ne.s32.totalorder %s196, %s199
    %p205 = scmp.eq.s32.totalorder %s18, 0
    %p206 = por %p204, %p205
    %p207 = scmp.ne.s32.totalorder %s196, %s199
    %p208 = scmp.eq.s32.totalorder %s23, 3
    %p209 = por %p207, %p208
    %p210 = scmp.ne.s32.totalorder %s199, %s200
    %p211 = scmp.eq.s32.totalorder %s23, 0
    %p212 = por %p210, %p211
    %p213 = scmp.ne.s32.totalorder %s199, %s200
    %p214 = scmp.eq.s32.totalorder %s24, 3
    %p215 = por %p213, %p214
    %p217 = scmp.ne.s32.totalorder %s200, %s216
    %p218 = scmp.eq.s32.totalorder %s24, 0
    %p219 = por %p217, %p218
    %s220 = ssub.s32 %s26, %s33
    %p221 = scmp.eq.s32.totalorder %s220, 0
    %s223 = sadd.s32 %s222, 1
    %s224 = scalar_select %p221, %s222, %s223
    %p227 = pneg %p221
    %p228 = scmp.eq.s32.totalorder %s18, 3
    %p229 = por %p227, %p228
    %p230 = scmp.ne.s32.totalorder %s222, %s225
    %p231 = scmp.eq.s32.totalorder %s18, 0
    %p232 = por %p230, %p231
    %p233 = scmp.ne.s32.totalorder %s222, %s225
    %p234 = scmp.eq.s32.totalorder %s23, 3
    %p235 = por %p233, %p234
    %p236 = scmp.ne.s32.totalorder %s225, %s226
    %p237 = scmp.eq.s32.totalorder %s23, 0
    %p238 = por %p236, %p237
    %p239 = scmp.ne.s32.totalorder %s225, %s226
    %p240 = scmp.eq.s32.totalorder %s24, 3
    %p241 = por %p239, %p240
    %p243 = scmp.ne.s32.totalorder %s226, %s242
    %p244 = scmp.eq.s32.totalorder %s24, 0
    %p245 = por %p243, %p244
    %s247 = sadd.s32 %s246, 1
    %p250 = scmp.eq.s32.totalorder %s18, 3
    %p251 = scmp.ne.s32.totalorder %s246, %s248
    %p252 = scmp.eq.s32.totalorder %s18, 0
    %p253 = por %p251, %p252
    %p254 = scmp.ne.s32.totalorder %s246, %s248
    %p255 = scmp.eq.s32.totalorder %s23, 3
    %p256 = por %p254, %p255
    %p257 = scmp.ne.s32.totalorder %s248, %s249
    %p258 = scmp.eq.s32.totalorder %s23, 0
    %p259 = por %p257, %p258
    %p260 = scmp.ne.s32.totalorder %s248, %s249
    %p261 = scmp.eq.s32.totalorder %s24, 3
    %p262 = por %p260, %p261
    %p264 = scmp.ne.s32.totalorder %s249, %s263
    %p265 = scmp.eq.s32.totalorder %s24, 0
    %p266 = por %p264, %p265
    %s268 = sadd.s32 %s267, 1
    %p271 = scmp.eq.s32.totalorder %s18, 3
    %p272 = scmp.ne.s32.totalorder %s267, %s269
    %p273 = scmp.eq.s32.totalorder %s18, 0
    %p274 = por %p272, %p273
    %p275 = scmp.ne.s32.totalorder %s267, %s269
    %p276 = scmp.eq.s32.totalorder %s23, 3
    %p277 = por %p275, %p276
    %p278 = scmp.ne.s32.totalorder %s269, %s270
    %p279 = scmp.eq.s32.totalorder %s23, 0
    %p280 = por %p278, %p279
    %p281 = scmp.ne.s32.totalorder %s269, %s270
    %p282 = scmp.eq.s32.totalorder %s24, 3
    %p283 = por %p281, %p282
    %p285 = scmp.ne.s32.totalorder %s270, %s284
    %p286 = scmp.eq.s32.totalorder %s24, 0
    %p287 = por %p285, %p286
    %s289 = sadd.s32 %s288, 1
    %p292 = scmp.eq.s32.totalorder %s18, 3
    %p293 = scmp.ne.s32.totalorder %s288, %s290
    %p294 = scmp.eq.s32.totalorder %s18, 0
    %p295 = por %p293, %p294
    %p296 = scmp.ne.s32.totalorder %s288, %s290
    %p297 = scmp.eq.s32.totalorder %s23, 3
    %p298 = por %p296, %p297
    %p299 = scmp.ne.s32.totalorder %s290, %s291
    %p300 = scmp.eq.s32.totalorder %s23, 0
    %p301 = por %p299, %p300
    %p302 = scmp.ne.s32.totalorder %s290, %s291
    %p303 = scmp.eq.s32.totalorder %s24, 3
    %p304 = por %p302, %p303
    %p306 = scmp.ne.s32.totalorder %s291, %s305
    %p307 = scmp.eq.s32.totalorder %s24, 0
    %p308 = por %p306, %p307
    %s309 = ssub.s32 %s25, %s37
    %p310 = scmp.eq.s32.totalorder %s309, 0
    %s312 = sadd.s32 %s311, 1
    %s313 = scalar_select %p310, %s311, %s312
    %p316 = pneg %p310
    %p317 = scmp.eq.s32.totalorder %s18, 3
    %p318 = por %p316, %p317
    %p319 = scmp.ne.s32.totalorder %s311, %s314
    %p320 = scmp.eq.s32.totalorder %s18, 0
    %p321 = por %p319, %p320
    %p322 = scmp.ne.s32.totalorder %s311, %s314
    %p323 = scmp.eq.s32.totalorder %s23, 3
    %p324 = por %p322, %p323
    %p325 = scmp.ne.s32.totalorder %s314, %s315
    %p326 = scmp.eq.s32.totalorder %s23, 0
    %p327 = por %p325, %p326
    %p328 = scmp.ne.s32.totalorder %s314, %s315
    %p329 = scmp.eq.s32.totalorder %s24, 3
    %p330 = por %p328, %p329
    %p332 = scmp.ne.s32.totalorder %s315, %s331
    %p333 = scmp.eq.s32.totalorder %s24, 0
    %p334 = por %p332, %p333
    %s335 = ssub.s32 %s25, %s37
    %p336 = scmp.eq.s32.totalorder %s335, 0
    %s338 = sadd.s32 %s337, 1
    %s339 = scalar_select %p336, %s337, %s338
    %p342 = pneg %p336
    %p343 = scmp.eq.s32.totalorder %s18, 3
    %p344 = por %p342, %p343
    %p345 = scmp.ne.s32.totalorder %s337, %s340
    %p346 = scmp.eq.s32.totalorder %s18, 0
    %p347 = por %p345, %p346
    %p348 = scmp.ne.s32.totalorder %s337, %s340
    %p349 = scmp.eq.s32.totalorder %s23, 3
    %p350 = por %p348, %p349
    %p351 = scmp.ne.s32.totalorder %s340, %s341
    %p352 = scmp.eq.s32.totalorder %s23, 0
    %p353 = por %p351, %p352
    %p354 = scmp.ne.s32.totalorder %s340, %s341
    %p355 = scmp.eq.s32.totalorder %s24, 3
    %p356 = por %p354, %p355
    %p358 = scmp.ne.s32.totalorder %s341, %s357
    %p359 = scmp.eq.s32.totalorder %s24, 0
    %p360 = por %p358, %p359
    %p361 = scmp.le.s32.totalorder 1, %s18
    %p362 = scmp.lt.s32.totalorder %s18, 5
    %p363 = pnand %p361, %p362
    %p364 = pneg %p363
    // Predicated region
    $region9: #{language_encoder_forward.7} parent=5 // pred_check
      _
    $region10: #{language_encoder_forward.7} parent=5 // pred_check_branch
      %366 = sbr.rel (%p363) target = $region12
    $region11: #{language_encoder_forward.7} parent=5 // pred_region
      %s367 = ssub.s32 %s18, 1
      // Predicated region
      $region13: #{language_encoder_forward.7} parent=11 // pred_check
        %p368 = pneg %p259
      $region14: #{language_encoder_forward.7} parent=11 // pred_check_branch
        %370 = sbr.rel (%p368) target = $region16
      $region15: #{language_encoder_forward.7} parent=11 // pred_region
        _
      $region16: #{language_encoder_forward.7} parent=11 // pred_fallthru
        _
      // Predicated region
      $region17: #{language_encoder_forward.7} parent=11 // pred_check
        %p371 = pneg %p280
      $region18: #{language_encoder_forward.7} parent=11 // pred_check_branch
        %373 = sbr.rel (%p371) target = $region20
      $region19: #{language_encoder_forward.7} parent=11 // pred_region
        _
      $region20: #{language_encoder_forward.7} parent=11 // pred_fallthru
        _
      // Predicated region
      $region21: #{language_encoder_forward.7} parent=11 // pred_check
        %p374 = pneg %p301
      $region22: #{language_encoder_forward.7} parent=11 // pred_check_branch
        %376 = sbr.rel (%p374) target = $region24
      $region23: #{language_encoder_forward.7} parent=11 // pred_region
        _
      $region24: #{language_encoder_forward.7} parent=11 // pred_fallthru
        _
    $region12: #{language_encoder_forward.7} parent=5 // pred_fallthru
      _
    %p377 = scmp.lt.s32.totalorder %s18, 4
    // Predicated region
    $region25: #{language_encoder_forward.7} parent=5 // pred_check
      %p378 = pneg %p377
    $region26: #{language_encoder_forward.7} parent=5 // pred_check_branch
      %380 = sbr.rel (%p378) target = $region28
    $region27: #{language_encoder_forward.7} parent=5 // pred_region
      // Predicated region
      $region29: #{language_encoder_forward.7} parent=27 // pred_check
        %p381 = pneg %p50
      $region30: #{language_encoder_forward.7} parent=27 // pred_check_branch
        %383 = sbr.rel (%p381) target = $region32
      $region31: #{language_encoder_forward.7} parent=27 // pred_region
        %p384 = scmp.lt.s32.totalorder %s25, 1
        %s385 = scalar_select %p384, %s25, 1
        %s386 = smul.addr %s385, 16
        %s387 = smul.addr %s386, 4
        %s388 = scalar_lea.vmem %s0, %s387
      $region32: #{language_encoder_forward.7} parent=27 // pred_fallthru
        _
      // Predicated region
      $region33: #{language_encoder_forward.7} parent=27 // pred_check
        %p389 = pneg %p76
      $region34: #{language_encoder_forward.7} parent=27 // pred_check_branch
        %391 = sbr.rel (%p389) target = $region36
      $region35: #{language_encoder_forward.7} parent=27 // pred_region
        %p392 = scmp.lt.s32.totalorder %s26, 1
        %s393 = scalar_select %p392, %s26, 1
        %s394 = smul.addr %s393, 16
        %s395 = smul.addr %s394, 4
        %s396 = scalar_lea.vmem %s1, %s395
      $region36: #{language_encoder_forward.7} parent=27 // pred_fallthru
        _
      // Predicated region
      $region37: #{language_encoder_forward.7} parent=27 // pred_check
        %p397 = pneg %p102
      $region38: #{language_encoder_forward.7} parent=27 // pred_check_branch
        %399 = sbr.rel (%p397) target = $region40
      $region39: #{language_encoder_forward.7} parent=27 // pred_region
        %p400 = scmp.lt.s32.totalorder %s26, 1
        %s401 = scalar_select %p400, %s26, 1
        %s402 = smul.addr %s401, 16
        %s403 = smul.addr %s402, 4
        %s404 = scalar_lea.vmem %s2, %s403
      $region40: #{language_encoder_forward.7} parent=27 // pred_fallthru
        _
      // Predicated region
      $region41: #{language_encoder_forward.7} parent=27 // pred_check
        %p405 = pneg %p128
      $region42: #{language_encoder_forward.7} parent=27 // pred_check_branch
        %407 = sbr.rel (%p405) target = $region44
      $region43: #{language_encoder_forward.7} parent=27 // pred_region
        %p408 = scmp.lt.s32.totalorder %s26, 1
        %s409 = scalar_select %p408, %s26, 1
        %s410 = smul.addr %s409, 16
        %s411 = smul.addr %s410, 4
        %s412 = scalar_lea.vmem %s3, %s411
      $region44: #{language_encoder_forward.7} parent=27 // pred_fallthru
        _
      // Predicated region
      $region45: #{language_encoder_forward.7} parent=27 // pred_check
        %p413 = pneg %p154
      $region46: #{language_encoder_forward.7} parent=27 // pred_check_branch
        %415 = sbr.rel (%p413) target = $region48
      $region47: #{language_encoder_forward.7} parent=27 // pred_region
        %p416 = scmp.lt.s32.totalorder %s26, 1
        %s417 = scalar_select %p416, %s26, 1
        %s418 = scalar_lea.vmem %s4, %s417
      $region48: #{language_encoder_forward.7} parent=27 // pred_fallthru
        _
      // Predicated region
      $region49: #{language_encoder_forward.7} parent=27 // pred_check
        %p419 = pneg %p180
      $region50: #{language_encoder_forward.7} parent=27 // pred_check_branch
        %421 = sbr.rel (%p419) target = $region52
      $region51: #{language_encoder_forward.7} parent=27 // pred_region
        %p422 = scmp.lt.s32.totalorder %s26, 1
        %s423 = scalar_select %p422, %s26, 1
        %s424 = scalar_lea.vmem %s5, %s423
      $region52: #{language_encoder_forward.7} parent=27 // pred_fallthru
        _
      // Predicated region
      $region53: #{language_encoder_forward.7} parent=27 // pred_check
        %p425 = pneg %p206
      $region54: #{language_encoder_forward.7} parent=27 // pred_check_branch
        %427 = sbr.rel (%p425) target = $region56
      $region55: #{language_encoder_forward.7} parent=27 // pred_region
        %p428 = scmp.lt.s32.totalorder %s26, 1
        %s429 = scalar_select %p428, %s26, 1
        %s430 = scalar_lea.vmem %s6, %s429
      $region56: #{language_encoder_forward.7} parent=27 // pred_fallthru
        _
      // Predicated region
      $region57: #{language_encoder_forward.7} parent=27 // pred_check
        %p431 = pneg %p232
      $region58: #{language_encoder_forward.7} parent=27 // pred_check_branch
        %433 = sbr.rel (%p431) target = $region60
      $region59: #{language_encoder_forward.7} parent=27 // pred_region
        %p434 = scmp.lt.s32.totalorder %s26, 1
        %s435 = scalar_select %p434, %s26, 1
        %s436 = smul.addr %s435, 8
        %s437 = smul.addr %s436, 4
        %s438 = scalar_lea.vmem %s7, %s437
      $region60: #{language_encoder_forward.7} parent=27 // pred_fallthru
        _
      // Predicated region
      $region61: #{language_encoder_forward.7} parent=27 // pred_check
        %p439 = pneg %p321
      $region62: #{language_encoder_forward.7} parent=27 // pred_check_branch
        %441 = sbr.rel (%p439) target = $region64
      $region63: #{language_encoder_forward.7} parent=27 // pred_region
        %p442 = scmp.lt.s32.totalorder %s25, 1
        %s443 = scalar_select %p442, %s25, 1
        %s444 = scalar_lea.vmem %s11, %s443
      $region64: #{language_encoder_forward.7} parent=27 // pred_fallthru
        _
    $region28: #{language_encoder_forward.7} parent=5 // pred_fallthru
      _
    %p445 = scmp.le.s32.totalorder 1, %s18
    %p446 = scmp.lt.s32.totalorder %s18, 5
    %p447 = pnand %p445, %p446
    %p448 = pneg %p447
    // Predicated region
    $region65: #{language_encoder_forward.7} parent=5 // pred_check
      _
    $region66: #{language_encoder_forward.7} parent=5 // pred_check_branch
      %450 = sbr.rel (%p447) target = $region68
    $region67: #{language_encoder_forward.7} parent=5 // pred_region
      %s451 = ssub.s32 %s18, 1
      %p452 = scmp.lt.s32.totalorder %s27, 1
      %s453 = scalar_select %p452, %s27, 1
      %s454 = smul.addr %s453, 16
      %s455 = smul.addr %s454, 4
      %s456 = scalar_lea.vmem %s0, %s455
      %p457 = pneg %p56
      %p458 = pneg %p53
      %p459 = scmp.lt.s32.totalorder %s28, 1
      %s460 = scalar_select %p459, %s28, 1
      %s461 = smul.addr %s460, 16
      %s462 = smul.addr %s461, 4
      %s463 = scalar_lea.vmem %s1, %s462
      %p464 = pneg %p82
      %p465 = pneg %p79
      %p466 = scmp.lt.s32.totalorder %s28, 1
      %s467 = scalar_select %p466, %s28, 1
      %s468 = smul.addr %s467, 16
      %s469 = smul.addr %s468, 4
      %s470 = scalar_lea.vmem %s2, %s469
      %p471 = pneg %p108
      %p472 = pneg %p105
      %p473 = scmp.lt.s32.totalorder %s28, 1
      %s474 = scalar_select %p473, %s28, 1
      %s475 = smul.addr %s474, 16
      %s476 = smul.addr %s475, 4
      %s477 = scalar_lea.vmem %s3, %s476
      %p478 = pneg %p134
      %p479 = pneg %p131
      %p480 = scmp.lt.s32.totalorder %s28, 1
      %s481 = scalar_select %p480, %s28, 1
      %s482 = scalar_lea.vmem %s4, %s481
      %p483 = pneg %p160
      %p484 = pneg %p157
      %p485 = scmp.lt.s32.totalorder %s28, 1
      %s486 = scalar_select %p485, %s28, 1
      %s487 = scalar_lea.vmem %s5, %s486
      %p488 = pneg %p186
      %p489 = pneg %p183
      %p490 = scmp.lt.s32.totalorder %s28, 1
      %s491 = scalar_select %p490, %s28, 1
      %s492 = scalar_lea.vmem %s6, %s491
      %p493 = pneg %p212
      %p494 = pneg %p209
      %p495 = scmp.lt.s32.totalorder %s28, 1
      %s496 = scalar_select %p495, %s28, 1
      %s497 = smul.addr %s496, 8
      %s498 = smul.addr %s497, 4
      %s499 = scalar_lea.vmem %s7, %s498
      %p500 = pneg %p238
      %p501 = pneg %p235
      %p502 = pneg %p259
      %p503 = pneg %p256
      %p504 = pneg %p280
      %p505 = pneg %p277
      %p506 = pneg %p301
      %p507 = pneg %p298
      %p508 = scmp.lt.s32.totalorder %s27, 1
      %s509 = scalar_select %p508, %s27, 1
      %s510 = scalar_lea.vmem %s11, %s509
      %p511 = pneg %p327
      %p512 = pneg %p324
      %p513 = pneg %p353
      %p514 = pneg %p350
      %p515 = scmp.lt.s32.totalorder %s27, 1
      %s516 = scalar_select %p515, %s27, 1
      %s517 = smul.addr %s516, 16
      %s518 = smul.addr %s517, 4
      %s519 = scalar_lea.vmem %s12, %s518
      %p520 = scmp.lt.s32.totalorder %s27, 1
      %s521 = scalar_select %p520, %s27, 1
      %s522 = smul.addr %s521, 16
      %s523 = smul.addr %s522, 4
      %s524 = scalar_lea.vmem %s0, %s523
      %p525 = scmp.lt.s32.totalorder %s28, 1
      %s526 = scalar_select %p525, %s28, 1
      %s527 = smul.addr %s526, 16
      %s528 = smul.addr %s527, 4
      %s529 = scalar_lea.vmem %s1, %s528
      %p530 = scmp.lt.s32.totalorder %s28, 1
      %s531 = scalar_select %p530, %s28, 1
      %s532 = smul.addr %s531, 16
      %s533 = smul.addr %s532, 4
      %s534 = scalar_lea.vmem %s2, %s533
      %p535 = scmp.lt.s32.totalorder %s28, 1
      %s536 = scalar_select %p535, %s28, 1
      %s537 = smul.addr %s536, 16
      %s538 = smul.addr %s537, 4
      %s539 = scalar_lea.vmem %s3, %s538
      %p540 = scmp.lt.s32.totalorder %s28, 1
      %s541 = scalar_select %p540, %s28, 1
      %s542 = scalar_lea.vmem %s4, %s541
      %p543 = scmp.lt.s32.totalorder %s28, 1
      %s544 = scalar_select %p543, %s28, 1
      %s545 = scalar_lea.vmem %s5, %s544
      %p546 = scmp.lt.s32.totalorder %s28, 1
      %s547 = scalar_select %p546, %s28, 1
      %s548 = scalar_lea.vmem %s6, %s547
      %p549 = scmp.lt.s32.totalorder %s28, 1
      %s550 = scalar_select %p549, %s28, 1
      %s551 = smul.addr %s550, 8
      %s552 = smul.addr %s551, 4
      %s553 = scalar_lea.vmem %s7, %s552
      %p554 = scmp.lt.s32.totalorder %s27, 1
      %s555 = scalar_select %p554, %s27, 1
      %s556 = scalar_lea.vmem %s11, %s555
      %p557 = scmp.lt.s32.totalorder %s27, 1
      %s558 = scalar_select %p557, %s27, 1
      %s559 = smul.addr %s558, 16
      %s560 = smul.addr %s559, 4
      %s561 = scalar_lea.vmem %s12, %s560
      %p563 = scmp.eq.s32.totalorder %s28, 0
      // Predicated region
      $region69: #{language_encoder_forward.7} parent=67 // pred_check
        %p564 = pneg %p563
      $region70: #{language_encoder_forward.7} parent=67 // pred_check_branch
        %566 = sbr.rel (%p564) target = $region72
      $region71: #{language_encoder_forward.7} parent=67 // pred_region
        %567 = vst [vmem:[#allocation2] sm:$0xff] 0.0
        %568 = vst [vmem:[#allocation2 + $0x8] sm:$0xff] 0.0
        %569 = vst [vmem:[#allocation2 + $0x10] sm:$0xff] 0.0
        %570 = vst [vmem:[#allocation2 + $0x18] sm:$0xff] 0.0
        %571 = vst [vmem:[#allocation2 + $0x20] sm:$0xff] 0.0
        %572 = vst [vmem:[#allocation2 + $0x28] sm:$0xff] 0.0
        %573 = vst [vmem:[#allocation2 + $0x30] sm:$0xff] 0.0
        %574 = vst [vmem:[#allocation2 + $0x38] sm:$0xff] 0.0
        %575 = vst [vmem:[#allocation2 + $0x40] sm:$0xff] 0.0
        %576 = vst [vmem:[#allocation2 + $0x48] sm:$0xff] 0.0
        %577 = vst [vmem:[#allocation2 + $0x50] sm:$0xff] 0.0
        %578 = vst [vmem:[#allocation2 + $0x58] sm:$0xff] 0.0
        %579 = vst [vmem:[#allocation2 + $0x60] sm:$0xff] 0.0
        %580 = vst [vmem:[#allocation2 + $0x68] sm:$0xff] 0.0
        %581 = vst [vmem:[#allocation2 + $0x70] sm:$0xff] 0.0
        %582 = vst [vmem:[#allocation2 + $0x78] sm:$0xff] 0.0
      $region72: #{language_encoder_forward.7} parent=67 // pred_fallthru
        _
      %v583 = vld [vmem:[%s524] sm:$0xf]
      %v584 = vld [vmem:[%s524 + $0x4] sm:$0xf]
      %v585 = vld [vmem:[%s524 + $0x8] sm:$0xf]
      %v586 = vld [vmem:[%s524 + $0xc] sm:$0xf]
      %v587 = vld [vmem:[%s524 + $0x10] sm:$0xf]
      %v588 = vld [vmem:[%s524 + $0x14] sm:$0xf]
      %v589 = vld [vmem:[%s524 + $0x18] sm:$0xf]
      %v590 = vld [vmem:[%s524 + $0x1c] sm:$0xf]
      %v591 = vld [vmem:[%s524 + $0x20] sm:$0xf]
      %v592 = vld [vmem:[%s524 + $0x24] sm:$0xf]
      %v593 = vld [vmem:[%s524 + $0x28] sm:$0xf]
      %v594 = vld [vmem:[%s524 + $0x2c] sm:$0xf]
      %v595 = vld [vmem:[%s524 + $0x30] sm:$0xf]
      %v596 = vld [vmem:[%s524 + $0x34] sm:$0xf]
      %v597 = vld [vmem:[%s524 + $0x38] sm:$0xf]
      %v598 = vld [vmem:[%s524 + $0x3c] sm:$0xf]
      %v599 = vld [vmem:[%s529] sm:$0xf]
      %v600 = vld [vmem:[%s529 + $0x4] sm:$0xf]
      %v601 = vld [vmem:[%s529 + $0x8] sm:$0xf]
      %v602 = vld [vmem:[%s529 + $0xc] sm:$0xf]
      %v603 = vld [vmem:[%s529 + $0x10] sm:$0xf]
      %v604 = vld [vmem:[%s529 + $0x14] sm:$0xf]
      %v605 = vld [vmem:[%s529 + $0x18] sm:$0xf]
      %v606 = vld [vmem:[%s529 + $0x1c] sm:$0xf]
      %v607 = vld [vmem:[%s529 + $0x20] sm:$0xf]
      %v608 = vld [vmem:[%s529 + $0x24] sm:$0xf]
      %v609 = vld [vmem:[%s529 + $0x28] sm:$0xf]
      %v610 = vld [vmem:[%s529 + $0x2c] sm:$0xf]
      %v611 = vld [vmem:[%s529 + $0x30] sm:$0xf]
      %v612 = vld [vmem:[%s529 + $0x34] sm:$0xf]
      %v613 = vld [vmem:[%s529 + $0x38] sm:$0xf]
      %v614 = vld [vmem:[%s529 + $0x3c] sm:$0xf]
      %v615 = vld [vmem:[%s542] sm:$0x1]
      %v617 = vlaneseq
      %v618 = vshrl.u32 %v617, 7
      %v619 = vsub.s32 0, %v618
      %v620 = vrot.slane %v615, %v619
      %v638 = vunpack.c.l.b16 %v583
      %v639 = vunpack.c.l.b16 %v584
      %v640 = vunpack.c.l.b16 %v585
      %v641 = vunpack.c.l.b16 %v586
      %v642 = vunpack.c.l.b16 %v587
      %v643 = vunpack.c.l.b16 %v588
      %v644 = vunpack.c.l.b16 %v589
      %v645 = vunpack.c.l.b16 %v590
      %v646 = vunpack.c.l.b16 %v591
      %v647 = vunpack.c.l.b16 %v592
      %v648 = vunpack.c.l.b16 %v593
      %v649 = vunpack.c.l.b16 %v594
      %v650 = vunpack.c.l.b16 %v595
      %v651 = vunpack.c.l.b16 %v596
      %v652 = vunpack.c.l.b16 %v597
      %v653 = vunpack.c.l.b16 %v598
      %v654 = vpack.c.b16 %v639, %v638
      %v655 = vpack.c.b16 %v641, %v640
      %v656 = vpack.c.b16 %v643, %v642
      %v657 = vpack.c.b16 %v645, %v644
      %v658 = vpack.c.b16 %v647, %v646
      %v659 = vpack.c.b16 %v649, %v648
      %v660 = vpack.c.b16 %v651, %v650
      %v661 = vpack.c.b16 %v653, %v652
      %v686 = vunpack.c.l.b16 %v599
      %v687 = vunpack.c.l.b16 %v600
      %v688 = vunpack.c.l.b16 %v601
      %v689 = vunpack.c.l.b16 %v602
      %v690 = vunpack.c.l.b16 %v603
      %v691 = vunpack.c.l.b16 %v604
      %v692 = vunpack.c.l.b16 %v605
      %v693 = vunpack.c.l.b16 %v606
      %v694 = vunpack.c.l.b16 %v607
      %v695 = vunpack.c.l.b16 %v608
      %v696 = vunpack.c.l.b16 %v609
      %v697 = vunpack.c.l.b16 %v610
      %v698 = vunpack.c.l.b16 %v611
      %v699 = vunpack.c.l.b16 %v612
      %v700 = vunpack.c.l.b16 %v613
      %v701 = vunpack.c.l.b16 %v614
      %v702 = vpack.c.b16 %v687, %v686
      %v703 = vpack.c.b16 %v689, %v688
      %v704 = vpack.c.b16 %v691, %v690
      %v705 = vpack.c.b16 %v693, %v692
      %v706 = vpack.c.b16 %v695, %v694
      %v707 = vpack.c.b16 %v697, %v696
      %v708 = vpack.c.b16 %v699, %v698
      %v709 = vpack.c.b16 %v701, %v700
      %718 = vmatprep.subr.bf16.mxu0 0
      %719 = vmatpush1.bf16.msra.mxu0 %v702
      %720 = vmatprep.subr.bf16.mxu0 0
      %721 = vmatpush1.bf16.msra.mxu0 %v703
      %722 = vmatprep.subr.bf16.mxu0 0
      %723 = vmatpush1.bf16.msra.mxu0 %v704
      %724 = vmatprep.subr.bf16.mxu0 0
      %725 = vmatpush1.bf16.msra.mxu0 %v705
      %726 = vmatprep.subr.bf16.mxu0 0
      %727 = vmatpush1.bf16.msra.mxu0 %v706
      %728 = vmatprep.subr.bf16.mxu0 0
      %729 = vmatpush1.bf16.msra.mxu0 %v707
      %730 = vmatprep.subr.bf16.mxu0 0
      %731 = vmatpush1.bf16.msra.mxu0 %v708
      %732 = vmatprep.subr.bf16.mxu0 0
      %733 = vmatpush1.bf16.msra.mxu0 %v709
      %734 = vmatprep.subr.bf16.mxu0 0
      %735 = vmatpush1.bf16.msra.mxu0 0
      %736 = vmatprep.subr.bf16.mxu0 0
      %737 = vmatpush1.bf16.msra.mxu0 0
      %738 = vmatprep.subr.bf16.mxu0 0
      %739 = vmatpush1.bf16.msra.mxu0 0
      %740 = vmatprep.subr.bf16.mxu0 0
      %741 = vmatpush1.bf16.msra.mxu0 0
      %742 = vmatprep.subr.bf16.mxu0 0
      %743 = vmatpush1.bf16.msra.mxu0 0
      %744 = vmatprep.subr.bf16.mxu0 0
      %745 = vmatpush1.bf16.msra.mxu0 0
      %746 = vmatprep.subr.bf16.mxu0 0
      %747 = vmatpush1.bf16.msra.mxu0 0
      %748 = vmatprep.subr.bf16.mxu0 0
      %749 = vmatpush1.bf16.msra.mxu0 0
      %750 = vmatprep.mubr.bf16.mxu0 0
      %751 = vmatmul.mubr.bf16.gmra.mrb[0].mxu0 %v654
      %v752 = vpop.f32.mrb[0].mxu0
      %v753 = vadd.f32 %v620, %v752
      %v754 = vpop.f32.mrb[0].mxu0
      %v755 = vpop.f32.mrb[0].mxu0
      %v756 = vadd.f32 %v620, %v755
      %v757 = vpop.f32.mrb[0].mxu0
      %758 = vmatprep.mubr.bf16.mxu0 0
      %759 = vmatmul.mubr.bf16.gmra.mrb[0].mxu0 %v655
      %v760 = vpop.f32.mrb[0].mxu0
      %v761 = vadd.f32 %v620, %v760
      %v762 = vpop.f32.mrb[0].mxu0
      %v763 = vpop.f32.mrb[0].mxu0
      %v764 = vadd.f32 %v620, %v763
      %v765 = vpop.f32.mrb[0].mxu0
      %766 = vmatprep.mubr.bf16.mxu0 0
      %767 = vmatmul.mubr.bf16.gmra.mrb[0].mxu0 %v656
      %v768 = vpop.f32.mrb[0].mxu0
      %v769 = vadd.f32 %v620, %v768
      %v770 = vpop.f32.mrb[0].mxu0
      %v771 = vpop.f32.mrb[0].mxu0
      %v772 = vadd.f32 %v620, %v771
      %v773 = vpop.f32.mrb[0].mxu0
      %774 = vmatprep.mubr.bf16.mxu0 0
      %775 = vmatmul.mubr.bf16.gmra.mrb[0].mxu0 %v657
      %v776 = vpop.f32.mrb[0].mxu0
      %v777 = vadd.f32 %v620, %v776
      %v778 = vpop.f32.mrb[0].mxu0
      %v779 = vpop.f32.mrb[0].mxu0
      %v780 = vadd.f32 %v620, %v779
      %v781 = vpop.f32.mrb[0].mxu0
      %782 = vmatprep.mubr.bf16.mxu0 0
      %783 = vmatmul.mubr.bf16.gmra.mrb[0].mxu0 %v658
      %v784 = vpop.f32.mrb[0].mxu0
      %v785 = vadd.f32 %v620, %v784
      %v786 = vpop.f32.mrb[0].mxu0
      %v787 = vpop.f32.mrb[0].mxu0
      %v788 = vadd.f32 %v620, %v787
      %v789 = vpop.f32.mrb[0].mxu0
      %790 = vmatprep.mubr.bf16.mxu0 0
      %791 = vmatmul.mubr.bf16.gmra.mrb[0].mxu0 %v659
      %v792 = vpop.f32.mrb[0].mxu0
      %v793 = vadd.f32 %v620, %v792
      %v794 = vpop.f32.mrb[0].mxu0
      %v795 = vpop.f32.mrb[0].mxu0
      %v796 = vadd.f32 %v620, %v795
      %v797 = vpop.f32.mrb[0].mxu0
      %798 = vmatprep.mubr.bf16.mxu0 0
      %799 = vmatmul.mubr.bf16.gmra.mrb[0].mxu0 %v660
      %v800 = vpop.f32.mrb[0].mxu0
      %v801 = vadd.f32 %v620, %v800
      %v802 = vpop.f32.mrb[0].mxu0
      %v803 = vpop.f32.mrb[0].mxu0
      %v804 = vadd.f32 %v620, %v803
      %v805 = vpop.f32.mrb[0].mxu0
      %806 = vmatprep.mubr.bf16.mxu0 0
      %807 = vmatmul.mubr.bf16.gmra.mrb[0].mxu0 %v661
      %v808 = vpop.f32.mrb[0].mxu0
      %v809 = vadd.f32 %v620, %v808
      %v810 = vpop.f32.mrb[0].mxu0
      %v811 = vpop.f32.mrb[0].mxu0
      %v812 = vadd.f32 %v620, %v811
      %v813 = vpop.f32.mrb[0].mxu0
      %814 = vdwg.mxu0
      %v815 = vpack.c.bf16 %v756, %v753
      %v816 = vpack.c.bf16 %v764, %v761
      %v817 = vpack.c.bf16 %v772, %v769
      %v818 = vpack.c.bf16 %v780, %v777
      %v819 = vpack.c.bf16 %v788, %v785
      %v820 = vpack.c.bf16 %v796, %v793
      %v821 = vpack.c.bf16 %v804, %v801
      %v822 = vpack.c.bf16 %v812, %v809
      %v823 = vld [vmem:[%s534] sm:$0xf]
      %v824 = vld [vmem:[%s534 + $0x4] sm:$0xf]
      %v825 = vld [vmem:[%s534 + $0x8] sm:$0xf]
      %v826 = vld [vmem:[%s534 + $0xc] sm:$0xf]
      %v827 = vld [vmem:[%s534 + $0x10] sm:$0xf]
      %v828 = vld [vmem:[%s534 + $0x14] sm:$0xf]
      %v829 = vld [vmem:[%s534 + $0x18] sm:$0xf]
      %v830 = vld [vmem:[%s534 + $0x1c] sm:$0xf]
      %v831 = vld [vmem:[%s534 + $0x20] sm:$0xf]
      %v832 = vld [vmem:[%s534 + $0x24] sm:$0xf]
      %v833 = vld [vmem:[%s534 + $0x28] sm:$0xf]
      %v834 = vld [vmem:[%s534 + $0x2c] sm:$0xf]
      %v835 = vld [vmem:[%s534 + $0x30] sm:$0xf]
      %v836 = vld [vmem:[%s534 + $0x34] sm:$0xf]
      %v837 = vld [vmem:[%s534 + $0x38] sm:$0xf]
      %v838 = vld [vmem:[%s534 + $0x3c] sm:$0xf]
      %v839 = vld [vmem:[%s545] sm:$0x1]
      %v841 = vlaneseq
      %v842 = vshrl.u32 %v841, 7
      %v843 = vsub.s32 0, %v842
      %v844 = vrot.slane %v839, %v843
      %v862 = vunpack.c.l.b16 %v823
      %v863 = vunpack.c.l.b16 %v824
      %v864 = vunpack.c.l.b16 %v825
      %v865 = vunpack.c.l.b16 %v826
      %v866 = vunpack.c.l.b16 %v827
      %v867 = vunpack.c.l.b16 %v828
      %v868 = vunpack.c.l.b16 %v829
      %v869 = vunpack.c.l.b16 %v830
      %v870 = vunpack.c.l.b16 %v831
      %v871 = vunpack.c.l.b16 %v832
      %v872 = vunpack.c.l.b16 %v833
      %v873 = vunpack.c.l.b16 %v834
      %v874 = vunpack.c.l.b16 %v835
      %v875 = vunpack.c.l.b16 %v836
      %v876 = vunpack.c.l.b16 %v837
      %v877 = vunpack.c.l.b16 %v838
      %v878 = vpack.c.b16 %v863, %v862
      %v879 = vpack.c.b16 %v865, %v864
      %v880 = vpack.c.b16 %v867, %v866
      %v881 = vpack.c.b16 %v869, %v868
      %v882 = vpack.c.b16 %v871, %v870
      %v883 = vpack.c.b16 %v873, %v872
      %v884 = vpack.c.b16 %v875, %v874
      %v885 = vpack.c.b16 %v877, %v876
      %894 = vmatprep.subr.bf16.mxu0 0
      %895 = vmatpush1.bf16.msra.mxu0 %v878
      %896 = vmatprep.subr.bf16.mxu0 0
      %897 = vmatpush1.bf16.msra.mxu0 %v879
      %898 = vmatprep.subr.bf16.mxu0 0
      %899 = vmatpush1.bf16.msra.mxu0 %v880
      %900 = vmatprep.subr.bf16.mxu0 0
      %901 = vmatpush1.bf16.msra.mxu0 %v881
      %902 = vmatprep.subr.bf16.mxu0 0
      %903 = vmatpush1.bf16.msra.mxu0 %v882
      %904 = vmatprep.subr.bf16.mxu0 0
      %905 = vmatpush1.bf16.msra.mxu0 %v883
      %906 = vmatprep.subr.bf16.mxu0 0
      %907 = vmatpush1.bf16.msra.mxu0 %v884
      %908 = vmatprep.subr.bf16.mxu0 0
      %909 = vmatpush1.bf16.msra.mxu0 %v885
      %910 = vmatprep.subr.bf16.mxu0 0
      %911 = vmatpush1.bf16.msra.mxu0 0
      %912 = vmatprep.subr.bf16.mxu0 0
      %913 = vmatpush1.bf16.msra.mxu0 0
      %914 = vmatprep.subr.bf16.mxu0 0
      %915 = vmatpush1.bf16.msra.mxu0 0
      %916 = vmatprep.subr.bf16.mxu0 0
      %917 = vmatpush1.bf16.msra.mxu0 0
      %918 = vmatprep.subr.bf16.mxu0 0
      %919 = vmatpush1.bf16.msra.mxu0 0
      %920 = vmatprep.subr.bf16.mxu0 0
      %921 = vmatpush1.bf16.msra.mxu0 0
      %922 = vmatprep.subr.bf16.mxu0 0
      %923 = vmatpush1.bf16.msra.mxu0 0
      %924 = vmatprep.subr.bf16.mxu0 0
      %925 = vmatpush1.bf16.msra.mxu0 0
      %926 = vmatprep.mubr.bf16.mxu0 0
      %927 = vmatmul.mubr.bf16.gmra.mrb[0].mxu0 %v654
      %v928 = vpop.f32.mrb[0].mxu0
      %v929 = vadd.f32 %v844, %v928
      %v930 = vpop.f32.mrb[0].mxu0
      %v931 = vpop.f32.mrb[0].mxu0
      %v932 = vadd.f32 %v844, %v931
      %v933 = vpop.f32.mrb[0].mxu0
      %934 = vmatprep.mubr.bf16.mxu0 0
      %935 = vmatmul.mubr.bf16.gmra.mrb[0].mxu0 %v655
      %v936 = vpop.f32.mrb[0].mxu0
      %v937 = vadd.f32 %v844, %v936
      %v938 = vpop.f32.mrb[0].mxu0
      %v939 = vpop.f32.mrb[0].mxu0
      %v940 = vadd.f32 %v844, %v939
      %v941 = vpop.f32.mrb[0].mxu0
      %942 = vmatprep.mubr.bf16.mxu0 0
      %943 = vmatmul.mubr.bf16.gmra.mrb[0].mxu0 %v656
      %v944 = vpop.f32.mrb[0].mxu0
      %v945 = vadd.f32 %v844, %v944
      %v946 = vpop.f32.mrb[0].mxu0
      %v947 = vpop.f32.mrb[0].mxu0
      %v948 = vadd.f32 %v844, %v947
      %v949 = vpop.f32.mrb[0].mxu0
      %950 = vmatprep.mubr.bf16.mxu0 0
      %951 = vmatmul.mubr.bf16.gmra.mrb[0].mxu0 %v657
      %v952 = vpop.f32.mrb[0].mxu0
      %v953 = vadd.f32 %v844, %v952
      %v954 = vpop.f32.mrb[0].mxu0
      %v955 = vpop.f32.mrb[0].mxu0
      %v956 = vadd.f32 %v844, %v955
      %v957 = vpop.f32.mrb[0].mxu0
      %958 = vmatprep.mubr.bf16.mxu0 0
      %959 = vmatmul.mubr.bf16.gmra.mrb[0].mxu0 %v658
      %v960 = vpop.f32.mrb[0].mxu0
      %v961 = vadd.f32 %v844, %v960
      %v962 = vpop.f32.mrb[0].mxu0
      %v963 = vpop.f32.mrb[0].mxu0
      %v964 = vadd.f32 %v844, %v963
      %v965 = vpop.f32.mrb[0].mxu0
      %966 = vmatprep.mubr.bf16.mxu0 0
      %967 = vmatmul.mubr.bf16.gmra.mrb[0].mxu0 %v659
      %v968 = vpop.f32.mrb[0].mxu0
      %v969 = vadd.f32 %v844, %v968
      %v970 = vpop.f32.mrb[0].mxu0
      %v971 = vpop.f32.mrb[0].mxu0
      %v972 = vadd.f32 %v844, %v971
      %v973 = vpop.f32.mrb[0].mxu0
      %974 = vmatprep.mubr.bf16.mxu0 0
      %975 = vmatmul.mubr.bf16.gmra.mrb[0].mxu0 %v660
      %v976 = vpop.f32.mrb[0].mxu0
      %v977 = vadd.f32 %v844, %v976
      %v978 = vpop.f32.mrb[0].mxu0
      %v979 = vpop.f32.mrb[0].mxu0
      %v980 = vadd.f32 %v844, %v979
      %v981 = vpop.f32.mrb[0].mxu0
      %982 = vmatprep.mubr.bf16.mxu0 0
      %983 = vmatmul.mubr.bf16.gmra.mrb[0].mxu0 %v661
      %v984 = vpop.f32.mrb[0].mxu0
      %v985 = vadd.f32 %v844, %v984
      %v986 = vpop.f32.mrb[0].mxu0
      %v987 = vpop.f32.mrb[0].mxu0
      %v988 = vadd.f32 %v844, %v987
      %v989 = vpop.f32.mrb[0].mxu0
      %990 = vdwg.mxu0
      %v991 = vpack.c.bf16 %v932, %v929
      %v992 = vpack.c.bf16 %v940, %v937
      %v993 = vpack.c.bf16 %v948, %v945
      %v994 = vpack.c.bf16 %v956, %v953
      %v995 = vpack.c.bf16 %v964, %v961
      %v996 = vpack.c.bf16 %v972, %v969
      %v997 = vpack.c.bf16 %v980, %v977
      %v998 = vpack.c.bf16 %v988, %v985
      %v999 = vld [vmem:[%s539] sm:$0xf]
      %v1000 = vld [vmem:[%s539 + $0x4] sm:$0xf]
      %v1001 = vld [vmem:[%s539 + $0x8] sm:$0xf]
      %v1002 = vld [vmem:[%s539 + $0xc] sm:$0xf]
      %v1003 = vld [vmem:[%s539 + $0x10] sm:$0xf]
      %v1004 = vld [vmem:[%s539 + $0x14] sm:$0xf]
      %v1005 = vld [vmem:[%s539 + $0x18] sm:$0xf]
      %v1006 = vld [vmem:[%s539 + $0x1c] sm:$0xf]
      %v1007 = vld [vmem:[%s539 + $0x20] sm:$0xf]
      %v1008 = vld [vmem:[%s539 + $0x24] sm:$0xf]
      %v1009 = vld [vmem:[%s539 + $0x28] sm:$0xf]
      %v1010 = vld [vmem:[%s539 + $0x2c] sm:$0xf]
      %v1011 = vld [vmem:[%s539 + $0x30] sm:$0xf]
      %v1012 = vld [vmem:[%s539 + $0x34] sm:$0xf]
      %v1013 = vld [vmem:[%s539 + $0x38] sm:$0xf]
      %v1014 = vld [vmem:[%s539 + $0x3c] sm:$0xf]
      %v1015 = vld [vmem:[%s548] sm:$0x1]
      %v1017 = vlaneseq
      %v1018 = vshrl.u32 %v1017, 7
      %v1019 = vsub.s32 0, %v1018
      %v1020 = vrot.slane %v1015, %v1019
      %v1038 = vunpack.c.l.b16 %v999
      %v1039 = vunpack.c.l.b16 %v1000
      %v1040 = vunpack.c.l.b16 %v1001
      %v1041 = vunpack.c.l.b16 %v1002
      %v1042 = vunpack.c.l.b16 %v1003
      %v1043 = vunpack.c.l.b16 %v1004
      %v1044 = vunpack.c.l.b16 %v1005
      %v1045 = vunpack.c.l.b16 %v1006
      %v1046 = vunpack.c.l.b16 %v1007
      %v1047 = vunpack.c.l.b16 %v1008
      %v1048 = vunpack.c.l.b16 %v1009
      %v1049 = vunpack.c.l.b16 %v1010
      %v1050 = vunpack.c.l.b16 %v1011
      %v1051 = vunpack.c.l.b16 %v1012
      %v1052 = vunpack.c.l.b16 %v1013
      %v1053 = vunpack.c.l.b16 %v1014
      %v1054 = vpack.c.b16 %v1039, %v1038
      %v1055 = vpack.c.b16 %v1041, %v1040
      %v1056 = vpack.c.b16 %v1043, %v1042
      %v1057 = vpack.c.b16 %v1045, %v1044
      %v1058 = vpack.c.b16 %v1047, %v1046
      %v1059 = vpack.c.b16 %v1049, %v1048
      %v1060 = vpack.c.b16 %v1051, %v1050
      %v1061 = vpack.c.b16 %v1053, %v1052
      %1070 = vmatprep.subr.bf16.mxu0 0
      %1071 = vmatpush1.bf16.msra.mxu0 %v1054
      %1072 = vmatprep.subr.bf16.mxu0 0
      %1073 = vmatpush1.bf16.msra.mxu0 %v1055
      %1074 = vmatprep.subr.bf16.mxu0 0
      %1075 = vmatpush1.bf16.msra.mxu0 %v1056
      %1076 = vmatprep.subr.bf16.mxu0 0
      %1077 = vmatpush1.bf16.msra.mxu0 %v1057
      %1078 = vmatprep.subr.bf16.mxu0 0
      %1079 = vmatpush1.bf16.msra.mxu0 %v1058
      %1080 = vmatprep.subr.bf16.mxu0 0
      %1081 = vmatpush1.bf16.msra.mxu0 %v1059
      %1082 = vmatprep.subr.bf16.mxu0 0
      %1083 = vmatpush1.bf16.msra.mxu0 %v1060
      %1084 = vmatprep.subr.bf16.mxu0 0
      %1085 = vmatpush1.bf16.msra.mxu0 %v1061
      %1086 = vmatprep.subr.bf16.mxu0 0
      %1087 = vmatpush1.bf16.msra.mxu0 0
      %1088 = vmatprep.subr.bf16.mxu0 0
      %1089 = vmatpush1.bf16.msra.mxu0 0
      %1090 = vmatprep.subr.bf16.mxu0 0
      %1091 = vmatpush1.bf16.msra.mxu0 0
      %1092 = vmatprep.subr.bf16.mxu0 0
      %1093 = vmatpush1.bf16.msra.mxu0 0
      %1094 = vmatprep.subr.bf16.mxu0 0
      %1095 = vmatpush1.bf16.msra.mxu0 0
      %1096 = vmatprep.subr.bf16.mxu0 0
      %1097 = vmatpush1.bf16.msra.mxu0 0
      %1098 = vmatprep.subr.bf16.mxu0 0
      %1099 = vmatpush1.bf16.msra.mxu0 0
      %1100 = vmatprep.subr.bf16.mxu0 0
      %1101 = vmatpush1.bf16.msra.mxu0 0
      %1102 = vmatprep.mubr.bf16.mxu0 0
      %1103 = vmatmul.mubr.bf16.gmra.mrb[0].mxu0 %v654
      %v1104 = vpop.f32.mrb[0].mxu0
      %v1105 = vadd.f32 %v1020, %v1104
      %v1106 = vpop.f32.mrb[0].mxu0
      %v1107 = vpop.f32.mrb[0].mxu0
      %v1108 = vadd.f32 %v1020, %v1107
      %v1109 = vpop.f32.mrb[0].mxu0
      %1110 = vmatprep.mubr.bf16.mxu0 0
      %1111 = vmatmul.mubr.bf16.gmra.mrb[0].mxu0 %v655
      %v1112 = vpop.f32.mrb[0].mxu0
      %v1113 = vadd.f32 %v1020, %v1112
      %v1114 = vpop.f32.mrb[0].mxu0
      %v1115 = vpop.f32.mrb[0].mxu0
      %v1116 = vadd.f32 %v1020, %v1115
      %v1117 = vpop.f32.mrb[0].mxu0
      %1118 = vmatprep.mubr.bf16.mxu0 0
      %1119 = vmatmul.mubr.bf16.gmra.mrb[0].mxu0 %v656
      %v1120 = vpop.f32.mrb[0].mxu0
      %v1121 = vadd.f32 %v1020, %v1120
      %v1122 = vpop.f32.mrb[0].mxu0
      %v1123 = vpop.f32.mrb[0].mxu0
      %v1124 = vadd.f32 %v1020, %v1123
      %v1125 = vpop.f32.mrb[0].mxu0
      %1126 = vmatprep.mubr.bf16.mxu0 0
      %1127 = vmatmul.mubr.bf16.gmra.mrb[0].mxu0 %v657
      %v1128 = vpop.f32.mrb[0].mxu0
      %v1129 = vadd.f32 %v1020, %v1128
      %v1130 = vpop.f32.mrb[0].mxu0
      %v1131 = vpop.f32.mrb[0].mxu0
      %v1132 = vadd.f32 %v1020, %v1131
      %v1133 = vpop.f32.mrb[0].mxu0
      %1134 = vmatprep.mubr.bf16.mxu0 0
      %1135 = vmatmul.mubr.bf16.gmra.mrb[0].mxu0 %v658
      %v1136 = vpop.f32.mrb[0].mxu0
      %v1137 = vadd.f32 %v1020, %v1136
      %v1138 = vpop.f32.mrb[0].mxu0
      %v1139 = vpop.f32.mrb[0].mxu0
      %v1140 = vadd.f32 %v1020, %v1139
      %v1141 = vpop.f32.mrb[0].mxu0
      %1142 = vmatprep.mubr.bf16.mxu0 0
      %1143 = vmatmul.mubr.bf16.gmra.mrb[0].mxu0 %v659
      %v1144 = vpop.f32.mrb[0].mxu0
      %v1145 = vadd.f32 %v1020, %v1144
      %v1146 = vpop.f32.mrb[0].mxu0
      %v1147 = vpop.f32.mrb[0].mxu0
      %v1148 = vadd.f32 %v1020, %v1147
      %v1149 = vpop.f32.mrb[0].mxu0
      %1150 = vmatprep.mubr.bf16.mxu0 0
      %1151 = vmatmul.mubr.bf16.gmra.mrb[0].mxu0 %v660
      %v1152 = vpop.f32.mrb[0].mxu0
      %v1153 = vadd.f32 %v1020, %v1152
      %v1154 = vpop.f32.mrb[0].mxu0
      %v1155 = vpop.f32.mrb[0].mxu0
      %v1156 = vadd.f32 %v1020, %v1155
      %v1157 = vpop.f32.mrb[0].mxu0
      %1158 = vmatprep.mubr.bf16.mxu0 0
      %1159 = vmatmul.mubr.bf16.gmra.mrb[0].mxu0 %v661
      %v1160 = vpop.f32.mrb[0].mxu0
      %v1161 = vadd.f32 %v1020, %v1160
      %v1162 = vpop.f32.mrb[0].mxu0
      %v1163 = vpop.f32.mrb[0].mxu0
      %v1164 = vadd.f32 %v1020, %v1163
      %v1165 = vpop.f32.mrb[0].mxu0
      %1166 = vdwg.mxu0
      %v1167 = vpack.c.bf16 %v1108, %v1105
      %v1168 = vpack.c.bf16 %v1116, %v1113
      %v1169 = vpack.c.bf16 %v1124, %v1121
      %v1170 = vpack.c.bf16 %v1132, %v1129
      %v1171 = vpack.c.bf16 %v1140, %v1137
      %v1172 = vpack.c.bf16 %v1148, %v1145
      %v1173 = vpack.c.bf16 %v1156, %v1153
      %v1174 = vpack.c.bf16 %v1164, %v1161
      %vm1175 = vcmask 523264
      %v1177 = vsel %vm1175, %v815, 0
      %v1180 = vsel %vm1175, %v816, 0
      %v1183 = vsel %vm1175, %v817, 0
      %v1186 = vsel %vm1175, %v818, 0
      %v1189 = vsel %vm1175, %v819, 0
      %v1192 = vsel %vm1175, %v820, 0
      %v1195 = vsel %vm1175, %v821, 0
      %v1198 = vsel %vm1175, %v822, 0
      %v1201 = vsel %vm1175, %v991, 0
      %v1204 = vsel %vm1175, %v992, 0
      %v1207 = vsel %vm1175, %v993, 0
      %v1210 = vsel %vm1175, %v994, 0
      %v1213 = vsel %vm1175, %v995, 0
      %v1216 = vsel %vm1175, %v996, 0
      %v1219 = vsel %vm1175, %v997, 0
      %v1222 = vsel %vm1175, %v998, 0
      %1224 = vmatprep.subr.bf16.mxu0 0
      %1225 = vmatpush1.bf16.xpose.msra.mxu0 %v1201
      %1226 = vmatprep.subr.bf16.mxu0 0
      %1227 = vmatpush1.bf16.xpose.msra.mxu0 %v1204
      %1228 = vmatprep.subr.bf16.mxu0 0
      %1229 = vmatpush1.bf16.xpose.msra.mxu0 %v1207
      %1230 = vmatprep.subr.bf16.mxu0 0
      %1231 = vmatpush1.bf16.xpose.msra.mxu0 %v1210
      %1232 = vmatprep.subr.bf16.mxu0 0
      %1233 = vmatpush1.bf16.xpose.msra.mxu0 %v1213
      %1234 = vmatprep.subr.bf16.mxu0 0
      %1235 = vmatpush1.bf16.xpose.msra.mxu0 %v1216
      %1236 = vmatprep.subr.bf16.mxu0 0
      %1237 = vmatpush1.bf16.xpose.msra.mxu0 %v1219
      %1238 = vmatprep.subr.bf16.mxu0 0
      %1239 = vmatpush1.bf16.xpose.msra.mxu0 %v1222
      %1240 = vmatprep.subr.bf16.mxu0 0
      %1241 = vmatpush1.bf16.xpose.msra.mxu0 0
      %1242 = vmatprep.subr.bf16.mxu0 0
      %1243 = vmatpush1.bf16.xpose.msra.mxu0 0
      %1244 = vmatprep.subr.bf16.mxu0 0
      %1245 = vmatpush1.bf16.xpose.msra.mxu0 0
      %1246 = vmatprep.subr.bf16.mxu0 0
      %1247 = vmatpush1.bf16.xpose.msra.mxu0 0
      %1248 = vmatprep.subr.bf16.mxu0 0
      %1249 = vmatpush1.bf16.xpose.msra.mxu0 0
      %1250 = vmatprep.subr.bf16.mxu0 0
      %1251 = vmatpush1.bf16.xpose.msra.mxu0 0
      %1252 = vmatprep.subr.bf16.mxu0 0
      %1253 = vmatpush1.bf16.xpose.msra.mxu0 0
      %1254 = vmatprep.subr.bf16.mxu0 0
      %1255 = vmatpush1.bf16.xpose.msra.mxu0 0
      %1256 = vmatprep.mubr.bf16.mxu0 0
      %1257 = vmatmul.mubr.bf16.gmra.mrb[0].mxu0 %v1177
      %v1258 = vpop.f32.mrb[0].mxu0
      %v1259 = vadd.f32 0.0, %v1258
      %v1260 = vpop.f32.mrb[0].mxu0
      %v1261 = vpop.f32.mrb[0].mxu0
      %v1262 = vadd.f32 0.0, %v1261
      %v1263 = vpop.f32.mrb[0].mxu0
      %1264 = vmatprep.mubr.bf16.mxu0 0
      %1265 = vmatmul.mubr.bf16.gmra.mrb[0].mxu0 %v1180
      %v1266 = vpop.f32.mrb[0].mxu0
      %v1267 = vadd.f32 0.0, %v1266
      %v1268 = vpop.f32.mrb[0].mxu0
      %v1269 = vpop.f32.mrb[0].mxu0
      %v1270 = vadd.f32 0.0, %v1269
      %v1271 = vpop.f32.mrb[0].mxu0
      %1272 = vmatprep.mubr.bf16.mxu0 0
      %1273 = vmatmul.mubr.bf16.gmra.mrb[0].mxu0 %v1183
      %v1274 = vpop.f32.mrb[0].mxu0
      %v1275 = vadd.f32 0.0, %v1274
      %v1276 = vpop.f32.mrb[0].mxu0
      %v1277 = vpop.f32.mrb[0].mxu0
      %v1278 = vadd.f32 0.0, %v1277
      %v1279 = vpop.f32.mrb[0].mxu0
      %1280 = vmatprep.mubr.bf16.mxu0 0
      %1281 = vmatmul.mubr.bf16.gmra.mrb[0].mxu0 %v1186
      %v1282 = vpop.f32.mrb[0].mxu0
      %v1283 = vadd.f32 0.0, %v1282
      %v1284 = vpop.f32.mrb[0].mxu0
      %v1285 = vpop.f32.mrb[0].mxu0
      %v1286 = vadd.f32 0.0, %v1285
      %v1287 = vpop.f32.mrb[0].mxu0
      %1288 = vmatprep.mubr.bf16.mxu0 0
      %1289 = vmatmul.mubr.bf16.gmra.mrb[0].mxu0 %v1189
      %v1290 = vpop.f32.mrb[0].mxu0
      %v1291 = vadd.f32 0.0, %v1290
      %v1292 = vpop.f32.mrb[0].mxu0
      %v1293 = vpop.f32.mrb[0].mxu0
      %v1294 = vadd.f32 0.0, %v1293
      %v1295 = vpop.f32.mrb[0].mxu0
      %1296 = vmatprep.mubr.bf16.mxu0 0
      %1297 = vmatmul.mubr.bf16.gmra.mrb[0].mxu0 %v1192
      %v1298 = vpop.f32.mrb[0].mxu0
      %v1299 = vadd.f32 0.0, %v1298
      %v1300 = vpop.f32.mrb[0].mxu0
      %v1301 = vpop.f32.mrb[0].mxu0
      %v1302 = vadd.f32 0.0, %v1301
      %v1303 = vpop.f32.mrb[0].mxu0
      %1304 = vmatprep.mubr.bf16.mxu0 0
      %1305 = vmatmul.mubr.bf16.gmra.mrb[0].mxu0 %v1195
      %v1306 = vpop.f32.mrb[0].mxu0
      %v1307 = vadd.f32 0.0, %v1306
      %v1308 = vpop.f32.mrb[0].mxu0
      %v1309 = vpop.f32.mrb[0].mxu0
      %v1310 = vadd.f32 0.0, %v1309
      %v1311 = vpop.f32.mrb[0].mxu0
      %1312 = vmatprep.mubr.bf16.mxu0 0
      %1313 = vmatmul.mubr.bf16.gmra.mrb[0].mxu0 %v1198
      %v1314 = vpop.f32.mrb[0].mxu0
      %v1315 = vadd.f32 0.0, %v1314
      %v1316 = vpop.f32.mrb[0].mxu0
      %v1317 = vpop.f32.mrb[0].mxu0
      %v1318 = vadd.f32 0.0, %v1317
      %v1319 = vpop.f32.mrb[0].mxu0
      %1320 = vdwg.mxu0
      %v1321 = vmul.f32 %v1259, 0.125
      %v1322 = vmul.f32 %v1262, 0.125
      %v1323 = vmul.f32 %v1267, 0.125
      %v1324 = vmul.f32 %v1270, 0.125
      %v1325 = vmul.f32 %v1275, 0.125
      %v1326 = vmul.f32 %v1278, 0.125
      %v1327 = vmul.f32 %v1283, 0.125
      %v1328 = vmul.f32 %v1286, 0.125
      %v1329 = vmul.f32 %v1291, 0.125
      %v1330 = vmul.f32 %v1294, 0.125
      %v1331 = vmul.f32 %v1299, 0.125
      %v1332 = vmul.f32 %v1302, 0.125
      %v1333 = vmul.f32 %v1307, 0.125
      %v1334 = vmul.f32 %v1310, 0.125
      %v1335 = vmul.f32 %v1315, 0.125
      %v1336 = vmul.f32 %v1318, 0.125
      %v1337 = vld [vmem:[%s556] sm:$0x1]
      %v1339 = vlaneseq
      %v1340 = vshrl.u32 %v1339, 7
      %v1341 = vsub.s32 0, %v1340
      %v1342 = vrot.slane %v1337, %v1341
      %v1344 = vadd.f32 %v1321, %v1342
      %v1345 = vadd.f32 %v1322, %v1342
      %v1346 = vadd.f32 %v1323, %v1342
      %v1347 = vadd.f32 %v1324, %v1342
      %v1348 = vadd.f32 %v1325, %v1342
      %v1349 = vadd.f32 %v1326, %v1342
      %v1350 = vadd.f32 %v1327, %v1342
      %v1351 = vadd.f32 %v1328, %v1342
      %v1352 = vadd.f32 %v1329, %v1342
      %v1353 = vadd.f32 %v1330, %v1342
      %v1354 = vadd.f32 %v1331, %v1342
      %v1355 = vadd.f32 %v1332, %v1342
      %v1356 = vadd.f32 %v1333, %v1342
      %v1357 = vadd.f32 %v1334, %v1342
      %v1358 = vadd.f32 %v1335, %v1342
      %v1359 = vadd.f32 %v1336, %v1342
      %1360 = vmax.xlane.f32.xlu0 %v1344
      %v1361 = vpop.xlane.xlu0 %1360
      %1362 = vmax.xlane.f32.xlu0 %v1345
      %v1363 = vpop.xlane.xlu0 %1362
      %1364 = vmax.xlane.f32.xlu0 %v1346
      %v1365 = vpop.xlane.xlu0 %1364
      %1366 = vmax.xlane.f32.xlu0 %v1347
      %v1367 = vpop.xlane.xlu0 %1366
      %1368 = vmax.xlane.f32.xlu0 %v1348
      %v1369 = vpop.xlane.xlu0 %1368
      %1370 = vmax.xlane.f32.xlu0 %v1349
      %v1371 = vpop.xlane.xlu0 %1370
      %1372 = vmax.xlane.f32.xlu0 %v1350
      %v1373 = vpop.xlane.xlu0 %1372
      %1374 = vmax.xlane.f32.xlu0 %v1351
      %v1375 = vpop.xlane.xlu0 %1374
      %1376 = vmax.xlane.f32.xlu0 %v1352
      %v1377 = vpop.xlane.xlu0 %1376
      %1378 = vmax.xlane.f32.xlu0 %v1353
      %v1379 = vpop.xlane.xlu0 %1378
      %1380 = vmax.xlane.f32.xlu0 %v1354
      %v1381 = vpop.xlane.xlu0 %1380
      %1382 = vmax.xlane.f32.xlu0 %v1355
      %v1383 = vpop.xlane.xlu0 %1382
      %1384 = vmax.xlane.f32.xlu0 %v1356
      %v1385 = vpop.xlane.xlu0 %1384
      %1386 = vmax.xlane.f32.xlu0 %v1357
      %v1387 = vpop.xlane.xlu0 %1386
      %1388 = vmax.xlane.f32.xlu0 %v1358
      %v1389 = vpop.xlane.xlu0 %1388
      %1390 = vmax.xlane.f32.xlu0 %v1359
      %v1391 = vpop.xlane.xlu0 %1390
      %v1392 = vsub.f32 %v1344, %v1361
      %v1393 = vsub.f32 %v1345, %v1363
      %v1394 = vsub.f32 %v1346, %v1365
      %v1395 = vsub.f32 %v1347, %v1367
      %v1396 = vsub.f32 %v1348, %v1369
      %v1397 = vsub.f32 %v1349, %v1371
      %v1398 = vsub.f32 %v1350, %v1373
      %v1399 = vsub.f32 %v1351, %v1375
      %v1400 = vsub.f32 %v1352, %v1377
      %v1401 = vsub.f32 %v1353, %v1379
      %v1402 = vsub.f32 %v1354, %v1381
      %v1403 = vsub.f32 %v1355, %v1383
      %v1404 = vsub.f32 %v1356, %v1385
      %v1405 = vsub.f32 %v1357, %v1387
      %v1406 = vsub.f32 %v1358, %v1389
      %v1407 = vsub.f32 %v1359, %v1391
      %v1408 = vmul.f32 %v1392, 1.442695
      %v1409 = vpow.pop %v1408
      %v1410 = vmul.f32 %v1393, 1.442695
      %v1411 = vpow.pop %v1410
      %v1412 = vmul.f32 %v1394, 1.442695
      %v1413 = vpow.pop %v1412
      %v1414 = vmul.f32 %v1395, 1.442695
      %v1415 = vpow.pop %v1414
      %v1416 = vmul.f32 %v1396, 1.442695
      %v1417 = vpow.pop %v1416
      %v1418 = vmul.f32 %v1397, 1.442695
      %v1419 = vpow.pop %v1418
      %v1420 = vmul.f32 %v1398, 1.442695
      %v1421 = vpow.pop %v1420
      %v1422 = vmul.f32 %v1399, 1.442695
      %v1423 = vpow.pop %v1422
      %v1424 = vmul.f32 %v1400, 1.442695
      %v1425 = vpow.pop %v1424
      %v1426 = vmul.f32 %v1401, 1.442695
      %v1427 = vpow.pop %v1426
      %v1428 = vmul.f32 %v1402, 1.442695
      %v1429 = vpow.pop %v1428
      %v1430 = vmul.f32 %v1403, 1.442695
      %v1431 = vpow.pop %v1430
      %v1432 = vmul.f32 %v1404, 1.442695
      %v1433 = vpow.pop %v1432
      %v1434 = vmul.f32 %v1405, 1.442695
      %v1435 = vpow.pop %v1434
      %v1436 = vmul.f32 %v1406, 1.442695
      %v1437 = vpow.pop %v1436
      %v1438 = vmul.f32 %v1407, 1.442695
      %v1439 = vpow.pop %v1438
      %1440 = vadd.xlane.f32.xlu0 %v1409
      %v1441 = vpop.xlane.xlu0 %1440
      %1442 = vadd.xlane.f32.xlu0 %v1411
      %v1443 = vpop.xlane.xlu0 %1442
      %1444 = vadd.xlane.f32.xlu0 %v1413
      %v1445 = vpop.xlane.xlu0 %1444
      %1446 = vadd.xlane.f32.xlu0 %v1415
      %v1447 = vpop.xlane.xlu0 %1446
      %1448 = vadd.xlane.f32.xlu0 %v1417
      %v1449 = vpop.xlane.xlu0 %1448
      %1450 = vadd.xlane.f32.xlu0 %v1419
      %v1451 = vpop.xlane.xlu0 %1450
      %1452 = vadd.xlane.f32.xlu0 %v1421
      %v1453 = vpop.xlane.xlu0 %1452
      %1454 = vadd.xlane.f32.xlu0 %v1423
      %v1455 = vpop.xlane.xlu0 %1454
      %1456 = vadd.xlane.f32.xlu0 %v1425
      %v1457 = vpop.xlane.xlu0 %1456
      %1458 = vadd.xlane.f32.xlu0 %v1427
      %v1459 = vpop.xlane.xlu0 %1458
      %1460 = vadd.xlane.f32.xlu0 %v1429
      %v1461 = vpop.xlane.xlu0 %1460
      %1462 = vadd.xlane.f32.xlu0 %v1431
      %v1463 = vpop.xlane.xlu0 %1462
      %1464 = vadd.xlane.f32.xlu0 %v1433
      %v1465 = vpop.xlane.xlu0 %1464
      %1466 = vadd.xlane.f32.xlu0 %v1435
      %v1467 = vpop.xlane.xlu0 %1466
      %1468 = vadd.xlane.f32.xlu0 %v1437
      %v1469 = vpop.xlane.xlu0 %1468
      %1470 = vadd.xlane.f32.xlu0 %v1439
      %v1471 = vpop.xlane.xlu0 %1470
      %v1472 = vrcp.pop %v1441
      %v1473 = vrcp.pop %v1443
      %v1474 = vrcp.pop %v1445
      %v1475 = vrcp.pop %v1447
      %v1476 = vrcp.pop %v1449
      %v1477 = vrcp.pop %v1451
      %v1478 = vrcp.pop %v1453
      %v1479 = vrcp.pop %v1455
      %v1480 = vrcp.pop %v1457
      %v1481 = vrcp.pop %v1459
      %v1482 = vrcp.pop %v1461
      %v1483 = vrcp.pop %v1463
      %v1484 = vrcp.pop %v1465
      %v1485 = vrcp.pop %v1467
      %v1486 = vrcp.pop %v1469
      %v1487 = vrcp.pop %v1471
      %v1488 = vmul.f32 %v1409, %v1472
      %v1489 = vmul.f32 %v1411, %v1473
      %v1490 = vmul.f32 %v1413, %v1474
      %v1491 = vmul.f32 %v1415, %v1475
      %v1492 = vmul.f32 %v1417, %v1476
      %v1493 = vmul.f32 %v1419, %v1477
      %v1494 = vmul.f32 %v1421, %v1478
      %v1495 = vmul.f32 %v1423, %v1479
      %v1496 = vmul.f32 %v1425, %v1480
      %v1497 = vmul.f32 %v1427, %v1481
      %v1498 = vmul.f32 %v1429, %v1482
      %v1499 = vmul.f32 %v1431, %v1483
      %v1500 = vmul.f32 %v1433, %v1484
      %v1501 = vmul.f32 %v1435, %v1485
      %v1502 = vmul.f32 %v1437, %v1486
      %v1503 = vmul.f32 %v1439, %v1487
      %v1504 = vpack.c.bf16 %v1489, %v1488
      %v1505 = vpack.c.bf16 %v1491, %v1490
      %v1506 = vpack.c.bf16 %v1493, %v1492
      %v1507 = vpack.c.bf16 %v1495, %v1494
      %v1508 = vpack.c.bf16 %v1497, %v1496
      %v1509 = vpack.c.bf16 %v1499, %v1498
      %v1510 = vpack.c.bf16 %v1501, %v1500
      %v1511 = vpack.c.bf16 %v1503, %v1502
      %1512 = vmatprep.subr.bf16.mxu0 0
      %1513 = vmatpush1.bf16.msra.mxu0 %v1167
      %1514 = vmatprep.subr.bf16.mxu0 0
      %1515 = vmatpush1.bf16.msra.mxu0 %v1168
      %1516 = vmatprep.subr.bf16.mxu0 0
      %1517 = vmatpush1.bf16.msra.mxu0 %v1169
      %1518 = vmatprep.subr.bf16.mxu0 0
      %1519 = vmatpush1.bf16.msra.mxu0 %v1170
      %1520 = vmatprep.subr.bf16.mxu0 0
      %1521 = vmatpush1.bf16.msra.mxu0 %v1171
      %1522 = vmatprep.subr.bf16.mxu0 0
      %1523 = vmatpush1.bf16.msra.mxu0 %v1172
      %1524 = vmatprep.subr.bf16.mxu0 0
      %1525 = vmatpush1.bf16.msra.mxu0 %v1173
      %1526 = vmatprep.subr.bf16.mxu0 0
      %1527 = vmatpush1.bf16.msra.mxu0 %v1174
      %1528 = vmatprep.subr.bf16.mxu0 0
      %1529 = vmatpush1.bf16.msra.mxu0 0
      %1530 = vmatprep.subr.bf16.mxu0 0
      %1531 = vmatpush1.bf16.msra.mxu0 0
      %1532 = vmatprep.subr.bf16.mxu0 0
      %1533 = vmatpush1.bf16.msra.mxu0 0
      %1534 = vmatprep.subr.bf16.mxu0 0
      %1535 = vmatpush1.bf16.msra.mxu0 0
      %1536 = vmatprep.subr.bf16.mxu0 0
      %1537 = vmatpush1.bf16.msra.mxu0 0
      %1538 = vmatprep.subr.bf16.mxu0 0
      %1539 = vmatpush1.bf16.msra.mxu0 0
      %1540 = vmatprep.subr.bf16.mxu0 0
      %1541 = vmatpush1.bf16.msra.mxu0 0
      %1542 = vmatprep.subr.bf16.mxu0 0
      %1543 = vmatpush1.bf16.msra.mxu0 0
      %1544 = vmatprep.mubr.bf16.mxu0 0
      %1545 = vmatmul.mubr.bf16.gmra.mrb[0].mxu0 %v1504
      %v1546 = vpop.f32.mrb[0].mxu0
      %v1547 = vadd.f32 0.0, %v1546
      %v1548 = vpop.f32.mrb[0].mxu0
      %v1549 = vpop.f32.mrb[0].mxu0
      %v1550 = vadd.f32 0.0, %v1549
      %v1551 = vpop.f32.mrb[0].mxu0
      %1552 = vmatprep.mubr.bf16.mxu0 0
      %1553 = vmatmul.mubr.bf16.gmra.mrb[0].mxu0 %v1505
      %v1554 = vpop.f32.mrb[0].mxu0
      %v1555 = vadd.f32 0.0, %v1554
      %v1556 = vpop.f32.mrb[0].mxu0
      %v1557 = vpop.f32.mrb[0].mxu0
      %v1558 = vadd.f32 0.0, %v1557
      %v1559 = vpop.f32.mrb[0].mxu0
      %1560 = vmatprep.mubr.bf16.mxu0 0
      %1561 = vmatmul.mubr.bf16.gmra.mrb[0].mxu0 %v1506
      %v1562 = vpop.f32.mrb[0].mxu0
      %v1563 = vadd.f32 0.0, %v1562
      %v1564 = vpop.f32.mrb[0].mxu0
      %v1565 = vpop.f32.mrb[0].mxu0
      %v1566 = vadd.f32 0.0, %v1565
      %v1567 = vpop.f32.mrb[0].mxu0
      %1568 = vmatprep.mubr.bf16.mxu0 0
      %1569 = vmatmul.mubr.bf16.gmra.mrb[0].mxu0 %v1507
      %v1570 = vpop.f32.mrb[0].mxu0
      %v1571 = vadd.f32 0.0, %v1570
      %v1572 = vpop.f32.mrb[0].mxu0
      %v1573 = vpop.f32.mrb[0].mxu0
      %v1574 = vadd.f32 0.0, %v1573
      %v1575 = vpop.f32.mrb[0].mxu0
      %1576 = vmatprep.mubr.bf16.mxu0 0
      %1577 = vmatmul.mubr.bf16.gmra.mrb[0].mxu0 %v1508
      %v1578 = vpop.f32.mrb[0].mxu0
      %v1579 = vadd.f32 0.0, %v1578
      %v1580 = vpop.f32.mrb[0].mxu0
      %v1581 = vpop.f32.mrb[0].mxu0
      %v1582 = vadd.f32 0.0, %v1581
      %v1583 = vpop.f32.mrb[0].mxu0
      %1584 = vmatprep.mubr.bf16.mxu0 0
      %1585 = vmatmul.mubr.bf16.gmra.mrb[0].mxu0 %v1509
      %v1586 = vpop.f32.mrb[0].mxu0
      %v1587 = vadd.f32 0.0, %v1586
      %v1588 = vpop.f32.mrb[0].mxu0
      %v1589 = vpop.f32.mrb[0].mxu0
      %v1590 = vadd.f32 0.0, %v1589
      %v1591 = vpop.f32.mrb[0].mxu0
      %1592 = vmatprep.mubr.bf16.mxu0 0
      %1593 = vmatmul.mubr.bf16.gmra.mrb[0].mxu0 %v1510
      %v1594 = vpop.f32.mrb[0].mxu0
      %v1595 = vadd.f32 0.0, %v1594
      %v1596 = vpop.f32.mrb[0].mxu0
      %v1597 = vpop.f32.mrb[0].mxu0
      %v1598 = vadd.f32 0.0, %v1597
      %v1599 = vpop.f32.mrb[0].mxu0
      %1600 = vmatprep.mubr.bf16.mxu0 0
      %1601 = vmatmul.mubr.bf16.gmra.mrb[0].mxu0 %v1511
      %v1602 = vpop.f32.mrb[0].mxu0
      %v1603 = vadd.f32 0.0, %v1602
      %v1604 = vpop.f32.mrb[0].mxu0
      %v1605 = vpop.f32.mrb[0].mxu0
      %v1606 = vadd.f32 0.0, %v1605
      %v1607 = vpop.f32.mrb[0].mxu0
      %1608 = vdwg.mxu0
      %v1609 = vld [vmem:[#allocation2] sm:$0xff]
      %v1610 = vld [vmem:[#allocation2 + $0x8] sm:$0xff]
      %v1611 = vld [vmem:[#allocation2 + $0x10] sm:$0xff]
      %v1612 = vld [vmem:[#allocation2 + $0x18] sm:$0xff]
      %v1613 = vld [vmem:[#allocation2 + $0x20] sm:$0xff]
      %v1614 = vld [vmem:[#allocation2 + $0x28] sm:$0xff]
      %v1615 = vld [vmem:[#allocation2 + $0x30] sm:$0xff]
      %v1616 = vld [vmem:[#allocation2 + $0x38] sm:$0xff]
      %v1617 = vld [vmem:[#allocation2 + $0x40] sm:$0xff]
      %v1618 = vld [vmem:[#allocation2 + $0x48] sm:$0xff]
      %v1619 = vld [vmem:[#allocation2 + $0x50] sm:$0xff]
      %v1620 = vld [vmem:[#allocation2 + $0x58] sm:$0xff]
      %v1621 = vld [vmem:[#allocation2 + $0x60] sm:$0xff]
      %v1622 = vld [vmem:[#allocation2 + $0x68] sm:$0xff]
      %v1623 = vld [vmem:[#allocation2 + $0x70] sm:$0xff]
      %v1624 = vld [vmem:[#allocation2 + $0x78] sm:$0xff]
      %v1625 = vpack.c.bf16 %v1550, %v1547
      %v1626 = vpack.c.bf16 %v1558, %v1555
      %v1627 = vpack.c.bf16 %v1566, %v1563
      %v1628 = vpack.c.bf16 %v1574, %v1571
      %v1629 = vpack.c.bf16 %v1582, %v1579
      %v1630 = vpack.c.bf16 %v1590, %v1587
      %v1631 = vpack.c.bf16 %v1598, %v1595
      %v1632 = vpack.c.bf16 %v1606, %v1603
      %v1633 = vld [vmem:[%s553] sm:$0xf]
      %v1634 = vld [vmem:[%s553 + $0x4] sm:$0xf]
      %v1635 = vld [vmem:[%s553 + $0x8] sm:$0xf]
      %v1636 = vld [vmem:[%s553 + $0xc] sm:$0xf]
      %v1637 = vld [vmem:[%s553 + $0x10] sm:$0xf]
      %v1638 = vld [vmem:[%s553 + $0x14] sm:$0xf]
      %v1639 = vld [vmem:[%s553 + $0x18] sm:$0xf]
      %v1640 = vld [vmem:[%s553 + $0x1c] sm:$0xf]
      %v1649 = vunpack.c.l.b16 %v1633
      %v1650 = vunpack.c.l.b16 %v1634
      %v1651 = vunpack.c.l.b16 %v1635
      %v1652 = vunpack.c.l.b16 %v1636
      %v1653 = vunpack.c.l.b16 %v1637
      %v1654 = vunpack.c.l.b16 %v1638
      %v1655 = vunpack.c.l.b16 %v1639
      %v1656 = vunpack.c.l.b16 %v1640
      %v1657 = vpack.c.b16 %v1650, %v1649
      %v1658 = vpack.c.b16 %v1652, %v1651
      %v1659 = vpack.c.b16 %v1654, %v1653
      %v1660 = vpack.c.b16 %v1656, %v1655
      %v1666 = vsel %vm1175, %v1625, 0
      %v1669 = vsel %vm1175, %v1626, 0
      %v1672 = vsel %vm1175, %v1627, 0
      %v1675 = vsel %vm1175, %v1628, 0
      %v1678 = vsel %vm1175, %v1629, 0
      %v1681 = vsel %vm1175, %v1630, 0
      %v1684 = vsel %vm1175, %v1631, 0
      %v1687 = vsel %vm1175, %v1632, 0
      %1689 = vmatprep.subr.bf16.mxu0 0
      %1690 = vmatpush1.bf16.msra.mxu0 %v1657
      %1691 = vmatprep.subr.bf16.mxu0 0
      %1692 = vmatpush1.bf16.msra.mxu0 %v1658
      %1693 = vmatprep.subr.bf16.mxu0 0
      %1694 = vmatpush1.bf16.msra.mxu0 %v1659
      %1695 = vmatprep.subr.bf16.mxu0 0
      %1696 = vmatpush1.bf16.msra.mxu0 %v1660
      %1697 = vmatprep.subr.bf16.mxu0 0
      %1698 = vmatpush1.bf16.msra.mxu0 0
      %1699 = vmatprep.subr.bf16.mxu0 0
      %1700 = vmatpush1.bf16.msra.mxu0 0
      %1701 = vmatprep.subr.bf16.mxu0 0
      %1702 = vmatpush1.bf16.msra.mxu0 0
      %1703 = vmatprep.subr.bf16.mxu0 0
      %1704 = vmatpush1.bf16.msra.mxu0 0
      %1705 = vmatprep.subr.bf16.mxu0 0
      %1706 = vmatpush1.bf16.msra.mxu0 0
      %1707 = vmatprep.subr.bf16.mxu0 0
      %1708 = vmatpush1.bf16.msra.mxu0 0
      %1709 = vmatprep.subr.bf16.mxu0 0
      %1710 = vmatpush1.bf16.msra.mxu0 0
      %1711 = vmatprep.subr.bf16.mxu0 0
      %1712 = vmatpush1.bf16.msra.mxu0 0
      %1713 = vmatprep.subr.bf16.mxu0 0
      %1714 = vmatpush1.bf16.msra.mxu0 0
      %1715 = vmatprep.subr.bf16.mxu0 0
      %1716 = vmatpush1.bf16.msra.mxu0 0
      %1717 = vmatprep.subr.bf16.mxu0 0
      %1718 = vmatpush1.bf16.msra.mxu0 0
      %1719 = vmatprep.subr.bf16.mxu0 0
      %1720 = vmatpush1.bf16.msra.mxu0 0
      %1721 = vmatprep.mubr.bf16.mxu0 0
      %1722 = vmatmul.mubr.bf16.gmra.mrb[0].mxu0 %v1666
      %v1723 = vpop.f32.mrb[0].mxu0
      %v1724 = vadd.f32 0.0, %v1723
      %v1725 = vpop.f32.mrb[0].mxu0
      %v1726 = vpop.f32.mrb[0].mxu0
      %v1727 = vadd.f32 0.0, %v1726
      %v1728 = vpop.f32.mrb[0].mxu0
      %1729 = vmatprep.mubr.bf16.mxu0 0
      %1730 = vmatmul.mubr.bf16.gmra.mrb[0].mxu0 %v1669
      %v1731 = vpop.f32.mrb[0].mxu0
      %v1732 = vadd.f32 0.0, %v1731
      %v1733 = vpop.f32.mrb[0].mxu0
      %v1734 = vpop.f32.mrb[0].mxu0
      %v1735 = vadd.f32 0.0, %v1734
      %v1736 = vpop.f32.mrb[0].mxu0
      %1737 = vmatprep.mubr.bf16.mxu0 0
      %1738 = vmatmul.mubr.bf16.gmra.mrb[0].mxu0 %v1672
      %v1739 = vpop.f32.mrb[0].mxu0
      %v1740 = vadd.f32 0.0, %v1739
      %v1741 = vpop.f32.mrb[0].mxu0
      %v1742 = vpop.f32.mrb[0].mxu0
      %v1743 = vadd.f32 0.0, %v1742
      %v1744 = vpop.f32.mrb[0].mxu0
      %1745 = vmatprep.mubr.bf16.mxu0 0
      %1746 = vmatmul.mubr.bf16.gmra.mrb[0].mxu0 %v1675
      %v1747 = vpop.f32.mrb[0].mxu0
      %v1748 = vadd.f32 0.0, %v1747
      %v1749 = vpop.f32.mrb[0].mxu0
      %v1750 = vpop.f32.mrb[0].mxu0
      %v1751 = vadd.f32 0.0, %v1750
      %v1752 = vpop.f32.mrb[0].mxu0
      %1753 = vmatprep.mubr.bf16.mxu0 0
      %1754 = vmatmul.mubr.bf16.gmra.mrb[0].mxu0 %v1678
      %v1755 = vpop.f32.mrb[0].mxu0
      %v1756 = vadd.f32 0.0, %v1755
      %v1757 = vpop.f32.mrb[0].mxu0
      %v1758 = vpop.f32.mrb[0].mxu0
      %v1759 = vadd.f32 0.0, %v1758
      %v1760 = vpop.f32.mrb[0].mxu0
      %1761 = vmatprep.mubr.bf16.mxu0 0
      %1762 = vmatmul.mubr.bf16.gmra.mrb[0].mxu0 %v1681
      %v1763 = vpop.f32.mrb[0].mxu0
      %v1764 = vadd.f32 0.0, %v1763
      %v1765 = vpop.f32.mrb[0].mxu0
      %v1766 = vpop.f32.mrb[0].mxu0
      %v1767 = vadd.f32 0.0, %v1766
      %v1768 = vpop.f32.mrb[0].mxu0
      %1769 = vmatprep.mubr.bf16.mxu0 0
      %1770 = vmatmul.mubr.bf16.gmra.mrb[0].mxu0 %v1684
      %v1771 = vpop.f32.mrb[0].mxu0
      %v1772 = vadd.f32 0.0, %v1771
      %v1773 = vpop.f32.mrb[0].mxu0
      %v1774 = vpop.f32.mrb[0].mxu0
      %v1775 = vadd.f32 0.0, %v1774
      %v1776 = vpop.f32.mrb[0].mxu0
      %1777 = vmatprep.mubr.bf16.mxu0 0
      %1778 = vmatmul.mubr.bf16.gmra.mrb[0].mxu0 %v1687
      %v1779 = vpop.f32.mrb[0].mxu0
      %v1780 = vadd.f32 0.0, %v1779
      %v1781 = vpop.f32.mrb[0].mxu0
      %v1782 = vpop.f32.mrb[0].mxu0
      %v1783 = vadd.f32 0.0, %v1782
      %v1784 = vpop.f32.mrb[0].mxu0
      %1785 = vdwg.mxu0
      %v1786 = vadd.f32 %v1609, %v1724
      %v1787 = vadd.f32 %v1610, %v1727
      %v1788 = vadd.f32 %v1611, %v1732
      %v1789 = vadd.f32 %v1612, %v1735
      %v1790 = vadd.f32 %v1613, %v1740
      %v1791 = vadd.f32 %v1614, %v1743
      %v1792 = vadd.f32 %v1615, %v1748
      %v1793 = vadd.f32 %v1616, %v1751
      %v1794 = vadd.f32 %v1617, %v1756
      %v1795 = vadd.f32 %v1618, %v1759
      %v1796 = vadd.f32 %v1619, %v1764
      %v1797 = vadd.f32 %v1620, %v1767
      %v1798 = vadd.f32 %v1621, %v1772
      %v1799 = vadd.f32 %v1622, %v1775
      %v1800 = vadd.f32 %v1623, %v1780
      %v1801 = vadd.f32 %v1624, %v1783
      %1802 = vst [vmem:[#allocation2] sm:$0xff] %v1786
      %1803 = vst [vmem:[#allocation2 + $0x8] sm:$0xff] %v1787
      %1804 = vst [vmem:[#allocation2 + $0x10] sm:$0xff] %v1788
      %1805 = vst [vmem:[#allocation2 + $0x18] sm:$0xff] %v1789
      %1806 = vst [vmem:[#allocation2 + $0x20] sm:$0xff] %v1790
      %1807 = vst [vmem:[#allocation2 + $0x28] sm:$0xff] %v1791
      %1808 = vst [vmem:[#allocation2 + $0x30] sm:$0xff] %v1792
      %1809 = vst [vmem:[#allocation2 + $0x38] sm:$0xff] %v1793
      %1810 = vst [vmem:[#allocation2 + $0x40] sm:$0xff] %v1794
      %1811 = vst [vmem:[#allocation2 + $0x48] sm:$0xff] %v1795
      %1812 = vst [vmem:[#allocation2 + $0x50] sm:$0xff] %v1796
      %1813 = vst [vmem:[#allocation2 + $0x58] sm:$0xff] %v1797
      %1814 = vst [vmem:[#allocation2 + $0x60] sm:$0xff] %v1798
      %1815 = vst [vmem:[#allocation2 + $0x68] sm:$0xff] %v1799
      %1816 = vst [vmem:[#allocation2 + $0x70] sm:$0xff] %v1800
      %1817 = vst [vmem:[#allocation2 + $0x78] sm:$0xff] %v1801
      %p1818 = scmp.eq.s32.totalorder %s28, 1
      // Predicated region
      $region73: #{language_encoder_forward.7} parent=67 // pred_check
        %p1819 = pneg %p1818
      $region74: #{language_encoder_forward.7} parent=67 // pred_check_branch
        %1821 = sbr.rel (%p1819) target = $region76
      $region75: #{language_encoder_forward.7} parent=67 // pred_region
        %v1822 = vld [vmem:[#allocation2] sm:$0xff]
        %v1823 = vld [vmem:[#allocation2 + $0x8] sm:$0xff]
        %v1824 = vld [vmem:[#allocation2 + $0x10] sm:$0xff]
        %v1825 = vld [vmem:[#allocation2 + $0x18] sm:$0xff]
        %v1826 = vld [vmem:[#allocation2 + $0x20] sm:$0xff]
        %v1827 = vld [vmem:[#allocation2 + $0x28] sm:$0xff]
        %v1828 = vld [vmem:[#allocation2 + $0x30] sm:$0xff]
        %v1829 = vld [vmem:[#allocation2 + $0x38] sm:$0xff]
        %v1830 = vld [vmem:[#allocation2 + $0x40] sm:$0xff]
        %v1831 = vld [vmem:[#allocation2 + $0x48] sm:$0xff]
        %v1832 = vld [vmem:[#allocation2 + $0x50] sm:$0xff]
        %v1833 = vld [vmem:[#allocation2 + $0x58] sm:$0xff]
        %v1834 = vld [vmem:[#allocation2 + $0x60] sm:$0xff]
        %v1835 = vld [vmem:[#allocation2 + $0x68] sm:$0xff]
        %v1836 = vld [vmem:[#allocation2 + $0x70] sm:$0xff]
        %v1837 = vld [vmem:[#allocation2 + $0x78] sm:$0xff]
        %v1838 = vld [vmem:[%s8] sm:$0x1]
        %v1840 = vlaneseq
        %v1841 = vshrl.u32 %v1840, 7
        %v1842 = vsub.s32 0, %v1841
        %v1843 = vrot.slane %v1838, %v1842
        %v1845 = vadd.f32 %v1822, %v1843
        %v1846 = vadd.f32 %v1823, %v1843
        %v1847 = vadd.f32 %v1824, %v1843
        %v1848 = vadd.f32 %v1825, %v1843
        %v1849 = vadd.f32 %v1826, %v1843
        %v1850 = vadd.f32 %v1827, %v1843
        %v1851 = vadd.f32 %v1828, %v1843
        %v1852 = vadd.f32 %v1829, %v1843
        %v1853 = vadd.f32 %v1830, %v1843
        %v1854 = vadd.f32 %v1831, %v1843
        %v1855 = vadd.f32 %v1832, %v1843
        %v1856 = vadd.f32 %v1833, %v1843
        %v1857 = vadd.f32 %v1834, %v1843
        %v1858 = vadd.f32 %v1835, %v1843
        %v1859 = vadd.f32 %v1836, %v1843
        %v1860 = vadd.f32 %v1837, %v1843
        %v1861 = vunpack.c.l.bf16 %v583
        %v1862 = vunpack.c.l.bf16 %v584
        %v1863 = vunpack.c.l.bf16 %v585
        %v1864 = vunpack.c.l.bf16 %v586
        %v1865 = vunpack.c.l.bf16 %v587
        %v1866 = vunpack.c.l.bf16 %v588
        %v1867 = vunpack.c.l.bf16 %v589
        %v1868 = vunpack.c.l.bf16 %v590
        %v1869 = vunpack.c.l.bf16 %v591
        %v1870 = vunpack.c.l.bf16 %v592
        %v1871 = vunpack.c.l.bf16 %v593
        %v1872 = vunpack.c.l.bf16 %v594
        %v1873 = vunpack.c.l.bf16 %v595
        %v1874 = vunpack.c.l.bf16 %v596
        %v1875 = vunpack.c.l.bf16 %v597
        %v1876 = vunpack.c.l.bf16 %v598
        %v1877 = vadd.f32 %v1845, %v1861
        %v1878 = vadd.f32 %v1846, %v1862
        %v1879 = vadd.f32 %v1847, %v1863
        %v1880 = vadd.f32 %v1848, %v1864
        %v1881 = vadd.f32 %v1849, %v1865
        %v1882 = vadd.f32 %v1850, %v1866
        %v1883 = vadd.f32 %v1851, %v1867
        %v1884 = vadd.f32 %v1852, %v1868
        %v1885 = vadd.f32 %v1853, %v1869
        %v1886 = vadd.f32 %v1854, %v1870
        %v1887 = vadd.f32 %v1855, %v1871
        %v1888 = vadd.f32 %v1856, %v1872
        %v1889 = vadd.f32 %v1857, %v1873
        %v1890 = vadd.f32 %v1858, %v1874
        %v1891 = vadd.f32 %v1859, %v1875
        %v1892 = vadd.f32 %v1860, %v1876
        %1893 = vadd.xlane.f32.xlu0 %v1877
        %v1894 = vpop.xlane.xlu0 %1893
        %1895 = vadd.xlane.f32.xlu0 %v1878
        %v1896 = vpop.xlane.xlu0 %1895
        %1897 = vadd.xlane.f32.xlu0 %v1879
        %v1898 = vpop.xlane.xlu0 %1897
        %1899 = vadd.xlane.f32.xlu0 %v1880
        %v1900 = vpop.xlane.xlu0 %1899
        %1901 = vadd.xlane.f32.xlu0 %v1881
        %v1902 = vpop.xlane.xlu0 %1901
        %1903 = vadd.xlane.f32.xlu0 %v1882
        %v1904 = vpop.xlane.xlu0 %1903
        %1905 = vadd.xlane.f32.xlu0 %v1883
        %v1906 = vpop.xlane.xlu0 %1905
        %1907 = vadd.xlane.f32.xlu0 %v1884
        %v1908 = vpop.xlane.xlu0 %1907
        %1909 = vadd.xlane.f32.xlu0 %v1885
        %v1910 = vpop.xlane.xlu0 %1909
        %1911 = vadd.xlane.f32.xlu0 %v1886
        %v1912 = vpop.xlane.xlu0 %1911
        %1913 = vadd.xlane.f32.xlu0 %v1887
        %v1914 = vpop.xlane.xlu0 %1913
        %1915 = vadd.xlane.f32.xlu0 %v1888
        %v1916 = vpop.xlane.xlu0 %1915
        %1917 = vadd.xlane.f32.xlu0 %v1889
        %v1918 = vpop.xlane.xlu0 %1917
        %1919 = vadd.xlane.f32.xlu0 %v1890
        %v1920 = vpop.xlane.xlu0 %1919
        %1921 = vadd.xlane.f32.xlu0 %v1891
        %v1922 = vpop.xlane.xlu0 %1921
        %1923 = vadd.xlane.f32.xlu0 %v1892
        %v1924 = vpop.xlane.xlu0 %1923
        %v1925 = vrcp.pop 128.0
        %v1926 = vmul.f32 %v1894, %v1925
        %v1927 = vmul.f32 %v1896, %v1925
        %v1928 = vmul.f32 %v1898, %v1925
        %v1929 = vmul.f32 %v1900, %v1925
        %v1930 = vmul.f32 %v1902, %v1925
        %v1931 = vmul.f32 %v1904, %v1925
        %v1932 = vmul.f32 %v1906, %v1925
        %v1933 = vmul.f32 %v1908, %v1925
        %v1934 = vmul.f32 %v1910, %v1925
        %v1935 = vmul.f32 %v1912, %v1925
        %v1936 = vmul.f32 %v1914, %v1925
        %v1937 = vmul.f32 %v1916, %v1925
        %v1938 = vmul.f32 %v1918, %v1925
        %v1939 = vmul.f32 %v1920, %v1925
        %v1940 = vmul.f32 %v1922, %v1925
        %v1941 = vmul.f32 %v1924, %v1925
        %v1942 = vsub.f32 %v1877, %v1926
        %v1943 = vsub.f32 %v1878, %v1927
        %v1944 = vsub.f32 %v1879, %v1928
        %v1945 = vsub.f32 %v1880, %v1929
        %v1946 = vsub.f32 %v1881, %v1930
        %v1947 = vsub.f32 %v1882, %v1931
        %v1948 = vsub.f32 %v1883, %v1932
        %v1949 = vsub.f32 %v1884, %v1933
        %v1950 = vsub.f32 %v1885, %v1934
        %v1951 = vsub.f32 %v1886, %v1935
        %v1952 = vsub.f32 %v1887, %v1936
        %v1953 = vsub.f32 %v1888, %v1937
        %v1954 = vsub.f32 %v1889, %v1938
        %v1955 = vsub.f32 %v1890, %v1939
        %v1956 = vsub.f32 %v1891, %v1940
        %v1957 = vsub.f32 %v1892, %v1941
        %v1958 = vmul.f32 %v1942, %v1942
        %v1959 = vmul.f32 %v1943, %v1943
        %v1960 = vmul.f32 %v1944, %v1944
        %v1961 = vmul.f32 %v1945, %v1945
        %v1962 = vmul.f32 %v1946, %v1946
        %v1963 = vmul.f32 %v1947, %v1947
        %v1964 = vmul.f32 %v1948, %v1948
        %v1965 = vmul.f32 %v1949, %v1949
        %v1966 = vmul.f32 %v1950, %v1950
        %v1967 = vmul.f32 %v1951, %v1951
        %v1968 = vmul.f32 %v1952, %v1952
        %v1969 = vmul.f32 %v1953, %v1953
        %v1970 = vmul.f32 %v1954, %v1954
        %v1971 = vmul.f32 %v1955, %v1955
        %v1972 = vmul.f32 %v1956, %v1956
        %v1973 = vmul.f32 %v1957, %v1957
        %1974 = vadd.xlane.f32.xlu0 %v1958
        %v1975 = vpop.xlane.xlu0 %1974
        %1976 = vadd.xlane.f32.xlu0 %v1959
        %v1977 = vpop.xlane.xlu0 %1976
        %1978 = vadd.xlane.f32.xlu0 %v1960
        %v1979 = vpop.xlane.xlu0 %1978
        %1980 = vadd.xlane.f32.xlu0 %v1961
        %v1981 = vpop.xlane.xlu0 %1980
        %1982 = vadd.xlane.f32.xlu0 %v1962
        %v1983 = vpop.xlane.xlu0 %1982
        %1984 = vadd.xlane.f32.xlu0 %v1963
        %v1985 = vpop.xlane.xlu0 %1984
        %1986 = vadd.xlane.f32.xlu0 %v1964
        %v1987 = vpop.xlane.xlu0 %1986
        %1988 = vadd.xlane.f32.xlu0 %v1965
        %v1989 = vpop.xlane.xlu0 %1988
        %1990 = vadd.xlane.f32.xlu0 %v1966
        %v1991 = vpop.xlane.xlu0 %1990
        %1992 = vadd.xlane.f32.xlu0 %v1967
        %v1993 = vpop.xlane.xlu0 %1992
        %1994 = vadd.xlane.f32.xlu0 %v1968
        %v1995 = vpop.xlane.xlu0 %1994
        %1996 = vadd.xlane.f32.xlu0 %v1969
        %v1997 = vpop.xlane.xlu0 %1996
        %1998 = vadd.xlane.f32.xlu0 %v1970
        %v1999 = vpop.xlane.xlu0 %1998
        %2000 = vadd.xlane.f32.xlu0 %v1971
        %v2001 = vpop.xlane.xlu0 %2000
        %2002 = vadd.xlane.f32.xlu0 %v1972
        %v2003 = vpop.xlane.xlu0 %2002
        %2004 = vadd.xlane.f32.xlu0 %v1973
        %v2005 = vpop.xlane.xlu0 %2004
        %v2006 = vmul.f32 %v1975, %v1925
        %v2007 = vmul.f32 %v1977, %v1925
        %v2008 = vmul.f32 %v1979, %v1925
        %v2009 = vmul.f32 %v1981, %v1925
        %v2010 = vmul.f32 %v1983, %v1925
        %v2011 = vmul.f32 %v1985, %v1925
        %v2012 = vmul.f32 %v1987, %v1925
        %v2013 = vmul.f32 %v1989, %v1925
        %v2014 = vmul.f32 %v1991, %v1925
        %v2015 = vmul.f32 %v1993, %v1925
        %v2016 = vmul.f32 %v1995, %v1925
        %v2017 = vmul.f32 %v1997, %v1925
        %v2018 = vmul.f32 %v1999, %v1925
        %v2019 = vmul.f32 %v2001, %v1925
        %v2020 = vmul.f32 %v2003, %v1925
        %v2021 = vmul.f32 %v2005, %v1925
        %v2022 = vadd.f32 %v2006, 1e-12
        %v2023 = vadd.f32 %v2007, 1e-12
        %v2024 = vadd.f32 %v2008, 1e-12
        %v2025 = vadd.f32 %v2009, 1e-12
        %v2026 = vadd.f32 %v2010, 1e-12
        %v2027 = vadd.f32 %v2011, 1e-12
        %v2028 = vadd.f32 %v2012, 1e-12
        %v2029 = vadd.f32 %v2013, 1e-12
        %v2030 = vadd.f32 %v2014, 1e-12
        %v2031 = vadd.f32 %v2015, 1e-12
        %v2032 = vadd.f32 %v2016, 1e-12
        %v2033 = vadd.f32 %v2017, 1e-12
        %v2034 = vadd.f32 %v2018, 1e-12
        %v2035 = vadd.f32 %v2019, 1e-12
        %v2036 = vadd.f32 %v2020, 1e-12
        %v2037 = vadd.f32 %v2021, 1e-12
        %v2038 = vrsqrt.pop %v2022
        %v2039 = vrsqrt.pop %v2023
        %v2040 = vrsqrt.pop %v2024
        %v2041 = vrsqrt.pop %v2025
        %v2042 = vrsqrt.pop %v2026
        %v2043 = vrsqrt.pop %v2027
        %v2044 = vrsqrt.pop %v2028
        %v2045 = vrsqrt.pop %v2029
        %v2046 = vrsqrt.pop %v2030
        %v2047 = vrsqrt.pop %v2031
        %v2048 = vrsqrt.pop %v2032
        %v2049 = vrsqrt.pop %v2033
        %v2050 = vrsqrt.pop %v2034
        %v2051 = vrsqrt.pop %v2035
        %v2052 = vrsqrt.pop %v2036
        %v2053 = vrsqrt.pop %v2037
        %v2054 = vmul.f32 %v1942, %v2038
        %v2055 = vmul.f32 %v1943, %v2039
        %v2056 = vmul.f32 %v1944, %v2040
        %v2057 = vmul.f32 %v1945, %v2041
        %v2058 = vmul.f32 %v1946, %v2042
        %v2059 = vmul.f32 %v1947, %v2043
        %v2060 = vmul.f32 %v1948, %v2044
        %v2061 = vmul.f32 %v1949, %v2045
        %v2062 = vmul.f32 %v1950, %v2046
        %v2063 = vmul.f32 %v1951, %v2047
        %v2064 = vmul.f32 %v1952, %v2048
        %v2065 = vmul.f32 %v1953, %v2049
        %v2066 = vmul.f32 %v1954, %v2050
        %v2067 = vmul.f32 %v1955, %v2051
        %v2068 = vmul.f32 %v1956, %v2052
        %v2069 = vmul.f32 %v1957, %v2053
        %v2070 = vld [vmem:[%s9] sm:$0x1]
        %v2072 = vlaneseq
        %v2073 = vshrl.u32 %v2072, 7
        %v2074 = vsub.s32 0, %v2073
        %v2075 = vrot.slane %v2070, %v2074
        %v2077 = vmul.f32 %v2054, %v2075
        %v2078 = vmul.f32 %v2055, %v2075
        %v2079 = vmul.f32 %v2056, %v2075
        %v2080 = vmul.f32 %v2057, %v2075
        %v2081 = vmul.f32 %v2058, %v2075
        %v2082 = vmul.f32 %v2059, %v2075
        %v2083 = vmul.f32 %v2060, %v2075
        %v2084 = vmul.f32 %v2061, %v2075
        %v2085 = vmul.f32 %v2062, %v2075
        %v2086 = vmul.f32 %v2063, %v2075
        %v2087 = vmul.f32 %v2064, %v2075
        %v2088 = vmul.f32 %v2065, %v2075
        %v2089 = vmul.f32 %v2066, %v2075
        %v2090 = vmul.f32 %v2067, %v2075
        %v2091 = vmul.f32 %v2068, %v2075
        %v2092 = vmul.f32 %v2069, %v2075
        %v2093 = vld [vmem:[%s10] sm:$0x1]
        %v2095 = vlaneseq
        %v2096 = vshrl.u32 %v2095, 7
        %v2097 = vsub.s32 0, %v2096
        %v2098 = vrot.slane %v2093, %v2097
        %v2100 = vadd.f32 %v2077, %v2098
        %v2101 = vadd.f32 %v2078, %v2098
        %v2102 = vadd.f32 %v2079, %v2098
        %v2103 = vadd.f32 %v2080, %v2098
        %v2104 = vadd.f32 %v2081, %v2098
        %v2105 = vadd.f32 %v2082, %v2098
        %v2106 = vadd.f32 %v2083, %v2098
        %v2107 = vadd.f32 %v2084, %v2098
        %v2108 = vadd.f32 %v2085, %v2098
        %v2109 = vadd.f32 %v2086, %v2098
        %v2110 = vadd.f32 %v2087, %v2098
        %v2111 = vadd.f32 %v2088, %v2098
        %v2112 = vadd.f32 %v2089, %v2098
        %v2113 = vadd.f32 %v2090, %v2098
        %v2114 = vadd.f32 %v2091, %v2098
        %v2115 = vadd.f32 %v2092, %v2098
        %v2116 = vpack.c.bf16 %v2101, %v2100
        %v2117 = vpack.c.bf16 %v2103, %v2102
        %v2118 = vpack.c.bf16 %v2105, %v2104
        %v2119 = vpack.c.bf16 %v2107, %v2106
        %v2120 = vpack.c.bf16 %v2109, %v2108
        %v2121 = vpack.c.bf16 %v2111, %v2110
        %v2122 = vpack.c.bf16 %v2113, %v2112
        %v2123 = vpack.c.bf16 %v2115, %v2114
        %v2132 = vunpack.c.l.b16 %v2116
        %v2133 = vunpack.c.h.b16 %v2116
        %v2134 = vunpack.c.l.b16 %v2117
        %v2135 = vunpack.c.h.b16 %v2117
        %v2136 = vunpack.c.l.b16 %v2118
        %v2137 = vunpack.c.h.b16 %v2118
        %v2138 = vunpack.c.l.b16 %v2119
        %v2139 = vunpack.c.h.b16 %v2119
        %v2140 = vunpack.c.l.b16 %v2120
        %v2141 = vunpack.c.h.b16 %v2120
        %v2142 = vunpack.c.l.b16 %v2121
        %v2143 = vunpack.c.h.b16 %v2121
        %v2144 = vunpack.c.l.b16 %v2122
        %v2145 = vunpack.c.h.b16 %v2122
        %v2146 = vunpack.c.l.b16 %v2123
        %v2147 = vunpack.c.h.b16 %v2123
        %v2148 = vpack.c.b16 %v2132, %v2132
        %v2149 = vpack.c.b16 %v2133, %v2133
        %v2150 = vpack.c.b16 %v2134, %v2134
        %v2151 = vpack.c.b16 %v2135, %v2135
        %v2152 = vpack.c.b16 %v2136, %v2136
        %v2153 = vpack.c.b16 %v2137, %v2137
        %v2154 = vpack.c.b16 %v2138, %v2138
        %v2155 = vpack.c.b16 %v2139, %v2139
        %v2156 = vpack.c.b16 %v2140, %v2140
        %v2157 = vpack.c.b16 %v2141, %v2141
        %v2158 = vpack.c.b16 %v2142, %v2142
        %v2159 = vpack.c.b16 %v2143, %v2143
        %v2160 = vpack.c.b16 %v2144, %v2144
        %v2161 = vpack.c.b16 %v2145, %v2145
        %v2162 = vpack.c.b16 %v2146, %v2146
        %v2163 = vpack.c.b16 %v2147, %v2147
        %2180 = vst [vmem:[%s561] sm:$0xf] %v2148
        %2181 = vst [vmem:[%s561 + $0x4] sm:$0xf] %v2149
        %2182 = vst [vmem:[%s561 + $0x8] sm:$0xf] %v2150
        %2183 = vst [vmem:[%s561 + $0xc] sm:$0xf] %v2151
        %2184 = vst [vmem:[%s561 + $0x10] sm:$0xf] %v2152
        %2185 = vst [vmem:[%s561 + $0x14] sm:$0xf] %v2153
        %2186 = vst [vmem:[%s561 + $0x18] sm:$0xf] %v2154
        %2187 = vst [vmem:[%s561 + $0x1c] sm:$0xf] %v2155
        %2188 = vst [vmem:[%s561 + $0x20] sm:$0xf] %v2156
        %2189 = vst [vmem:[%s561 + $0x24] sm:$0xf] %v2157
        %2190 = vst [vmem:[%s561 + $0x28] sm:$0xf] %v2158
        %2191 = vst [vmem:[%s561 + $0x2c] sm:$0xf] %v2159
        %2192 = vst [vmem:[%s561 + $0x30] sm:$0xf] %v2160
        %2193 = vst [vmem:[%s561 + $0x34] sm:$0xf] %v2161
        %2194 = vst [vmem:[%s561 + $0x38] sm:$0xf] %v2162
        %2195 = vst [vmem:[%s561 + $0x3c] sm:$0xf] %v2163
      $region76: #{language_encoder_forward.7} parent=67 // pred_fallthru
        _
      %p2196 = scmp.lt.s32.totalorder %s27, 1
      %s2197 = scalar_select %p2196, %s27, 1
      %s2198 = smul.addr %s2197, 16
      %s2199 = smul.addr %s2198, 4
      %s2200 = scalar_lea.vmem %s12, %s2199
      // Predicated region
      $region77: #{language_encoder_forward.7} parent=67 // pred_check
        %p2201 = pneg %p350
      $region78: #{language_encoder_forward.7} parent=67 // pred_check_branch
        %2203 = sbr.rel (%p2201) target = $region80
      $region79: #{language_encoder_forward.7} parent=67 // pred_region
        _
      $region80: #{language_encoder_forward.7} parent=67 // pred_fallthru
        _
    $region68: #{language_encoder_forward.7} parent=5 // pred_fallthru
      _
    %p2204 = scmp.le.s32.totalorder 2, %s18
    // Predicated region
    $region81: #{language_encoder_forward.7} parent=5 // pred_check
      %p2205 = pneg %p2204
    $region82: #{language_encoder_forward.7} parent=5 // pred_check_branch
      %2207 = sbr.rel (%p2205) target = $region84
    $region83: #{language_encoder_forward.7} parent=5 // pred_region
      %s2208 = ssub.s32 %s18, 2
      // Predicated region
      $region85: #{language_encoder_forward.7} parent=83 // pred_check
        %p2209 = pneg %p356
      $region86: #{language_encoder_forward.7} parent=83 // pred_check_branch
        %2211 = sbr.rel (%p2209) target = $region88
      $region87: #{language_encoder_forward.7} parent=83 // pred_region
        %p2212 = scmp.lt.s32.totalorder %s29, 1
        %s2213 = scalar_select %p2212, %s29, 1
        %s2214 = smul.addr %s2213, 16
        %s2215 = smul.addr %s2214, 4
        %s2216 = scalar_lea.vmem %s12, %s2215
      $region88: #{language_encoder_forward.7} parent=83 // pred_fallthru
        _
    $region84: #{language_encoder_forward.7} parent=5 // pred_fallthru
      _
  $region6: #{language_encoder_forward.7} parent=0 // loop_footer
    %s22 = sadd.s32 1, %s18
  $region7: #{language_encoder_forward.7} parent=0 // loop_footer_branch
    %17 = sbr.rel target = $region3
  $region8: #{language_encoder_forward.7} parent=0 // loop_exit
    _

// kernel: language_encoder_forward.8
$region0: #{language_encoder_forward.8}
  #allocation0 [shape = 'u32[]', space=smem, size = 0x4, offset = 0x4, fixed_abs, tag = 'smem constant byte address 0x4 - core index']
  #allocation1 [shape = 'u32[144,128]{1,0:T(1,128)}', space=vmem, size = 0x12000, scoped, tag = 'internal scratch']
  %s0 = inlined_call_operand.vmem [shape: bf16[256,128], index: 0, kind: input, shape index: {}]
  %s1 = inlined_call_operand.vmem [shape: bf16[128,512], index: 1, kind: input, shape index: {}]
  %s2 = inlined_call_operand.vmem [shape: f32[1,512], index: 2, kind: input, shape index: {}]
  %s3 = inlined_call_operand.vmem [shape: bf16[512,128], index: 3, kind: input, shape index: {}]
  %s4 = inlined_call_operand.vmem [shape: f32[1,128], index: 4, kind: input, shape index: {}]
  %s5 = inlined_call_operand.vmem [shape: f32[1,128], index: 5, kind: input, shape index: {}]
  %s6 = inlined_call_operand.vmem [shape: f32[1,128], index: 6, kind: input, shape index: {}]
  %s7 = inlined_call_operand.vmem [shape: bf16[256,128], index: 7, kind: output, shape index: {}]
  %s8 = sld [smem:[#allocation0]]
  $region38: #{language_encoder_forward.8} parent=0
    _
  %s10 = ssub.s32 1, %s8
  %s11 = scalar_select 0, %s10, %s8
  // Predicated region
  $region2: #{language_encoder_forward.8} parent=0 // pred_check
    _
  $region3: #{language_encoder_forward.8} parent=0 // pred_check_branch
    %13 = sbr.rel (0) target = $region5
  $region4: #{language_encoder_forward.8} parent=0 // pred_region
    _
  $region5: #{language_encoder_forward.8} parent=0 // pred_fallthru
    _
  // Predicated region
  $region6: #{language_encoder_forward.8} parent=0 // pred_check
    _
  $region7: #{language_encoder_forward.8} parent=0 // pred_check_branch
    %15 = sbr.rel (0) target = $region9
  $region8: #{language_encoder_forward.8} parent=0 // pred_region
    _
  $region9: #{language_encoder_forward.8} parent=0 // pred_fallthru
    _
  // Predicated region
  $region10: #{language_encoder_forward.8} parent=0 // pred_check
    _
  $region11: #{language_encoder_forward.8} parent=0 // pred_check_branch
    %17 = sbr.rel (0) target = $region13
  $region12: #{language_encoder_forward.8} parent=0 // pred_region
    _
  $region13: #{language_encoder_forward.8} parent=0 // pred_fallthru
    _
  // Predicated region
  $region14: #{language_encoder_forward.8} parent=0 // pred_check
    _
  $region15: #{language_encoder_forward.8} parent=0 // pred_check_branch
    %19 = sbr.rel (0) target = $region17
  $region16: #{language_encoder_forward.8} parent=0 // pred_region
    _
  $region17: #{language_encoder_forward.8} parent=0 // pred_fallthru
    _
  // Predicated region
  $region18: #{language_encoder_forward.8} parent=0 // pred_check
    _
  $region19: #{language_encoder_forward.8} parent=0 // pred_check_branch
    %21 = sbr.rel (0) target = $region21
  $region20: #{language_encoder_forward.8} parent=0 // pred_region
    _
  $region21: #{language_encoder_forward.8} parent=0 // pred_fallthru
    _
  // Predicated region
  $region22: #{language_encoder_forward.8} parent=0 // pred_check
    _
  $region23: #{language_encoder_forward.8} parent=0 // pred_check_branch
    %23 = sbr.rel (0) target = $region25
  $region24: #{language_encoder_forward.8} parent=0 // pred_region
    _
  $region25: #{language_encoder_forward.8} parent=0 // pred_fallthru
    _
  // Predicated region
  $region26: #{language_encoder_forward.8} parent=0 // pred_check
    _
  $region27: #{language_encoder_forward.8} parent=0 // pred_check_branch
    %25 = sbr.rel (0) target = $region29
  $region28: #{language_encoder_forward.8} parent=0 // pred_region
    _
  $region29: #{language_encoder_forward.8} parent=0 // pred_fallthru
    _
  %v27 = vld [vmem:[%s0] sm:$0xf]
  %v28 = vld [vmem:[%s0 + $0x4] sm:$0xf]
  %v29 = vld [vmem:[%s0 + $0x8] sm:$0xf]
  %v30 = vld [vmem:[%s0 + $0xc] sm:$0xf]
  %v31 = vld [vmem:[%s0 + $0x10] sm:$0xf]
  %v32 = vld [vmem:[%s0 + $0x14] sm:$0xf]
  %v33 = vld [vmem:[%s0 + $0x18] sm:$0xf]
  %v34 = vld [vmem:[%s0 + $0x1c] sm:$0xf]
  %v35 = vld [vmem:[%s0 + $0x20] sm:$0xf]
  %v36 = vld [vmem:[%s0 + $0x24] sm:$0xf]
  %v37 = vld [vmem:[%s0 + $0x28] sm:$0xf]
  %v38 = vld [vmem:[%s0 + $0x2c] sm:$0xf]
  %v39 = vld [vmem:[%s0 + $0x30] sm:$0xf]
  %v40 = vld [vmem:[%s0 + $0x34] sm:$0xf]
  %v41 = vld [vmem:[%s0 + $0x38] sm:$0xf]
  %v42 = vld [vmem:[%s0 + $0x3c] sm:$0xf]
  %v43 = vld [vmem:[%s0 + $0x40] sm:$0xf]
  %v44 = vld [vmem:[%s0 + $0x44] sm:$0xf]
  %v45 = vld [vmem:[%s0 + $0x48] sm:$0xf]
  %v46 = vld [vmem:[%s0 + $0x4c] sm:$0xf]
  %v47 = vld [vmem:[%s0 + $0x50] sm:$0xf]
  %v48 = vld [vmem:[%s0 + $0x54] sm:$0xf]
  %v49 = vld [vmem:[%s0 + $0x58] sm:$0xf]
  %v50 = vld [vmem:[%s0 + $0x5c] sm:$0xf]
  %v51 = vld [vmem:[%s0 + $0x60] sm:$0xf]
  %v52 = vld [vmem:[%s0 + $0x64] sm:$0xf]
  %v53 = vld [vmem:[%s0 + $0x68] sm:$0xf]
  %v54 = vld [vmem:[%s0 + $0x6c] sm:$0xf]
  %v55 = vld [vmem:[%s0 + $0x70] sm:$0xf]
  %v56 = vld [vmem:[%s0 + $0x74] sm:$0xf]
  %v57 = vld [vmem:[%s0 + $0x78] sm:$0xf]
  %v58 = vld [vmem:[%s0 + $0x7c] sm:$0xf]
  %v59 = vld [vmem:[%s1] sm:$0xff]
  %v60 = vld [vmem:[%s1 + $0x8] sm:$0xff]
  %v61 = vld [vmem:[%s1 + $0x10] sm:$0xff]
  %v62 = vld [vmem:[%s1 + $0x18] sm:$0xff]
  %v63 = vld [vmem:[%s1 + $0x20] sm:$0xff]
  %v64 = vld [vmem:[%s1 + $0x28] sm:$0xff]
  %v65 = vld [vmem:[%s1 + $0x30] sm:$0xff]
  %v66 = vld [vmem:[%s1 + $0x38] sm:$0xff]
  %v67 = vld [vmem:[%s1 + $0x40] sm:$0xff]
  %v68 = vld [vmem:[%s1 + $0x48] sm:$0xff]
  %v69 = vld [vmem:[%s1 + $0x50] sm:$0xff]
  %v70 = vld [vmem:[%s1 + $0x58] sm:$0xff]
  %v71 = vld [vmem:[%s1 + $0x60] sm:$0xff]
  %v72 = vld [vmem:[%s1 + $0x68] sm:$0xff]
  %v73 = vld [vmem:[%s1 + $0x70] sm:$0xff]
  %v74 = vld [vmem:[%s1 + $0x78] sm:$0xff]
  %v75 = vld [vmem:[%s1 + $0x80] sm:$0xff]
  %v76 = vld [vmem:[%s1 + $0x88] sm:$0xff]
  %v77 = vld [vmem:[%s1 + $0x90] sm:$0xff]
  %v78 = vld [vmem:[%s1 + $0x98] sm:$0xff]
  %v79 = vld [vmem:[%s1 + $0xa0] sm:$0xff]
  %v80 = vld [vmem:[%s1 + $0xa8] sm:$0xff]
  %v81 = vld [vmem:[%s1 + $0xb0] sm:$0xff]
  %v82 = vld [vmem:[%s1 + $0xb8] sm:$0xff]
  %v83 = vld [vmem:[%s1 + $0xc0] sm:$0xff]
  %v84 = vld [vmem:[%s1 + $0xc8] sm:$0xff]
  %v85 = vld [vmem:[%s1 + $0xd0] sm:$0xff]
  %v86 = vld [vmem:[%s1 + $0xd8] sm:$0xff]
  %v87 = vld [vmem:[%s1 + $0xe0] sm:$0xff]
  %v88 = vld [vmem:[%s1 + $0xe8] sm:$0xff]
  %v89 = vld [vmem:[%s1 + $0xf0] sm:$0xff]
  %v90 = vld [vmem:[%s1 + $0xf8] sm:$0xff]
  %v91 = vld [vmem:[%s2] sm:$0xf]
  %v93 = vlaneseq
  %v94 = vshrl.u32 %v93, 7
  %v95 = vsub.s32 0, %v94
  %v96 = vrot.slane %v91, %v95
  %v97 = vlaneseq
  %v98 = vshrl.u32 %v97, 7
  %v99 = vsub.s32 1, %v98
  %v100 = vrot.slane %v91, %v99
  %v101 = vlaneseq
  %v102 = vshrl.u32 %v101, 7
  %v103 = vsub.s32 2, %v102
  %v104 = vrot.slane %v91, %v103
  %v105 = vlaneseq
  %v106 = vshrl.u32 %v105, 7
  %v107 = vsub.s32 3, %v106
  %v108 = vrot.slane %v91, %v107
  %v145 = vunpack.c.l.b16 %v27
  %v146 = vunpack.c.l.b16 %v28
  %v147 = vunpack.c.l.b16 %v29
  %v148 = vunpack.c.l.b16 %v30
  %v149 = vunpack.c.l.b16 %v31
  %v150 = vunpack.c.l.b16 %v32
  %v151 = vunpack.c.l.b16 %v33
  %v152 = vunpack.c.l.b16 %v34
  %v153 = vunpack.c.l.b16 %v35
  %v154 = vunpack.c.l.b16 %v36
  %v155 = vunpack.c.l.b16 %v37
  %v156 = vunpack.c.l.b16 %v38
  %v157 = vunpack.c.l.b16 %v39
  %v158 = vunpack.c.l.b16 %v40
  %v159 = vunpack.c.l.b16 %v41
  %v160 = vunpack.c.l.b16 %v42
  %v161 = vunpack.c.l.b16 %v43
  %v162 = vunpack.c.l.b16 %v44
  %v163 = vunpack.c.l.b16 %v45
  %v164 = vunpack.c.l.b16 %v46
  %v165 = vunpack.c.l.b16 %v47
  %v166 = vunpack.c.l.b16 %v48
  %v167 = vunpack.c.l.b16 %v49
  %v168 = vunpack.c.l.b16 %v50
  %v169 = vunpack.c.l.b16 %v51
  %v170 = vunpack.c.l.b16 %v52
  %v171 = vunpack.c.l.b16 %v53
  %v172 = vunpack.c.l.b16 %v54
  %v173 = vunpack.c.l.b16 %v55
  %v174 = vunpack.c.l.b16 %v56
  %v175 = vunpack.c.l.b16 %v57
  %v176 = vunpack.c.l.b16 %v58
  %v177 = vpack.c.b16 %v146, %v145
  %v178 = vpack.c.b16 %v148, %v147
  %v179 = vpack.c.b16 %v150, %v149
  %v180 = vpack.c.b16 %v152, %v151
  %v181 = vpack.c.b16 %v154, %v153
  %v182 = vpack.c.b16 %v156, %v155
  %v183 = vpack.c.b16 %v158, %v157
  %v184 = vpack.c.b16 %v160, %v159
  %v185 = vpack.c.b16 %v162, %v161
  %v186 = vpack.c.b16 %v164, %v163
  %v187 = vpack.c.b16 %v166, %v165
  %v188 = vpack.c.b16 %v168, %v167
  %v189 = vpack.c.b16 %v170, %v169
  %v190 = vpack.c.b16 %v172, %v171
  %v191 = vpack.c.b16 %v174, %v173
  %v192 = vpack.c.b16 %v176, %v175
  %v241 = vunpack.c.l.b16 %v59
  %v242 = vunpack.c.h.b16 %v59
  %v243 = vunpack.c.l.b16 %v60
  %v244 = vunpack.c.h.b16 %v60
  %v245 = vunpack.c.l.b16 %v61
  %v246 = vunpack.c.h.b16 %v61
  %v247 = vunpack.c.l.b16 %v62
  %v248 = vunpack.c.h.b16 %v62
  %v249 = vunpack.c.l.b16 %v63
  %v250 = vunpack.c.h.b16 %v63
  %v251 = vunpack.c.l.b16 %v64
  %v252 = vunpack.c.h.b16 %v64
  %v253 = vunpack.c.l.b16 %v65
  %v254 = vunpack.c.h.b16 %v65
  %v255 = vunpack.c.l.b16 %v66
  %v256 = vunpack.c.h.b16 %v66
  %v257 = vunpack.c.l.b16 %v67
  %v258 = vunpack.c.h.b16 %v67
  %v259 = vunpack.c.l.b16 %v68
  %v260 = vunpack.c.h.b16 %v68
  %v261 = vunpack.c.l.b16 %v69
  %v262 = vunpack.c.h.b16 %v69
  %v263 = vunpack.c.l.b16 %v70
  %v264 = vunpack.c.h.b16 %v70
  %v265 = vunpack.c.l.b16 %v71
  %v266 = vunpack.c.h.b16 %v71
  %v267 = vunpack.c.l.b16 %v72
  %v268 = vunpack.c.h.b16 %v72
  %v269 = vunpack.c.l.b16 %v73
  %v270 = vunpack.c.h.b16 %v73
  %v271 = vunpack.c.l.b16 %v74
  %v272 = vunpack.c.h.b16 %v74
  %v273 = vunpack.c.l.b16 %v75
  %v274 = vunpack.c.h.b16 %v75
  %v275 = vunpack.c.l.b16 %v76
  %v276 = vunpack.c.h.b16 %v76
  %v277 = vunpack.c.l.b16 %v77
  %v278 = vunpack.c.h.b16 %v77
  %v279 = vunpack.c.l.b16 %v78
  %v280 = vunpack.c.h.b16 %v78
  %v281 = vunpack.c.l.b16 %v79
  %v282 = vunpack.c.h.b16 %v79
  %v283 = vunpack.c.l.b16 %v80
  %v284 = vunpack.c.h.b16 %v80
  %v285 = vunpack.c.l.b16 %v81
  %v286 = vunpack.c.h.b16 %v81
  %v287 = vunpack.c.l.b16 %v82
  %v288 = vunpack.c.h.b16 %v82
  %v289 = vunpack.c.l.b16 %v83
  %v290 = vunpack.c.h.b16 %v83
  %v291 = vunpack.c.l.b16 %v84
  %v292 = vunpack.c.h.b16 %v84
  %v293 = vunpack.c.l.b16 %v85
  %v294 = vunpack.c.h.b16 %v85
  %v295 = vunpack.c.l.b16 %v86
  %v296 = vunpack.c.h.b16 %v86
  %v297 = vunpack.c.l.b16 %v87
  %v298 = vunpack.c.h.b16 %v87
  %v299 = vunpack.c.l.b16 %v88
  %v300 = vunpack.c.h.b16 %v88
  %v301 = vunpack.c.l.b16 %v89
  %v302 = vunpack.c.h.b16 %v89
  %v303 = vunpack.c.l.b16 %v90
  %v304 = vunpack.c.h.b16 %v90
  %v305 = vpack.c.b16 %v245, %v241
  %v306 = vpack.c.b16 %v246, %v242
  %v307 = vpack.c.b16 %v247, %v243
  %v308 = vpack.c.b16 %v248, %v244
  %v309 = vpack.c.b16 %v253, %v249
  %v310 = vpack.c.b16 %v254, %v250
  %v311 = vpack.c.b16 %v255, %v251
  %v312 = vpack.c.b16 %v256, %v252
  %v313 = vpack.c.b16 %v261, %v257
  %v314 = vpack.c.b16 %v262, %v258
  %v315 = vpack.c.b16 %v263, %v259
  %v316 = vpack.c.b16 %v264, %v260
  %v317 = vpack.c.b16 %v269, %v265
  %v318 = vpack.c.b16 %v270, %v266
  %v319 = vpack.c.b16 %v271, %v267
  %v320 = vpack.c.b16 %v272, %v268
  %v321 = vpack.c.b16 %v277, %v273
  %v322 = vpack.c.b16 %v278, %v274
  %v323 = vpack.c.b16 %v279, %v275
  %v324 = vpack.c.b16 %v280, %v276
  %v325 = vpack.c.b16 %v285, %v281
  %v326 = vpack.c.b16 %v286, %v282
  %v327 = vpack.c.b16 %v287, %v283
  %v328 = vpack.c.b16 %v288, %v284
  %v329 = vpack.c.b16 %v293, %v289
  %v330 = vpack.c.b16 %v294, %v290
  %v331 = vpack.c.b16 %v295, %v291
  %v332 = vpack.c.b16 %v296, %v292
  %v333 = vpack.c.b16 %v301, %v297
  %v334 = vpack.c.b16 %v302, %v298
  %v335 = vpack.c.b16 %v303, %v299
  %v336 = vpack.c.b16 %v304, %v300
  %369 = vmatprep.subr.bf16.mxu0 %v306
  %370 = vmatpush1.bf16.msra.mxu0 %v305
  %371 = vmatprep.subr.bf16.mxu0 %v310
  %372 = vmatpush1.bf16.msra.mxu0 %v309
  %373 = vmatprep.subr.bf16.mxu0 %v314
  %374 = vmatpush1.bf16.msra.mxu0 %v313
  %375 = vmatprep.subr.bf16.mxu0 %v318
  %376 = vmatpush1.bf16.msra.mxu0 %v317
  %377 = vmatprep.subr.bf16.mxu0 %v322
  %378 = vmatpush1.bf16.msra.mxu0 %v321
  %379 = vmatprep.subr.bf16.mxu0 %v326
  %380 = vmatpush1.bf16.msra.mxu0 %v325
  %381 = vmatprep.subr.bf16.mxu0 %v330
  %382 = vmatpush1.bf16.msra.mxu0 %v329
  %383 = vmatprep.subr.bf16.mxu0 %v334
  %384 = vmatpush1.bf16.msra.mxu0 %v333
  %385 = vmatprep.subr.bf16.mxu0 0
  %386 = vmatpush1.bf16.msra.mxu0 0
  %387 = vmatprep.subr.bf16.mxu0 0
  %388 = vmatpush1.bf16.msra.mxu0 0
  %389 = vmatprep.subr.bf16.mxu0 0
  %390 = vmatpush1.bf16.msra.mxu0 0
  %391 = vmatprep.subr.bf16.mxu0 0
  %392 = vmatpush1.bf16.msra.mxu0 0
  %393 = vmatprep.subr.bf16.mxu0 0
  %394 = vmatpush1.bf16.msra.mxu0 0
  %395 = vmatprep.subr.bf16.mxu0 0
  %396 = vmatpush1.bf16.msra.mxu0 0
  %397 = vmatprep.subr.bf16.mxu0 0
  %398 = vmatpush1.bf16.msra.mxu0 0
  %399 = vmatprep.subr.bf16.mxu0 0
  %400 = vmatpush1.bf16.msra.mxu0 0
  %401 = vmatprep.mubr.bf16.mxu0 0
  %402 = vmatmul.mubr.bf16.gmra.mrb[0].mxu0 %v177
  %v403 = vpop.f32.mrb[0].mxu0
  %v404 = vadd.f32 %v96, %v403
  %v405 = vpop.f32.mrb[0].mxu0
  %v406 = vadd.f32 %v100, %v405
  %v407 = vpop.f32.mrb[0].mxu0
  %v408 = vadd.f32 %v96, %v407
  %v409 = vpop.f32.mrb[0].mxu0
  %v410 = vadd.f32 %v100, %v409
  %411 = vmatprep.mubr.bf16.mxu0 0
  %412 = vmatmul.mubr.bf16.gmra.mrb[0].mxu0 %v178
  %v413 = vpop.f32.mrb[0].mxu0
  %v414 = vadd.f32 %v96, %v413
  %v415 = vpop.f32.mrb[0].mxu0
  %v416 = vadd.f32 %v100, %v415
  %v417 = vpop.f32.mrb[0].mxu0
  %v418 = vadd.f32 %v96, %v417
  %v419 = vpop.f32.mrb[0].mxu0
  %v420 = vadd.f32 %v100, %v419
  %421 = vmatprep.mubr.bf16.mxu0 0
  %422 = vmatmul.mubr.bf16.gmra.mrb[0].mxu0 %v179
  %v423 = vpop.f32.mrb[0].mxu0
  %v424 = vadd.f32 %v96, %v423
  %v425 = vpop.f32.mrb[0].mxu0
  %v426 = vadd.f32 %v100, %v425
  %v427 = vpop.f32.mrb[0].mxu0
  %v428 = vadd.f32 %v96, %v427
  %v429 = vpop.f32.mrb[0].mxu0
  %v430 = vadd.f32 %v100, %v429
  %431 = vmatprep.mubr.bf16.mxu0 0
  %432 = vmatmul.mubr.bf16.gmra.mrb[0].mxu0 %v180
  %v433 = vpop.f32.mrb[0].mxu0
  %v434 = vadd.f32 %v96, %v433
  %v435 = vpop.f32.mrb[0].mxu0
  %v436 = vadd.f32 %v100, %v435
  %v437 = vpop.f32.mrb[0].mxu0
  %v438 = vadd.f32 %v96, %v437
  %v439 = vpop.f32.mrb[0].mxu0
  %v440 = vadd.f32 %v100, %v439
  %441 = vmatprep.mubr.bf16.mxu0 0
  %442 = vmatmul.mubr.bf16.gmra.mrb[0].mxu0 %v181
  %v443 = vpop.f32.mrb[0].mxu0
  %v444 = vadd.f32 %v96, %v443
  %v445 = vpop.f32.mrb[0].mxu0
  %v446 = vadd.f32 %v100, %v445
  %v447 = vpop.f32.mrb[0].mxu0
  %v448 = vadd.f32 %v96, %v447
  %v449 = vpop.f32.mrb[0].mxu0
  %v450 = vadd.f32 %v100, %v449
  %451 = vmatprep.mubr.bf16.mxu0 0
  %452 = vmatmul.mubr.bf16.gmra.mrb[0].mxu0 %v182
  %v453 = vpop.f32.mrb[0].mxu0
  %v454 = vadd.f32 %v96, %v453
  %v455 = vpop.f32.mrb[0].mxu0
  %v456 = vadd.f32 %v100, %v455
  %v457 = vpop.f32.mrb[0].mxu0
  %v458 = vadd.f32 %v96, %v457
  %v459 = vpop.f32.mrb[0].mxu0
  %v460 = vadd.f32 %v100, %v459
  %461 = vmatprep.mubr.bf16.mxu0 0
  %462 = vmatmul.mubr.bf16.gmra.mrb[0].mxu0 %v183
  %v463 = vpop.f32.mrb[0].mxu0
  %v464 = vadd.f32 %v96, %v463
  %v465 = vpop.f32.mrb[0].mxu0
  %v466 = vadd.f32 %v100, %v465
  %v467 = vpop.f32.mrb[0].mxu0
  %v468 = vadd.f32 %v96, %v467
  %v469 = vpop.f32.mrb[0].mxu0
  %v470 = vadd.f32 %v100, %v469
  %471 = vmatprep.mubr.bf16.mxu0 0
  %472 = vmatmul.mubr.bf16.gmra.mrb[0].mxu0 %v184
  %v473 = vpop.f32.mrb[0].mxu0
  %v474 = vadd.f32 %v96, %v473
  %v475 = vpop.f32.mrb[0].mxu0
  %v476 = vadd.f32 %v100, %v475
  %v477 = vpop.f32.mrb[0].mxu0
  %v478 = vadd.f32 %v96, %v477
  %v479 = vpop.f32.mrb[0].mxu0
  %v480 = vadd.f32 %v100, %v479
  %481 = vmatprep.mubr.bf16.mxu0 0
  %482 = vmatmul.mubr.bf16.gmra.mrb[0].mxu0 %v185
  %v483 = vpop.f32.mrb[0].mxu0
  %v484 = vadd.f32 %v96, %v483
  %v485 = vpop.f32.mrb[0].mxu0
  %v486 = vadd.f32 %v100, %v485
  %v487 = vpop.f32.mrb[0].mxu0
  %v488 = vadd.f32 %v96, %v487
  %v489 = vpop.f32.mrb[0].mxu0
  %v490 = vadd.f32 %v100, %v489
  %491 = vmatprep.mubr.bf16.mxu0 0
  %492 = vmatmul.mubr.bf16.gmra.mrb[0].mxu0 %v186
  %v493 = vpop.f32.mrb[0].mxu0
  %v494 = vadd.f32 %v96, %v493
  %v495 = vpop.f32.mrb[0].mxu0
  %v496 = vadd.f32 %v100, %v495
  %v497 = vpop.f32.mrb[0].mxu0
  %v498 = vadd.f32 %v96, %v497
  %v499 = vpop.f32.mrb[0].mxu0
  %v500 = vadd.f32 %v100, %v499
  %501 = vmatprep.mubr.bf16.mxu0 0
  %502 = vmatmul.mubr.bf16.gmra.mrb[0].mxu0 %v187
  %v503 = vpop.f32.mrb[0].mxu0
  %v504 = vadd.f32 %v96, %v503
  %v505 = vpop.f32.mrb[0].mxu0
  %v506 = vadd.f32 %v100, %v505
  %v507 = vpop.f32.mrb[0].mxu0
  %v508 = vadd.f32 %v96, %v507
  %v509 = vpop.f32.mrb[0].mxu0
  %v510 = vadd.f32 %v100, %v509
  %511 = vmatprep.mubr.bf16.mxu0 0
  %512 = vmatmul.mubr.bf16.gmra.mrb[0].mxu0 %v188
  %v513 = vpop.f32.mrb[0].mxu0
  %v514 = vadd.f32 %v96, %v513
  %v515 = vpop.f32.mrb[0].mxu0
  %v516 = vadd.f32 %v100, %v515
  %v517 = vpop.f32.mrb[0].mxu0
  %v518 = vadd.f32 %v96, %v517
  %v519 = vpop.f32.mrb[0].mxu0
  %v520 = vadd.f32 %v100, %v519
  %521 = vmatprep.mubr.bf16.mxu0 0
  %522 = vmatmul.mubr.bf16.gmra.mrb[0].mxu0 %v189
  %v523 = vpop.f32.mrb[0].mxu0
  %v524 = vadd.f32 %v96, %v523
  %v525 = vpop.f32.mrb[0].mxu0
  %v526 = vadd.f32 %v100, %v525
  %v527 = vpop.f32.mrb[0].mxu0
  %v528 = vadd.f32 %v96, %v527
  %v529 = vpop.f32.mrb[0].mxu0
  %v530 = vadd.f32 %v100, %v529
  %531 = vmatprep.mubr.bf16.mxu0 0
  %532 = vmatmul.mubr.bf16.gmra.mrb[0].mxu0 %v190
  %v533 = vpop.f32.mrb[0].mxu0
  %v534 = vadd.f32 %v96, %v533
  %v535 = vpop.f32.mrb[0].mxu0
  %v536 = vadd.f32 %v100, %v535
  %v537 = vpop.f32.mrb[0].mxu0
  %v538 = vadd.f32 %v96, %v537
  %v539 = vpop.f32.mrb[0].mxu0
  %v540 = vadd.f32 %v100, %v539
  %541 = vmatprep.mubr.bf16.mxu0 0
  %542 = vmatmul.mubr.bf16.gmra.mrb[0].mxu0 %v191
  %v543 = vpop.f32.mrb[0].mxu0
  %v544 = vadd.f32 %v96, %v543
  %v545 = vpop.f32.mrb[0].mxu0
  %v546 = vadd.f32 %v100, %v545
  %v547 = vpop.f32.mrb[0].mxu0
  %v548 = vadd.f32 %v96, %v547
  %v549 = vpop.f32.mrb[0].mxu0
  %v550 = vadd.f32 %v100, %v549
  %551 = vmatprep.mubr.bf16.mxu0 0
  %552 = vmatmul.mubr.bf16.gmra.mrb[0].mxu0 %v192
  %v553 = vpop.f32.mrb[0].mxu0
  %v554 = vadd.f32 %v96, %v553
  %v555 = vpop.f32.mrb[0].mxu0
  %v556 = vadd.f32 %v100, %v555
  %v557 = vpop.f32.mrb[0].mxu0
  %v558 = vadd.f32 %v96, %v557
  %v559 = vpop.f32.mrb[0].mxu0
  %v560 = vadd.f32 %v100, %v559
  %561 = vdwg.mxu0
  %562 = vmatprep.subr.bf16.mxu0 %v308
  %563 = vmatpush1.bf16.msra.mxu0 %v307
  %564 = vmatprep.subr.bf16.mxu0 %v312
  %565 = vmatpush1.bf16.msra.mxu0 %v311
  %566 = vmatprep.subr.bf16.mxu0 %v316
  %567 = vmatpush1.bf16.msra.mxu0 %v315
  %568 = vmatprep.subr.bf16.mxu0 %v320
  %569 = vmatpush1.bf16.msra.mxu0 %v319
  %570 = vmatprep.subr.bf16.mxu0 %v324
  %571 = vmatpush1.bf16.msra.mxu0 %v323
  %572 = vmatprep.subr.bf16.mxu0 %v328
  %573 = vmatpush1.bf16.msra.mxu0 %v327
  %574 = vmatprep.subr.bf16.mxu0 %v332
  %575 = vmatpush1.bf16.msra.mxu0 %v331
  %576 = vmatprep.subr.bf16.mxu0 %v336
  %577 = vmatpush1.bf16.msra.mxu0 %v335
  %578 = vmatprep.subr.bf16.mxu0 0
  %579 = vmatpush1.bf16.msra.mxu0 0
  %580 = vmatprep.subr.bf16.mxu0 0
  %581 = vmatpush1.bf16.msra.mxu0 0
  %582 = vmatprep.subr.bf16.mxu0 0
  %583 = vmatpush1.bf16.msra.mxu0 0
  %584 = vmatprep.subr.bf16.mxu0 0
  %585 = vmatpush1.bf16.msra.mxu0 0
  %586 = vmatprep.subr.bf16.mxu0 0
  %587 = vmatpush1.bf16.msra.mxu0 0
  %588 = vmatprep.subr.bf16.mxu0 0
  %589 = vmatpush1.bf16.msra.mxu0 0
  %590 = vmatprep.subr.bf16.mxu0 0
  %591 = vmatpush1.bf16.msra.mxu0 0
  %592 = vmatprep.subr.bf16.mxu0 0
  %593 = vmatpush1.bf16.msra.mxu0 0
  %594 = vmatprep.mubr.bf16.mxu0 0
  %595 = vmatmul.mubr.bf16.gmra.mrb[0].mxu0 %v177
  %v596 = vpop.f32.mrb[0].mxu0
  %v597 = vadd.f32 %v104, %v596
  %v598 = vpop.f32.mrb[0].mxu0
  %v599 = vadd.f32 %v108, %v598
  %v600 = vpop.f32.mrb[0].mxu0
  %v601 = vadd.f32 %v104, %v600
  %v602 = vpop.f32.mrb[0].mxu0
  %v603 = vadd.f32 %v108, %v602
  %604 = vmatprep.mubr.bf16.mxu0 0
  %605 = vmatmul.mubr.bf16.gmra.mrb[0].mxu0 %v178
  %v606 = vpop.f32.mrb[0].mxu0
  %v607 = vadd.f32 %v104, %v606
  %v608 = vpop.f32.mrb[0].mxu0
  %v609 = vadd.f32 %v108, %v608
  %v610 = vpop.f32.mrb[0].mxu0
  %v611 = vadd.f32 %v104, %v610
  %v612 = vpop.f32.mrb[0].mxu0
  %v613 = vadd.f32 %v108, %v612
  %614 = vmatprep.mubr.bf16.mxu0 0
  %615 = vmatmul.mubr.bf16.gmra.mrb[0].mxu0 %v179
  %v616 = vpop.f32.mrb[0].mxu0
  %v617 = vadd.f32 %v104, %v616
  %v618 = vpop.f32.mrb[0].mxu0
  %v619 = vadd.f32 %v108, %v618
  %v620 = vpop.f32.mrb[0].mxu0
  %v621 = vadd.f32 %v104, %v620
  %v622 = vpop.f32.mrb[0].mxu0
  %v623 = vadd.f32 %v108, %v622
  %624 = vmatprep.mubr.bf16.mxu0 0
  %625 = vmatmul.mubr.bf16.gmra.mrb[0].mxu0 %v180
  %v626 = vpop.f32.mrb[0].mxu0
  %v627 = vadd.f32 %v104, %v626
  %v628 = vpop.f32.mrb[0].mxu0
  %v629 = vadd.f32 %v108, %v628
  %v630 = vpop.f32.mrb[0].mxu0
  %v631 = vadd.f32 %v104, %v630
  %v632 = vpop.f32.mrb[0].mxu0
  %v633 = vadd.f32 %v108, %v632
  %634 = vmatprep.mubr.bf16.mxu0 0
  %635 = vmatmul.mubr.bf16.gmra.mrb[0].mxu0 %v181
  %v636 = vpop.f32.mrb[0].mxu0
  %v637 = vadd.f32 %v104, %v636
  %v638 = vpop.f32.mrb[0].mxu0
  %v639 = vadd.f32 %v108, %v638
  %v640 = vpop.f32.mrb[0].mxu0
  %v641 = vadd.f32 %v104, %v640
  %v642 = vpop.f32.mrb[0].mxu0
  %v643 = vadd.f32 %v108, %v642
  %644 = vmatprep.mubr.bf16.mxu0 0
  %645 = vmatmul.mubr.bf16.gmra.mrb[0].mxu0 %v182
  %v646 = vpop.f32.mrb[0].mxu0
  %v647 = vadd.f32 %v104, %v646
  %v648 = vpop.f32.mrb[0].mxu0
  %v649 = vadd.f32 %v108, %v648
  %v650 = vpop.f32.mrb[0].mxu0
  %v651 = vadd.f32 %v104, %v650
  %v652 = vpop.f32.mrb[0].mxu0
  %v653 = vadd.f32 %v108, %v652
  %654 = vmatprep.mubr.bf16.mxu0 0
  %655 = vmatmul.mubr.bf16.gmra.mrb[0].mxu0 %v183
  %v656 = vpop.f32.mrb[0].mxu0
  %v657 = vadd.f32 %v104, %v656
  %v658 = vpop.f32.mrb[0].mxu0
  %v659 = vadd.f32 %v108, %v658
  %v660 = vpop.f32.mrb[0].mxu0
  %v661 = vadd.f32 %v104, %v660
  %v662 = vpop.f32.mrb[0].mxu0
  %v663 = vadd.f32 %v108, %v662
  %664 = vmatprep.mubr.bf16.mxu0 0
  %665 = vmatmul.mubr.bf16.gmra.mrb[0].mxu0 %v184
  %v666 = vpop.f32.mrb[0].mxu0
  %v667 = vadd.f32 %v104, %v666
  %v668 = vpop.f32.mrb[0].mxu0
  %v669 = vadd.f32 %v108, %v668
  %v670 = vpop.f32.mrb[0].mxu0
  %v671 = vadd.f32 %v104, %v670
  %v672 = vpop.f32.mrb[0].mxu0
  %v673 = vadd.f32 %v108, %v672
  %674 = vmatprep.mubr.bf16.mxu0 0
  %675 = vmatmul.mubr.bf16.gmra.mrb[0].mxu0 %v185
  %v676 = vpop.f32.mrb[0].mxu0
  %v677 = vadd.f32 %v104, %v676
  %v678 = vpop.f32.mrb[0].mxu0
  %v679 = vadd.f32 %v108, %v678
  %v680 = vpop.f32.mrb[0].mxu0
  %v681 = vadd.f32 %v104, %v680
  %v682 = vpop.f32.mrb[0].mxu0
  %v683 = vadd.f32 %v108, %v682
  %684 = vmatprep.mubr.bf16.mxu0 0
  %685 = vmatmul.mubr.bf16.gmra.mrb[0].mxu0 %v186
  %v686 = vpop.f32.mrb[0].mxu0
  %v687 = vadd.f32 %v104, %v686
  %v688 = vpop.f32.mrb[0].mxu0
  %v689 = vadd.f32 %v108, %v688
  %v690 = vpop.f32.mrb[0].mxu0
  %v691 = vadd.f32 %v104, %v690
  %v692 = vpop.f32.mrb[0].mxu0
  %v693 = vadd.f32 %v108, %v692
  %694 = vmatprep.mubr.bf16.mxu0 0
  %695 = vmatmul.mubr.bf16.gmra.mrb[0].mxu0 %v187
  %v696 = vpop.f32.mrb[0].mxu0
  %v697 = vadd.f32 %v104, %v696
  %v698 = vpop.f32.mrb[0].mxu0
  %v699 = vadd.f32 %v108, %v698
  %v700 = vpop.f32.mrb[0].mxu0
  %v701 = vadd.f32 %v104, %v700
  %v702 = vpop.f32.mrb[0].mxu0
  %v703 = vadd.f32 %v108, %v702
  %704 = vmatprep.mubr.bf16.mxu0 0
  %705 = vmatmul.mubr.bf16.gmra.mrb[0].mxu0 %v188
  %v706 = vpop.f32.mrb[0].mxu0
  %v707 = vadd.f32 %v104, %v706
  %v708 = vpop.f32.mrb[0].mxu0
  %v709 = vadd.f32 %v108, %v708
  %v710 = vpop.f32.mrb[0].mxu0
  %v711 = vadd.f32 %v104, %v710
  %v712 = vpop.f32.mrb[0].mxu0
  %v713 = vadd.f32 %v108, %v712
  %714 = vmatprep.mubr.bf16.mxu0 0
  %715 = vmatmul.mubr.bf16.gmra.mrb[0].mxu0 %v189
  %v716 = vpop.f32.mrb[0].mxu0
  %v717 = vadd.f32 %v104, %v716
  %v718 = vpop.f32.mrb[0].mxu0
  %v719 = vadd.f32 %v108, %v718
  %v720 = vpop.f32.mrb[0].mxu0
  %v721 = vadd.f32 %v104, %v720
  %v722 = vpop.f32.mrb[0].mxu0
  %v723 = vadd.f32 %v108, %v722
  %724 = vmatprep.mubr.bf16.mxu0 0
  %725 = vmatmul.mubr.bf16.gmra.mrb[0].mxu0 %v190
  %v726 = vpop.f32.mrb[0].mxu0
  %v727 = vadd.f32 %v104, %v726
  %v728 = vpop.f32.mrb[0].mxu0
  %v729 = vadd.f32 %v108, %v728
  %v730 = vpop.f32.mrb[0].mxu0
  %v731 = vadd.f32 %v104, %v730
  %v732 = vpop.f32.mrb[0].mxu0
  %v733 = vadd.f32 %v108, %v732
  %734 = vmatprep.mubr.bf16.mxu0 0
  %735 = vmatmul.mubr.bf16.gmra.mrb[0].mxu0 %v191
  %v736 = vpop.f32.mrb[0].mxu0
  %v737 = vadd.f32 %v104, %v736
  %v738 = vpop.f32.mrb[0].mxu0
  %v739 = vadd.f32 %v108, %v738
  %v740 = vpop.f32.mrb[0].mxu0
  %v741 = vadd.f32 %v104, %v740
  %v742 = vpop.f32.mrb[0].mxu0
  %v743 = vadd.f32 %v108, %v742
  %744 = vmatprep.mubr.bf16.mxu0 0
  %745 = vmatmul.mubr.bf16.gmra.mrb[0].mxu0 %v192
  %v746 = vpop.f32.mrb[0].mxu0
  %v747 = vadd.f32 %v104, %v746
  %v748 = vpop.f32.mrb[0].mxu0
  %v749 = vadd.f32 %v108, %v748
  %v750 = vpop.f32.mrb[0].mxu0
  %v751 = vadd.f32 %v104, %v750
  %v752 = vpop.f32.mrb[0].mxu0
  %v753 = vadd.f32 %v108, %v752
  %754 = vdwg.mxu0
  %v755 = vmul.f32 %v404, %v404
  %v756 = vmul.f32 %v406, %v406
  %v757 = vmul.f32 %v597, %v597
  %v758 = vmul.f32 %v599, %v599
  %v759 = vmul.f32 %v408, %v408
  %v760 = vmul.f32 %v410, %v410
  %v761 = vmul.f32 %v601, %v601
  %v762 = vmul.f32 %v603, %v603
  %v763 = vmul.f32 %v414, %v414
  %v764 = vmul.f32 %v416, %v416
  %v765 = vmul.f32 %v607, %v607
  %v766 = vmul.f32 %v609, %v609
  %v767 = vmul.f32 %v418, %v418
  %v768 = vmul.f32 %v420, %v420
  %v769 = vmul.f32 %v611, %v611
  %v770 = vmul.f32 %v613, %v613
  %v771 = vmul.f32 %v424, %v424
  %v772 = vmul.f32 %v426, %v426
  %v773 = vmul.f32 %v617, %v617
  %v774 = vmul.f32 %v619, %v619
  %v775 = vmul.f32 %v428, %v428
  %v776 = vmul.f32 %v430, %v430
  %v777 = vmul.f32 %v621, %v621
  %v778 = vmul.f32 %v623, %v623
  %v779 = vmul.f32 %v434, %v434
  %v780 = vmul.f32 %v436, %v436
  %v781 = vmul.f32 %v627, %v627
  %v782 = vmul.f32 %v629, %v629
  %v783 = vmul.f32 %v438, %v438
  %v784 = vmul.f32 %v440, %v440
  %v785 = vmul.f32 %v631, %v631
  %v786 = vmul.f32 %v633, %v633
  %v787 = vmul.f32 %v444, %v444
  %v788 = vmul.f32 %v446, %v446
  %v789 = vmul.f32 %v637, %v637
  %v790 = vmul.f32 %v639, %v639
  %v791 = vmul.f32 %v448, %v448
  %v792 = vmul.f32 %v450, %v450
  %v793 = vmul.f32 %v641, %v641
  %v794 = vmul.f32 %v643, %v643
  %v795 = vmul.f32 %v454, %v454
  %v796 = vmul.f32 %v456, %v456
  %v797 = vmul.f32 %v647, %v647
  %v798 = vmul.f32 %v649, %v649
  %v799 = vmul.f32 %v458, %v458
  %v800 = vmul.f32 %v460, %v460
  %v801 = vmul.f32 %v651, %v651
  %v802 = vmul.f32 %v653, %v653
  %v803 = vmul.f32 %v464, %v464
  %v804 = vmul.f32 %v466, %v466
  %v805 = vmul.f32 %v657, %v657
  %v806 = vmul.f32 %v659, %v659
  %v807 = vmul.f32 %v468, %v468
  %v808 = vmul.f32 %v470, %v470
  %v809 = vmul.f32 %v661, %v661
  %v810 = vmul.f32 %v663, %v663
  %v811 = vmul.f32 %v474, %v474
  %v812 = vmul.f32 %v476, %v476
  %v813 = vmul.f32 %v667, %v667
  %v814 = vmul.f32 %v669, %v669
  %v815 = vmul.f32 %v478, %v478
  %v816 = vmul.f32 %v480, %v480
  %v817 = vmul.f32 %v671, %v671
  %v818 = vmul.f32 %v673, %v673
  %v819 = vmul.f32 %v484, %v484
  %v820 = vmul.f32 %v486, %v486
  %v821 = vmul.f32 %v677, %v677
  %v822 = vmul.f32 %v679, %v679
  %v823 = vmul.f32 %v488, %v488
  %v824 = vmul.f32 %v490, %v490
  %v825 = vmul.f32 %v681, %v681
  %v826 = vmul.f32 %v683, %v683
  %v827 = vmul.f32 %v494, %v494
  %v828 = vmul.f32 %v496, %v496
  %v829 = vmul.f32 %v687, %v687
  %v830 = vmul.f32 %v689, %v689
  %v831 = vmul.f32 %v498, %v498
  %v832 = vmul.f32 %v500, %v500
  %v833 = vmul.f32 %v691, %v691
  %v834 = vmul.f32 %v693, %v693
  %v835 = vmul.f32 %v504, %v504
  %v836 = vmul.f32 %v506, %v506
  %v837 = vmul.f32 %v697, %v697
  %v838 = vmul.f32 %v699, %v699
  %v839 = vmul.f32 %v508, %v508
  %v840 = vmul.f32 %v510, %v510
  %v841 = vmul.f32 %v701, %v701
  %v842 = vmul.f32 %v703, %v703
  %v843 = vmul.f32 %v514, %v514
  %v844 = vmul.f32 %v516, %v516
  %v845 = vmul.f32 %v707, %v707
  %v846 = vmul.f32 %v709, %v709
  %v847 = vmul.f32 %v518, %v518
  %v848 = vmul.f32 %v520, %v520
  %v849 = vmul.f32 %v711, %v711
  %v850 = vmul.f32 %v713, %v713
  %v851 = vmul.f32 %v524, %v524
  %v852 = vmul.f32 %v526, %v526
  %v853 = vmul.f32 %v717, %v717
  %v854 = vmul.f32 %v719, %v719
  %v855 = vmul.f32 %v528, %v528
  %v856 = vmul.f32 %v530, %v530
  %v857 = vmul.f32 %v721, %v721
  %v858 = vmul.f32 %v723, %v723
  %v859 = vmul.f32 %v534, %v534
  %v860 = vmul.f32 %v536, %v536
  %v861 = vmul.f32 %v727, %v727
  %v862 = vmul.f32 %v729, %v729
  %v863 = vmul.f32 %v538, %v538
  %v864 = vmul.f32 %v540, %v540
  %v865 = vmul.f32 %v731, %v731
  %v866 = vmul.f32 %v733, %v733
  %v867 = vmul.f32 %v544, %v544
  %v868 = vmul.f32 %v546, %v546
  %v869 = vmul.f32 %v737, %v737
  %v870 = vmul.f32 %v739, %v739
  %v871 = vmul.f32 %v548, %v548
  %v872 = vmul.f32 %v550, %v550
  %v873 = vmul.f32 %v741, %v741
  %v874 = vmul.f32 %v743, %v743
  %v875 = vmul.f32 %v554, %v554
  %v876 = vmul.f32 %v556, %v556
  %v877 = vmul.f32 %v747, %v747
  %v878 = vmul.f32 %v749, %v749
  %v879 = vmul.f32 %v558, %v558
  %v880 = vmul.f32 %v560, %v560
  %v881 = vmul.f32 %v751, %v751
  %v882 = vmul.f32 %v753, %v753
  %v883 = vmul.f32 %v404, %v755
  %v884 = vmul.f32 %v406, %v756
  %v885 = vmul.f32 %v597, %v757
  %v886 = vmul.f32 %v599, %v758
  %v887 = vmul.f32 %v408, %v759
  %v888 = vmul.f32 %v410, %v760
  %v889 = vmul.f32 %v601, %v761
  %v890 = vmul.f32 %v603, %v762
  %v891 = vmul.f32 %v414, %v763
  %v892 = vmul.f32 %v416, %v764
  %v893 = vmul.f32 %v607, %v765
  %v894 = vmul.f32 %v609, %v766
  %v895 = vmul.f32 %v418, %v767
  %v896 = vmul.f32 %v420, %v768
  %v897 = vmul.f32 %v611, %v769
  %v898 = vmul.f32 %v613, %v770
  %v899 = vmul.f32 %v424, %v771
  %v900 = vmul.f32 %v426, %v772
  %v901 = vmul.f32 %v617, %v773
  %v902 = vmul.f32 %v619, %v774
  %v903 = vmul.f32 %v428, %v775
  %v904 = vmul.f32 %v430, %v776
  %v905 = vmul.f32 %v621, %v777
  %v906 = vmul.f32 %v623, %v778
  %v907 = vmul.f32 %v434, %v779
  %v908 = vmul.f32 %v436, %v780
  %v909 = vmul.f32 %v627, %v781
  %v910 = vmul.f32 %v629, %v782
  %v911 = vmul.f32 %v438, %v783
  %v912 = vmul.f32 %v440, %v784
  %v913 = vmul.f32 %v631, %v785
  %v914 = vmul.f32 %v633, %v786
  %v915 = vmul.f32 %v444, %v787
  %v916 = vmul.f32 %v446, %v788
  %v917 = vmul.f32 %v637, %v789
  %v918 = vmul.f32 %v639, %v790
  %v919 = vmul.f32 %v448, %v791
  %v920 = vmul.f32 %v450, %v792
  %v921 = vmul.f32 %v641, %v793
  %v922 = vmul.f32 %v643, %v794
  %v923 = vmul.f32 %v454, %v795
  %v924 = vmul.f32 %v456, %v796
  %v925 = vmul.f32 %v647, %v797
  %v926 = vmul.f32 %v649, %v798
  %v927 = vmul.f32 %v458, %v799
  %v928 = vmul.f32 %v460, %v800
  %v929 = vmul.f32 %v651, %v801
  %v930 = vmul.f32 %v653, %v802
  %v931 = vmul.f32 %v464, %v803
  %v932 = vmul.f32 %v466, %v804
  %v933 = vmul.f32 %v657, %v805
  %v934 = vmul.f32 %v659, %v806
  %v935 = vmul.f32 %v468, %v807
  %v936 = vmul.f32 %v470, %v808
  %v937 = vmul.f32 %v661, %v809
  %v938 = vmul.f32 %v663, %v810
  %v939 = vmul.f32 %v474, %v811
  %v940 = vmul.f32 %v476, %v812
  %v941 = vmul.f32 %v667, %v813
  %v942 = vmul.f32 %v669, %v814
  %v943 = vmul.f32 %v478, %v815
  %v944 = vmul.f32 %v480, %v816
  %v945 = vmul.f32 %v671, %v817
  %v946 = vmul.f32 %v673, %v818
  %v947 = vmul.f32 %v484, %v819
  %v948 = vmul.f32 %v486, %v820
  %v949 = vmul.f32 %v677, %v821
  %v950 = vmul.f32 %v679, %v822
  %v951 = vmul.f32 %v488, %v823
  %v952 = vmul.f32 %v490, %v824
  %v953 = vmul.f32 %v681, %v825
  %v954 = vmul.f32 %v683, %v826
  %v955 = vmul.f32 %v494, %v827
  %v956 = vmul.f32 %v496, %v828
  %v957 = vmul.f32 %v687, %v829
  %v958 = vmul.f32 %v689, %v830
  %v959 = vmul.f32 %v498, %v831
  %v960 = vmul.f32 %v500, %v832
  %v961 = vmul.f32 %v691, %v833
  %v962 = vmul.f32 %v693, %v834
  %v963 = vmul.f32 %v504, %v835
  %v964 = vmul.f32 %v506, %v836
  %v965 = vmul.f32 %v697, %v837
  %v966 = vmul.f32 %v699, %v838
  %v967 = vmul.f32 %v508, %v839
  %v968 = vmul.f32 %v510, %v840
  %v969 = vmul.f32 %v701, %v841
  %v970 = vmul.f32 %v703, %v842
  %v971 = vmul.f32 %v514, %v843
  %v972 = vmul.f32 %v516, %v844
  %v973 = vmul.f32 %v707, %v845
  %v974 = vmul.f32 %v709, %v846
  %v975 = vmul.f32 %v518, %v847
  %v976 = vmul.f32 %v520, %v848
  %v977 = vmul.f32 %v711, %v849
  %v978 = vmul.f32 %v713, %v850
  %v979 = vmul.f32 %v524, %v851
  %v980 = vmul.f32 %v526, %v852
  %v981 = vmul.f32 %v717, %v853
  %v982 = vmul.f32 %v719, %v854
  %v983 = vmul.f32 %v528, %v855
  %v984 = vmul.f32 %v530, %v856
  %v985 = vmul.f32 %v721, %v857
  %v986 = vmul.f32 %v723, %v858
  %v987 = vmul.f32 %v534, %v859
  %v988 = vmul.f32 %v536, %v860
  %v989 = vmul.f32 %v727, %v861
  %v990 = vmul.f32 %v729, %v862
  %v991 = vmul.f32 %v538, %v863
  %v992 = vmul.f32 %v540, %v864
  %v993 = vmul.f32 %v731, %v865
  %v994 = vmul.f32 %v733, %v866
  %v995 = vmul.f32 %v544, %v867
  %v996 = vmul.f32 %v546, %v868
  %v997 = vmul.f32 %v737, %v869
  %v998 = vmul.f32 %v739, %v870
  %v999 = vmul.f32 %v548, %v871
  %v1000 = vmul.f32 %v550, %v872
  %v1001 = vmul.f32 %v741, %v873
  %v1002 = vmul.f32 %v743, %v874
  %v1003 = vmul.f32 %v554, %v875
  %v1004 = vmul.f32 %v556, %v876
  %v1005 = vmul.f32 %v747, %v877
  %v1006 = vmul.f32 %v749, %v878
  %v1007 = vmul.f32 %v558, %v879
  %v1008 = vmul.f32 %v560, %v880
  %v1009 = vmul.f32 %v751, %v881
  %v1010 = vmul.f32 %v753, %v882
  %v1011 = vmul.f32 %v883, 0.044715
  %v1012 = vmul.f32 %v884, 0.044715
  %v1013 = vmul.f32 %v885, 0.044715
  %v1014 = vmul.f32 %v886, 0.044715
  %v1015 = vmul.f32 %v887, 0.044715
  %v1016 = vmul.f32 %v888, 0.044715
  %v1017 = vmul.f32 %v889, 0.044715
  %v1018 = vmul.f32 %v890, 0.044715
  %v1019 = vmul.f32 %v891, 0.044715
  %v1020 = vmul.f32 %v892, 0.044715
  %v1021 = vmul.f32 %v893, 0.044715
  %v1022 = vmul.f32 %v894, 0.044715
  %v1023 = vmul.f32 %v895, 0.044715
  %v1024 = vmul.f32 %v896, 0.044715
  %v1025 = vmul.f32 %v897, 0.044715
  %v1026 = vmul.f32 %v898, 0.044715
  %v1027 = vmul.f32 %v899, 0.044715
  %v1028 = vmul.f32 %v900, 0.044715
  %v1029 = vmul.f32 %v901, 0.044715
  %v1030 = vmul.f32 %v902, 0.044715
  %v1031 = vmul.f32 %v903, 0.044715
  %v1032 = vmul.f32 %v904, 0.044715
  %v1033 = vmul.f32 %v905, 0.044715
  %v1034 = vmul.f32 %v906, 0.044715
  %v1035 = vmul.f32 %v907, 0.044715
  %v1036 = vmul.f32 %v908, 0.044715
  %v1037 = vmul.f32 %v909, 0.044715
  %v1038 = vmul.f32 %v910, 0.044715
  %v1039 = vmul.f32 %v911, 0.044715
  %v1040 = vmul.f32 %v912, 0.044715
  %v1041 = vmul.f32 %v913, 0.044715
  %v1042 = vmul.f32 %v914, 0.044715
  %v1043 = vmul.f32 %v915, 0.044715
  %v1044 = vmul.f32 %v916, 0.044715
  %v1045 = vmul.f32 %v917, 0.044715
  %v1046 = vmul.f32 %v918, 0.044715
  %v1047 = vmul.f32 %v919, 0.044715
  %v1048 = vmul.f32 %v920, 0.044715
  %v1049 = vmul.f32 %v921, 0.044715
  %v1050 = vmul.f32 %v922, 0.044715
  %v1051 = vmul.f32 %v923, 0.044715
  %v1052 = vmul.f32 %v924, 0.044715
  %v1053 = vmul.f32 %v925, 0.044715
  %v1054 = vmul.f32 %v926, 0.044715
  %v1055 = vmul.f32 %v927, 0.044715
  %v1056 = vmul.f32 %v928, 0.044715
  %v1057 = vmul.f32 %v929, 0.044715
  %v1058 = vmul.f32 %v930, 0.044715
  %v1059 = vmul.f32 %v931, 0.044715
  %v1060 = vmul.f32 %v932, 0.044715
  %v1061 = vmul.f32 %v933, 0.044715
  %v1062 = vmul.f32 %v934, 0.044715
  %v1063 = vmul.f32 %v935, 0.044715
  %v1064 = vmul.f32 %v936, 0.044715
  %v1065 = vmul.f32 %v937, 0.044715
  %v1066 = vmul.f32 %v938, 0.044715
  %v1067 = vmul.f32 %v939, 0.044715
  %v1068 = vmul.f32 %v940, 0.044715
  %v1069 = vmul.f32 %v941, 0.044715
  %v1070 = vmul.f32 %v942, 0.044715
  %v1071 = vmul.f32 %v943, 0.044715
  %v1072 = vmul.f32 %v944, 0.044715
  %v1073 = vmul.f32 %v945, 0.044715
  %v1074 = vmul.f32 %v946, 0.044715
  %v1075 = vmul.f32 %v947, 0.044715
  %v1076 = vmul.f32 %v948, 0.044715
  %v1077 = vmul.f32 %v949, 0.044715
  %v1078 = vmul.f32 %v950, 0.044715
  %v1079 = vmul.f32 %v951, 0.044715
  %v1080 = vmul.f32 %v952, 0.044715
  %v1081 = vmul.f32 %v953, 0.044715
  %v1082 = vmul.f32 %v954, 0.044715
  %v1083 = vmul.f32 %v955, 0.044715
  %v1084 = vmul.f32 %v956, 0.044715
  %v1085 = vmul.f32 %v957, 0.044715
  %v1086 = vmul.f32 %v958, 0.044715
  %v1087 = vmul.f32 %v959, 0.044715
  %v1088 = vmul.f32 %v960, 0.044715
  %v1089 = vmul.f32 %v961, 0.044715
  %v1090 = vmul.f32 %v962, 0.044715
  %v1091 = vmul.f32 %v963, 0.044715
  %v1092 = vmul.f32 %v964, 0.044715
  %v1093 = vmul.f32 %v965, 0.044715
  %v1094 = vmul.f32 %v966, 0.044715
  %v1095 = vmul.f32 %v967, 0.044715
  %v1096 = vmul.f32 %v968, 0.044715
  %v1097 = vmul.f32 %v969, 0.044715
  %v1098 = vmul.f32 %v970, 0.044715
  %v1099 = vmul.f32 %v971, 0.044715
  %v1100 = vmul.f32 %v972, 0.044715
  %v1101 = vmul.f32 %v973, 0.044715
  %v1102 = vmul.f32 %v974, 0.044715
  %v1103 = vmul.f32 %v975, 0.044715
  %v1104 = vmul.f32 %v976, 0.044715
  %v1105 = vmul.f32 %v977, 0.044715
  %v1106 = vmul.f32 %v978, 0.044715
  %v1107 = vmul.f32 %v979, 0.044715
  %v1108 = vmul.f32 %v980, 0.044715
  %v1109 = vmul.f32 %v981, 0.044715
  %v1110 = vmul.f32 %v982, 0.044715
  %v1111 = vmul.f32 %v983, 0.044715
  %v1112 = vmul.f32 %v984, 0.044715
  %v1113 = vmul.f32 %v985, 0.044715
  %v1114 = vmul.f32 %v986, 0.044715
  %v1115 = vmul.f32 %v987, 0.044715
  %v1116 = vmul.f32 %v988, 0.044715
  %v1117 = vmul.f32 %v989, 0.044715
  %v1118 = vmul.f32 %v990, 0.044715
  %v1119 = vmul.f32 %v991, 0.044715
  %v1120 = vmul.f32 %v992, 0.044715
  %v1121 = vmul.f32 %v993, 0.044715
  %v1122 = vmul.f32 %v994, 0.044715
  %v1123 = vmul.f32 %v995, 0.044715
  %v1124 = vmul.f32 %v996, 0.044715
  %v1125 = vmul.f32 %v997, 0.044715
  %v1126 = vmul.f32 %v998, 0.044715
  %v1127 = vmul.f32 %v999, 0.044715
  %v1128 = vmul.f32 %v1000, 0.044715
  %v1129 = vmul.f32 %v1001, 0.044715
  %v1130 = vmul.f32 %v1002, 0.044715
  %v1131 = vmul.f32 %v1003, 0.044715
  %v1132 = vmul.f32 %v1004, 0.044715
  %v1133 = vmul.f32 %v1005, 0.044715
  %v1134 = vmul.f32 %v1006, 0.044715
  %v1135 = vmul.f32 %v1007, 0.044715
  %v1136 = vmul.f32 %v1008, 0.044715
  %v1137 = vmul.f32 %v1009, 0.044715
  %v1138 = vmul.f32 %v1010, 0.044715
  %v1139 = vadd.f32 %v404, %v1011
  %v1140 = vadd.f32 %v406, %v1012
  %v1141 = vadd.f32 %v597, %v1013
  %v1142 = vadd.f32 %v599, %v1014
  %v1143 = vadd.f32 %v408, %v1015
  %v1144 = vadd.f32 %v410, %v1016
  %v1145 = vadd.f32 %v601, %v1017
  %v1146 = vadd.f32 %v603, %v1018
  %v1147 = vadd.f32 %v414, %v1019
  %v1148 = vadd.f32 %v416, %v1020
  %v1149 = vadd.f32 %v607, %v1021
  %v1150 = vadd.f32 %v609, %v1022
  %v1151 = vadd.f32 %v418, %v1023
  %v1152 = vadd.f32 %v420, %v1024
  %v1153 = vadd.f32 %v611, %v1025
  %v1154 = vadd.f32 %v613, %v1026
  %v1155 = vadd.f32 %v424, %v1027
  %v1156 = vadd.f32 %v426, %v1028
  %v1157 = vadd.f32 %v617, %v1029
  %v1158 = vadd.f32 %v619, %v1030
  %v1159 = vadd.f32 %v428, %v1031
  %v1160 = vadd.f32 %v430, %v1032
  %v1161 = vadd.f32 %v621, %v1033
  %v1162 = vadd.f32 %v623, %v1034
  %v1163 = vadd.f32 %v434, %v1035
  %v1164 = vadd.f32 %v436, %v1036
  %v1165 = vadd.f32 %v627, %v1037
  %v1166 = vadd.f32 %v629, %v1038
  %v1167 = vadd.f32 %v438, %v1039
  %v1168 = vadd.f32 %v440, %v1040
  %v1169 = vadd.f32 %v631, %v1041
  %v1170 = vadd.f32 %v633, %v1042
  %v1171 = vadd.f32 %v444, %v1043
  %v1172 = vadd.f32 %v446, %v1044
  %v1173 = vadd.f32 %v637, %v1045
  %v1174 = vadd.f32 %v639, %v1046
  %v1175 = vadd.f32 %v448, %v1047
  %v1176 = vadd.f32 %v450, %v1048
  %v1177 = vadd.f32 %v641, %v1049
  %v1178 = vadd.f32 %v643, %v1050
  %v1179 = vadd.f32 %v454, %v1051
  %v1180 = vadd.f32 %v456, %v1052
  %v1181 = vadd.f32 %v647, %v1053
  %v1182 = vadd.f32 %v649, %v1054
  %v1183 = vadd.f32 %v458, %v1055
  %v1184 = vadd.f32 %v460, %v1056
  %v1185 = vadd.f32 %v651, %v1057
  %v1186 = vadd.f32 %v653, %v1058
  %v1187 = vadd.f32 %v464, %v1059
  %v1188 = vadd.f32 %v466, %v1060
  %v1189 = vadd.f32 %v657, %v1061
  %v1190 = vadd.f32 %v659, %v1062
  %v1191 = vadd.f32 %v468, %v1063
  %v1192 = vadd.f32 %v470, %v1064
  %v1193 = vadd.f32 %v661, %v1065
  %v1194 = vadd.f32 %v663, %v1066
  %v1195 = vadd.f32 %v474, %v1067
  %v1196 = vadd.f32 %v476, %v1068
  %v1197 = vadd.f32 %v667, %v1069
  %v1198 = vadd.f32 %v669, %v1070
  %v1199 = vadd.f32 %v478, %v1071
  %v1200 = vadd.f32 %v480, %v1072
  %v1201 = vadd.f32 %v671, %v1073
  %v1202 = vadd.f32 %v673, %v1074
  %v1203 = vadd.f32 %v484, %v1075
  %v1204 = vadd.f32 %v486, %v1076
  %v1205 = vadd.f32 %v677, %v1077
  %v1206 = vadd.f32 %v679, %v1078
  %v1207 = vadd.f32 %v488, %v1079
  %v1208 = vadd.f32 %v490, %v1080
  %v1209 = vadd.f32 %v681, %v1081
  %v1210 = vadd.f32 %v683, %v1082
  %v1211 = vadd.f32 %v494, %v1083
  %v1212 = vadd.f32 %v496, %v1084
  %v1213 = vadd.f32 %v687, %v1085
  %v1214 = vadd.f32 %v689, %v1086
  %v1215 = vadd.f32 %v498, %v1087
  %v1216 = vadd.f32 %v500, %v1088
  %v1217 = vadd.f32 %v691, %v1089
  %v1218 = vadd.f32 %v693, %v1090
  %v1219 = vadd.f32 %v504, %v1091
  %v1220 = vadd.f32 %v506, %v1092
  %v1221 = vadd.f32 %v697, %v1093
  %v1222 = vadd.f32 %v699, %v1094
  %v1223 = vadd.f32 %v508, %v1095
  %v1224 = vadd.f32 %v510, %v1096
  %v1225 = vadd.f32 %v701, %v1097
  %v1226 = vadd.f32 %v703, %v1098
  %v1227 = vadd.f32 %v514, %v1099
  %v1228 = vadd.f32 %v516, %v1100
  %v1229 = vadd.f32 %v707, %v1101
  %v1230 = vadd.f32 %v709, %v1102
  %v1231 = vadd.f32 %v518, %v1103
  %v1232 = vadd.f32 %v520, %v1104
  %v1233 = vadd.f32 %v711, %v1105
  %v1234 = vadd.f32 %v713, %v1106
  %v1235 = vadd.f32 %v524, %v1107
  %v1236 = vadd.f32 %v526, %v1108
  %v1237 = vadd.f32 %v717, %v1109
  %v1238 = vadd.f32 %v719, %v1110
  %v1239 = vadd.f32 %v528, %v1111
  %v1240 = vadd.f32 %v530, %v1112
  %v1241 = vadd.f32 %v721, %v1113
  %v1242 = vadd.f32 %v723, %v1114
  %v1243 = vadd.f32 %v534, %v1115
  %v1244 = vadd.f32 %v536, %v1116
  %v1245 = vadd.f32 %v727, %v1117
  %v1246 = vadd.f32 %v729, %v1118
  %v1247 = vadd.f32 %v538, %v1119
  %v1248 = vadd.f32 %v540, %v1120
  %v1249 = vadd.f32 %v731, %v1121
  %v1250 = vadd.f32 %v733, %v1122
  %v1251 = vadd.f32 %v544, %v1123
  %v1252 = vadd.f32 %v546, %v1124
  %v1253 = vadd.f32 %v737, %v1125
  %v1254 = vadd.f32 %v739, %v1126
  %v1255 = vadd.f32 %v548, %v1127
  %v1256 = vadd.f32 %v550, %v1128
  %v1257 = vadd.f32 %v741, %v1129
  %v1258 = vadd.f32 %v743, %v1130
  %v1259 = vadd.f32 %v554, %v1131
  %v1260 = vadd.f32 %v556, %v1132
  %v1261 = vadd.f32 %v747, %v1133
  %v1262 = vadd.f32 %v749, %v1134
  %v1263 = vadd.f32 %v558, %v1135
  %v1264 = vadd.f32 %v560, %v1136
  %v1265 = vadd.f32 %v751, %v1137
  %v1266 = vadd.f32 %v753, %v1138
  %v1267 = vmul.f32 %v1139, 0.7978846
  %v1268 = vmul.f32 %v1140, 0.7978846
  %v1269 = vmul.f32 %v1141, 0.7978846
  %v1270 = vmul.f32 %v1142, 0.7978846
  %v1271 = vmul.f32 %v1143, 0.7978846
  %v1272 = vmul.f32 %v1144, 0.7978846
  %v1273 = vmul.f32 %v1145, 0.7978846
  %v1274 = vmul.f32 %v1146, 0.7978846
  %v1275 = vmul.f32 %v1147, 0.7978846
  %v1276 = vmul.f32 %v1148, 0.7978846
  %v1277 = vmul.f32 %v1149, 0.7978846
  %v1278 = vmul.f32 %v1150, 0.7978846
  %v1279 = vmul.f32 %v1151, 0.7978846
  %v1280 = vmul.f32 %v1152, 0.7978846
  %v1281 = vmul.f32 %v1153, 0.7978846
  %v1282 = vmul.f32 %v1154, 0.7978846
  %v1283 = vmul.f32 %v1155, 0.7978846
  %v1284 = vmul.f32 %v1156, 0.7978846
  %v1285 = vmul.f32 %v1157, 0.7978846
  %v1286 = vmul.f32 %v1158, 0.7978846
  %v1287 = vmul.f32 %v1159, 0.7978846
  %v1288 = vmul.f32 %v1160, 0.7978846
  %v1289 = vmul.f32 %v1161, 0.7978846
  %v1290 = vmul.f32 %v1162, 0.7978846
  %v1291 = vmul.f32 %v1163, 0.7978846
  %v1292 = vmul.f32 %v1164, 0.7978846
  %v1293 = vmul.f32 %v1165, 0.7978846
  %v1294 = vmul.f32 %v1166, 0.7978846
  %v1295 = vmul.f32 %v1167, 0.7978846
  %v1296 = vmul.f32 %v1168, 0.7978846
  %v1297 = vmul.f32 %v1169, 0.7978846
  %v1298 = vmul.f32 %v1170, 0.7978846
  %v1299 = vmul.f32 %v1171, 0.7978846
  %v1300 = vmul.f32 %v1172, 0.7978846
  %v1301 = vmul.f32 %v1173, 0.7978846
  %v1302 = vmul.f32 %v1174, 0.7978846
  %v1303 = vmul.f32 %v1175, 0.7978846
  %v1304 = vmul.f32 %v1176, 0.7978846
  %v1305 = vmul.f32 %v1177, 0.7978846
  %v1306 = vmul.f32 %v1178, 0.7978846
  %v1307 = vmul.f32 %v1179, 0.7978846
  %v1308 = vmul.f32 %v1180, 0.7978846
  %v1309 = vmul.f32 %v1181, 0.7978846
  %v1310 = vmul.f32 %v1182, 0.7978846
  %v1311 = vmul.f32 %v1183, 0.7978846
  %v1312 = vmul.f32 %v1184, 0.7978846
  %v1313 = vmul.f32 %v1185, 0.7978846
  %v1314 = vmul.f32 %v1186, 0.7978846
  %v1315 = vmul.f32 %v1187, 0.7978846
  %v1316 = vmul.f32 %v1188, 0.7978846
  %v1317 = vmul.f32 %v1189, 0.7978846
  %v1318 = vmul.f32 %v1190, 0.7978846
  %v1319 = vmul.f32 %v1191, 0.7978846
  %v1320 = vmul.f32 %v1192, 0.7978846
  %v1321 = vmul.f32 %v1193, 0.7978846
  %v1322 = vmul.f32 %v1194, 0.7978846
  %v1323 = vmul.f32 %v1195, 0.7978846
  %v1324 = vmul.f32 %v1196, 0.7978846
  %v1325 = vmul.f32 %v1197, 0.7978846
  %v1326 = vmul.f32 %v1198, 0.7978846
  %v1327 = vmul.f32 %v1199, 0.7978846
  %v1328 = vmul.f32 %v1200, 0.7978846
  %v1329 = vmul.f32 %v1201, 0.7978846
  %v1330 = vmul.f32 %v1202, 0.7978846
  %v1331 = vmul.f32 %v1203, 0.7978846
  %v1332 = vmul.f32 %v1204, 0.7978846
  %v1333 = vmul.f32 %v1205, 0.7978846
  %v1334 = vmul.f32 %v1206, 0.7978846
  %v1335 = vmul.f32 %v1207, 0.7978846
  %v1336 = vmul.f32 %v1208, 0.7978846
  %v1337 = vmul.f32 %v1209, 0.7978846
  %v1338 = vmul.f32 %v1210, 0.7978846
  %v1339 = vmul.f32 %v1211, 0.7978846
  %v1340 = vmul.f32 %v1212, 0.7978846
  %v1341 = vmul.f32 %v1213, 0.7978846
  %v1342 = vmul.f32 %v1214, 0.7978846
  %v1343 = vmul.f32 %v1215, 0.7978846
  %v1344 = vmul.f32 %v1216, 0.7978846
  %v1345 = vmul.f32 %v1217, 0.7978846
  %v1346 = vmul.f32 %v1218, 0.7978846
  %v1347 = vmul.f32 %v1219, 0.7978846
  %v1348 = vmul.f32 %v1220, 0.7978846
  %v1349 = vmul.f32 %v1221, 0.7978846
  %v1350 = vmul.f32 %v1222, 0.7978846
  %v1351 = vmul.f32 %v1223, 0.7978846
  %v1352 = vmul.f32 %v1224, 0.7978846
  %v1353 = vmul.f32 %v1225, 0.7978846
  %v1354 = vmul.f32 %v1226, 0.7978846
  %v1355 = vmul.f32 %v1227, 0.7978846
  %v1356 = vmul.f32 %v1228, 0.7978846
  %v1357 = vmul.f32 %v1229, 0.7978846
  %v1358 = vmul.f32 %v1230, 0.7978846
  %v1359 = vmul.f32 %v1231, 0.7978846
  %v1360 = vmul.f32 %v1232, 0.7978846
  %v1361 = vmul.f32 %v1233, 0.7978846
  %v1362 = vmul.f32 %v1234, 0.7978846
  %v1363 = vmul.f32 %v1235, 0.7978846
  %v1364 = vmul.f32 %v1236, 0.7978846
  %v1365 = vmul.f32 %v1237, 0.7978846
  %v1366 = vmul.f32 %v1238, 0.7978846
  %v1367 = vmul.f32 %v1239, 0.7978846
  %v1368 = vmul.f32 %v1240, 0.7978846
  %v1369 = vmul.f32 %v1241, 0.7978846
  %v1370 = vmul.f32 %v1242, 0.7978846
  %v1371 = vmul.f32 %v1243, 0.7978846
  %v1372 = vmul.f32 %v1244, 0.7978846
  %v1373 = vmul.f32 %v1245, 0.7978846
  %v1374 = vmul.f32 %v1246, 0.7978846
  %v1375 = vmul.f32 %v1247, 0.7978846
  %v1376 = vmul.f32 %v1248, 0.7978846
  %v1377 = vmul.f32 %v1249, 0.7978846
  %v1378 = vmul.f32 %v1250, 0.7978846
  %v1379 = vmul.f32 %v1251, 0.7978846
  %v1380 = vmul.f32 %v1252, 0.7978846
  %v1381 = vmul.f32 %v1253, 0.7978846
  %v1382 = vmul.f32 %v1254, 0.7978846
  %v1383 = vmul.f32 %v1255, 0.7978846
  %v1384 = vmul.f32 %v1256, 0.7978846
  %v1385 = vmul.f32 %v1257, 0.7978846
  %v1386 = vmul.f32 %v1258, 0.7978846
  %v1387 = vmul.f32 %v1259, 0.7978846
  %v1388 = vmul.f32 %v1260, 0.7978846
  %v1389 = vmul.f32 %v1261, 0.7978846
  %v1390 = vmul.f32 %v1262, 0.7978846
  %v1391 = vmul.f32 %v1263, 0.7978846
  %v1392 = vmul.f32 %v1264, 0.7978846
  %v1393 = vmul.f32 %v1265, 0.7978846
  %v1394 = vmul.f32 %v1266, 0.7978846
  %v1395 = vtanh.pop %v1267
  %v1396 = vtanh.pop %v1268
  %v1397 = vtanh.pop %v1269
  %v1398 = vtanh.pop %v1270
  %v1399 = vtanh.pop %v1271
  %v1400 = vtanh.pop %v1272
  %v1401 = vtanh.pop %v1273
  %v1402 = vtanh.pop %v1274
  %v1403 = vtanh.pop %v1275
  %v1404 = vtanh.pop %v1276
  %v1405 = vtanh.pop %v1277
  %v1406 = vtanh.pop %v1278
  %v1407 = vtanh.pop %v1279
  %v1408 = vtanh.pop %v1280
  %v1409 = vtanh.pop %v1281
  %v1410 = vtanh.pop %v1282
  %v1411 = vtanh.pop %v1283
  %v1412 = vtanh.pop %v1284
  %v1413 = vtanh.pop %v1285
  %v1414 = vtanh.pop %v1286
  %v1415 = vtanh.pop %v1287
  %v1416 = vtanh.pop %v1288
  %v1417 = vtanh.pop %v1289
  %v1418 = vtanh.pop %v1290
  %v1419 = vtanh.pop %v1291
  %v1420 = vtanh.pop %v1292
  %v1421 = vtanh.pop %v1293
  %v1422 = vtanh.pop %v1294
  %v1423 = vtanh.pop %v1295
  %v1424 = vtanh.pop %v1296
  %v1425 = vtanh.pop %v1297
  %v1426 = vtanh.pop %v1298
  %v1427 = vtanh.pop %v1299
  %v1428 = vtanh.pop %v1300
  %v1429 = vtanh.pop %v1301
  %v1430 = vtanh.pop %v1302
  %v1431 = vtanh.pop %v1303
  %v1432 = vtanh.pop %v1304
  %v1433 = vtanh.pop %v1305
  %v1434 = vtanh.pop %v1306
  %v1435 = vtanh.pop %v1307
  %v1436 = vtanh.pop %v1308
  %v1437 = vtanh.pop %v1309
  %v1438 = vtanh.pop %v1310
  %v1439 = vtanh.pop %v1311
  %v1440 = vtanh.pop %v1312
  %v1441 = vtanh.pop %v1313
  %v1442 = vtanh.pop %v1314
  %v1443 = vtanh.pop %v1315
  %v1444 = vtanh.pop %v1316
  %v1445 = vtanh.pop %v1317
  %v1446 = vtanh.pop %v1318
  %v1447 = vtanh.pop %v1319
  %v1448 = vtanh.pop %v1320
  %v1449 = vtanh.pop %v1321
  %v1450 = vtanh.pop %v1322
  %v1451 = vtanh.pop %v1323
  %v1452 = vtanh.pop %v1324
  %v1453 = vtanh.pop %v1325
  %v1454 = vtanh.pop %v1326
  %v1455 = vtanh.pop %v1327
  %v1456 = vtanh.pop %v1328
  %v1457 = vtanh.pop %v1329
  %v1458 = vtanh.pop %v1330
  %v1459 = vtanh.pop %v1331
  %v1460 = vtanh.pop %v1332
  %v1461 = vtanh.pop %v1333
  %v1462 = vtanh.pop %v1334
  %v1463 = vtanh.pop %v1335
  %v1464 = vtanh.pop %v1336
  %v1465 = vtanh.pop %v1337
  %v1466 = vtanh.pop %v1338
  %v1467 = vtanh.pop %v1339
  %v1468 = vtanh.pop %v1340
  %v1469 = vtanh.pop %v1341
  %v1470 = vtanh.pop %v1342
  %v1471 = vtanh.pop %v1343
  %v1472 = vtanh.pop %v1344
  %v1473 = vtanh.pop %v1345
  %v1474 = vtanh.pop %v1346
  %v1475 = vtanh.pop %v1347
  %v1476 = vtanh.pop %v1348
  %v1477 = vtanh.pop %v1349
  %v1478 = vtanh.pop %v1350
  %v1479 = vtanh.pop %v1351
  %v1480 = vtanh.pop %v1352
  %v1481 = vtanh.pop %v1353
  %v1482 = vtanh.pop %v1354
  %v1483 = vtanh.pop %v1355
  %v1484 = vtanh.pop %v1356
  %v1485 = vtanh.pop %v1357
  %v1486 = vtanh.pop %v1358
  %v1487 = vtanh.pop %v1359
  %v1488 = vtanh.pop %v1360
  %v1489 = vtanh.pop %v1361
  %v1490 = vtanh.pop %v1362
  %v1491 = vtanh.pop %v1363
  %v1492 = vtanh.pop %v1364
  %v1493 = vtanh.pop %v1365
  %v1494 = vtanh.pop %v1366
  %v1495 = vtanh.pop %v1367
  %v1496 = vtanh.pop %v1368
  %v1497 = vtanh.pop %v1369
  %v1498 = vtanh.pop %v1370
  %v1499 = vtanh.pop %v1371
  %v1500 = vtanh.pop %v1372
  %v1501 = vtanh.pop %v1373
  %v1502 = vtanh.pop %v1374
  %v1503 = vtanh.pop %v1375
  %v1504 = vtanh.pop %v1376
  %v1505 = vtanh.pop %v1377
  %v1506 = vtanh.pop %v1378
  %v1507 = vtanh.pop %v1379
  %v1508 = vtanh.pop %v1380
  %v1509 = vtanh.pop %v1381
  %v1510 = vtanh.pop %v1382
  %v1511 = vtanh.pop %v1383
  %v1512 = vtanh.pop %v1384
  %v1513 = vtanh.pop %v1385
  %v1514 = vtanh.pop %v1386
  %v1515 = vtanh.pop %v1387
  %v1516 = vtanh.pop %v1388
  %v1517 = vtanh.pop %v1389
  %v1518 = vtanh.pop %v1390
  %v1519 = vtanh.pop %v1391
  %v1520 = vtanh.pop %v1392
  %v1521 = vtanh.pop %v1393
  %v1522 = vtanh.pop %v1394
  %v1523 = vadd.f32 %v1395, 1.0
  %v1524 = vadd.f32 %v1396, 1.0
  %v1525 = vadd.f32 %v1397, 1.0
  %v1526 = vadd.f32 %v1398, 1.0
  %v1527 = vadd.f32 %v1399, 1.0
  %v1528 = vadd.f32 %v1400, 1.0
  %v1529 = vadd.f32 %v1401, 1.0
  %v1530 = vadd.f32 %v1402, 1.0
  %v1531 = vadd.f32 %v1403, 1.0
  %v1532 = vadd.f32 %v1404, 1.0
  %v1533 = vadd.f32 %v1405, 1.0
  %v1534 = vadd.f32 %v1406, 1.0
  %v1535 = vadd.f32 %v1407, 1.0
  %v1536 = vadd.f32 %v1408, 1.0
  %v1537 = vadd.f32 %v1409, 1.0
  %v1538 = vadd.f32 %v1410, 1.0
  %v1539 = vadd.f32 %v1411, 1.0
  %v1540 = vadd.f32 %v1412, 1.0
  %v1541 = vadd.f32 %v1413, 1.0
  %v1542 = vadd.f32 %v1414, 1.0
  %v1543 = vadd.f32 %v1415, 1.0
  %v1544 = vadd.f32 %v1416, 1.0
  %v1545 = vadd.f32 %v1417, 1.0
  %v1546 = vadd.f32 %v1418, 1.0
  %v1547 = vadd.f32 %v1419, 1.0
  %v1548 = vadd.f32 %v1420, 1.0
  %v1549 = vadd.f32 %v1421, 1.0
  %v1550 = vadd.f32 %v1422, 1.0
  %v1551 = vadd.f32 %v1423, 1.0
  %v1552 = vadd.f32 %v1424, 1.0
  %v1553 = vadd.f32 %v1425, 1.0
  %v1554 = vadd.f32 %v1426, 1.0
  %v1555 = vadd.f32 %v1427, 1.0
  %v1556 = vadd.f32 %v1428, 1.0
  %v1557 = vadd.f32 %v1429, 1.0
  %v1558 = vadd.f32 %v1430, 1.0
  %v1559 = vadd.f32 %v1431, 1.0
  %v1560 = vadd.f32 %v1432, 1.0
  %v1561 = vadd.f32 %v1433, 1.0
  %v1562 = vadd.f32 %v1434, 1.0
  %v1563 = vadd.f32 %v1435, 1.0
  %v1564 = vadd.f32 %v1436, 1.0
  %v1565 = vadd.f32 %v1437, 1.0
  %v1566 = vadd.f32 %v1438, 1.0
  %v1567 = vadd.f32 %v1439, 1.0
  %v1568 = vadd.f32 %v1440, 1.0
  %v1569 = vadd.f32 %v1441, 1.0
  %v1570 = vadd.f32 %v1442, 1.0
  %v1571 = vadd.f32 %v1443, 1.0
  %v1572 = vadd.f32 %v1444, 1.0
  %v1573 = vadd.f32 %v1445, 1.0
  %v1574 = vadd.f32 %v1446, 1.0
  %v1575 = vadd.f32 %v1447, 1.0
  %v1576 = vadd.f32 %v1448, 1.0
  %v1577 = vadd.f32 %v1449, 1.0
  %v1578 = vadd.f32 %v1450, 1.0
  %v1579 = vadd.f32 %v1451, 1.0
  %v1580 = vadd.f32 %v1452, 1.0
  %v1581 = vadd.f32 %v1453, 1.0
  %v1582 = vadd.f32 %v1454, 1.0
  %v1583 = vadd.f32 %v1455, 1.0
  %v1584 = vadd.f32 %v1456, 1.0
  %v1585 = vadd.f32 %v1457, 1.0
  %v1586 = vadd.f32 %v1458, 1.0
  %v1587 = vadd.f32 %v1459, 1.0
  %v1588 = vadd.f32 %v1460, 1.0
  %v1589 = vadd.f32 %v1461, 1.0
  %v1590 = vadd.f32 %v1462, 1.0
  %v1591 = vadd.f32 %v1463, 1.0
  %v1592 = vadd.f32 %v1464, 1.0
  %v1593 = vadd.f32 %v1465, 1.0
  %v1594 = vadd.f32 %v1466, 1.0
  %v1595 = vadd.f32 %v1467, 1.0
  %v1596 = vadd.f32 %v1468, 1.0
  %v1597 = vadd.f32 %v1469, 1.0
  %v1598 = vadd.f32 %v1470, 1.0
  %v1599 = vadd.f32 %v1471, 1.0
  %v1600 = vadd.f32 %v1472, 1.0
  %v1601 = vadd.f32 %v1473, 1.0
  %v1602 = vadd.f32 %v1474, 1.0
  %v1603 = vadd.f32 %v1475, 1.0
  %v1604 = vadd.f32 %v1476, 1.0
  %v1605 = vadd.f32 %v1477, 1.0
  %v1606 = vadd.f32 %v1478, 1.0
  %v1607 = vadd.f32 %v1479, 1.0
  %v1608 = vadd.f32 %v1480, 1.0
  %v1609 = vadd.f32 %v1481, 1.0
  %v1610 = vadd.f32 %v1482, 1.0
  %v1611 = vadd.f32 %v1483, 1.0
  %v1612 = vadd.f32 %v1484, 1.0
  %v1613 = vadd.f32 %v1485, 1.0
  %v1614 = vadd.f32 %v1486, 1.0
  %v1615 = vadd.f32 %v1487, 1.0
  %v1616 = vadd.f32 %v1488, 1.0
  %v1617 = vadd.f32 %v1489, 1.0
  %v1618 = vadd.f32 %v1490, 1.0
  %v1619 = vadd.f32 %v1491, 1.0
  %v1620 = vadd.f32 %v1492, 1.0
  %v1621 = vadd.f32 %v1493, 1.0
  %v1622 = vadd.f32 %v1494, 1.0
  %v1623 = vadd.f32 %v1495, 1.0
  %v1624 = vadd.f32 %v1496, 1.0
  %v1625 = vadd.f32 %v1497, 1.0
  %v1626 = vadd.f32 %v1498, 1.0
  %v1627 = vadd.f32 %v1499, 1.0
  %v1628 = vadd.f32 %v1500, 1.0
  %v1629 = vadd.f32 %v1501, 1.0
  %v1630 = vadd.f32 %v1502, 1.0
  %v1631 = vadd.f32 %v1503, 1.0
  %v1632 = vadd.f32 %v1504, 1.0
  %v1633 = vadd.f32 %v1505, 1.0
  %v1634 = vadd.f32 %v1506, 1.0
  %v1635 = vadd.f32 %v1507, 1.0
  %v1636 = vadd.f32 %v1508, 1.0
  %v1637 = vadd.f32 %v1509, 1.0
  %v1638 = vadd.f32 %v1510, 1.0
  %v1639 = vadd.f32 %v1511, 1.0
  %v1640 = vadd.f32 %v1512, 1.0
  %v1641 = vadd.f32 %v1513, 1.0
  %v1642 = vadd.f32 %v1514, 1.0
  %v1643 = vadd.f32 %v1515, 1.0
  %v1644 = vadd.f32 %v1516, 1.0
  %v1645 = vadd.f32 %v1517, 1.0
  %v1646 = vadd.f32 %v1518, 1.0
  %v1647 = vadd.f32 %v1519, 1.0
  %v1648 = vadd.f32 %v1520, 1.0
  %v1649 = vadd.f32 %v1521, 1.0
  %v1650 = vadd.f32 %v1522, 1.0
  %v1651 = vmul.f32 %v1523, 0.5
  %v1652 = vmul.f32 %v1524, 0.5
  %v1653 = vmul.f32 %v1525, 0.5
  %v1654 = vmul.f32 %v1526, 0.5
  %v1655 = vmul.f32 %v1527, 0.5
  %v1656 = vmul.f32 %v1528, 0.5
  %v1657 = vmul.f32 %v1529, 0.5
  %v1658 = vmul.f32 %v1530, 0.5
  %v1659 = vmul.f32 %v1531, 0.5
  %v1660 = vmul.f32 %v1532, 0.5
  %v1661 = vmul.f32 %v1533, 0.5
  %v1662 = vmul.f32 %v1534, 0.5
  %v1663 = vmul.f32 %v1535, 0.5
  %v1664 = vmul.f32 %v1536, 0.5
  %v1665 = vmul.f32 %v1537, 0.5
  %v1666 = vmul.f32 %v1538, 0.5
  %v1667 = vmul.f32 %v1539, 0.5
  %v1668 = vmul.f32 %v1540, 0.5
  %v1669 = vmul.f32 %v1541, 0.5
  %v1670 = vmul.f32 %v1542, 0.5
  %v1671 = vmul.f32 %v1543, 0.5
  %v1672 = vmul.f32 %v1544, 0.5
  %v1673 = vmul.f32 %v1545, 0.5
  %v1674 = vmul.f32 %v1546, 0.5
  %v1675 = vmul.f32 %v1547, 0.5
  %v1676 = vmul.f32 %v1548, 0.5
  %v1677 = vmul.f32 %v1549, 0.5
  %v1678 = vmul.f32 %v1550, 0.5
  %v1679 = vmul.f32 %v1551, 0.5
  %v1680 = vmul.f32 %v1552, 0.5
  %v1681 = vmul.f32 %v1553, 0.5
  %v1682 = vmul.f32 %v1554, 0.5
  %v1683 = vmul.f32 %v1555, 0.5
  %v1684 = vmul.f32 %v1556, 0.5
  %v1685 = vmul.f32 %v1557, 0.5
  %v1686 = vmul.f32 %v1558, 0.5
  %v1687 = vmul.f32 %v1559, 0.5
  %v1688 = vmul.f32 %v1560, 0.5
  %v1689 = vmul.f32 %v1561, 0.5
  %v1690 = vmul.f32 %v1562, 0.5
  %v1691 = vmul.f32 %v1563, 0.5
  %v1692 = vmul.f32 %v1564, 0.5
  %v1693 = vmul.f32 %v1565, 0.5
  %v1694 = vmul.f32 %v1566, 0.5
  %v1695 = vmul.f32 %v1567, 0.5
  %v1696 = vmul.f32 %v1568, 0.5
  %v1697 = vmul.f32 %v1569, 0.5
  %v1698 = vmul.f32 %v1570, 0.5
  %v1699 = vmul.f32 %v1571, 0.5
  %v1700 = vmul.f32 %v1572, 0.5
  %v1701 = vmul.f32 %v1573, 0.5
  %v1702 = vmul.f32 %v1574, 0.5
  %v1703 = vmul.f32 %v1575, 0.5
  %v1704 = vmul.f32 %v1576, 0.5
  %v1705 = vmul.f32 %v1577, 0.5
  %v1706 = vmul.f32 %v1578, 0.5
  %v1707 = vmul.f32 %v1579, 0.5
  %v1708 = vmul.f32 %v1580, 0.5
  %v1709 = vmul.f32 %v1581, 0.5
  %v1710 = vmul.f32 %v1582, 0.5
  %v1711 = vmul.f32 %v1583, 0.5
  %v1712 = vmul.f32 %v1584, 0.5
  %v1713 = vmul.f32 %v1585, 0.5
  %v1714 = vmul.f32 %v1586, 0.5
  %v1715 = vmul.f32 %v1587, 0.5
  %v1716 = vmul.f32 %v1588, 0.5
  %v1717 = vmul.f32 %v1589, 0.5
  %v1718 = vmul.f32 %v1590, 0.5
  %v1719 = vmul.f32 %v1591, 0.5
  %v1720 = vmul.f32 %v1592, 0.5
  %v1721 = vmul.f32 %v1593, 0.5
  %v1722 = vmul.f32 %v1594, 0.5
  %v1723 = vmul.f32 %v1595, 0.5
  %v1724 = vmul.f32 %v1596, 0.5
  %v1725 = vmul.f32 %v1597, 0.5
  %v1726 = vmul.f32 %v1598, 0.5
  %v1727 = vmul.f32 %v1599, 0.5
  %v1728 = vmul.f32 %v1600, 0.5
  %v1729 = vmul.f32 %v1601, 0.5
  %v1730 = vmul.f32 %v1602, 0.5
  %v1731 = vmul.f32 %v1603, 0.5
  %v1732 = vmul.f32 %v1604, 0.5
  %v1733 = vmul.f32 %v1605, 0.5
  %v1734 = vmul.f32 %v1606, 0.5
  %v1735 = vmul.f32 %v1607, 0.5
  %v1736 = vmul.f32 %v1608, 0.5
  %v1737 = vmul.f32 %v1609, 0.5
  %v1738 = vmul.f32 %v1610, 0.5
  %v1739 = vmul.f32 %v1611, 0.5
  %v1740 = vmul.f32 %v1612, 0.5
  %v1741 = vmul.f32 %v1613, 0.5
  %v1742 = vmul.f32 %v1614, 0.5
  %v1743 = vmul.f32 %v1615, 0.5
  %v1744 = vmul.f32 %v1616, 0.5
  %v1745 = vmul.f32 %v1617, 0.5
  %v1746 = vmul.f32 %v1618, 0.5
  %v1747 = vmul.f32 %v1619, 0.5
  %v1748 = vmul.f32 %v1620, 0.5
  %v1749 = vmul.f32 %v1621, 0.5
  %v1750 = vmul.f32 %v1622, 0.5
  %v1751 = vmul.f32 %v1623, 0.5
  %v1752 = vmul.f32 %v1624, 0.5
  %v1753 = vmul.f32 %v1625, 0.5
  %v1754 = vmul.f32 %v1626, 0.5
  %v1755 = vmul.f32 %v1627, 0.5
  %v1756 = vmul.f32 %v1628, 0.5
  %v1757 = vmul.f32 %v1629, 0.5
  %v1758 = vmul.f32 %v1630, 0.5
  %v1759 = vmul.f32 %v1631, 0.5
  %v1760 = vmul.f32 %v1632, 0.5
  %v1761 = vmul.f32 %v1633, 0.5
  %v1762 = vmul.f32 %v1634, 0.5
  %v1763 = vmul.f32 %v1635, 0.5
  %v1764 = vmul.f32 %v1636, 0.5
  %v1765 = vmul.f32 %v1637, 0.5
  %v1766 = vmul.f32 %v1638, 0.5
  %v1767 = vmul.f32 %v1639, 0.5
  %v1768 = vmul.f32 %v1640, 0.5
  %v1769 = vmul.f32 %v1641, 0.5
  %v1770 = vmul.f32 %v1642, 0.5
  %v1771 = vmul.f32 %v1643, 0.5
  %v1772 = vmul.f32 %v1644, 0.5
  %v1773 = vmul.f32 %v1645, 0.5
  %v1774 = vmul.f32 %v1646, 0.5
  %v1775 = vmul.f32 %v1647, 0.5
  %v1776 = vmul.f32 %v1648, 0.5
  %v1777 = vmul.f32 %v1649, 0.5
  %v1778 = vmul.f32 %v1650, 0.5
  %v1779 = vmul.f32 %v404, %v1651
  %v1780 = vmul.f32 %v406, %v1652
  %v1781 = vmul.f32 %v597, %v1653
  %v1782 = vmul.f32 %v599, %v1654
  %v1783 = vmul.f32 %v408, %v1655
  %v1784 = vmul.f32 %v410, %v1656
  %v1785 = vmul.f32 %v601, %v1657
  %v1786 = vmul.f32 %v603, %v1658
  %v1787 = vmul.f32 %v414, %v1659
  %v1788 = vmul.f32 %v416, %v1660
  %v1789 = vmul.f32 %v607, %v1661
  %v1790 = vmul.f32 %v609, %v1662
  %v1791 = vmul.f32 %v418, %v1663
  %v1792 = vmul.f32 %v420, %v1664
  %v1793 = vmul.f32 %v611, %v1665
  %v1794 = vmul.f32 %v613, %v1666
  %v1795 = vmul.f32 %v424, %v1667
  %v1796 = vmul.f32 %v426, %v1668
  %v1797 = vmul.f32 %v617, %v1669
  %v1798 = vmul.f32 %v619, %v1670
  %v1799 = vmul.f32 %v428, %v1671
  %v1800 = vmul.f32 %v430, %v1672
  %v1801 = vmul.f32 %v621, %v1673
  %v1802 = vmul.f32 %v623, %v1674
  %v1803 = vmul.f32 %v434, %v1675
  %v1804 = vmul.f32 %v436, %v1676
  %v1805 = vmul.f32 %v627, %v1677
  %v1806 = vmul.f32 %v629, %v1678
  %v1807 = vmul.f32 %v438, %v1679
  %v1808 = vmul.f32 %v440, %v1680
  %v1809 = vmul.f32 %v631, %v1681
  %v1810 = vmul.f32 %v633, %v1682
  %v1811 = vmul.f32 %v444, %v1683
  %v1812 = vmul.f32 %v446, %v1684
  %v1813 = vmul.f32 %v637, %v1685
  %v1814 = vmul.f32 %v639, %v1686
  %v1815 = vmul.f32 %v448, %v1687
  %v1816 = vmul.f32 %v450, %v1688
  %v1817 = vmul.f32 %v641, %v1689
  %v1818 = vmul.f32 %v643, %v1690
  %v1819 = vmul.f32 %v454, %v1691
  %v1820 = vmul.f32 %v456, %v1692
  %v1821 = vmul.f32 %v647, %v1693
  %v1822 = vmul.f32 %v649, %v1694
  %v1823 = vmul.f32 %v458, %v1695
  %v1824 = vmul.f32 %v460, %v1696
  %v1825 = vmul.f32 %v651, %v1697
  %v1826 = vmul.f32 %v653, %v1698
  %v1827 = vmul.f32 %v464, %v1699
  %v1828 = vmul.f32 %v466, %v1700
  %v1829 = vmul.f32 %v657, %v1701
  %v1830 = vmul.f32 %v659, %v1702
  %v1831 = vmul.f32 %v468, %v1703
  %v1832 = vmul.f32 %v470, %v1704
  %v1833 = vmul.f32 %v661, %v1705
  %v1834 = vmul.f32 %v663, %v1706
  %v1835 = vmul.f32 %v474, %v1707
  %v1836 = vmul.f32 %v476, %v1708
  %v1837 = vmul.f32 %v667, %v1709
  %v1838 = vmul.f32 %v669, %v1710
  %v1839 = vmul.f32 %v478, %v1711
  %v1840 = vmul.f32 %v480, %v1712
  %v1841 = vmul.f32 %v671, %v1713
  %v1842 = vmul.f32 %v673, %v1714
  %v1843 = vmul.f32 %v484, %v1715
  %v1844 = vmul.f32 %v486, %v1716
  %v1845 = vmul.f32 %v677, %v1717
  %v1846 = vmul.f32 %v679, %v1718
  %v1847 = vmul.f32 %v488, %v1719
  %v1848 = vmul.f32 %v490, %v1720
  %v1849 = vmul.f32 %v681, %v1721
  %v1850 = vmul.f32 %v683, %v1722
  %v1851 = vmul.f32 %v494, %v1723
  %v1852 = vmul.f32 %v496, %v1724
  %v1853 = vmul.f32 %v687, %v1725
  %v1854 = vmul.f32 %v689, %v1726
  %v1855 = vmul.f32 %v498, %v1727
  %v1856 = vmul.f32 %v500, %v1728
  %v1857 = vmul.f32 %v691, %v1729
  %v1858 = vmul.f32 %v693, %v1730
  %v1859 = vmul.f32 %v504, %v1731
  %v1860 = vmul.f32 %v506, %v1732
  %v1861 = vmul.f32 %v697, %v1733
  %v1862 = vmul.f32 %v699, %v1734
  %v1863 = vmul.f32 %v508, %v1735
  %v1864 = vmul.f32 %v510, %v1736
  %v1865 = vmul.f32 %v701, %v1737
  %v1866 = vmul.f32 %v703, %v1738
  %v1867 = vmul.f32 %v514, %v1739
  %v1868 = vmul.f32 %v516, %v1740
  %v1869 = vmul.f32 %v707, %v1741
  %v1870 = vmul.f32 %v709, %v1742
  %v1871 = vmul.f32 %v518, %v1743
  %v1872 = vmul.f32 %v520, %v1744
  %v1873 = vmul.f32 %v711, %v1745
  %v1874 = vmul.f32 %v713, %v1746
  %v1875 = vmul.f32 %v524, %v1747
  %v1876 = vmul.f32 %v526, %v1748
  %v1877 = vmul.f32 %v717, %v1749
  %v1878 = vmul.f32 %v719, %v1750
  %v1879 = vmul.f32 %v528, %v1751
  %v1880 = vmul.f32 %v530, %v1752
  %v1881 = vmul.f32 %v721, %v1753
  %v1882 = vmul.f32 %v723, %v1754
  %v1883 = vmul.f32 %v534, %v1755
  %v1884 = vmul.f32 %v536, %v1756
  %v1885 = vmul.f32 %v727, %v1757
  %v1886 = vmul.f32 %v729, %v1758
  %v1887 = vmul.f32 %v538, %v1759
  %v1888 = vmul.f32 %v540, %v1760
  %v1889 = vmul.f32 %v731, %v1761
  %v1890 = vmul.f32 %v733, %v1762
  %v1891 = vmul.f32 %v544, %v1763
  %v1892 = vmul.f32 %v546, %v1764
  %v1893 = vmul.f32 %v737, %v1765
  %v1894 = vmul.f32 %v739, %v1766
  %v1895 = vmul.f32 %v548, %v1767
  %v1896 = vmul.f32 %v550, %v1768
  %v1897 = vmul.f32 %v741, %v1769
  %v1898 = vmul.f32 %v743, %v1770
  %v1899 = vmul.f32 %v554, %v1771
  %v1900 = vmul.f32 %v556, %v1772
  %v1901 = vmul.f32 %v747, %v1773
  %v1902 = vmul.f32 %v749, %v1774
  %v1903 = vmul.f32 %v558, %v1775
  %v1904 = vmul.f32 %v560, %v1776
  %v1905 = vmul.f32 %v751, %v1777
  %v1906 = vmul.f32 %v753, %v1778
  %v1907 = vpack.c.bf16 %v1783, %v1779
  %v1908 = vpack.c.bf16 %v1784, %v1780
  %v1909 = vpack.c.bf16 %v1785, %v1781
  %v1910 = vpack.c.bf16 %v1786, %v1782
  %v1911 = vpack.c.bf16 %v1791, %v1787
  %v1912 = vpack.c.bf16 %v1792, %v1788
  %v1913 = vpack.c.bf16 %v1793, %v1789
  %v1914 = vpack.c.bf16 %v1794, %v1790
  %v1915 = vpack.c.bf16 %v1799, %v1795
  %v1916 = vpack.c.bf16 %v1800, %v1796
  %v1917 = vpack.c.bf16 %v1801, %v1797
  %v1918 = vpack.c.bf16 %v1802, %v1798
  %v1919 = vpack.c.bf16 %v1807, %v1803
  %v1920 = vpack.c.bf16 %v1808, %v1804
  %v1921 = vpack.c.bf16 %v1809, %v1805
  %v1922 = vpack.c.bf16 %v1810, %v1806
  %v1923 = vpack.c.bf16 %v1815, %v1811
  %v1924 = vpack.c.bf16 %v1816, %v1812
  %v1925 = vpack.c.bf16 %v1817, %v1813
  %v1926 = vpack.c.bf16 %v1818, %v1814
  %v1927 = vpack.c.bf16 %v1823, %v1819
  %v1928 = vpack.c.bf16 %v1824, %v1820
  %v1929 = vpack.c.bf16 %v1825, %v1821
  %v1930 = vpack.c.bf16 %v1826, %v1822
  %v1931 = vpack.c.bf16 %v1831, %v1827
  %v1932 = vpack.c.bf16 %v1832, %v1828
  %v1933 = vpack.c.bf16 %v1833, %v1829
  %v1934 = vpack.c.bf16 %v1834, %v1830
  %v1935 = vpack.c.bf16 %v1839, %v1835
  %v1936 = vpack.c.bf16 %v1840, %v1836
  %v1937 = vpack.c.bf16 %v1841, %v1837
  %v1938 = vpack.c.bf16 %v1842, %v1838
  %v1939 = vpack.c.bf16 %v1847, %v1843
  %v1940 = vpack.c.bf16 %v1848, %v1844
  %v1941 = vpack.c.bf16 %v1849, %v1845
  %v1942 = vpack.c.bf16 %v1850, %v1846
  %v1943 = vpack.c.bf16 %v1855, %v1851
  %v1944 = vpack.c.bf16 %v1856, %v1852
  %v1945 = vpack.c.bf16 %v1857, %v1853
  %v1946 = vpack.c.bf16 %v1858, %v1854
  %v1947 = vpack.c.bf16 %v1863, %v1859
  %v1948 = vpack.c.bf16 %v1864, %v1860
  %v1949 = vpack.c.bf16 %v1865, %v1861
  %v1950 = vpack.c.bf16 %v1866, %v1862
  %v1951 = vpack.c.bf16 %v1871, %v1867
  %v1952 = vpack.c.bf16 %v1872, %v1868
  %v1953 = vpack.c.bf16 %v1873, %v1869
  %v1954 = vpack.c.bf16 %v1874, %v1870
  %v1955 = vpack.c.bf16 %v1879, %v1875
  %v1956 = vpack.c.bf16 %v1880, %v1876
  %v1957 = vpack.c.bf16 %v1881, %v1877
  %v1958 = vpack.c.bf16 %v1882, %v1878
  %v1959 = vpack.c.bf16 %v1887, %v1883
  %v1960 = vpack.c.bf16 %v1888, %v1884
  %v1961 = vpack.c.bf16 %v1889, %v1885
  %v1962 = vpack.c.bf16 %v1890, %v1886
  %v1963 = vpack.c.bf16 %v1895, %v1891
  %v1964 = vpack.c.bf16 %v1896, %v1892
  %v1965 = vpack.c.bf16 %v1897, %v1893
  %v1966 = vpack.c.bf16 %v1898, %v1894
  %v1967 = vpack.c.bf16 %v1903, %v1899
  %v1968 = vpack.c.bf16 %v1904, %v1900
  %v1969 = vpack.c.bf16 %v1905, %v1901
  %v1970 = vpack.c.bf16 %v1906, %v1902
  %v1971 = vld [vmem:[%s3] sm:$0xf]
  %v1972 = vld [vmem:[%s3 + $0x4] sm:$0xf]
  %v1973 = vld [vmem:[%s3 + $0x8] sm:$0xf]
  %v1974 = vld [vmem:[%s3 + $0xc] sm:$0xf]
  %v1975 = vld [vmem:[%s3 + $0x10] sm:$0xf]
  %v1976 = vld [vmem:[%s3 + $0x14] sm:$0xf]
  %v1977 = vld [vmem:[%s3 + $0x18] sm:$0xf]
  %v1978 = vld [vmem:[%s3 + $0x1c] sm:$0xf]
  %v1979 = vld [vmem:[%s3 + $0x20] sm:$0xf]
  %v1980 = vld [vmem:[%s3 + $0x24] sm:$0xf]
  %v1981 = vld [vmem:[%s3 + $0x28] sm:$0xf]
  %v1982 = vld [vmem:[%s3 + $0x2c] sm:$0xf]
  %v1983 = vld [vmem:[%s3 + $0x30] sm:$0xf]
  %v1984 = vld [vmem:[%s3 + $0x34] sm:$0xf]
  %v1985 = vld [vmem:[%s3 + $0x38] sm:$0xf]
  %v1986 = vld [vmem:[%s3 + $0x3c] sm:$0xf]
  %v1987 = vld [vmem:[%s3 + $0x40] sm:$0xf]
  %v1988 = vld [vmem:[%s3 + $0x44] sm:$0xf]
  %v1989 = vld [vmem:[%s3 + $0x48] sm:$0xf]
  %v1990 = vld [vmem:[%s3 + $0x4c] sm:$0xf]
  %v1991 = vld [vmem:[%s3 + $0x50] sm:$0xf]
  %v1992 = vld [vmem:[%s3 + $0x54] sm:$0xf]
  %v1993 = vld [vmem:[%s3 + $0x58] sm:$0xf]
  %v1994 = vld [vmem:[%s3 + $0x5c] sm:$0xf]
  %v1995 = vld [vmem:[%s3 + $0x60] sm:$0xf]
  %v1996 = vld [vmem:[%s3 + $0x64] sm:$0xf]
  %v1997 = vld [vmem:[%s3 + $0x68] sm:$0xf]
  %v1998 = vld [vmem:[%s3 + $0x6c] sm:$0xf]
  %v1999 = vld [vmem:[%s3 + $0x70] sm:$0xf]
  %v2000 = vld [vmem:[%s3 + $0x74] sm:$0xf]
  %v2001 = vld [vmem:[%s3 + $0x78] sm:$0xf]
  %v2002 = vld [vmem:[%s3 + $0x7c] sm:$0xf]
  %v2003 = vld [vmem:[%s3 + $0x80] sm:$0xf]
  %v2004 = vld [vmem:[%s3 + $0x84] sm:$0xf]
  %v2005 = vld [vmem:[%s3 + $0x88] sm:$0xf]
  %v2006 = vld [vmem:[%s3 + $0x8c] sm:$0xf]
  %v2007 = vld [vmem:[%s3 + $0x90] sm:$0xf]
  %v2008 = vld [vmem:[%s3 + $0x94] sm:$0xf]
  %v2009 = vld [vmem:[%s3 + $0x98] sm:$0xf]
  %v2010 = vld [vmem:[%s3 + $0x9c] sm:$0xf]
  %v2011 = vld [vmem:[%s3 + $0xa0] sm:$0xf]
  %v2012 = vld [vmem:[%s3 + $0xa4] sm:$0xf]
  %v2013 = vld [vmem:[%s3 + $0xa8] sm:$0xf]
  %v2014 = vld [vmem:[%s3 + $0xac] sm:$0xf]
  %v2015 = vld [vmem:[%s3 + $0xb0] sm:$0xf]
  %v2016 = vld [vmem:[%s3 + $0xb4] sm:$0xf]
  %v2017 = vld [vmem:[%s3 + $0xb8] sm:$0xf]
  %v2018 = vld [vmem:[%s3 + $0xbc] sm:$0xf]
  %v2019 = vld [vmem:[%s3 + $0xc0] sm:$0xf]
  %v2020 = vld [vmem:[%s3 + $0xc4] sm:$0xf]
  %v2021 = vld [vmem:[%s3 + $0xc8] sm:$0xf]
  %v2022 = vld [vmem:[%s3 + $0xcc] sm:$0xf]
  %v2023 = vld [vmem:[%s3 + $0xd0] sm:$0xf]
  %v2024 = vld [vmem:[%s3 + $0xd4] sm:$0xf]
  %v2025 = vld [vmem:[%s3 + $0xd8] sm:$0xf]
  %v2026 = vld [vmem:[%s3 + $0xdc] sm:$0xf]
  %v2027 = vld [vmem:[%s3 + $0xe0] sm:$0xf]
  %v2028 = vld [vmem:[%s3 + $0xe4] sm:$0xf]
  %v2029 = vld [vmem:[%s3 + $0xe8] sm:$0xf]
  %v2030 = vld [vmem:[%s3 + $0xec] sm:$0xf]
  %v2031 = vld [vmem:[%s3 + $0xf0] sm:$0xf]
  %v2032 = vld [vmem:[%s3 + $0xf4] sm:$0xf]
  %v2033 = vld [vmem:[%s3 + $0xf8] sm:$0xf]
  %v2034 = vld [vmem:[%s3 + $0xfc] sm:$0xf]
  %v2035 = vld [vmem:[%s4] sm:$0x1]
  %v2037 = vlaneseq
  %v2038 = vshrl.u32 %v2037, 7
  %v2039 = vsub.s32 0, %v2038
  %v2040 = vrot.slane %v2035, %v2039
  %v2106 = vunpack.c.l.b16 %v1971
  %v2107 = vunpack.c.l.b16 %v1972
  %v2108 = vunpack.c.l.b16 %v1973
  %v2109 = vunpack.c.l.b16 %v1974
  %v2110 = vunpack.c.l.b16 %v1975
  %v2111 = vunpack.c.l.b16 %v1976
  %v2112 = vunpack.c.l.b16 %v1977
  %v2113 = vunpack.c.l.b16 %v1978
  %v2114 = vunpack.c.l.b16 %v1979
  %v2115 = vunpack.c.l.b16 %v1980
  %v2116 = vunpack.c.l.b16 %v1981
  %v2117 = vunpack.c.l.b16 %v1982
  %v2118 = vunpack.c.l.b16 %v1983
  %v2119 = vunpack.c.l.b16 %v1984
  %v2120 = vunpack.c.l.b16 %v1985
  %v2121 = vunpack.c.l.b16 %v1986
  %v2122 = vunpack.c.l.b16 %v1987
  %v2123 = vunpack.c.l.b16 %v1988
  %v2124 = vunpack.c.l.b16 %v1989
  %v2125 = vunpack.c.l.b16 %v1990
  %v2126 = vunpack.c.l.b16 %v1991
  %v2127 = vunpack.c.l.b16 %v1992
  %v2128 = vunpack.c.l.b16 %v1993
  %v2129 = vunpack.c.l.b16 %v1994
  %v2130 = vunpack.c.l.b16 %v1995
  %v2131 = vunpack.c.l.b16 %v1996
  %v2132 = vunpack.c.l.b16 %v1997
  %v2133 = vunpack.c.l.b16 %v1998
  %v2134 = vunpack.c.l.b16 %v1999
  %v2135 = vunpack.c.l.b16 %v2000
  %v2136 = vunpack.c.l.b16 %v2001
  %v2137 = vunpack.c.l.b16 %v2002
  %v2138 = vunpack.c.l.b16 %v2003
  %v2139 = vunpack.c.l.b16 %v2004
  %v2140 = vunpack.c.l.b16 %v2005
  %v2141 = vunpack.c.l.b16 %v2006
  %v2142 = vunpack.c.l.b16 %v2007
  %v2143 = vunpack.c.l.b16 %v2008
  %v2144 = vunpack.c.l.b16 %v2009
  %v2145 = vunpack.c.l.b16 %v2010
  %v2146 = vunpack.c.l.b16 %v2011
  %v2147 = vunpack.c.l.b16 %v2012
  %v2148 = vunpack.c.l.b16 %v2013
  %v2149 = vunpack.c.l.b16 %v2014
  %v2150 = vunpack.c.l.b16 %v2015
  %v2151 = vunpack.c.l.b16 %v2016
  %v2152 = vunpack.c.l.b16 %v2017
  %v2153 = vunpack.c.l.b16 %v2018
  %v2154 = vunpack.c.l.b16 %v2019
  %v2155 = vunpack.c.l.b16 %v2020
  %v2156 = vunpack.c.l.b16 %v2021
  %v2157 = vunpack.c.l.b16 %v2022
  %v2158 = vunpack.c.l.b16 %v2023
  %v2159 = vunpack.c.l.b16 %v2024
  %v2160 = vunpack.c.l.b16 %v2025
  %v2161 = vunpack.c.l.b16 %v2026
  %v2162 = vunpack.c.l.b16 %v2027
  %v2163 = vunpack.c.l.b16 %v2028
  %v2164 = vunpack.c.l.b16 %v2029
  %v2165 = vunpack.c.l.b16 %v2030
  %v2166 = vunpack.c.l.b16 %v2031
  %v2167 = vunpack.c.l.b16 %v2032
  %v2168 = vunpack.c.l.b16 %v2033
  %v2169 = vunpack.c.l.b16 %v2034
  %v2170 = vpack.c.b16 %v2107, %v2106
  %v2171 = vpack.c.b16 %v2109, %v2108
  %v2172 = vpack.c.b16 %v2111, %v2110
  %v2173 = vpack.c.b16 %v2113, %v2112
  %v2174 = vpack.c.b16 %v2115, %v2114
  %v2175 = vpack.c.b16 %v2117, %v2116
  %v2176 = vpack.c.b16 %v2119, %v2118
  %v2177 = vpack.c.b16 %v2121, %v2120
  %v2178 = vpack.c.b16 %v2123, %v2122
  %v2179 = vpack.c.b16 %v2125, %v2124
  %v2180 = vpack.c.b16 %v2127, %v2126
  %v2181 = vpack.c.b16 %v2129, %v2128
  %v2182 = vpack.c.b16 %v2131, %v2130
  %v2183 = vpack.c.b16 %v2133, %v2132
  %v2184 = vpack.c.b16 %v2135, %v2134
  %v2185 = vpack.c.b16 %v2137, %v2136
  %v2186 = vpack.c.b16 %v2139, %v2138
  %v2187 = vpack.c.b16 %v2141, %v2140
  %v2188 = vpack.c.b16 %v2143, %v2142
  %v2189 = vpack.c.b16 %v2145, %v2144
  %v2190 = vpack.c.b16 %v2147, %v2146
  %v2191 = vpack.c.b16 %v2149, %v2148
  %v2192 = vpack.c.b16 %v2151, %v2150
  %v2193 = vpack.c.b16 %v2153, %v2152
  %v2194 = vpack.c.b16 %v2155, %v2154
  %v2195 = vpack.c.b16 %v2157, %v2156
  %v2196 = vpack.c.b16 %v2159, %v2158
  %v2197 = vpack.c.b16 %v2161, %v2160
  %v2198 = vpack.c.b16 %v2163, %v2162
  %v2199 = vpack.c.b16 %v2165, %v2164
  %v2200 = vpack.c.b16 %v2167, %v2166
  %v2201 = vpack.c.b16 %v2169, %v2168
  %2234 = vmatprep.subr.bf16.mxu0 0
  %2235 = vmatpush1.bf16.msra.mxu0 %v2170
  %2236 = vmatprep.subr.bf16.mxu0 0
  %2237 = vmatpush1.bf16.msra.mxu0 %v2171
  %2238 = vmatprep.subr.bf16.mxu0 0
  %2239 = vmatpush1.bf16.msra.mxu0 %v2172
  %2240 = vmatprep.subr.bf16.mxu0 0
  %2241 = vmatpush1.bf16.msra.mxu0 %v2173
  %2242 = vmatprep.subr.bf16.mxu0 0
  %2243 = vmatpush1.bf16.msra.mxu0 %v2174
  %2244 = vmatprep.subr.bf16.mxu0 0
  %2245 = vmatpush1.bf16.msra.mxu0 %v2175
  %2246 = vmatprep.subr.bf16.mxu0 0
  %2247 = vmatpush1.bf16.msra.mxu0 %v2176
  %2248 = vmatprep.subr.bf16.mxu0 0
  %2249 = vmatpush1.bf16.msra.mxu0 %v2177
  %2250 = vmatprep.subr.bf16.mxu0 0
  %2251 = vmatpush1.bf16.msra.mxu0 %v2178
  %2252 = vmatprep.subr.bf16.mxu0 0
  %2253 = vmatpush1.bf16.msra.mxu0 %v2179
  %2254 = vmatprep.subr.bf16.mxu0 0
  %2255 = vmatpush1.bf16.msra.mxu0 %v2180
  %2256 = vmatprep.subr.bf16.mxu0 0
  %2257 = vmatpush1.bf16.msra.mxu0 %v2181
  %2258 = vmatprep.subr.bf16.mxu0 0
  %2259 = vmatpush1.bf16.msra.mxu0 %v2182
  %2260 = vmatprep.subr.bf16.mxu0 0
  %2261 = vmatpush1.bf16.msra.mxu0 %v2183
  %2262 = vmatprep.subr.bf16.mxu0 0
  %2263 = vmatpush1.bf16.msra.mxu0 %v2184
  %2264 = vmatprep.subr.bf16.mxu0 0
  %2265 = vmatpush1.bf16.msra.mxu0 %v2185
  %2266 = vmatprep.mubr.bf16.mxu0 %v1908
  %2267 = vmatmul.mubr.bf16.gmra.mrb[0].mxu0 %v1907
  %v2268 = vpop.f32.mrb[0].mxu0
  %v2269 = vadd.f32 %v2040, %v2268
  %v2270 = vpop.f32.mrb[0].mxu0
  %v2271 = vpop.f32.mrb[0].mxu0
  %v2272 = vadd.f32 %v2040, %v2271
  %v2273 = vpop.f32.mrb[0].mxu0
  %2274 = vmatprep.mubr.bf16.mxu0 %v1912
  %2275 = vmatmul.mubr.bf16.gmra.mrb[0].mxu0 %v1911
  %v2276 = vpop.f32.mrb[0].mxu0
  %v2277 = vadd.f32 %v2040, %v2276
  %v2278 = vpop.f32.mrb[0].mxu0
  %v2279 = vpop.f32.mrb[0].mxu0
  %v2280 = vadd.f32 %v2040, %v2279
  %v2281 = vpop.f32.mrb[0].mxu0
  %2282 = vmatprep.mubr.bf16.mxu0 %v1916
  %2283 = vmatmul.mubr.bf16.gmra.mrb[0].mxu0 %v1915
  %v2284 = vpop.f32.mrb[0].mxu0
  %v2285 = vadd.f32 %v2040, %v2284
  %v2286 = vpop.f32.mrb[0].mxu0
  %v2287 = vpop.f32.mrb[0].mxu0
  %v2288 = vadd.f32 %v2040, %v2287
  %v2289 = vpop.f32.mrb[0].mxu0
  %2290 = vmatprep.mubr.bf16.mxu0 %v1920
  %2291 = vmatmul.mubr.bf16.gmra.mrb[0].mxu0 %v1919
  %v2292 = vpop.f32.mrb[0].mxu0
  %v2293 = vadd.f32 %v2040, %v2292
  %v2294 = vpop.f32.mrb[0].mxu0
  %v2295 = vpop.f32.mrb[0].mxu0
  %v2296 = vadd.f32 %v2040, %v2295
  %v2297 = vpop.f32.mrb[0].mxu0
  %2298 = vmatprep.mubr.bf16.mxu0 %v1924
  %2299 = vmatmul.mubr.bf16.gmra.mrb[0].mxu0 %v1923
  %v2300 = vpop.f32.mrb[0].mxu0
  %v2301 = vadd.f32 %v2040, %v2300
  %v2302 = vpop.f32.mrb[0].mxu0
  %v2303 = vpop.f32.mrb[0].mxu0
  %v2304 = vadd.f32 %v2040, %v2303
  %v2305 = vpop.f32.mrb[0].mxu0
  %2306 = vmatprep.mubr.bf16.mxu0 %v1928
  %2307 = vmatmul.mubr.bf16.gmra.mrb[0].mxu0 %v1927
  %v2308 = vpop.f32.mrb[0].mxu0
  %v2309 = vadd.f32 %v2040, %v2308
  %v2310 = vpop.f32.mrb[0].mxu0
  %v2311 = vpop.f32.mrb[0].mxu0
  %v2312 = vadd.f32 %v2040, %v2311
  %v2313 = vpop.f32.mrb[0].mxu0
  %2314 = vmatprep.mubr.bf16.mxu0 %v1932
  %2315 = vmatmul.mubr.bf16.gmra.mrb[0].mxu0 %v1931
  %v2316 = vpop.f32.mrb[0].mxu0
  %v2317 = vadd.f32 %v2040, %v2316
  %v2318 = vpop.f32.mrb[0].mxu0
  %v2319 = vpop.f32.mrb[0].mxu0
  %v2320 = vadd.f32 %v2040, %v2319
  %v2321 = vpop.f32.mrb[0].mxu0
  %2322 = vmatprep.mubr.bf16.mxu0 %v1936
  %2323 = vmatmul.mubr.bf16.gmra.mrb[0].mxu0 %v1935
  %v2324 = vpop.f32.mrb[0].mxu0
  %v2325 = vadd.f32 %v2040, %v2324
  %v2326 = vpop.f32.mrb[0].mxu0
  %v2327 = vpop.f32.mrb[0].mxu0
  %v2328 = vadd.f32 %v2040, %v2327
  %v2329 = vpop.f32.mrb[0].mxu0
  %2330 = vmatprep.mubr.bf16.mxu0 %v1940
  %2331 = vmatmul.mubr.bf16.gmra.mrb[0].mxu0 %v1939
  %v2332 = vpop.f32.mrb[0].mxu0
  %v2333 = vadd.f32 %v2040, %v2332
  %v2334 = vpop.f32.mrb[0].mxu0
  %v2335 = vpop.f32.mrb[0].mxu0
  %v2336 = vadd.f32 %v2040, %v2335
  %v2337 = vpop.f32.mrb[0].mxu0
  %2338 = vmatprep.mubr.bf16.mxu0 %v1944
  %2339 = vmatmul.mubr.bf16.gmra.mrb[0].mxu0 %v1943
  %v2340 = vpop.f32.mrb[0].mxu0
  %v2341 = vadd.f32 %v2040, %v2340
  %v2342 = vpop.f32.mrb[0].mxu0
  %v2343 = vpop.f32.mrb[0].mxu0
  %v2344 = vadd.f32 %v2040, %v2343
  %v2345 = vpop.f32.mrb[0].mxu0
  %2346 = vmatprep.mubr.bf16.mxu0 %v1948
  %2347 = vmatmul.mubr.bf16.gmra.mrb[0].mxu0 %v1947
  %v2348 = vpop.f32.mrb[0].mxu0
  %v2349 = vadd.f32 %v2040, %v2348
  %v2350 = vpop.f32.mrb[0].mxu0
  %v2351 = vpop.f32.mrb[0].mxu0
  %v2352 = vadd.f32 %v2040, %v2351
  %v2353 = vpop.f32.mrb[0].mxu0
  %2354 = vmatprep.mubr.bf16.mxu0 %v1952
  %2355 = vmatmul.mubr.bf16.gmra.mrb[0].mxu0 %v1951
  %v2356 = vpop.f32.mrb[0].mxu0
  %v2357 = vadd.f32 %v2040, %v2356
  %v2358 = vpop.f32.mrb[0].mxu0
  %v2359 = vpop.f32.mrb[0].mxu0
  %v2360 = vadd.f32 %v2040, %v2359
  %v2361 = vpop.f32.mrb[0].mxu0
  %2362 = vmatprep.mubr.bf16.mxu0 %v1956
  %2363 = vmatmul.mubr.bf16.gmra.mrb[0].mxu0 %v1955
  %v2364 = vpop.f32.mrb[0].mxu0
  %v2365 = vadd.f32 %v2040, %v2364
  %v2366 = vpop.f32.mrb[0].mxu0
  %v2367 = vpop.f32.mrb[0].mxu0
  %v2368 = vadd.f32 %v2040, %v2367
  %v2369 = vpop.f32.mrb[0].mxu0
  %2370 = vmatprep.mubr.bf16.mxu0 %v1960
  %2371 = vmatmul.mubr.bf16.gmra.mrb[0].mxu0 %v1959
  %v2372 = vpop.f32.mrb[0].mxu0
  %v2373 = vadd.f32 %v2040, %v2372
  %v2374 = vpop.f32.mrb[0].mxu0
  %v2375 = vpop.f32.mrb[0].mxu0
  %v2376 = vadd.f32 %v2040, %v2375
  %v2377 = vpop.f32.mrb[0].mxu0
  %2378 = vmatprep.mubr.bf16.mxu0 %v1964
  %2379 = vmatmul.mubr.bf16.gmra.mrb[0].mxu0 %v1963
  %v2380 = vpop.f32.mrb[0].mxu0
  %v2381 = vadd.f32 %v2040, %v2380
  %v2382 = vpop.f32.mrb[0].mxu0
  %v2383 = vpop.f32.mrb[0].mxu0
  %v2384 = vadd.f32 %v2040, %v2383
  %v2385 = vpop.f32.mrb[0].mxu0
  %2386 = vmatprep.mubr.bf16.mxu0 %v1968
  %2387 = vmatmul.mubr.bf16.gmra.mrb[0].mxu0 %v1967
  %v2388 = vpop.f32.mrb[0].mxu0
  %v2389 = vadd.f32 %v2040, %v2388
  %v2390 = vpop.f32.mrb[0].mxu0
  %v2391 = vpop.f32.mrb[0].mxu0
  %v2392 = vadd.f32 %v2040, %v2391
  %v2393 = vpop.f32.mrb[0].mxu0
  %2394 = vdwg.mxu0
  %2395 = vmatprep.subr.bf16.mxu0 0
  %2396 = vmatpush1.bf16.msra.mxu0 %v2186
  %2397 = vmatprep.subr.bf16.mxu0 0
  %2398 = vmatpush1.bf16.msra.mxu0 %v2187
  %2399 = vmatprep.subr.bf16.mxu0 0
  %2400 = vmatpush1.bf16.msra.mxu0 %v2188
  %2401 = vmatprep.subr.bf16.mxu0 0
  %2402 = vmatpush1.bf16.msra.mxu0 %v2189
  %2403 = vmatprep.subr.bf16.mxu0 0
  %2404 = vmatpush1.bf16.msra.mxu0 %v2190
  %2405 = vmatprep.subr.bf16.mxu0 0
  %2406 = vmatpush1.bf16.msra.mxu0 %v2191
  %2407 = vmatprep.subr.bf16.mxu0 0
  %2408 = vmatpush1.bf16.msra.mxu0 %v2192
  %2409 = vmatprep.subr.bf16.mxu0 0
  %2410 = vmatpush1.bf16.msra.mxu0 %v2193
  %2411 = vmatprep.subr.bf16.mxu0 0
  %2412 = vmatpush1.bf16.msra.mxu0 %v2194
  %2413 = vmatprep.subr.bf16.mxu0 0
  %2414 = vmatpush1.bf16.msra.mxu0 %v2195
  %2415 = vmatprep.subr.bf16.mxu0 0
  %2416 = vmatpush1.bf16.msra.mxu0 %v2196
  %2417 = vmatprep.subr.bf16.mxu0 0
  %2418 = vmatpush1.bf16.msra.mxu0 %v2197
  %2419 = vmatprep.subr.bf16.mxu0 0
  %2420 = vmatpush1.bf16.msra.mxu0 %v2198
  %2421 = vmatprep.subr.bf16.mxu0 0
  %2422 = vmatpush1.bf16.msra.mxu0 %v2199
  %2423 = vmatprep.subr.bf16.mxu0 0
  %2424 = vmatpush1.bf16.msra.mxu0 %v2200
  %2425 = vmatprep.subr.bf16.mxu0 0
  %2426 = vmatpush1.bf16.msra.mxu0 %v2201
  %2427 = vmatprep.mubr.bf16.mxu0 %v1910
  %2428 = vmatmul.mubr.bf16.gmra.mrb[0].mxu0 %v1909
  %v2429 = vpop.f32.mrb[0].mxu0
  %v2430 = vadd.f32 %v2269, %v2429
  %v2431 = vpop.f32.mrb[0].mxu0
  %v2432 = vpop.f32.mrb[0].mxu0
  %v2433 = vadd.f32 %v2272, %v2432
  %v2434 = vpop.f32.mrb[0].mxu0
  %2435 = vmatprep.mubr.bf16.mxu0 %v1914
  %2436 = vmatmul.mubr.bf16.gmra.mrb[0].mxu0 %v1913
  %v2437 = vpop.f32.mrb[0].mxu0
  %v2438 = vadd.f32 %v2277, %v2437
  %v2439 = vpop.f32.mrb[0].mxu0
  %v2440 = vpop.f32.mrb[0].mxu0
  %v2441 = vadd.f32 %v2280, %v2440
  %v2442 = vpop.f32.mrb[0].mxu0
  %2443 = vmatprep.mubr.bf16.mxu0 %v1918
  %2444 = vmatmul.mubr.bf16.gmra.mrb[0].mxu0 %v1917
  %v2445 = vpop.f32.mrb[0].mxu0
  %v2446 = vadd.f32 %v2285, %v2445
  %v2447 = vpop.f32.mrb[0].mxu0
  %v2448 = vpop.f32.mrb[0].mxu0
  %v2449 = vadd.f32 %v2288, %v2448
  %v2450 = vpop.f32.mrb[0].mxu0
  %2451 = vmatprep.mubr.bf16.mxu0 %v1922
  %2452 = vmatmul.mubr.bf16.gmra.mrb[0].mxu0 %v1921
  %v2453 = vpop.f32.mrb[0].mxu0
  %v2454 = vadd.f32 %v2293, %v2453
  %v2455 = vpop.f32.mrb[0].mxu0
  %v2456 = vpop.f32.mrb[0].mxu0
  %v2457 = vadd.f32 %v2296, %v2456
  %v2458 = vpop.f32.mrb[0].mxu0
  %2459 = vmatprep.mubr.bf16.mxu0 %v1926
  %2460 = vmatmul.mubr.bf16.gmra.mrb[0].mxu0 %v1925
  %v2461 = vpop.f32.mrb[0].mxu0
  %v2462 = vadd.f32 %v2301, %v2461
  %v2463 = vpop.f32.mrb[0].mxu0
  %v2464 = vpop.f32.mrb[0].mxu0
  %v2465 = vadd.f32 %v2304, %v2464
  %v2466 = vpop.f32.mrb[0].mxu0
  %2467 = vmatprep.mubr.bf16.mxu0 %v1930
  %2468 = vmatmul.mubr.bf16.gmra.mrb[0].mxu0 %v1929
  %v2469 = vpop.f32.mrb[0].mxu0
  %v2470 = vadd.f32 %v2309, %v2469
  %v2471 = vpop.f32.mrb[0].mxu0
  %v2472 = vpop.f32.mrb[0].mxu0
  %v2473 = vadd.f32 %v2312, %v2472
  %v2474 = vpop.f32.mrb[0].mxu0
  %2475 = vmatprep.mubr.bf16.mxu0 %v1934
  %2476 = vmatmul.mubr.bf16.gmra.mrb[0].mxu0 %v1933
  %v2477 = vpop.f32.mrb[0].mxu0
  %v2478 = vadd.f32 %v2317, %v2477
  %v2479 = vpop.f32.mrb[0].mxu0
  %v2480 = vpop.f32.mrb[0].mxu0
  %v2481 = vadd.f32 %v2320, %v2480
  %v2482 = vpop.f32.mrb[0].mxu0
  %2483 = vmatprep.mubr.bf16.mxu0 %v1938
  %2484 = vmatmul.mubr.bf16.gmra.mrb[0].mxu0 %v1937
  %v2485 = vpop.f32.mrb[0].mxu0
  %v2486 = vadd.f32 %v2325, %v2485
  %v2487 = vpop.f32.mrb[0].mxu0
  %v2488 = vpop.f32.mrb[0].mxu0
  %v2489 = vadd.f32 %v2328, %v2488
  %v2490 = vpop.f32.mrb[0].mxu0
  %2491 = vmatprep.mubr.bf16.mxu0 %v1942
  %2492 = vmatmul.mubr.bf16.gmra.mrb[0].mxu0 %v1941
  %v2493 = vpop.f32.mrb[0].mxu0
  %v2494 = vadd.f32 %v2333, %v2493
  %v2495 = vpop.f32.mrb[0].mxu0
  %v2496 = vpop.f32.mrb[0].mxu0
  %v2497 = vadd.f32 %v2336, %v2496
  %v2498 = vpop.f32.mrb[0].mxu0
  %2499 = vmatprep.mubr.bf16.mxu0 %v1946
  %2500 = vmatmul.mubr.bf16.gmra.mrb[0].mxu0 %v1945
  %v2501 = vpop.f32.mrb[0].mxu0
  %v2502 = vadd.f32 %v2341, %v2501
  %v2503 = vpop.f32.mrb[0].mxu0
  %v2504 = vpop.f32.mrb[0].mxu0
  %v2505 = vadd.f32 %v2344, %v2504
  %v2506 = vpop.f32.mrb[0].mxu0
  %2507 = vmatprep.mubr.bf16.mxu0 %v1950
  %2508 = vmatmul.mubr.bf16.gmra.mrb[0].mxu0 %v1949
  %v2509 = vpop.f32.mrb[0].mxu0
  %v2510 = vadd.f32 %v2349, %v2509
  %v2511 = vpop.f32.mrb[0].mxu0
  %v2512 = vpop.f32.mrb[0].mxu0
  %v2513 = vadd.f32 %v2352, %v2512
  %v2514 = vpop.f32.mrb[0].mxu0
  %2515 = vmatprep.mubr.bf16.mxu0 %v1954
  %2516 = vmatmul.mubr.bf16.gmra.mrb[0].mxu0 %v1953
  %v2517 = vpop.f32.mrb[0].mxu0
  %v2518 = vadd.f32 %v2357, %v2517
  %v2519 = vpop.f32.mrb[0].mxu0
  %v2520 = vpop.f32.mrb[0].mxu0
  %v2521 = vadd.f32 %v2360, %v2520
  %v2522 = vpop.f32.mrb[0].mxu0
  %2523 = vmatprep.mubr.bf16.mxu0 %v1958
  %2524 = vmatmul.mubr.bf16.gmra.mrb[0].mxu0 %v1957
  %v2525 = vpop.f32.mrb[0].mxu0
  %v2526 = vadd.f32 %v2365, %v2525
  %v2527 = vpop.f32.mrb[0].mxu0
  %v2528 = vpop.f32.mrb[0].mxu0
  %v2529 = vadd.f32 %v2368, %v2528
  %v2530 = vpop.f32.mrb[0].mxu0
  %2531 = vmatprep.mubr.bf16.mxu0 %v1962
  %2532 = vmatmul.mubr.bf16.gmra.mrb[0].mxu0 %v1961
  %v2533 = vpop.f32.mrb[0].mxu0
  %v2534 = vadd.f32 %v2373, %v2533
  %v2535 = vpop.f32.mrb[0].mxu0
  %v2536 = vpop.f32.mrb[0].mxu0
  %v2537 = vadd.f32 %v2376, %v2536
  %v2538 = vpop.f32.mrb[0].mxu0
  %2539 = vmatprep.mubr.bf16.mxu0 %v1966
  %2540 = vmatmul.mubr.bf16.gmra.mrb[0].mxu0 %v1965
  %v2541 = vpop.f32.mrb[0].mxu0
  %v2542 = vadd.f32 %v2381, %v2541
  %v2543 = vpop.f32.mrb[0].mxu0
  %v2544 = vpop.f32.mrb[0].mxu0
  %v2545 = vadd.f32 %v2384, %v2544
  %v2546 = vpop.f32.mrb[0].mxu0
  %2547 = vmatprep.mubr.bf16.mxu0 %v1970
  %2548 = vmatmul.mubr.bf16.gmra.mrb[0].mxu0 %v1969
  %v2549 = vpop.f32.mrb[0].mxu0
  %v2550 = vadd.f32 %v2389, %v2549
  %v2551 = vpop.f32.mrb[0].mxu0
  %v2552 = vpop.f32.mrb[0].mxu0
  %v2553 = vadd.f32 %v2392, %v2552
  %v2554 = vpop.f32.mrb[0].mxu0
  %2555 = vdwg.mxu0
  %v2556 = vunpack.c.l.bf16 %v27
  %v2557 = vunpack.c.l.bf16 %v28
  %v2558 = vunpack.c.l.bf16 %v29
  %v2559 = vunpack.c.l.bf16 %v30
  %v2560 = vunpack.c.l.bf16 %v31
  %v2561 = vunpack.c.l.bf16 %v32
  %v2562 = vunpack.c.l.bf16 %v33
  %v2563 = vunpack.c.l.bf16 %v34
  %v2564 = vunpack.c.l.bf16 %v35
  %v2565 = vunpack.c.l.bf16 %v36
  %v2566 = vunpack.c.l.bf16 %v37
  %v2567 = vunpack.c.l.bf16 %v38
  %v2568 = vunpack.c.l.bf16 %v39
  %v2569 = vunpack.c.l.bf16 %v40
  %v2570 = vunpack.c.l.bf16 %v41
  %v2571 = vunpack.c.l.bf16 %v42
  %v2572 = vunpack.c.l.bf16 %v43
  %v2573 = vunpack.c.l.bf16 %v44
  %v2574 = vunpack.c.l.bf16 %v45
  %v2575 = vunpack.c.l.bf16 %v46
  %v2576 = vunpack.c.l.bf16 %v47
  %v2577 = vunpack.c.l.bf16 %v48
  %v2578 = vunpack.c.l.bf16 %v49
  %v2579 = vunpack.c.l.bf16 %v50
  %v2580 = vunpack.c.l.bf16 %v51
  %v2581 = vunpack.c.l.bf16 %v52
  %v2582 = vunpack.c.l.bf16 %v53
  %v2583 = vunpack.c.l.bf16 %v54
  %v2584 = vunpack.c.l.bf16 %v55
  %v2585 = vunpack.c.l.bf16 %v56
  %v2586 = vunpack.c.l.bf16 %v57
  %v2587 = vunpack.c.l.bf16 %v58
  %v2588 = vadd.f32 %v2430, %v2556
  %v2589 = vadd.f32 %v2433, %v2557
  %v2590 = vadd.f32 %v2438, %v2558
  %v2591 = vadd.f32 %v2441, %v2559
  %v2592 = vadd.f32 %v2446, %v2560
  %v2593 = vadd.f32 %v2449, %v2561
  %v2594 = vadd.f32 %v2454, %v2562
  %v2595 = vadd.f32 %v2457, %v2563
  %v2596 = vadd.f32 %v2462, %v2564
  %v2597 = vadd.f32 %v2465, %v2565
  %v2598 = vadd.f32 %v2470, %v2566
  %v2599 = vadd.f32 %v2473, %v2567
  %v2600 = vadd.f32 %v2478, %v2568
  %v2601 = vadd.f32 %v2481, %v2569
  %v2602 = vadd.f32 %v2486, %v2570
  %v2603 = vadd.f32 %v2489, %v2571
  %v2604 = vadd.f32 %v2494, %v2572
  %v2605 = vadd.f32 %v2497, %v2573
  %v2606 = vadd.f32 %v2502, %v2574
  %v2607 = vadd.f32 %v2505, %v2575
  %v2608 = vadd.f32 %v2510, %v2576
  %v2609 = vadd.f32 %v2513, %v2577
  %v2610 = vadd.f32 %v2518, %v2578
  %v2611 = vadd.f32 %v2521, %v2579
  %v2612 = vadd.f32 %v2526, %v2580
  %v2613 = vadd.f32 %v2529, %v2581
  %v2614 = vadd.f32 %v2534, %v2582
  %v2615 = vadd.f32 %v2537, %v2583
  %v2616 = vadd.f32 %v2542, %v2584
  %v2617 = vadd.f32 %v2545, %v2585
  %v2618 = vadd.f32 %v2550, %v2586
  %v2619 = vadd.f32 %v2553, %v2587
  %2620 = vadd.xlane.f32.xlu0 %v2588
  %v2621 = vpop.xlane.xlu0 %2620
  %2622 = vadd.xlane.f32.xlu0 %v2589
  %v2623 = vpop.xlane.xlu0 %2622
  %2624 = vadd.xlane.f32.xlu0 %v2590
  %v2625 = vpop.xlane.xlu0 %2624
  %2626 = vadd.xlane.f32.xlu0 %v2591
  %v2627 = vpop.xlane.xlu0 %2626
  %2628 = vadd.xlane.f32.xlu0 %v2592
  %v2629 = vpop.xlane.xlu0 %2628
  %2630 = vadd.xlane.f32.xlu0 %v2593
  %v2631 = vpop.xlane.xlu0 %2630
  %2632 = vadd.xlane.f32.xlu0 %v2594
  %v2633 = vpop.xlane.xlu0 %2632
  %2634 = vadd.xlane.f32.xlu0 %v2595
  %v2635 = vpop.xlane.xlu0 %2634
  %2636 = vadd.xlane.f32.xlu0 %v2596
  %v2637 = vpop.xlane.xlu0 %2636
  %2638 = vadd.xlane.f32.xlu0 %v2597
  %v2639 = vpop.xlane.xlu0 %2638
  %2640 = vadd.xlane.f32.xlu0 %v2598
  %v2641 = vpop.xlane.xlu0 %2640
  %2642 = vadd.xlane.f32.xlu0 %v2599
  %v2643 = vpop.xlane.xlu0 %2642
  %2644 = vadd.xlane.f32.xlu0 %v2600
  %v2645 = vpop.xlane.xlu0 %2644
  %2646 = vadd.xlane.f32.xlu0 %v2601
  %v2647 = vpop.xlane.xlu0 %2646
  %2648 = vadd.xlane.f32.xlu0 %v2602
  %v2649 = vpop.xlane.xlu0 %2648
  %2650 = vadd.xlane.f32.xlu0 %v2603
  %v2651 = vpop.xlane.xlu0 %2650
  %2652 = vadd.xlane.f32.xlu0 %v2604
  %v2653 = vpop.xlane.xlu0 %2652
  %2654 = vadd.xlane.f32.xlu0 %v2605
  %v2655 = vpop.xlane.xlu0 %2654
  %2656 = vadd.xlane.f32.xlu0 %v2606
  %v2657 = vpop.xlane.xlu0 %2656
  %2658 = vadd.xlane.f32.xlu0 %v2607
  %v2659 = vpop.xlane.xlu0 %2658
  %2660 = vadd.xlane.f32.xlu0 %v2608
  %v2661 = vpop.xlane.xlu0 %2660
  %2662 = vadd.xlane.f32.xlu0 %v2609
  %v2663 = vpop.xlane.xlu0 %2662
  %2664 = vadd.xlane.f32.xlu0 %v2610
  %v2665 = vpop.xlane.xlu0 %2664
  %2666 = vadd.xlane.f32.xlu0 %v2611
  %v2667 = vpop.xlane.xlu0 %2666
  %2668 = vadd.xlane.f32.xlu0 %v2612
  %v2669 = vpop.xlane.xlu0 %2668
  %2670 = vadd.xlane.f32.xlu0 %v2613
  %v2671 = vpop.xlane.xlu0 %2670
  %2672 = vadd.xlane.f32.xlu0 %v2614
  %v2673 = vpop.xlane.xlu0 %2672
  %2674 = vadd.xlane.f32.xlu0 %v2615
  %v2675 = vpop.xlane.xlu0 %2674
  %2676 = vadd.xlane.f32.xlu0 %v2616
  %v2677 = vpop.xlane.xlu0 %2676
  %2678 = vadd.xlane.f32.xlu0 %v2617
  %v2679 = vpop.xlane.xlu0 %2678
  %2680 = vadd.xlane.f32.xlu0 %v2618
  %v2681 = vpop.xlane.xlu0 %2680
  %2682 = vadd.xlane.f32.xlu0 %v2619
  %v2683 = vpop.xlane.xlu0 %2682
  %v2684 = vrcp.pop 128.0
  %v2685 = vmul.f32 %v2621, %v2684
  %v2686 = vmul.f32 %v2623, %v2684
  %v2687 = vmul.f32 %v2625, %v2684
  %v2688 = vmul.f32 %v2627, %v2684
  %v2689 = vmul.f32 %v2629, %v2684
  %v2690 = vmul.f32 %v2631, %v2684
  %v2691 = vmul.f32 %v2633, %v2684
  %v2692 = vmul.f32 %v2635, %v2684
  %v2693 = vmul.f32 %v2637, %v2684
  %v2694 = vmul.f32 %v2639, %v2684
  %v2695 = vmul.f32 %v2641, %v2684
  %v2696 = vmul.f32 %v2643, %v2684
  %v2697 = vmul.f32 %v2645, %v2684
  %v2698 = vmul.f32 %v2647, %v2684
  %v2699 = vmul.f32 %v2649, %v2684
  %v2700 = vmul.f32 %v2651, %v2684
  %v2701 = vmul.f32 %v2653, %v2684
  %v2702 = vmul.f32 %v2655, %v2684
  %v2703 = vmul.f32 %v2657, %v2684
  %v2704 = vmul.f32 %v2659, %v2684
  %v2705 = vmul.f32 %v2661, %v2684
  %v2706 = vmul.f32 %v2663, %v2684
  %v2707 = vmul.f32 %v2665, %v2684
  %v2708 = vmul.f32 %v2667, %v2684
  %v2709 = vmul.f32 %v2669, %v2684
  %v2710 = vmul.f32 %v2671, %v2684
  %v2711 = vmul.f32 %v2673, %v2684
  %v2712 = vmul.f32 %v2675, %v2684
  %v2713 = vmul.f32 %v2677, %v2684
  %v2714 = vmul.f32 %v2679, %v2684
  %v2715 = vmul.f32 %v2681, %v2684
  %v2716 = vmul.f32 %v2683, %v2684
  %v2717 = vsub.f32 %v2588, %v2685
  %v2718 = vsub.f32 %v2589, %v2686
  %v2719 = vsub.f32 %v2590, %v2687
  %v2720 = vsub.f32 %v2591, %v2688
  %v2721 = vsub.f32 %v2592, %v2689
  %v2722 = vsub.f32 %v2593, %v2690
  %v2723 = vsub.f32 %v2594, %v2691
  %v2724 = vsub.f32 %v2595, %v2692
  %v2725 = vsub.f32 %v2596, %v2693
  %v2726 = vsub.f32 %v2597, %v2694
  %v2727 = vsub.f32 %v2598, %v2695
  %v2728 = vsub.f32 %v2599, %v2696
  %v2729 = vsub.f32 %v2600, %v2697
  %v2730 = vsub.f32 %v2601, %v2698
  %v2731 = vsub.f32 %v2602, %v2699
  %v2732 = vsub.f32 %v2603, %v2700
  %v2733 = vsub.f32 %v2604, %v2701
  %v2734 = vsub.f32 %v2605, %v2702
  %v2735 = vsub.f32 %v2606, %v2703
  %v2736 = vsub.f32 %v2607, %v2704
  %v2737 = vsub.f32 %v2608, %v2705
  %v2738 = vsub.f32 %v2609, %v2706
  %v2739 = vsub.f32 %v2610, %v2707
  %v2740 = vsub.f32 %v2611, %v2708
  %v2741 = vsub.f32 %v2612, %v2709
  %v2742 = vsub.f32 %v2613, %v2710
  %v2743 = vsub.f32 %v2614, %v2711
  %v2744 = vsub.f32 %v2615, %v2712
  %v2745 = vsub.f32 %v2616, %v2713
  %v2746 = vsub.f32 %v2617, %v2714
  %v2747 = vsub.f32 %v2618, %v2715
  %v2748 = vsub.f32 %v2619, %v2716
  %v2749 = vmul.f32 %v2717, %v2717
  %v2750 = vmul.f32 %v2718, %v2718
  %v2751 = vmul.f32 %v2719, %v2719
  %v2752 = vmul.f32 %v2720, %v2720
  %v2753 = vmul.f32 %v2721, %v2721
  %v2754 = vmul.f32 %v2722, %v2722
  %v2755 = vmul.f32 %v2723, %v2723
  %v2756 = vmul.f32 %v2724, %v2724
  %v2757 = vmul.f32 %v2725, %v2725
  %v2758 = vmul.f32 %v2726, %v2726
  %v2759 = vmul.f32 %v2727, %v2727
  %v2760 = vmul.f32 %v2728, %v2728
  %v2761 = vmul.f32 %v2729, %v2729
  %v2762 = vmul.f32 %v2730, %v2730
  %v2763 = vmul.f32 %v2731, %v2731
  %v2764 = vmul.f32 %v2732, %v2732
  %v2765 = vmul.f32 %v2733, %v2733
  %v2766 = vmul.f32 %v2734, %v2734
  %v2767 = vmul.f32 %v2735, %v2735
  %v2768 = vmul.f32 %v2736, %v2736
  %v2769 = vmul.f32 %v2737, %v2737
  %v2770 = vmul.f32 %v2738, %v2738
  %v2771 = vmul.f32 %v2739, %v2739
  %v2772 = vmul.f32 %v2740, %v2740
  %v2773 = vmul.f32 %v2741, %v2741
  %v2774 = vmul.f32 %v2742, %v2742
  %v2775 = vmul.f32 %v2743, %v2743
  %v2776 = vmul.f32 %v2744, %v2744
  %v2777 = vmul.f32 %v2745, %v2745
  %v2778 = vmul.f32 %v2746, %v2746
  %v2779 = vmul.f32 %v2747, %v2747
  %v2780 = vmul.f32 %v2748, %v2748
  %2781 = vadd.xlane.f32.xlu0 %v2749
  %v2782 = vpop.xlane.xlu0 %2781
  %2783 = vadd.xlane.f32.xlu0 %v2750
  %v2784 = vpop.xlane.xlu0 %2783
  %2785 = vadd.xlane.f32.xlu0 %v2751
  %v2786 = vpop.xlane.xlu0 %2785
  %2787 = vadd.xlane.f32.xlu0 %v2752
  %v2788 = vpop.xlane.xlu0 %2787
  %2789 = vadd.xlane.f32.xlu0 %v2753
  %v2790 = vpop.xlane.xlu0 %2789
  %2791 = vadd.xlane.f32.xlu0 %v2754
  %v2792 = vpop.xlane.xlu0 %2791
  %2793 = vadd.xlane.f32.xlu0 %v2755
  %v2794 = vpop.xlane.xlu0 %2793
  %2795 = vadd.xlane.f32.xlu0 %v2756
  %v2796 = vpop.xlane.xlu0 %2795
  %2797 = vadd.xlane.f32.xlu0 %v2757
  %v2798 = vpop.xlane.xlu0 %2797
  %2799 = vadd.xlane.f32.xlu0 %v2758
  %v2800 = vpop.xlane.xlu0 %2799
  %2801 = vadd.xlane.f32.xlu0 %v2759
  %v2802 = vpop.xlane.xlu0 %2801
  %2803 = vadd.xlane.f32.xlu0 %v2760
  %v2804 = vpop.xlane.xlu0 %2803
  %2805 = vadd.xlane.f32.xlu0 %v2761
  %v2806 = vpop.xlane.xlu0 %2805
  %2807 = vadd.xlane.f32.xlu0 %v2762
  %v2808 = vpop.xlane.xlu0 %2807
  %2809 = vadd.xlane.f32.xlu0 %v2763
  %v2810 = vpop.xlane.xlu0 %2809
  %2811 = vadd.xlane.f32.xlu0 %v2764
  %v2812 = vpop.xlane.xlu0 %2811
  %2813 = vadd.xlane.f32.xlu0 %v2765
  %v2814 = vpop.xlane.xlu0 %2813
  %2815 = vadd.xlane.f32.xlu0 %v2766
  %v2816 = vpop.xlane.xlu0 %2815
  %2817 = vadd.xlane.f32.xlu0 %v2767
  %v2818 = vpop.xlane.xlu0 %2817
  %2819 = vadd.xlane.f32.xlu0 %v2768
  %v2820 = vpop.xlane.xlu0 %2819
  %2821 = vadd.xlane.f32.xlu0 %v2769
  %v2822 = vpop.xlane.xlu0 %2821
  %2823 = vadd.xlane.f32.xlu0 %v2770
  %v2824 = vpop.xlane.xlu0 %2823
  %2825 = vadd.xlane.f32.xlu0 %v2771
  %v2826 = vpop.xlane.xlu0 %2825
  %2827 = vadd.xlane.f32.xlu0 %v2772
  %v2828 = vpop.xlane.xlu0 %2827
  %2829 = vadd.xlane.f32.xlu0 %v2773
  %v2830 = vpop.xlane.xlu0 %2829
  %2831 = vadd.xlane.f32.xlu0 %v2774
  %v2832 = vpop.xlane.xlu0 %2831
  %2833 = vadd.xlane.f32.xlu0 %v2775
  %v2834 = vpop.xlane.xlu0 %2833
  %2835 = vadd.xlane.f32.xlu0 %v2776
  %v2836 = vpop.xlane.xlu0 %2835
  %2837 = vadd.xlane.f32.xlu0 %v2777
  %v2838 = vpop.xlane.xlu0 %2837
  %2839 = vadd.xlane.f32.xlu0 %v2778
  %v2840 = vpop.xlane.xlu0 %2839
  %2841 = vadd.xlane.f32.xlu0 %v2779
  %v2842 = vpop.xlane.xlu0 %2841
  %2843 = vadd.xlane.f32.xlu0 %v2780
  %v2844 = vpop.xlane.xlu0 %2843
  %v2845 = vmul.f32 %v2782, %v2684
  %v2846 = vmul.f32 %v2784, %v2684
  %v2847 = vmul.f32 %v2786, %v2684
  %v2848 = vmul.f32 %v2788, %v2684
  %v2849 = vmul.f32 %v2790, %v2684
  %v2850 = vmul.f32 %v2792, %v2684
  %v2851 = vmul.f32 %v2794, %v2684
  %v2852 = vmul.f32 %v2796, %v2684
  %v2853 = vmul.f32 %v2798, %v2684
  %v2854 = vmul.f32 %v2800, %v2684
  %v2855 = vmul.f32 %v2802, %v2684
  %v2856 = vmul.f32 %v2804, %v2684
  %v2857 = vmul.f32 %v2806, %v2684
  %v2858 = vmul.f32 %v2808, %v2684
  %v2859 = vmul.f32 %v2810, %v2684
  %v2860 = vmul.f32 %v2812, %v2684
  %v2861 = vmul.f32 %v2814, %v2684
  %v2862 = vmul.f32 %v2816, %v2684
  %v2863 = vmul.f32 %v2818, %v2684
  %v2864 = vmul.f32 %v2820, %v2684
  %v2865 = vmul.f32 %v2822, %v2684
  %v2866 = vmul.f32 %v2824, %v2684
  %v2867 = vmul.f32 %v2826, %v2684
  %v2868 = vmul.f32 %v2828, %v2684
  %v2869 = vmul.f32 %v2830, %v2684
  %v2870 = vmul.f32 %v2832, %v2684
  %v2871 = vmul.f32 %v2834, %v2684
  %v2872 = vmul.f32 %v2836, %v2684
  %v2873 = vmul.f32 %v2838, %v2684
  %v2874 = vmul.f32 %v2840, %v2684
  %v2875 = vmul.f32 %v2842, %v2684
  %v2876 = vmul.f32 %v2844, %v2684
  %v2877 = vadd.f32 %v2845, 1e-12
  %v2878 = vadd.f32 %v2846, 1e-12
  %v2879 = vadd.f32 %v2847, 1e-12
  %v2880 = vadd.f32 %v2848, 1e-12
  %v2881 = vadd.f32 %v2849, 1e-12
  %v2882 = vadd.f32 %v2850, 1e-12
  %v2883 = vadd.f32 %v2851, 1e-12
  %v2884 = vadd.f32 %v2852, 1e-12
  %v2885 = vadd.f32 %v2853, 1e-12
  %v2886 = vadd.f32 %v2854, 1e-12
  %v2887 = vadd.f32 %v2855, 1e-12
  %v2888 = vadd.f32 %v2856, 1e-12
  %v2889 = vadd.f32 %v2857, 1e-12
  %v2890 = vadd.f32 %v2858, 1e-12
  %v2891 = vadd.f32 %v2859, 1e-12
  %v2892 = vadd.f32 %v2860, 1e-12
  %v2893 = vadd.f32 %v2861, 1e-12
  %v2894 = vadd.f32 %v2862, 1e-12
  %v2895 = vadd.f32 %v2863, 1e-12
  %v2896 = vadd.f32 %v2864, 1e-12
  %v2897 = vadd.f32 %v2865, 1e-12
  %v2898 = vadd.f32 %v2866, 1e-12
  %v2899 = vadd.f32 %v2867, 1e-12
  %v2900 = vadd.f32 %v2868, 1e-12
  %v2901 = vadd.f32 %v2869, 1e-12
  %v2902 = vadd.f32 %v2870, 1e-12
  %v2903 = vadd.f32 %v2871, 1e-12
  %v2904 = vadd.f32 %v2872, 1e-12
  %v2905 = vadd.f32 %v2873, 1e-12
  %v2906 = vadd.f32 %v2874, 1e-12
  %v2907 = vadd.f32 %v2875, 1e-12
  %v2908 = vadd.f32 %v2876, 1e-12
  %v2909 = vrsqrt.pop %v2877
  %v2910 = vrsqrt.pop %v2878
  %v2911 = vrsqrt.pop %v2879
  %v2912 = vrsqrt.pop %v2880
  %v2913 = vrsqrt.pop %v2881
  %v2914 = vrsqrt.pop %v2882
  %v2915 = vrsqrt.pop %v2883
  %v2916 = vrsqrt.pop %v2884
  %v2917 = vrsqrt.pop %v2885
  %v2918 = vrsqrt.pop %v2886
  %v2919 = vrsqrt.pop %v2887
  %v2920 = vrsqrt.pop %v2888
  %v2921 = vrsqrt.pop %v2889
  %v2922 = vrsqrt.pop %v2890
  %v2923 = vrsqrt.pop %v2891
  %v2924 = vrsqrt.pop %v2892
  %v2925 = vrsqrt.pop %v2893
  %v2926 = vrsqrt.pop %v2894
  %v2927 = vrsqrt.pop %v2895
  %v2928 = vrsqrt.pop %v2896
  %v2929 = vrsqrt.pop %v2897
  %v2930 = vrsqrt.pop %v2898
  %v2931 = vrsqrt.pop %v2899
  %v2932 = vrsqrt.pop %v2900
  %v2933 = vrsqrt.pop %v2901
  %v2934 = vrsqrt.pop %v2902
  %v2935 = vrsqrt.pop %v2903
  %v2936 = vrsqrt.pop %v2904
  %v2937 = vrsqrt.pop %v2905
  %v2938 = vrsqrt.pop %v2906
  %v2939 = vrsqrt.pop %v2907
  %v2940 = vrsqrt.pop %v2908
  %v2941 = vmul.f32 %v2717, %v2909
  %v2942 = vmul.f32 %v2718, %v2910
  %v2943 = vmul.f32 %v2719, %v2911
  %v2944 = vmul.f32 %v2720, %v2912
  %v2945 = vmul.f32 %v2721, %v2913
  %v2946 = vmul.f32 %v2722, %v2914
  %v2947 = vmul.f32 %v2723, %v2915
  %v2948 = vmul.f32 %v2724, %v2916
  %v2949 = vmul.f32 %v2725, %v2917
  %v2950 = vmul.f32 %v2726, %v2918
  %v2951 = vmul.f32 %v2727, %v2919
  %v2952 = vmul.f32 %v2728, %v2920
  %v2953 = vmul.f32 %v2729, %v2921
  %v2954 = vmul.f32 %v2730, %v2922
  %v2955 = vmul.f32 %v2731, %v2923
  %v2956 = vmul.f32 %v2732, %v2924
  %v2957 = vmul.f32 %v2733, %v2925
  %v2958 = vmul.f32 %v2734, %v2926
  %v2959 = vmul.f32 %v2735, %v2927
  %v2960 = vmul.f32 %v2736, %v2928
  %v2961 = vmul.f32 %v2737, %v2929
  %v2962 = vmul.f32 %v2738, %v2930
  %v2963 = vmul.f32 %v2739, %v2931
  %v2964 = vmul.f32 %v2740, %v2932
  %v2965 = vmul.f32 %v2741, %v2933
  %v2966 = vmul.f32 %v2742, %v2934
  %v2967 = vmul.f32 %v2743, %v2935
  %v2968 = vmul.f32 %v2744, %v2936
  %v2969 = vmul.f32 %v2745, %v2937
  %v2970 = vmul.f32 %v2746, %v2938
  %v2971 = vmul.f32 %v2747, %v2939
  %v2972 = vmul.f32 %v2748, %v2940
  %v2973 = vld [vmem:[%s5] sm:$0x1]
  %v2975 = vlaneseq
  %v2976 = vshrl.u32 %v2975, 7
  %v2977 = vsub.s32 0, %v2976
  %v2978 = vrot.slane %v2973, %v2977
  %v2980 = vmul.f32 %v2941, %v2978
  %v2981 = vmul.f32 %v2942, %v2978
  %v2982 = vmul.f32 %v2943, %v2978
  %v2983 = vmul.f32 %v2944, %v2978
  %v2984 = vmul.f32 %v2945, %v2978
  %v2985 = vmul.f32 %v2946, %v2978
  %v2986 = vmul.f32 %v2947, %v2978
  %v2987 = vmul.f32 %v2948, %v2978
  %v2988 = vmul.f32 %v2949, %v2978
  %v2989 = vmul.f32 %v2950, %v2978
  %v2990 = vmul.f32 %v2951, %v2978
  %v2991 = vmul.f32 %v2952, %v2978
  %v2992 = vmul.f32 %v2953, %v2978
  %v2993 = vmul.f32 %v2954, %v2978
  %v2994 = vmul.f32 %v2955, %v2978
  %v2995 = vmul.f32 %v2956, %v2978
  %v2996 = vmul.f32 %v2957, %v2978
  %v2997 = vmul.f32 %v2958, %v2978
  %v2998 = vmul.f32 %v2959, %v2978
  %v2999 = vmul.f32 %v2960, %v2978
  %v3000 = vmul.f32 %v2961, %v2978
  %v3001 = vmul.f32 %v2962, %v2978
  %v3002 = vmul.f32 %v2963, %v2978
  %v3003 = vmul.f32 %v2964, %v2978
  %v3004 = vmul.f32 %v2965, %v2978
  %v3005 = vmul.f32 %v2966, %v2978
  %v3006 = vmul.f32 %v2967, %v2978
  %v3007 = vmul.f32 %v2968, %v2978
  %v3008 = vmul.f32 %v2969, %v2978
  %v3009 = vmul.f32 %v2970, %v2978
  %v3010 = vmul.f32 %v2971, %v2978
  %v3011 = vmul.f32 %v2972, %v2978
  %v3012 = vld [vmem:[%s6] sm:$0x1]
  %v3014 = vlaneseq
  %v3015 = vshrl.u32 %v3014, 7
  %v3016 = vsub.s32 0, %v3015
  %v3017 = vrot.slane %v3012, %v3016
  %v3019 = vadd.f32 %v2980, %v3017
  %v3020 = vadd.f32 %v2981, %v3017
  %v3021 = vadd.f32 %v2982, %v3017
  %v3022 = vadd.f32 %v2983, %v3017
  %v3023 = vadd.f32 %v2984, %v3017
  %v3024 = vadd.f32 %v2985, %v3017
  %v3025 = vadd.f32 %v2986, %v3017
  %v3026 = vadd.f32 %v2987, %v3017
  %v3027 = vadd.f32 %v2988, %v3017
  %v3028 = vadd.f32 %v2989, %v3017
  %v3029 = vadd.f32 %v2990, %v3017
  %v3030 = vadd.f32 %v2991, %v3017
  %v3031 = vadd.f32 %v2992, %v3017
  %v3032 = vadd.f32 %v2993, %v3017
  %v3033 = vadd.f32 %v2994, %v3017
  %v3034 = vadd.f32 %v2995, %v3017
  %v3035 = vadd.f32 %v2996, %v3017
  %v3036 = vadd.f32 %v2997, %v3017
  %v3037 = vadd.f32 %v2998, %v3017
  %v3038 = vadd.f32 %v2999, %v3017
  %v3039 = vadd.f32 %v3000, %v3017
  %v3040 = vadd.f32 %v3001, %v3017
  %v3041 = vadd.f32 %v3002, %v3017
  %v3042 = vadd.f32 %v3003, %v3017
  %v3043 = vadd.f32 %v3004, %v3017
  %v3044 = vadd.f32 %v3005, %v3017
  %v3045 = vadd.f32 %v3006, %v3017
  %v3046 = vadd.f32 %v3007, %v3017
  %v3047 = vadd.f32 %v3008, %v3017
  %v3048 = vadd.f32 %v3009, %v3017
  %v3049 = vadd.f32 %v3010, %v3017
  %v3050 = vadd.f32 %v3011, %v3017
  %v3051 = vpack.c.bf16 %v3020, %v3019
  %v3052 = vpack.c.bf16 %v3022, %v3021
  %v3053 = vpack.c.bf16 %v3024, %v3023
  %v3054 = vpack.c.bf16 %v3026, %v3025
  %v3055 = vpack.c.bf16 %v3028, %v3027
  %v3056 = vpack.c.bf16 %v3030, %v3029
  %v3057 = vpack.c.bf16 %v3032, %v3031
  %v3058 = vpack.c.bf16 %v3034, %v3033
  %v3059 = vpack.c.bf16 %v3036, %v3035
  %v3060 = vpack.c.bf16 %v3038, %v3037
  %v3061 = vpack.c.bf16 %v3040, %v3039
  %v3062 = vpack.c.bf16 %v3042, %v3041
  %v3063 = vpack.c.bf16 %v3044, %v3043
  %v3064 = vpack.c.bf16 %v3046, %v3045
  %v3065 = vpack.c.bf16 %v3048, %v3047
  %v3066 = vpack.c.bf16 %v3050, %v3049
  %v3083 = vunpack.c.l.b16 %v3051
  %v3084 = vunpack.c.h.b16 %v3051
  %v3085 = vunpack.c.l.b16 %v3052
  %v3086 = vunpack.c.h.b16 %v3052
  %v3087 = vunpack.c.l.b16 %v3053
  %v3088 = vunpack.c.h.b16 %v3053
  %v3089 = vunpack.c.l.b16 %v3054
  %v3090 = vunpack.c.h.b16 %v3054
  %v3091 = vunpack.c.l.b16 %v3055
  %v3092 = vunpack.c.h.b16 %v3055
  %v3093 = vunpack.c.l.b16 %v3056
  %v3094 = vunpack.c.h.b16 %v3056
  %v3095 = vunpack.c.l.b16 %v3057
  %v3096 = vunpack.c.h.b16 %v3057
  %v3097 = vunpack.c.l.b16 %v3058
  %v3098 = vunpack.c.h.b16 %v3058
  %v3099 = vunpack.c.l.b16 %v3059
  %v3100 = vunpack.c.h.b16 %v3059
  %v3101 = vunpack.c.l.b16 %v3060
  %v3102 = vunpack.c.h.b16 %v3060
  %v3103 = vunpack.c.l.b16 %v3061
  %v3104 = vunpack.c.h.b16 %v3061
  %v3105 = vunpack.c.l.b16 %v3062
  %v3106 = vunpack.c.h.b16 %v3062
  %v3107 = vunpack.c.l.b16 %v3063
  %v3108 = vunpack.c.h.b16 %v3063
  %v3109 = vunpack.c.l.b16 %v3064
  %v3110 = vunpack.c.h.b16 %v3064
  %v3111 = vunpack.c.l.b16 %v3065
  %v3112 = vunpack.c.h.b16 %v3065
  %v3113 = vunpack.c.l.b16 %v3066
  %v3114 = vunpack.c.h.b16 %v3066
  %v3115 = vpack.c.b16 %v3083, %v3083
  %v3116 = vpack.c.b16 %v3084, %v3084
  %v3117 = vpack.c.b16 %v3085, %v3085
  %v3118 = vpack.c.b16 %v3086, %v3086
  %v3119 = vpack.c.b16 %v3087, %v3087
  %v3120 = vpack.c.b16 %v3088, %v3088
  %v3121 = vpack.c.b16 %v3089, %v3089
  %v3122 = vpack.c.b16 %v3090, %v3090
  %v3123 = vpack.c.b16 %v3091, %v3091
  %v3124 = vpack.c.b16 %v3092, %v3092
  %v3125 = vpack.c.b16 %v3093, %v3093
  %v3126 = vpack.c.b16 %v3094, %v3094
  %v3127 = vpack.c.b16 %v3095, %v3095
  %v3128 = vpack.c.b16 %v3096, %v3096
  %v3129 = vpack.c.b16 %v3097, %v3097
  %v3130 = vpack.c.b16 %v3098, %v3098
  %v3131 = vpack.c.b16 %v3099, %v3099
  %v3132 = vpack.c.b16 %v3100, %v3100
  %v3133 = vpack.c.b16 %v3101, %v3101
  %v3134 = vpack.c.b16 %v3102, %v3102
  %v3135 = vpack.c.b16 %v3103, %v3103
  %v3136 = vpack.c.b16 %v3104, %v3104
  %v3137 = vpack.c.b16 %v3105, %v3105
  %v3138 = vpack.c.b16 %v3106, %v3106
  %v3139 = vpack.c.b16 %v3107, %v3107
  %v3140 = vpack.c.b16 %v3108, %v3108
  %v3141 = vpack.c.b16 %v3109, %v3109
  %v3142 = vpack.c.b16 %v3110, %v3110
  %v3143 = vpack.c.b16 %v3111, %v3111
  %v3144 = vpack.c.b16 %v3112, %v3112
  %v3145 = vpack.c.b16 %v3113, %v3113
  %v3146 = vpack.c.b16 %v3114, %v3114
  %3179 = vst [vmem:[%s7] sm:$0xf] %v3115
  %3180 = vst [vmem:[%s7 + $0x4] sm:$0xf] %v3116
  %3181 = vst [vmem:[%s7 + $0x8] sm:$0xf] %v3117
  %3182 = vst [vmem:[%s7 + $0xc] sm:$0xf] %v3118
  %3183 = vst [vmem:[%s7 + $0x10] sm:$0xf] %v3119
  %3184 = vst [vmem:[%s7 + $0x14] sm:$0xf] %v3120
  %3185 = vst [vmem:[%s7 + $0x18] sm:$0xf] %v3121
  %3186 = vst [vmem:[%s7 + $0x1c] sm:$0xf] %v3122
  %3187 = vst [vmem:[%s7 + $0x20] sm:$0xf] %v3123
  %3188 = vst [vmem:[%s7 + $0x24] sm:$0xf] %v3124
  %3189 = vst [vmem:[%s7 + $0x28] sm:$0xf] %v3125
  %3190 = vst [vmem:[%s7 + $0x2c] sm:$0xf] %v3126
  %3191 = vst [vmem:[%s7 + $0x30] sm:$0xf] %v3127
  %3192 = vst [vmem:[%s7 + $0x34] sm:$0xf] %v3128
  %3193 = vst [vmem:[%s7 + $0x38] sm:$0xf] %v3129
  %3194 = vst [vmem:[%s7 + $0x3c] sm:$0xf] %v3130
  %3195 = vst [vmem:[%s7 + $0x40] sm:$0xf] %v3131
  %3196 = vst [vmem:[%s7 + $0x44] sm:$0xf] %v3132
  %3197 = vst [vmem:[%s7 + $0x48] sm:$0xf] %v3133
  %3198 = vst [vmem:[%s7 + $0x4c] sm:$0xf] %v3134
  %3199 = vst [vmem:[%s7 + $0x50] sm:$0xf] %v3135
  %3200 = vst [vmem:[%s7 + $0x54] sm:$0xf] %v3136
  %3201 = vst [vmem:[%s7 + $0x58] sm:$0xf] %v3137
  %3202 = vst [vmem:[%s7 + $0x5c] sm:$0xf] %v3138
  %3203 = vst [vmem:[%s7 + $0x60] sm:$0xf] %v3139
  %3204 = vst [vmem:[%s7 + $0x64] sm:$0xf] %v3140
  %3205 = vst [vmem:[%s7 + $0x68] sm:$0xf] %v3141
  %3206 = vst [vmem:[%s7 + $0x6c] sm:$0xf] %v3142
  %3207 = vst [vmem:[%s7 + $0x70] sm:$0xf] %v3143
  %3208 = vst [vmem:[%s7 + $0x74] sm:$0xf] %v3144
  %3209 = vst [vmem:[%s7 + $0x78] sm:$0xf] %v3145
  %3210 = vst [vmem:[%s7 + $0x7c] sm:$0xf] %v3146
  // Predicated region
  $region30: #{language_encoder_forward.8} parent=0 // pred_check
    _
  $region31: #{language_encoder_forward.8} parent=0 // pred_check_branch
    %3212 = sbr.rel (0) target = $region33
  $region32: #{language_encoder_forward.8} parent=0 // pred_region
    _
  $region33: #{language_encoder_forward.8} parent=0 // pred_fallthru
    _
  // Predicated region
  $region34: #{language_encoder_forward.8} parent=0 // pred_check
    _
  $region35: #{language_encoder_forward.8} parent=0 // pred_check_branch
    %3214 = sbr.rel (0) target = $region37
  $region36: #{language_encoder_forward.8} parent=0 // pred_region
    _
  $region37: #{language_encoder_forward.8} parent=0 // pred_fallthru
    _

</llo_original>
